<compile_context>
chip_gen: v5e
topology: v5e:2x2
jax: 0.10.0
libtpu: 0.0.40
codegen_flags: <defaults>
</compile_context>

<pallas_src>
import functools

import jax
import jax.numpy as jnp
from jax.experimental import pallas as pl
from jax.experimental.pallas import tpu as pltpu

P = 3.0
EPS = 1e-6
LANE = 128


def gem_linear_kernel(x_ref, w_ref, b_ref, o_ref):
    # x_ref: (B, C, H*W) f32, resident (constant index_map -> DMA'd once)
    # w_ref: (C, TN)   bf16, streamed per grid step
    # b_ref: (1, TN)   f32
    # o_ref: (B, TN)   f32
    x = jnp.maximum(x_ref[...], EPS)             # clamp(min=eps)              (VPU)
    xp = x * x * x                               # .pow(3)                     (VPU)
    feat = jnp.mean(xp, axis=-1)                 # avg_pool2d over HxW -> (B,C) (XLU)
    feat = jnp.exp(jnp.log(feat) * (1.0 / P))    # .pow(1/3); feat >= EPS^3 > 0 (EUP)
    # classifier tile: feat @ W[:, j*TN:(j+1)*TN] + b   (bf16 MXU, f32 accumulation)
    o_ref[...] = (
        jnp.dot(feat.astype(jnp.bfloat16), w_ref[...],
                preferred_element_type=jnp.float32)
        + b_ref[...]
    )


def prepare_classifier_params(weight, bias):
    """One-time (model-load) prep: transpose to [C, N], pad N to a multiple of 128,
    store the weight in bf16.  Keeps the transpose / cast out of the hot path."""
    n, c = weight.shape
    n_pad = ((n + LANE - 1) // LANE) * LANE
    w_cn = jnp.zeros((c, n_pad), jnp.bfloat16).at[:, :n].set(
        weight.T.astype(jnp.bfloat16))
    b_2d = jnp.zeros((1, n_pad), jnp.float32).at[:, :n].set(
        bias.astype(jnp.float32))
    return w_cn, b_2d


def num_tensorcores():
    """One grid step per TensorCore: 1 on single-TC chips (v5e/v6e), 2 on v7x."""
    try:
        kind = jax.devices()[0].device_kind.lower()
        if "v7" in kind:
            return 2
    except Exception:
        pass
    return 1


@functools.partial(jax.jit, static_argnames=("num_classes", "num_steps"))
def custom_model_forward(x_nchw, w_cn, b_2d, num_classes, num_steps=1):
    """x_nchw: [B, C, H, W] backbone features (f32);
    w_cn: [C, N_pad] bf16 (pre-transposed/padded); b_2d: [1, N_pad] f32."""
    B, C, H, W = x_nchw.shape
    n_pad = w_cn.shape[1]
    if n_pad % num_steps != 0 or (n_pad // num_steps) % LANE != 0:
        num_steps = 1
    tn = n_pad // num_steps

    # Free view, no transpose, no extra HBM round-trip: [B, C, H*W].
    x_flat = x_nchw.reshape(B, C, H * W)

    out_pad = pl.pallas_call(
        gem_linear_kernel,
        out_shape=jax.ShapeDtypeStruct((B, n_pad), jnp.float32),
        grid=(num_steps,),
        in_specs=[
            # x resident across the (<=2-step) N grid: same block every step.
            pl.BlockSpec((B, C, H * W), lambda j: (0, 0, 0)),
            # weight / bias / output tiled over N (only for v7x TC-sharding).
            pl.BlockSpec((C, tn), lambda j: (0, j)),
            pl.BlockSpec((1, tn), lambda j: (0, j)),
        ],
        out_specs=pl.BlockSpec((B, tn), lambda j: (0, j)),
        compiler_params=pltpu.CompilerParams(
            # Shards the N steps across both TensorCores on v7x; no-op for grid=1.
            dimension_semantics=("parallel",),
        ),
    )(x_flat, w_cn, b_2d)

    return out_pad[:, :num_classes]


def reference_forward_f32(x_nchw, weight, bias):
    """Faithful f32 reference of gem(...) + Linear (PyTorch semantics)."""
    xc = jnp.maximum(x_nchw.astype(jnp.float32), EPS)
    feat = jnp.mean(xc ** P, axis=(2, 3)) ** (1.0 / P)        # GeM -> [B, C]
    return jnp.dot(feat, weight.T, precision=jax.lax.Precision.HIGHEST) + bias


def reference_forward_quantized(x_nchw, weight, bias):
    """Same math with the kernel's inference-time bf16 quantization of the MXU
    operands (weight + pooled feature), exact f32 products/accumulation."""
    xc = jnp.maximum(x_nchw.astype(jnp.float32), EPS)
    xp = xc * xc * xc
    feat = jnp.exp(jnp.log(jnp.mean(xp, axis=(2, 3))) * (1.0 / P))
    feat_q = feat.astype(jnp.bfloat16).astype(jnp.float32)
    w_q = weight.astype(jnp.bfloat16).astype(jnp.float32)
    return jnp.dot(feat_q, w_q.T, precision=jax.lax.Precision.HIGHEST) + bias


if __name__ == "__main__":
    # Small shapes consistent with the module: feat_dim['eca_nfnet_l2'] = 1536.
    B, C, H, W = 2, 1536, 8, 8
    NUM_CLASSES = 1000

    key = jax.random.PRNGKey(0)
    kx, kw, kb = jax.random.split(key, 3)

    # Synthetic backbone feature map (post-trunk activations are non-negative-ish;
    # abs mimics that, the in-kernel clamp handles the rest).
    x = jnp.abs(jax.random.normal(kx, (B, C, H, W), dtype=jnp.float32))

    # Deterministic Linear(1536, num_classes) parameters (nn.Linear-style init).
    bound = 1.0 / (C ** 0.5)
    weight = jax.random.uniform(kw, (NUM_CLASSES, C), jnp.float32, -bound, bound)
    bias = jax.random.uniform(kb, (NUM_CLASSES,), jnp.float32, -bound, bound)

    # One-time parameter prep (hoisted out of the hot path).
    w_cn, b_2d = prepare_classifier_params(weight, bias)
    steps = num_tensorcores()

    out = jax.block_until_ready(
        custom_model_forward(x, w_cn, b_2d, num_classes=NUM_CLASSES,
                             num_steps=steps))
    ref_q = jax.block_until_ready(reference_forward_quantized(x, weight, bias))
    ref_f32 = jax.block_until_ready(reference_forward_f32(x, weight, bias))

    assert out.shape == (B, NUM_CLASSES), out.shape
    # Tight check vs. the bf16-quantized reference (same numerics as the kernel).
    assert jnp.allclose(out, ref_q, rtol=2e-3, atol=2e-3), \
        float(jnp.max(jnp.abs(out - ref_q)))
    # Loose sanity check vs. the pure-f32 module semantics (bf16 weight storage
    # introduces ~0.4% relative error on the classifier output).
    assert jnp.allclose(out, ref_f32, rtol=5e-2, atol=5e-2), \
        float(jnp.max(jnp.abs(out - ref_f32)))
    print("KERNEL_OK")
</pallas_src>

<mosaic_0001>
module attributes {stable_mosaic.version = 11 : i64} {
  func.func @gem_linear_kernel(%arg0: i32, %arg1: memref<2x1536x64xf32, #tpu.memory_space<vmem>>, %arg2: memref<1536x1024xbf16, #tpu.memory_space<vmem>>, %arg3: memref<1x1024xf32, #tpu.memory_space<vmem>>, %arg4: memref<2x1024xf32, #tpu.memory_space<vmem>>) attributes {dimension_semantics = [#tpu.dimension_semantics<parallel>], iteration_bounds = array<i64: 1>, scalar_prefetch = 0 : i64, scratch_operands = 0 : i64, tpu.core_type = #tpu.core_type<tc>, window_params = [{pipeline_mode = #tpu.pipeline_mode<synchronous>, transform_indices = @transform_0, window_bounds = array<i64: 2, 1536, 64>}, {transform_indices = @transform_1, window_bounds = array<i64: 1536, 1024>}, {transform_indices = @transform_2, window_bounds = array<i64: 1, 1024>}, {transform_indices = @transform_3, window_bounds = array<i64: 2, 1024>}]} {
    %c0 = arith.constant 0 : index
    %c0_0 = arith.constant 0 : index
    %c0_1 = arith.constant 0 : index
    %0 = vector.load %arg1[%c0, %c0_0, %c0_1] : memref<2x1536x64xf32, #tpu.memory_space<vmem>>, vector<2x1536x64xf32>
    %cst = arith.constant 9.99999997E-7 : f32
    %1 = vector.broadcast %cst : f32 to vector<2x1536x64xf32>
    %2 = arith.maximumf %0, %1 : vector<2x1536x64xf32>
    %3 = arith.mulf %2, %2 : vector<2x1536x64xf32>
    %4 = arith.mulf %3, %2 : vector<2x1536x64xf32>
    %cst_2 = arith.constant dense<0.000000e+00> : vector<2x1536xf32>
    %5 = vector.multi_reduction <add>, %4, %cst_2 [2] : vector<2x1536x64xf32> to vector<2x1536xf32>
    %cst_3 = arith.constant 6.400000e+01 : f32
    %6 = vector.broadcast %cst_3 : f32 to vector<2x1536xf32>
    %7 = arith.divf %5, %6 : vector<2x1536xf32>
    %8 = math.log %7 : vector<2x1536xf32>
    %cst_4 = arith.constant 0.333333343 : f32
    %9 = vector.broadcast %cst_4 : f32 to vector<2x1536xf32>
    %10 = arith.mulf %8, %9 : vector<2x1536xf32>
    %11 = math.exp %10 : vector<2x1536xf32>
    %12 = arith.truncf %11 : vector<2x1536xf32> to vector<2x1536xbf16>
    %c0_5 = arith.constant 0 : index
    %c0_6 = arith.constant 0 : index
    %13 = vector.load %arg2[%c0_5, %c0_6] : memref<1536x1024xbf16, #tpu.memory_space<vmem>>, vector<1536x1024xbf16>
    %cst_7 = arith.constant dense<0.000000e+00> : vector<2x1024xf32>
    %14 = tpu.matmul %12, %13, %cst_7 {dimension_numbers = #tpu.dot_dimension_numbers<[1], [0], [0], [1], [0, 0, 1, 1], [], []>} : vector<2x1536xbf16>, vector<1536x1024xbf16>, vector<2x1024xf32> -> vector<2x1024xf32>
    %c0_8 = arith.constant 0 : index
    %c0_9 = arith.constant 0 : index
    %15 = vector.load %arg3[%c0_8, %c0_9] : memref<1x1024xf32, #tpu.memory_space<vmem>>, vector<1x1024xf32>
    %16 = vector.broadcast %15 : vector<1x1024xf32> to vector<2x1024xf32>
    %17 = arith.addf %14, %16 : vector<2x1024xf32>
    %c0_10 = arith.constant 0 : index
    %c0_11 = arith.constant 0 : index
    %18 = vector.load %arg4[%c0_10, %c0_11] : memref<2x1024xf32, #tpu.memory_space<vmem>>, vector<2x1024xf32>
    tpu.vector_store %arg4[%c0_10, %c0_11], %17 {strides = array<i32>} : memref<2x1024xf32, #tpu.memory_space<vmem>>, vector<2x1024xf32>,
    return
  }
  func.func @transform_0(%arg0: i32) -> (i32, i32, i32) {
    %c0_i32 = arith.constant 0 : i32
    %c0_i32_0 = arith.constant 0 : i32
    %c0_i32_1 = arith.constant 0 : i32
    %c0_i32_2 = arith.constant 0 : i32
    return %c0_i32, %c0_i32_0, %c0_i32_1 : i32, i32, i32
  }
  func.func @transform_1(%arg0: i32) -> (i32, i32) {
    %c0_i32 = arith.constant 0 : i32
    %c0_i32_0 = arith.constant 0 : i32
    return %c0_i32, %arg0 : i32, i32
  }
  func.func @transform_2(%arg0: i32) -> (i32, i32) {
    %c0_i32 = arith.constant 0 : i32
    %c0_i32_0 = arith.constant 0 : i32
    return %c0_i32, %arg0 : i32, i32
  }
  func.func @transform_3(%arg0: i32) -> (i32, i32) {
    %c0_i32 = arith.constant 0 : i32
    %c0_i32_0 = arith.constant 0 : i32
    return %c0_i32, %arg0 : i32, i32
  }
}

</mosaic_0001>

<llo_original>
// kernel: custom_model_forward.1
$region0: #{custom_model_forward.1}
  #allocation0 [shape = 'u32[]', space=smem, size = 0x4, offset = 0x4, fixed_abs, tag = 'smem constant byte address 0x4 - core index']
  #allocation1 [shape = 'u32[72,128]{1,0:T(1,128)}', space=vmem, size = 0x9000, scoped, tag = 'internal scratch']
  %s0 = inlined_call_operand.vmem [shape: f32[2,1536,64], index: 0, kind: input, shape index: {}]
  %s1 = inlined_call_operand.hbm [shape: bf16[1536,1024], index: 1, kind: input, shape index: {}]
  %s2 = inlined_call_operand.hbm [shape: f32[1,1024], index: 2, kind: input, shape index: {}]
  %s3 = inlined_call_operand.hbm [shape: f32[2,1024], index: 3, kind: output, shape index: {}]
  %s4 = sld [smem:[#allocation0]]
  $region30: #{custom_model_forward.1} parent=0
    _
  %s6 = ssub.s32 1, %s4
  %s7 = scalar_select 0, %s6, %s4
  $region1: #{custom_model_forward.1} parent=0
    #allocation2 [shape = 'u8[3145728]{0}', space=vmem, size = 0x300000, scoped, tag = 'input window, operand 1, single buffered']
    #allocation3 [shape = 's32[1]{0}', space=sflag, size = 0x4, scoped, tag = 'scoped memory for custom_model_forward.1']
    #allocation4 [shape = 's32[1]{0}', space=sflag, size = 0x4, scoped, tag = 'scoped memory for custom_model_forward.1']
    #allocation5 [shape = 'u8[4096]{0}', space=vmem, size = 0x1000, scoped, tag = 'input window, operand 2, single buffered']
    #allocation6 [shape = 's32[1]{0}', space=sflag, size = 0x4, scoped, tag = 'scoped memory for custom_model_forward.1']
    #allocation7 [shape = 'u8[8192]{0}', space=vmem, size = 0x2000, scoped, tag = 'output window, operand 0, single buffered']
    %8 = vsyncpa [#allocation3], 0
    %9 = vsyncpa [#allocation6], 0
    %10 = vsyncpa [#allocation4], 0
    // Predicated region
    $region2: #{custom_model_forward.1} parent=1 // pred_check
      _
    $region3: #{custom_model_forward.1} parent=1 // pred_check_branch
      %12 = sbr.rel (0) target = $region5
    $region4: #{custom_model_forward.1} parent=1 // pred_region
      _
    $region5: #{custom_model_forward.1} parent=1 // pred_fallthru
      _
    // Predicated region
    $region6: #{custom_model_forward.1} parent=1 // pred_check
      _
    $region7: #{custom_model_forward.1} parent=1 // pred_check_branch
      %14 = sbr.rel (0) target = $region9
    $region8: #{custom_model_forward.1} parent=1 // pred_region
      %16 = vsyncadd [#allocation3], 0
      %s17 = sshll.u32 %s1, 4
      %s18 = int_to_ptr.hbm [resolvable:$true] %s17
      %s19 = sshll.u32 [#allocation2], 4
      %s20 = int_to_ptr.vmem [resolvable:$true] %s19
      %25 = dma.hbm_to_vmem [thread:$0]  %s18, 98304, %s20, [#allocation3], 512, 512, 32
    $region9: #{custom_model_forward.1} parent=1 // pred_fallthru
      _
    // Predicated region
    $region10: #{custom_model_forward.1} parent=1 // pred_check
      _
    $region11: #{custom_model_forward.1} parent=1 // pred_check_branch
      %27 = sbr.rel (0) target = $region13
    $region12: #{custom_model_forward.1} parent=1 // pred_region
      %29 = vsyncadd [#allocation6], 0
      %s31 = sshll.u32 %s2, 4
      %s32 = int_to_ptr.hbm [resolvable:$true] %s31
      %s33 = sshll.u32 [#allocation5], 4
      %s34 = int_to_ptr.vmem [resolvable:$true] %s33
      %36 = dma.hbm_to_vmem [thread:$0]  %s32, 128, %s34, [#allocation6]
    $region13: #{custom_model_forward.1} parent=1 // pred_fallthru
      _
    // Predicated region
    $region14: #{custom_model_forward.1} parent=1 // pred_check
      _
    $region15: #{custom_model_forward.1} parent=1 // pred_check_branch
      %38 = sbr.rel (0) target = $region17
    $region16: #{custom_model_forward.1} parent=1 // pred_region
      %40 = dma.done [#allocation3], 98304
    $region17: #{custom_model_forward.1} parent=1 // pred_fallthru
      _
    // Predicated region
    $region18: #{custom_model_forward.1} parent=1 // pred_check
      _
    $region19: #{custom_model_forward.1} parent=1 // pred_check_branch
      %42 = sbr.rel (0) target = $region21
    $region20: #{custom_model_forward.1} parent=1 // pred_region
      %44 = dma.done [#allocation6], 128
    $region21: #{custom_model_forward.1} parent=1 // pred_fallthru
      _
    %v45 = vld [vmem:[%s0] sm:$0xff]
    %v46 = vld [vmem:[%s0 + $0x8] sm:$0xff]
    %v47 = vld [vmem:[%s0 + $0x10] sm:$0xff]
    %v48 = vld [vmem:[%s0 + $0x18] sm:$0xff]
    %v49 = vld [vmem:[%s0 + $0x20] sm:$0xff]
    %v50 = vld [vmem:[%s0 + $0x28] sm:$0xff]
    %v51 = vld [vmem:[%s0 + $0x30] sm:$0xff]
    %v52 = vld [vmem:[%s0 + $0x38] sm:$0xff]
    %v53 = vld [vmem:[%s0 + $0x40] sm:$0xff]
    %v54 = vld [vmem:[%s0 + $0x48] sm:$0xff]
    %v55 = vld [vmem:[%s0 + $0x50] sm:$0xff]
    %v56 = vld [vmem:[%s0 + $0x58] sm:$0xff]
    %v57 = vld [vmem:[%s0 + $0x60] sm:$0xff]
    %v58 = vld [vmem:[%s0 + $0x68] sm:$0xff]
    %v59 = vld [vmem:[%s0 + $0x70] sm:$0xff]
    %v60 = vld [vmem:[%s0 + $0x78] sm:$0xff]
    %v61 = vld [vmem:[%s0 + $0x80] sm:$0xff]
    %v62 = vld [vmem:[%s0 + $0x88] sm:$0xff]
    %v63 = vld [vmem:[%s0 + $0x90] sm:$0xff]
    %v64 = vld [vmem:[%s0 + $0x98] sm:$0xff]
    %v65 = vld [vmem:[%s0 + $0xa0] sm:$0xff]
    %v66 = vld [vmem:[%s0 + $0xa8] sm:$0xff]
    %v67 = vld [vmem:[%s0 + $0xb0] sm:$0xff]
    %v68 = vld [vmem:[%s0 + $0xb8] sm:$0xff]
    %v69 = vld [vmem:[%s0 + $0xc0] sm:$0xff]
    %v70 = vld [vmem:[%s0 + $0xc8] sm:$0xff]
    %v71 = vld [vmem:[%s0 + $0xd0] sm:$0xff]
    %v72 = vld [vmem:[%s0 + $0xd8] sm:$0xff]
    %v73 = vld [vmem:[%s0 + $0xe0] sm:$0xff]
    %v74 = vld [vmem:[%s0 + $0xe8] sm:$0xff]
    %v75 = vld [vmem:[%s0 + $0xf0] sm:$0xff]
    %v76 = vld [vmem:[%s0 + $0xf8] sm:$0xff]
    %v77 = vld [vmem:[%s0 + $0x100] sm:$0xff]
    %v78 = vld [vmem:[%s0 + $0x108] sm:$0xff]
    %v79 = vld [vmem:[%s0 + $0x110] sm:$0xff]
    %v80 = vld [vmem:[%s0 + $0x118] sm:$0xff]
    %v81 = vld [vmem:[%s0 + $0x120] sm:$0xff]
    %v82 = vld [vmem:[%s0 + $0x128] sm:$0xff]
    %v83 = vld [vmem:[%s0 + $0x130] sm:$0xff]
    %v84 = vld [vmem:[%s0 + $0x138] sm:$0xff]
    %v85 = vld [vmem:[%s0 + $0x140] sm:$0xff]
    %v86 = vld [vmem:[%s0 + $0x148] sm:$0xff]
    %v87 = vld [vmem:[%s0 + $0x150] sm:$0xff]
    %v88 = vld [vmem:[%s0 + $0x158] sm:$0xff]
    %v89 = vld [vmem:[%s0 + $0x160] sm:$0xff]
    %v90 = vld [vmem:[%s0 + $0x168] sm:$0xff]
    %v91 = vld [vmem:[%s0 + $0x170] sm:$0xff]
    %v92 = vld [vmem:[%s0 + $0x178] sm:$0xff]
    %v93 = vld [vmem:[%s0 + $0x180] sm:$0xff]
    %v94 = vld [vmem:[%s0 + $0x188] sm:$0xff]
    %v95 = vld [vmem:[%s0 + $0x190] sm:$0xff]
    %v96 = vld [vmem:[%s0 + $0x198] sm:$0xff]
    %v97 = vld [vmem:[%s0 + $0x1a0] sm:$0xff]
    %v98 = vld [vmem:[%s0 + $0x1a8] sm:$0xff]
    %v99 = vld [vmem:[%s0 + $0x1b0] sm:$0xff]
    %v100 = vld [vmem:[%s0 + $0x1b8] sm:$0xff]
    %v101 = vld [vmem:[%s0 + $0x1c0] sm:$0xff]
    %v102 = vld [vmem:[%s0 + $0x1c8] sm:$0xff]
    %v103 = vld [vmem:[%s0 + $0x1d0] sm:$0xff]
    %v104 = vld [vmem:[%s0 + $0x1d8] sm:$0xff]
    %v105 = vld [vmem:[%s0 + $0x1e0] sm:$0xff]
    %v106 = vld [vmem:[%s0 + $0x1e8] sm:$0xff]
    %v107 = vld [vmem:[%s0 + $0x1f0] sm:$0xff]
    %v108 = vld [vmem:[%s0 + $0x1f8] sm:$0xff]
    %v109 = vld [vmem:[%s0 + $0x200] sm:$0xff]
    %v110 = vld [vmem:[%s0 + $0x208] sm:$0xff]
    %v111 = vld [vmem:[%s0 + $0x210] sm:$0xff]
    %v112 = vld [vmem:[%s0 + $0x218] sm:$0xff]
    %v113 = vld [vmem:[%s0 + $0x220] sm:$0xff]
    %v114 = vld [vmem:[%s0 + $0x228] sm:$0xff]
    %v115 = vld [vmem:[%s0 + $0x230] sm:$0xff]
    %v116 = vld [vmem:[%s0 + $0x238] sm:$0xff]
    %v117 = vld [vmem:[%s0 + $0x240] sm:$0xff]
    %v118 = vld [vmem:[%s0 + $0x248] sm:$0xff]
    %v119 = vld [vmem:[%s0 + $0x250] sm:$0xff]
    %v120 = vld [vmem:[%s0 + $0x258] sm:$0xff]
    %v121 = vld [vmem:[%s0 + $0x260] sm:$0xff]
    %v122 = vld [vmem:[%s0 + $0x268] sm:$0xff]
    %v123 = vld [vmem:[%s0 + $0x270] sm:$0xff]
    %v124 = vld [vmem:[%s0 + $0x278] sm:$0xff]
    %v125 = vld [vmem:[%s0 + $0x280] sm:$0xff]
    %v126 = vld [vmem:[%s0 + $0x288] sm:$0xff]
    %v127 = vld [vmem:[%s0 + $0x290] sm:$0xff]
    %v128 = vld [vmem:[%s0 + $0x298] sm:$0xff]
    %v129 = vld [vmem:[%s0 + $0x2a0] sm:$0xff]
    %v130 = vld [vmem:[%s0 + $0x2a8] sm:$0xff]
    %v131 = vld [vmem:[%s0 + $0x2b0] sm:$0xff]
    %v132 = vld [vmem:[%s0 + $0x2b8] sm:$0xff]
    %v133 = vld [vmem:[%s0 + $0x2c0] sm:$0xff]
    %v134 = vld [vmem:[%s0 + $0x2c8] sm:$0xff]
    %v135 = vld [vmem:[%s0 + $0x2d0] sm:$0xff]
    %v136 = vld [vmem:[%s0 + $0x2d8] sm:$0xff]
    %v137 = vld [vmem:[%s0 + $0x2e0] sm:$0xff]
    %v138 = vld [vmem:[%s0 + $0x2e8] sm:$0xff]
    %v139 = vld [vmem:[%s0 + $0x2f0] sm:$0xff]
    %v140 = vld [vmem:[%s0 + $0x2f8] sm:$0xff]
    %v141 = vld [vmem:[%s0 + $0x300] sm:$0xff]
    %v142 = vld [vmem:[%s0 + $0x308] sm:$0xff]
    %v143 = vld [vmem:[%s0 + $0x310] sm:$0xff]
    %v144 = vld [vmem:[%s0 + $0x318] sm:$0xff]
    %v145 = vld [vmem:[%s0 + $0x320] sm:$0xff]
    %v146 = vld [vmem:[%s0 + $0x328] sm:$0xff]
    %v147 = vld [vmem:[%s0 + $0x330] sm:$0xff]
    %v148 = vld [vmem:[%s0 + $0x338] sm:$0xff]
    %v149 = vld [vmem:[%s0 + $0x340] sm:$0xff]
    %v150 = vld [vmem:[%s0 + $0x348] sm:$0xff]
    %v151 = vld [vmem:[%s0 + $0x350] sm:$0xff]
    %v152 = vld [vmem:[%s0 + $0x358] sm:$0xff]
    %v153 = vld [vmem:[%s0 + $0x360] sm:$0xff]
    %v154 = vld [vmem:[%s0 + $0x368] sm:$0xff]
    %v155 = vld [vmem:[%s0 + $0x370] sm:$0xff]
    %v156 = vld [vmem:[%s0 + $0x378] sm:$0xff]
    %v157 = vld [vmem:[%s0 + $0x380] sm:$0xff]
    %v158 = vld [vmem:[%s0 + $0x388] sm:$0xff]
    %v159 = vld [vmem:[%s0 + $0x390] sm:$0xff]
    %v160 = vld [vmem:[%s0 + $0x398] sm:$0xff]
    %v161 = vld [vmem:[%s0 + $0x3a0] sm:$0xff]
    %v162 = vld [vmem:[%s0 + $0x3a8] sm:$0xff]
    %v163 = vld [vmem:[%s0 + $0x3b0] sm:$0xff]
    %v164 = vld [vmem:[%s0 + $0x3b8] sm:$0xff]
    %v165 = vld [vmem:[%s0 + $0x3c0] sm:$0xff]
    %v166 = vld [vmem:[%s0 + $0x3c8] sm:$0xff]
    %v167 = vld [vmem:[%s0 + $0x3d0] sm:$0xff]
    %v168 = vld [vmem:[%s0 + $0x3d8] sm:$0xff]
    %v169 = vld [vmem:[%s0 + $0x3e0] sm:$0xff]
    %v170 = vld [vmem:[%s0 + $0x3e8] sm:$0xff]
    %v171 = vld [vmem:[%s0 + $0x3f0] sm:$0xff]
    %v172 = vld [vmem:[%s0 + $0x3f8] sm:$0xff]
    %v173 = vld [vmem:[%s0 + $0x400] sm:$0xff]
    %v174 = vld [vmem:[%s0 + $0x408] sm:$0xff]
    %v175 = vld [vmem:[%s0 + $0x410] sm:$0xff]
    %v176 = vld [vmem:[%s0 + $0x418] sm:$0xff]
    %v177 = vld [vmem:[%s0 + $0x420] sm:$0xff]
    %v178 = vld [vmem:[%s0 + $0x428] sm:$0xff]
    %v179 = vld [vmem:[%s0 + $0x430] sm:$0xff]
    %v180 = vld [vmem:[%s0 + $0x438] sm:$0xff]
    %v181 = vld [vmem:[%s0 + $0x440] sm:$0xff]
    %v182 = vld [vmem:[%s0 + $0x448] sm:$0xff]
    %v183 = vld [vmem:[%s0 + $0x450] sm:$0xff]
    %v184 = vld [vmem:[%s0 + $0x458] sm:$0xff]
    %v185 = vld [vmem:[%s0 + $0x460] sm:$0xff]
    %v186 = vld [vmem:[%s0 + $0x468] sm:$0xff]
    %v187 = vld [vmem:[%s0 + $0x470] sm:$0xff]
    %v188 = vld [vmem:[%s0 + $0x478] sm:$0xff]
    %v189 = vld [vmem:[%s0 + $0x480] sm:$0xff]
    %v190 = vld [vmem:[%s0 + $0x488] sm:$0xff]
    %v191 = vld [vmem:[%s0 + $0x490] sm:$0xff]
    %v192 = vld [vmem:[%s0 + $0x498] sm:$0xff]
    %v193 = vld [vmem:[%s0 + $0x4a0] sm:$0xff]
    %v194 = vld [vmem:[%s0 + $0x4a8] sm:$0xff]
    %v195 = vld [vmem:[%s0 + $0x4b0] sm:$0xff]
    %v196 = vld [vmem:[%s0 + $0x4b8] sm:$0xff]
    %v197 = vld [vmem:[%s0 + $0x4c0] sm:$0xff]
    %v198 = vld [vmem:[%s0 + $0x4c8] sm:$0xff]
    %v199 = vld [vmem:[%s0 + $0x4d0] sm:$0xff]
    %v200 = vld [vmem:[%s0 + $0x4d8] sm:$0xff]
    %v201 = vld [vmem:[%s0 + $0x4e0] sm:$0xff]
    %v202 = vld [vmem:[%s0 + $0x4e8] sm:$0xff]
    %v203 = vld [vmem:[%s0 + $0x4f0] sm:$0xff]
    %v204 = vld [vmem:[%s0 + $0x4f8] sm:$0xff]
    %v205 = vld [vmem:[%s0 + $0x500] sm:$0xff]
    %v206 = vld [vmem:[%s0 + $0x508] sm:$0xff]
    %v207 = vld [vmem:[%s0 + $0x510] sm:$0xff]
    %v208 = vld [vmem:[%s0 + $0x518] sm:$0xff]
    %v209 = vld [vmem:[%s0 + $0x520] sm:$0xff]
    %v210 = vld [vmem:[%s0 + $0x528] sm:$0xff]
    %v211 = vld [vmem:[%s0 + $0x530] sm:$0xff]
    %v212 = vld [vmem:[%s0 + $0x538] sm:$0xff]
    %v213 = vld [vmem:[%s0 + $0x540] sm:$0xff]
    %v214 = vld [vmem:[%s0 + $0x548] sm:$0xff]
    %v215 = vld [vmem:[%s0 + $0x550] sm:$0xff]
    %v216 = vld [vmem:[%s0 + $0x558] sm:$0xff]
    %v217 = vld [vmem:[%s0 + $0x560] sm:$0xff]
    %v218 = vld [vmem:[%s0 + $0x568] sm:$0xff]
    %v219 = vld [vmem:[%s0 + $0x570] sm:$0xff]
    %v220 = vld [vmem:[%s0 + $0x578] sm:$0xff]
    %v221 = vld [vmem:[%s0 + $0x580] sm:$0xff]
    %v222 = vld [vmem:[%s0 + $0x588] sm:$0xff]
    %v223 = vld [vmem:[%s0 + $0x590] sm:$0xff]
    %v224 = vld [vmem:[%s0 + $0x598] sm:$0xff]
    %v225 = vld [vmem:[%s0 + $0x5a0] sm:$0xff]
    %v226 = vld [vmem:[%s0 + $0x5a8] sm:$0xff]
    %v227 = vld [vmem:[%s0 + $0x5b0] sm:$0xff]
    %v228 = vld [vmem:[%s0 + $0x5b8] sm:$0xff]
    %v229 = vld [vmem:[%s0 + $0x5c0] sm:$0xff]
    %v230 = vld [vmem:[%s0 + $0x5c8] sm:$0xff]
    %v231 = vld [vmem:[%s0 + $0x5d0] sm:$0xff]
    %v232 = vld [vmem:[%s0 + $0x5d8] sm:$0xff]
    %v233 = vld [vmem:[%s0 + $0x5e0] sm:$0xff]
    %v234 = vld [vmem:[%s0 + $0x5e8] sm:$0xff]
    %v235 = vld [vmem:[%s0 + $0x5f0] sm:$0xff]
    %v236 = vld [vmem:[%s0 + $0x5f8] sm:$0xff]
    %v237 = vld [vmem:[%s0 + $0x600] sm:$0xff]
    %v238 = vld [vmem:[%s0 + $0x608] sm:$0xff]
    %v239 = vld [vmem:[%s0 + $0x610] sm:$0xff]
    %v240 = vld [vmem:[%s0 + $0x618] sm:$0xff]
    %v241 = vld [vmem:[%s0 + $0x620] sm:$0xff]
    %v242 = vld [vmem:[%s0 + $0x628] sm:$0xff]
    %v243 = vld [vmem:[%s0 + $0x630] sm:$0xff]
    %v244 = vld [vmem:[%s0 + $0x638] sm:$0xff]
    %v245 = vld [vmem:[%s0 + $0x640] sm:$0xff]
    %v246 = vld [vmem:[%s0 + $0x648] sm:$0xff]
    %v247 = vld [vmem:[%s0 + $0x650] sm:$0xff]
    %v248 = vld [vmem:[%s0 + $0x658] sm:$0xff]
    %v249 = vld [vmem:[%s0 + $0x660] sm:$0xff]
    %v250 = vld [vmem:[%s0 + $0x668] sm:$0xff]
    %v251 = vld [vmem:[%s0 + $0x670] sm:$0xff]
    %v252 = vld [vmem:[%s0 + $0x678] sm:$0xff]
    %v253 = vld [vmem:[%s0 + $0x680] sm:$0xff]
    %v254 = vld [vmem:[%s0 + $0x688] sm:$0xff]
    %v255 = vld [vmem:[%s0 + $0x690] sm:$0xff]
    %v256 = vld [vmem:[%s0 + $0x698] sm:$0xff]
    %v257 = vld [vmem:[%s0 + $0x6a0] sm:$0xff]
    %v258 = vld [vmem:[%s0 + $0x6a8] sm:$0xff]
    %v259 = vld [vmem:[%s0 + $0x6b0] sm:$0xff]
    %v260 = vld [vmem:[%s0 + $0x6b8] sm:$0xff]
    %v261 = vld [vmem:[%s0 + $0x6c0] sm:$0xff]
    %v262 = vld [vmem:[%s0 + $0x6c8] sm:$0xff]
    %v263 = vld [vmem:[%s0 + $0x6d0] sm:$0xff]
    %v264 = vld [vmem:[%s0 + $0x6d8] sm:$0xff]
    %v265 = vld [vmem:[%s0 + $0x6e0] sm:$0xff]
    %v266 = vld [vmem:[%s0 + $0x6e8] sm:$0xff]
    %v267 = vld [vmem:[%s0 + $0x6f0] sm:$0xff]
    %v268 = vld [vmem:[%s0 + $0x6f8] sm:$0xff]
    %v269 = vld [vmem:[%s0 + $0x700] sm:$0xff]
    %v270 = vld [vmem:[%s0 + $0x708] sm:$0xff]
    %v271 = vld [vmem:[%s0 + $0x710] sm:$0xff]
    %v272 = vld [vmem:[%s0 + $0x718] sm:$0xff]
    %v273 = vld [vmem:[%s0 + $0x720] sm:$0xff]
    %v274 = vld [vmem:[%s0 + $0x728] sm:$0xff]
    %v275 = vld [vmem:[%s0 + $0x730] sm:$0xff]
    %v276 = vld [vmem:[%s0 + $0x738] sm:$0xff]
    %v277 = vld [vmem:[%s0 + $0x740] sm:$0xff]
    %v278 = vld [vmem:[%s0 + $0x748] sm:$0xff]
    %v279 = vld [vmem:[%s0 + $0x750] sm:$0xff]
    %v280 = vld [vmem:[%s0 + $0x758] sm:$0xff]
    %v281 = vld [vmem:[%s0 + $0x760] sm:$0xff]
    %v282 = vld [vmem:[%s0 + $0x768] sm:$0xff]
    %v283 = vld [vmem:[%s0 + $0x770] sm:$0xff]
    %v284 = vld [vmem:[%s0 + $0x778] sm:$0xff]
    %v285 = vld [vmem:[%s0 + $0x780] sm:$0xff]
    %v286 = vld [vmem:[%s0 + $0x788] sm:$0xff]
    %v287 = vld [vmem:[%s0 + $0x790] sm:$0xff]
    %v288 = vld [vmem:[%s0 + $0x798] sm:$0xff]
    %v289 = vld [vmem:[%s0 + $0x7a0] sm:$0xff]
    %v290 = vld [vmem:[%s0 + $0x7a8] sm:$0xff]
    %v291 = vld [vmem:[%s0 + $0x7b0] sm:$0xff]
    %v292 = vld [vmem:[%s0 + $0x7b8] sm:$0xff]
    %v293 = vld [vmem:[%s0 + $0x7c0] sm:$0xff]
    %v294 = vld [vmem:[%s0 + $0x7c8] sm:$0xff]
    %v295 = vld [vmem:[%s0 + $0x7d0] sm:$0xff]
    %v296 = vld [vmem:[%s0 + $0x7d8] sm:$0xff]
    %v297 = vld [vmem:[%s0 + $0x7e0] sm:$0xff]
    %v298 = vld [vmem:[%s0 + $0x7e8] sm:$0xff]
    %v299 = vld [vmem:[%s0 + $0x7f0] sm:$0xff]
    %v300 = vld [vmem:[%s0 + $0x7f8] sm:$0xff]
    %v301 = vld [vmem:[%s0 + $0x800] sm:$0xff]
    %v302 = vld [vmem:[%s0 + $0x808] sm:$0xff]
    %v303 = vld [vmem:[%s0 + $0x810] sm:$0xff]
    %v304 = vld [vmem:[%s0 + $0x818] sm:$0xff]
    %v305 = vld [vmem:[%s0 + $0x820] sm:$0xff]
    %v306 = vld [vmem:[%s0 + $0x828] sm:$0xff]
    %v307 = vld [vmem:[%s0 + $0x830] sm:$0xff]
    %v308 = vld [vmem:[%s0 + $0x838] sm:$0xff]
    %v309 = vld [vmem:[%s0 + $0x840] sm:$0xff]
    %v310 = vld [vmem:[%s0 + $0x848] sm:$0xff]
    %v311 = vld [vmem:[%s0 + $0x850] sm:$0xff]
    %v312 = vld [vmem:[%s0 + $0x858] sm:$0xff]
    %v313 = vld [vmem:[%s0 + $0x860] sm:$0xff]
    %v314 = vld [vmem:[%s0 + $0x868] sm:$0xff]
    %v315 = vld [vmem:[%s0 + $0x870] sm:$0xff]
    %v316 = vld [vmem:[%s0 + $0x878] sm:$0xff]
    %v317 = vld [vmem:[%s0 + $0x880] sm:$0xff]
    %v318 = vld [vmem:[%s0 + $0x888] sm:$0xff]
    %v319 = vld [vmem:[%s0 + $0x890] sm:$0xff]
    %v320 = vld [vmem:[%s0 + $0x898] sm:$0xff]
    %v321 = vld [vmem:[%s0 + $0x8a0] sm:$0xff]
    %v322 = vld [vmem:[%s0 + $0x8a8] sm:$0xff]
    %v323 = vld [vmem:[%s0 + $0x8b0] sm:$0xff]
    %v324 = vld [vmem:[%s0 + $0x8b8] sm:$0xff]
    %v325 = vld [vmem:[%s0 + $0x8c0] sm:$0xff]
    %v326 = vld [vmem:[%s0 + $0x8c8] sm:$0xff]
    %v327 = vld [vmem:[%s0 + $0x8d0] sm:$0xff]
    %v328 = vld [vmem:[%s0 + $0x8d8] sm:$0xff]
    %v329 = vld [vmem:[%s0 + $0x8e0] sm:$0xff]
    %v330 = vld [vmem:[%s0 + $0x8e8] sm:$0xff]
    %v331 = vld [vmem:[%s0 + $0x8f0] sm:$0xff]
    %v332 = vld [vmem:[%s0 + $0x8f8] sm:$0xff]
    %v333 = vld [vmem:[%s0 + $0x900] sm:$0xff]
    %v334 = vld [vmem:[%s0 + $0x908] sm:$0xff]
    %v335 = vld [vmem:[%s0 + $0x910] sm:$0xff]
    %v336 = vld [vmem:[%s0 + $0x918] sm:$0xff]
    %v337 = vld [vmem:[%s0 + $0x920] sm:$0xff]
    %v338 = vld [vmem:[%s0 + $0x928] sm:$0xff]
    %v339 = vld [vmem:[%s0 + $0x930] sm:$0xff]
    %v340 = vld [vmem:[%s0 + $0x938] sm:$0xff]
    %v341 = vld [vmem:[%s0 + $0x940] sm:$0xff]
    %v342 = vld [vmem:[%s0 + $0x948] sm:$0xff]
    %v343 = vld [vmem:[%s0 + $0x950] sm:$0xff]
    %v344 = vld [vmem:[%s0 + $0x958] sm:$0xff]
    %v345 = vld [vmem:[%s0 + $0x960] sm:$0xff]
    %v346 = vld [vmem:[%s0 + $0x968] sm:$0xff]
    %v347 = vld [vmem:[%s0 + $0x970] sm:$0xff]
    %v348 = vld [vmem:[%s0 + $0x978] sm:$0xff]
    %v349 = vld [vmem:[%s0 + $0x980] sm:$0xff]
    %v350 = vld [vmem:[%s0 + $0x988] sm:$0xff]
    %v351 = vld [vmem:[%s0 + $0x990] sm:$0xff]
    %v352 = vld [vmem:[%s0 + $0x998] sm:$0xff]
    %v353 = vld [vmem:[%s0 + $0x9a0] sm:$0xff]
    %v354 = vld [vmem:[%s0 + $0x9a8] sm:$0xff]
    %v355 = vld [vmem:[%s0 + $0x9b0] sm:$0xff]
    %v356 = vld [vmem:[%s0 + $0x9b8] sm:$0xff]
    %v357 = vld [vmem:[%s0 + $0x9c0] sm:$0xff]
    %v358 = vld [vmem:[%s0 + $0x9c8] sm:$0xff]
    %v359 = vld [vmem:[%s0 + $0x9d0] sm:$0xff]
    %v360 = vld [vmem:[%s0 + $0x9d8] sm:$0xff]
    %v361 = vld [vmem:[%s0 + $0x9e0] sm:$0xff]
    %v362 = vld [vmem:[%s0 + $0x9e8] sm:$0xff]
    %v363 = vld [vmem:[%s0 + $0x9f0] sm:$0xff]
    %v364 = vld [vmem:[%s0 + $0x9f8] sm:$0xff]
    %v365 = vld [vmem:[%s0 + $0xa00] sm:$0xff]
    %v366 = vld [vmem:[%s0 + $0xa08] sm:$0xff]
    %v367 = vld [vmem:[%s0 + $0xa10] sm:$0xff]
    %v368 = vld [vmem:[%s0 + $0xa18] sm:$0xff]
    %v369 = vld [vmem:[%s0 + $0xa20] sm:$0xff]
    %v370 = vld [vmem:[%s0 + $0xa28] sm:$0xff]
    %v371 = vld [vmem:[%s0 + $0xa30] sm:$0xff]
    %v372 = vld [vmem:[%s0 + $0xa38] sm:$0xff]
    %v373 = vld [vmem:[%s0 + $0xa40] sm:$0xff]
    %v374 = vld [vmem:[%s0 + $0xa48] sm:$0xff]
    %v375 = vld [vmem:[%s0 + $0xa50] sm:$0xff]
    %v376 = vld [vmem:[%s0 + $0xa58] sm:$0xff]
    %v377 = vld [vmem:[%s0 + $0xa60] sm:$0xff]
    %v378 = vld [vmem:[%s0 + $0xa68] sm:$0xff]
    %v379 = vld [vmem:[%s0 + $0xa70] sm:$0xff]
    %v380 = vld [vmem:[%s0 + $0xa78] sm:$0xff]
    %v381 = vld [vmem:[%s0 + $0xa80] sm:$0xff]
    %v382 = vld [vmem:[%s0 + $0xa88] sm:$0xff]
    %v383 = vld [vmem:[%s0 + $0xa90] sm:$0xff]
    %v384 = vld [vmem:[%s0 + $0xa98] sm:$0xff]
    %v385 = vld [vmem:[%s0 + $0xaa0] sm:$0xff]
    %v386 = vld [vmem:[%s0 + $0xaa8] sm:$0xff]
    %v387 = vld [vmem:[%s0 + $0xab0] sm:$0xff]
    %v388 = vld [vmem:[%s0 + $0xab8] sm:$0xff]
    %v389 = vld [vmem:[%s0 + $0xac0] sm:$0xff]
    %v390 = vld [vmem:[%s0 + $0xac8] sm:$0xff]
    %v391 = vld [vmem:[%s0 + $0xad0] sm:$0xff]
    %v392 = vld [vmem:[%s0 + $0xad8] sm:$0xff]
    %v393 = vld [vmem:[%s0 + $0xae0] sm:$0xff]
    %v394 = vld [vmem:[%s0 + $0xae8] sm:$0xff]
    %v395 = vld [vmem:[%s0 + $0xaf0] sm:$0xff]
    %v396 = vld [vmem:[%s0 + $0xaf8] sm:$0xff]
    %v397 = vld [vmem:[%s0 + $0xb00] sm:$0xff]
    %v398 = vld [vmem:[%s0 + $0xb08] sm:$0xff]
    %v399 = vld [vmem:[%s0 + $0xb10] sm:$0xff]
    %v400 = vld [vmem:[%s0 + $0xb18] sm:$0xff]
    %v401 = vld [vmem:[%s0 + $0xb20] sm:$0xff]
    %v402 = vld [vmem:[%s0 + $0xb28] sm:$0xff]
    %v403 = vld [vmem:[%s0 + $0xb30] sm:$0xff]
    %v404 = vld [vmem:[%s0 + $0xb38] sm:$0xff]
    %v405 = vld [vmem:[%s0 + $0xb40] sm:$0xff]
    %v406 = vld [vmem:[%s0 + $0xb48] sm:$0xff]
    %v407 = vld [vmem:[%s0 + $0xb50] sm:$0xff]
    %v408 = vld [vmem:[%s0 + $0xb58] sm:$0xff]
    %v409 = vld [vmem:[%s0 + $0xb60] sm:$0xff]
    %v410 = vld [vmem:[%s0 + $0xb68] sm:$0xff]
    %v411 = vld [vmem:[%s0 + $0xb70] sm:$0xff]
    %v412 = vld [vmem:[%s0 + $0xb78] sm:$0xff]
    %v413 = vld [vmem:[%s0 + $0xb80] sm:$0xff]
    %v414 = vld [vmem:[%s0 + $0xb88] sm:$0xff]
    %v415 = vld [vmem:[%s0 + $0xb90] sm:$0xff]
    %v416 = vld [vmem:[%s0 + $0xb98] sm:$0xff]
    %v417 = vld [vmem:[%s0 + $0xba0] sm:$0xff]
    %v418 = vld [vmem:[%s0 + $0xba8] sm:$0xff]
    %v419 = vld [vmem:[%s0 + $0xbb0] sm:$0xff]
    %v420 = vld [vmem:[%s0 + $0xbb8] sm:$0xff]
    %v421 = vld [vmem:[%s0 + $0xbc0] sm:$0xff]
    %v422 = vld [vmem:[%s0 + $0xbc8] sm:$0xff]
    %v423 = vld [vmem:[%s0 + $0xbd0] sm:$0xff]
    %v424 = vld [vmem:[%s0 + $0xbd8] sm:$0xff]
    %v425 = vld [vmem:[%s0 + $0xbe0] sm:$0xff]
    %v426 = vld [vmem:[%s0 + $0xbe8] sm:$0xff]
    %v427 = vld [vmem:[%s0 + $0xbf0] sm:$0xff]
    %v428 = vld [vmem:[%s0 + $0xbf8] sm:$0xff]
    %v429 = vmax.f32 %v45, 1e-06
    %v430 = vmax.f32 %v46, 1e-06
    %v431 = vmax.f32 %v47, 1e-06
    %v432 = vmax.f32 %v48, 1e-06
    %v433 = vmax.f32 %v49, 1e-06
    %v434 = vmax.f32 %v50, 1e-06
    %v435 = vmax.f32 %v51, 1e-06
    %v436 = vmax.f32 %v52, 1e-06
    %v437 = vmax.f32 %v53, 1e-06
    %v438 = vmax.f32 %v54, 1e-06
    %v439 = vmax.f32 %v55, 1e-06
    %v440 = vmax.f32 %v56, 1e-06
    %v441 = vmax.f32 %v57, 1e-06
    %v442 = vmax.f32 %v58, 1e-06
    %v443 = vmax.f32 %v59, 1e-06
    %v444 = vmax.f32 %v60, 1e-06
    %v445 = vmax.f32 %v61, 1e-06
    %v446 = vmax.f32 %v62, 1e-06
    %v447 = vmax.f32 %v63, 1e-06
    %v448 = vmax.f32 %v64, 1e-06
    %v449 = vmax.f32 %v65, 1e-06
    %v450 = vmax.f32 %v66, 1e-06
    %v451 = vmax.f32 %v67, 1e-06
    %v452 = vmax.f32 %v68, 1e-06
    %v453 = vmax.f32 %v69, 1e-06
    %v454 = vmax.f32 %v70, 1e-06
    %v455 = vmax.f32 %v71, 1e-06
    %v456 = vmax.f32 %v72, 1e-06
    %v457 = vmax.f32 %v73, 1e-06
    %v458 = vmax.f32 %v74, 1e-06
    %v459 = vmax.f32 %v75, 1e-06
    %v460 = vmax.f32 %v76, 1e-06
    %v461 = vmax.f32 %v77, 1e-06
    %v462 = vmax.f32 %v78, 1e-06
    %v463 = vmax.f32 %v79, 1e-06
    %v464 = vmax.f32 %v80, 1e-06
    %v465 = vmax.f32 %v81, 1e-06
    %v466 = vmax.f32 %v82, 1e-06
    %v467 = vmax.f32 %v83, 1e-06
    %v468 = vmax.f32 %v84, 1e-06
    %v469 = vmax.f32 %v85, 1e-06
    %v470 = vmax.f32 %v86, 1e-06
    %v471 = vmax.f32 %v87, 1e-06
    %v472 = vmax.f32 %v88, 1e-06
    %v473 = vmax.f32 %v89, 1e-06
    %v474 = vmax.f32 %v90, 1e-06
    %v475 = vmax.f32 %v91, 1e-06
    %v476 = vmax.f32 %v92, 1e-06
    %v477 = vmax.f32 %v93, 1e-06
    %v478 = vmax.f32 %v94, 1e-06
    %v479 = vmax.f32 %v95, 1e-06
    %v480 = vmax.f32 %v96, 1e-06
    %v481 = vmax.f32 %v97, 1e-06
    %v482 = vmax.f32 %v98, 1e-06
    %v483 = vmax.f32 %v99, 1e-06
    %v484 = vmax.f32 %v100, 1e-06
    %v485 = vmax.f32 %v101, 1e-06
    %v486 = vmax.f32 %v102, 1e-06
    %v487 = vmax.f32 %v103, 1e-06
    %v488 = vmax.f32 %v104, 1e-06
    %v489 = vmax.f32 %v105, 1e-06
    %v490 = vmax.f32 %v106, 1e-06
    %v491 = vmax.f32 %v107, 1e-06
    %v492 = vmax.f32 %v108, 1e-06
    %v493 = vmax.f32 %v109, 1e-06
    %v494 = vmax.f32 %v110, 1e-06
    %v495 = vmax.f32 %v111, 1e-06
    %v496 = vmax.f32 %v112, 1e-06
    %v497 = vmax.f32 %v113, 1e-06
    %v498 = vmax.f32 %v114, 1e-06
    %v499 = vmax.f32 %v115, 1e-06
    %v500 = vmax.f32 %v116, 1e-06
    %v501 = vmax.f32 %v117, 1e-06
    %v502 = vmax.f32 %v118, 1e-06
    %v503 = vmax.f32 %v119, 1e-06
    %v504 = vmax.f32 %v120, 1e-06
    %v505 = vmax.f32 %v121, 1e-06
    %v506 = vmax.f32 %v122, 1e-06
    %v507 = vmax.f32 %v123, 1e-06
    %v508 = vmax.f32 %v124, 1e-06
    %v509 = vmax.f32 %v125, 1e-06
    %v510 = vmax.f32 %v126, 1e-06
    %v511 = vmax.f32 %v127, 1e-06
    %v512 = vmax.f32 %v128, 1e-06
    %v513 = vmax.f32 %v129, 1e-06
    %v514 = vmax.f32 %v130, 1e-06
    %v515 = vmax.f32 %v131, 1e-06
    %v516 = vmax.f32 %v132, 1e-06
    %v517 = vmax.f32 %v133, 1e-06
    %v518 = vmax.f32 %v134, 1e-06
    %v519 = vmax.f32 %v135, 1e-06
    %v520 = vmax.f32 %v136, 1e-06
    %v521 = vmax.f32 %v137, 1e-06
    %v522 = vmax.f32 %v138, 1e-06
    %v523 = vmax.f32 %v139, 1e-06
    %v524 = vmax.f32 %v140, 1e-06
    %v525 = vmax.f32 %v141, 1e-06
    %v526 = vmax.f32 %v142, 1e-06
    %v527 = vmax.f32 %v143, 1e-06
    %v528 = vmax.f32 %v144, 1e-06
    %v529 = vmax.f32 %v145, 1e-06
    %v530 = vmax.f32 %v146, 1e-06
    %v531 = vmax.f32 %v147, 1e-06
    %v532 = vmax.f32 %v148, 1e-06
    %v533 = vmax.f32 %v149, 1e-06
    %v534 = vmax.f32 %v150, 1e-06
    %v535 = vmax.f32 %v151, 1e-06
    %v536 = vmax.f32 %v152, 1e-06
    %v537 = vmax.f32 %v153, 1e-06
    %v538 = vmax.f32 %v154, 1e-06
    %v539 = vmax.f32 %v155, 1e-06
    %v540 = vmax.f32 %v156, 1e-06
    %v541 = vmax.f32 %v157, 1e-06
    %v542 = vmax.f32 %v158, 1e-06
    %v543 = vmax.f32 %v159, 1e-06
    %v544 = vmax.f32 %v160, 1e-06
    %v545 = vmax.f32 %v161, 1e-06
    %v546 = vmax.f32 %v162, 1e-06
    %v547 = vmax.f32 %v163, 1e-06
    %v548 = vmax.f32 %v164, 1e-06
    %v549 = vmax.f32 %v165, 1e-06
    %v550 = vmax.f32 %v166, 1e-06
    %v551 = vmax.f32 %v167, 1e-06
    %v552 = vmax.f32 %v168, 1e-06
    %v553 = vmax.f32 %v169, 1e-06
    %v554 = vmax.f32 %v170, 1e-06
    %v555 = vmax.f32 %v171, 1e-06
    %v556 = vmax.f32 %v172, 1e-06
    %v557 = vmax.f32 %v173, 1e-06
    %v558 = vmax.f32 %v174, 1e-06
    %v559 = vmax.f32 %v175, 1e-06
    %v560 = vmax.f32 %v176, 1e-06
    %v561 = vmax.f32 %v177, 1e-06
    %v562 = vmax.f32 %v178, 1e-06
    %v563 = vmax.f32 %v179, 1e-06
    %v564 = vmax.f32 %v180, 1e-06
    %v565 = vmax.f32 %v181, 1e-06
    %v566 = vmax.f32 %v182, 1e-06
    %v567 = vmax.f32 %v183, 1e-06
    %v568 = vmax.f32 %v184, 1e-06
    %v569 = vmax.f32 %v185, 1e-06
    %v570 = vmax.f32 %v186, 1e-06
    %v571 = vmax.f32 %v187, 1e-06
    %v572 = vmax.f32 %v188, 1e-06
    %v573 = vmax.f32 %v189, 1e-06
    %v574 = vmax.f32 %v190, 1e-06
    %v575 = vmax.f32 %v191, 1e-06
    %v576 = vmax.f32 %v192, 1e-06
    %v577 = vmax.f32 %v193, 1e-06
    %v578 = vmax.f32 %v194, 1e-06
    %v579 = vmax.f32 %v195, 1e-06
    %v580 = vmax.f32 %v196, 1e-06
    %v581 = vmax.f32 %v197, 1e-06
    %v582 = vmax.f32 %v198, 1e-06
    %v583 = vmax.f32 %v199, 1e-06
    %v584 = vmax.f32 %v200, 1e-06
    %v585 = vmax.f32 %v201, 1e-06
    %v586 = vmax.f32 %v202, 1e-06
    %v587 = vmax.f32 %v203, 1e-06
    %v588 = vmax.f32 %v204, 1e-06
    %v589 = vmax.f32 %v205, 1e-06
    %v590 = vmax.f32 %v206, 1e-06
    %v591 = vmax.f32 %v207, 1e-06
    %v592 = vmax.f32 %v208, 1e-06
    %v593 = vmax.f32 %v209, 1e-06
    %v594 = vmax.f32 %v210, 1e-06
    %v595 = vmax.f32 %v211, 1e-06
    %v596 = vmax.f32 %v212, 1e-06
    %v597 = vmax.f32 %v213, 1e-06
    %v598 = vmax.f32 %v214, 1e-06
    %v599 = vmax.f32 %v215, 1e-06
    %v600 = vmax.f32 %v216, 1e-06
    %v601 = vmax.f32 %v217, 1e-06
    %v602 = vmax.f32 %v218, 1e-06
    %v603 = vmax.f32 %v219, 1e-06
    %v604 = vmax.f32 %v220, 1e-06
    %v605 = vmax.f32 %v221, 1e-06
    %v606 = vmax.f32 %v222, 1e-06
    %v607 = vmax.f32 %v223, 1e-06
    %v608 = vmax.f32 %v224, 1e-06
    %v609 = vmax.f32 %v225, 1e-06
    %v610 = vmax.f32 %v226, 1e-06
    %v611 = vmax.f32 %v227, 1e-06
    %v612 = vmax.f32 %v228, 1e-06
    %v613 = vmax.f32 %v229, 1e-06
    %v614 = vmax.f32 %v230, 1e-06
    %v615 = vmax.f32 %v231, 1e-06
    %v616 = vmax.f32 %v232, 1e-06
    %v617 = vmax.f32 %v233, 1e-06
    %v618 = vmax.f32 %v234, 1e-06
    %v619 = vmax.f32 %v235, 1e-06
    %v620 = vmax.f32 %v236, 1e-06
    %v621 = vmax.f32 %v237, 1e-06
    %v622 = vmax.f32 %v238, 1e-06
    %v623 = vmax.f32 %v239, 1e-06
    %v624 = vmax.f32 %v240, 1e-06
    %v625 = vmax.f32 %v241, 1e-06
    %v626 = vmax.f32 %v242, 1e-06
    %v627 = vmax.f32 %v243, 1e-06
    %v628 = vmax.f32 %v244, 1e-06
    %v629 = vmax.f32 %v245, 1e-06
    %v630 = vmax.f32 %v246, 1e-06
    %v631 = vmax.f32 %v247, 1e-06
    %v632 = vmax.f32 %v248, 1e-06
    %v633 = vmax.f32 %v249, 1e-06
    %v634 = vmax.f32 %v250, 1e-06
    %v635 = vmax.f32 %v251, 1e-06
    %v636 = vmax.f32 %v252, 1e-06
    %v637 = vmax.f32 %v253, 1e-06
    %v638 = vmax.f32 %v254, 1e-06
    %v639 = vmax.f32 %v255, 1e-06
    %v640 = vmax.f32 %v256, 1e-06
    %v641 = vmax.f32 %v257, 1e-06
    %v642 = vmax.f32 %v258, 1e-06
    %v643 = vmax.f32 %v259, 1e-06
    %v644 = vmax.f32 %v260, 1e-06
    %v645 = vmax.f32 %v261, 1e-06
    %v646 = vmax.f32 %v262, 1e-06
    %v647 = vmax.f32 %v263, 1e-06
    %v648 = vmax.f32 %v264, 1e-06
    %v649 = vmax.f32 %v265, 1e-06
    %v650 = vmax.f32 %v266, 1e-06
    %v651 = vmax.f32 %v267, 1e-06
    %v652 = vmax.f32 %v268, 1e-06
    %v653 = vmax.f32 %v269, 1e-06
    %v654 = vmax.f32 %v270, 1e-06
    %v655 = vmax.f32 %v271, 1e-06
    %v656 = vmax.f32 %v272, 1e-06
    %v657 = vmax.f32 %v273, 1e-06
    %v658 = vmax.f32 %v274, 1e-06
    %v659 = vmax.f32 %v275, 1e-06
    %v660 = vmax.f32 %v276, 1e-06
    %v661 = vmax.f32 %v277, 1e-06
    %v662 = vmax.f32 %v278, 1e-06
    %v663 = vmax.f32 %v279, 1e-06
    %v664 = vmax.f32 %v280, 1e-06
    %v665 = vmax.f32 %v281, 1e-06
    %v666 = vmax.f32 %v282, 1e-06
    %v667 = vmax.f32 %v283, 1e-06
    %v668 = vmax.f32 %v284, 1e-06
    %v669 = vmax.f32 %v285, 1e-06
    %v670 = vmax.f32 %v286, 1e-06
    %v671 = vmax.f32 %v287, 1e-06
    %v672 = vmax.f32 %v288, 1e-06
    %v673 = vmax.f32 %v289, 1e-06
    %v674 = vmax.f32 %v290, 1e-06
    %v675 = vmax.f32 %v291, 1e-06
    %v676 = vmax.f32 %v292, 1e-06
    %v677 = vmax.f32 %v293, 1e-06
    %v678 = vmax.f32 %v294, 1e-06
    %v679 = vmax.f32 %v295, 1e-06
    %v680 = vmax.f32 %v296, 1e-06
    %v681 = vmax.f32 %v297, 1e-06
    %v682 = vmax.f32 %v298, 1e-06
    %v683 = vmax.f32 %v299, 1e-06
    %v684 = vmax.f32 %v300, 1e-06
    %v685 = vmax.f32 %v301, 1e-06
    %v686 = vmax.f32 %v302, 1e-06
    %v687 = vmax.f32 %v303, 1e-06
    %v688 = vmax.f32 %v304, 1e-06
    %v689 = vmax.f32 %v305, 1e-06
    %v690 = vmax.f32 %v306, 1e-06
    %v691 = vmax.f32 %v307, 1e-06
    %v692 = vmax.f32 %v308, 1e-06
    %v693 = vmax.f32 %v309, 1e-06
    %v694 = vmax.f32 %v310, 1e-06
    %v695 = vmax.f32 %v311, 1e-06
    %v696 = vmax.f32 %v312, 1e-06
    %v697 = vmax.f32 %v313, 1e-06
    %v698 = vmax.f32 %v314, 1e-06
    %v699 = vmax.f32 %v315, 1e-06
    %v700 = vmax.f32 %v316, 1e-06
    %v701 = vmax.f32 %v317, 1e-06
    %v702 = vmax.f32 %v318, 1e-06
    %v703 = vmax.f32 %v319, 1e-06
    %v704 = vmax.f32 %v320, 1e-06
    %v705 = vmax.f32 %v321, 1e-06
    %v706 = vmax.f32 %v322, 1e-06
    %v707 = vmax.f32 %v323, 1e-06
    %v708 = vmax.f32 %v324, 1e-06
    %v709 = vmax.f32 %v325, 1e-06
    %v710 = vmax.f32 %v326, 1e-06
    %v711 = vmax.f32 %v327, 1e-06
    %v712 = vmax.f32 %v328, 1e-06
    %v713 = vmax.f32 %v329, 1e-06
    %v714 = vmax.f32 %v330, 1e-06
    %v715 = vmax.f32 %v331, 1e-06
    %v716 = vmax.f32 %v332, 1e-06
    %v717 = vmax.f32 %v333, 1e-06
    %v718 = vmax.f32 %v334, 1e-06
    %v719 = vmax.f32 %v335, 1e-06
    %v720 = vmax.f32 %v336, 1e-06
    %v721 = vmax.f32 %v337, 1e-06
    %v722 = vmax.f32 %v338, 1e-06
    %v723 = vmax.f32 %v339, 1e-06
    %v724 = vmax.f32 %v340, 1e-06
    %v725 = vmax.f32 %v341, 1e-06
    %v726 = vmax.f32 %v342, 1e-06
    %v727 = vmax.f32 %v343, 1e-06
    %v728 = vmax.f32 %v344, 1e-06
    %v729 = vmax.f32 %v345, 1e-06
    %v730 = vmax.f32 %v346, 1e-06
    %v731 = vmax.f32 %v347, 1e-06
    %v732 = vmax.f32 %v348, 1e-06
    %v733 = vmax.f32 %v349, 1e-06
    %v734 = vmax.f32 %v350, 1e-06
    %v735 = vmax.f32 %v351, 1e-06
    %v736 = vmax.f32 %v352, 1e-06
    %v737 = vmax.f32 %v353, 1e-06
    %v738 = vmax.f32 %v354, 1e-06
    %v739 = vmax.f32 %v355, 1e-06
    %v740 = vmax.f32 %v356, 1e-06
    %v741 = vmax.f32 %v357, 1e-06
    %v742 = vmax.f32 %v358, 1e-06
    %v743 = vmax.f32 %v359, 1e-06
    %v744 = vmax.f32 %v360, 1e-06
    %v745 = vmax.f32 %v361, 1e-06
    %v746 = vmax.f32 %v362, 1e-06
    %v747 = vmax.f32 %v363, 1e-06
    %v748 = vmax.f32 %v364, 1e-06
    %v749 = vmax.f32 %v365, 1e-06
    %v750 = vmax.f32 %v366, 1e-06
    %v751 = vmax.f32 %v367, 1e-06
    %v752 = vmax.f32 %v368, 1e-06
    %v753 = vmax.f32 %v369, 1e-06
    %v754 = vmax.f32 %v370, 1e-06
    %v755 = vmax.f32 %v371, 1e-06
    %v756 = vmax.f32 %v372, 1e-06
    %v757 = vmax.f32 %v373, 1e-06
    %v758 = vmax.f32 %v374, 1e-06
    %v759 = vmax.f32 %v375, 1e-06
    %v760 = vmax.f32 %v376, 1e-06
    %v761 = vmax.f32 %v377, 1e-06
    %v762 = vmax.f32 %v378, 1e-06
    %v763 = vmax.f32 %v379, 1e-06
    %v764 = vmax.f32 %v380, 1e-06
    %v765 = vmax.f32 %v381, 1e-06
    %v766 = vmax.f32 %v382, 1e-06
    %v767 = vmax.f32 %v383, 1e-06
    %v768 = vmax.f32 %v384, 1e-06
    %v769 = vmax.f32 %v385, 1e-06
    %v770 = vmax.f32 %v386, 1e-06
    %v771 = vmax.f32 %v387, 1e-06
    %v772 = vmax.f32 %v388, 1e-06
    %v773 = vmax.f32 %v389, 1e-06
    %v774 = vmax.f32 %v390, 1e-06
    %v775 = vmax.f32 %v391, 1e-06
    %v776 = vmax.f32 %v392, 1e-06
    %v777 = vmax.f32 %v393, 1e-06
    %v778 = vmax.f32 %v394, 1e-06
    %v779 = vmax.f32 %v395, 1e-06
    %v780 = vmax.f32 %v396, 1e-06
    %v781 = vmax.f32 %v397, 1e-06
    %v782 = vmax.f32 %v398, 1e-06
    %v783 = vmax.f32 %v399, 1e-06
    %v784 = vmax.f32 %v400, 1e-06
    %v785 = vmax.f32 %v401, 1e-06
    %v786 = vmax.f32 %v402, 1e-06
    %v787 = vmax.f32 %v403, 1e-06
    %v788 = vmax.f32 %v404, 1e-06
    %v789 = vmax.f32 %v405, 1e-06
    %v790 = vmax.f32 %v406, 1e-06
    %v791 = vmax.f32 %v407, 1e-06
    %v792 = vmax.f32 %v408, 1e-06
    %v793 = vmax.f32 %v409, 1e-06
    %v794 = vmax.f32 %v410, 1e-06
    %v795 = vmax.f32 %v411, 1e-06
    %v796 = vmax.f32 %v412, 1e-06
    %v797 = vmax.f32 %v413, 1e-06
    %v798 = vmax.f32 %v414, 1e-06
    %v799 = vmax.f32 %v415, 1e-06
    %v800 = vmax.f32 %v416, 1e-06
    %v801 = vmax.f32 %v417, 1e-06
    %v802 = vmax.f32 %v418, 1e-06
    %v803 = vmax.f32 %v419, 1e-06
    %v804 = vmax.f32 %v420, 1e-06
    %v805 = vmax.f32 %v421, 1e-06
    %v806 = vmax.f32 %v422, 1e-06
    %v807 = vmax.f32 %v423, 1e-06
    %v808 = vmax.f32 %v424, 1e-06
    %v809 = vmax.f32 %v425, 1e-06
    %v810 = vmax.f32 %v426, 1e-06
    %v811 = vmax.f32 %v427, 1e-06
    %v812 = vmax.f32 %v428, 1e-06
    %v813 = vmul.f32 %v429, %v429
    %v814 = vmul.f32 %v430, %v430
    %v815 = vmul.f32 %v431, %v431
    %v816 = vmul.f32 %v432, %v432
    %v817 = vmul.f32 %v433, %v433
    %v818 = vmul.f32 %v434, %v434
    %v819 = vmul.f32 %v435, %v435
    %v820 = vmul.f32 %v436, %v436
    %v821 = vmul.f32 %v437, %v437
    %v822 = vmul.f32 %v438, %v438
    %v823 = vmul.f32 %v439, %v439
    %v824 = vmul.f32 %v440, %v440
    %v825 = vmul.f32 %v441, %v441
    %v826 = vmul.f32 %v442, %v442
    %v827 = vmul.f32 %v443, %v443
    %v828 = vmul.f32 %v444, %v444
    %v829 = vmul.f32 %v445, %v445
    %v830 = vmul.f32 %v446, %v446
    %v831 = vmul.f32 %v447, %v447
    %v832 = vmul.f32 %v448, %v448
    %v833 = vmul.f32 %v449, %v449
    %v834 = vmul.f32 %v450, %v450
    %v835 = vmul.f32 %v451, %v451
    %v836 = vmul.f32 %v452, %v452
    %v837 = vmul.f32 %v453, %v453
    %v838 = vmul.f32 %v454, %v454
    %v839 = vmul.f32 %v455, %v455
    %v840 = vmul.f32 %v456, %v456
    %v841 = vmul.f32 %v457, %v457
    %v842 = vmul.f32 %v458, %v458
    %v843 = vmul.f32 %v459, %v459
    %v844 = vmul.f32 %v460, %v460
    %v845 = vmul.f32 %v461, %v461
    %v846 = vmul.f32 %v462, %v462
    %v847 = vmul.f32 %v463, %v463
    %v848 = vmul.f32 %v464, %v464
    %v849 = vmul.f32 %v465, %v465
    %v850 = vmul.f32 %v466, %v466
    %v851 = vmul.f32 %v467, %v467
    %v852 = vmul.f32 %v468, %v468
    %v853 = vmul.f32 %v469, %v469
    %v854 = vmul.f32 %v470, %v470
    %v855 = vmul.f32 %v471, %v471
    %v856 = vmul.f32 %v472, %v472
    %v857 = vmul.f32 %v473, %v473
    %v858 = vmul.f32 %v474, %v474
    %v859 = vmul.f32 %v475, %v475
    %v860 = vmul.f32 %v476, %v476
    %v861 = vmul.f32 %v477, %v477
    %v862 = vmul.f32 %v478, %v478
    %v863 = vmul.f32 %v479, %v479
    %v864 = vmul.f32 %v480, %v480
    %v865 = vmul.f32 %v481, %v481
    %v866 = vmul.f32 %v482, %v482
    %v867 = vmul.f32 %v483, %v483
    %v868 = vmul.f32 %v484, %v484
    %v869 = vmul.f32 %v485, %v485
    %v870 = vmul.f32 %v486, %v486
    %v871 = vmul.f32 %v487, %v487
    %v872 = vmul.f32 %v488, %v488
    %v873 = vmul.f32 %v489, %v489
    %v874 = vmul.f32 %v490, %v490
    %v875 = vmul.f32 %v491, %v491
    %v876 = vmul.f32 %v492, %v492
    %v877 = vmul.f32 %v493, %v493
    %v878 = vmul.f32 %v494, %v494
    %v879 = vmul.f32 %v495, %v495
    %v880 = vmul.f32 %v496, %v496
    %v881 = vmul.f32 %v497, %v497
    %v882 = vmul.f32 %v498, %v498
    %v883 = vmul.f32 %v499, %v499
    %v884 = vmul.f32 %v500, %v500
    %v885 = vmul.f32 %v501, %v501
    %v886 = vmul.f32 %v502, %v502
    %v887 = vmul.f32 %v503, %v503
    %v888 = vmul.f32 %v504, %v504
    %v889 = vmul.f32 %v505, %v505
    %v890 = vmul.f32 %v506, %v506
    %v891 = vmul.f32 %v507, %v507
    %v892 = vmul.f32 %v508, %v508
    %v893 = vmul.f32 %v509, %v509
    %v894 = vmul.f32 %v510, %v510
    %v895 = vmul.f32 %v511, %v511
    %v896 = vmul.f32 %v512, %v512
    %v897 = vmul.f32 %v513, %v513
    %v898 = vmul.f32 %v514, %v514
    %v899 = vmul.f32 %v515, %v515
    %v900 = vmul.f32 %v516, %v516
    %v901 = vmul.f32 %v517, %v517
    %v902 = vmul.f32 %v518, %v518
    %v903 = vmul.f32 %v519, %v519
    %v904 = vmul.f32 %v520, %v520
    %v905 = vmul.f32 %v521, %v521
    %v906 = vmul.f32 %v522, %v522
    %v907 = vmul.f32 %v523, %v523
    %v908 = vmul.f32 %v524, %v524
    %v909 = vmul.f32 %v525, %v525
    %v910 = vmul.f32 %v526, %v526
    %v911 = vmul.f32 %v527, %v527
    %v912 = vmul.f32 %v528, %v528
    %v913 = vmul.f32 %v529, %v529
    %v914 = vmul.f32 %v530, %v530
    %v915 = vmul.f32 %v531, %v531
    %v916 = vmul.f32 %v532, %v532
    %v917 = vmul.f32 %v533, %v533
    %v918 = vmul.f32 %v534, %v534
    %v919 = vmul.f32 %v535, %v535
    %v920 = vmul.f32 %v536, %v536
    %v921 = vmul.f32 %v537, %v537
    %v922 = vmul.f32 %v538, %v538
    %v923 = vmul.f32 %v539, %v539
    %v924 = vmul.f32 %v540, %v540
    %v925 = vmul.f32 %v541, %v541
    %v926 = vmul.f32 %v542, %v542
    %v927 = vmul.f32 %v543, %v543
    %v928 = vmul.f32 %v544, %v544
    %v929 = vmul.f32 %v545, %v545
    %v930 = vmul.f32 %v546, %v546
    %v931 = vmul.f32 %v547, %v547
    %v932 = vmul.f32 %v548, %v548
    %v933 = vmul.f32 %v549, %v549
    %v934 = vmul.f32 %v550, %v550
    %v935 = vmul.f32 %v551, %v551
    %v936 = vmul.f32 %v552, %v552
    %v937 = vmul.f32 %v553, %v553
    %v938 = vmul.f32 %v554, %v554
    %v939 = vmul.f32 %v555, %v555
    %v940 = vmul.f32 %v556, %v556
    %v941 = vmul.f32 %v557, %v557
    %v942 = vmul.f32 %v558, %v558
    %v943 = vmul.f32 %v559, %v559
    %v944 = vmul.f32 %v560, %v560
    %v945 = vmul.f32 %v561, %v561
    %v946 = vmul.f32 %v562, %v562
    %v947 = vmul.f32 %v563, %v563
    %v948 = vmul.f32 %v564, %v564
    %v949 = vmul.f32 %v565, %v565
    %v950 = vmul.f32 %v566, %v566
    %v951 = vmul.f32 %v567, %v567
    %v952 = vmul.f32 %v568, %v568
    %v953 = vmul.f32 %v569, %v569
    %v954 = vmul.f32 %v570, %v570
    %v955 = vmul.f32 %v571, %v571
    %v956 = vmul.f32 %v572, %v572
    %v957 = vmul.f32 %v573, %v573
    %v958 = vmul.f32 %v574, %v574
    %v959 = vmul.f32 %v575, %v575
    %v960 = vmul.f32 %v576, %v576
    %v961 = vmul.f32 %v577, %v577
    %v962 = vmul.f32 %v578, %v578
    %v963 = vmul.f32 %v579, %v579
    %v964 = vmul.f32 %v580, %v580
    %v965 = vmul.f32 %v581, %v581
    %v966 = vmul.f32 %v582, %v582
    %v967 = vmul.f32 %v583, %v583
    %v968 = vmul.f32 %v584, %v584
    %v969 = vmul.f32 %v585, %v585
    %v970 = vmul.f32 %v586, %v586
    %v971 = vmul.f32 %v587, %v587
    %v972 = vmul.f32 %v588, %v588
    %v973 = vmul.f32 %v589, %v589
    %v974 = vmul.f32 %v590, %v590
    %v975 = vmul.f32 %v591, %v591
    %v976 = vmul.f32 %v592, %v592
    %v977 = vmul.f32 %v593, %v593
    %v978 = vmul.f32 %v594, %v594
    %v979 = vmul.f32 %v595, %v595
    %v980 = vmul.f32 %v596, %v596
    %v981 = vmul.f32 %v597, %v597
    %v982 = vmul.f32 %v598, %v598
    %v983 = vmul.f32 %v599, %v599
    %v984 = vmul.f32 %v600, %v600
    %v985 = vmul.f32 %v601, %v601
    %v986 = vmul.f32 %v602, %v602
    %v987 = vmul.f32 %v603, %v603
    %v988 = vmul.f32 %v604, %v604
    %v989 = vmul.f32 %v605, %v605
    %v990 = vmul.f32 %v606, %v606
    %v991 = vmul.f32 %v607, %v607
    %v992 = vmul.f32 %v608, %v608
    %v993 = vmul.f32 %v609, %v609
    %v994 = vmul.f32 %v610, %v610
    %v995 = vmul.f32 %v611, %v611
    %v996 = vmul.f32 %v612, %v612
    %v997 = vmul.f32 %v613, %v613
    %v998 = vmul.f32 %v614, %v614
    %v999 = vmul.f32 %v615, %v615
    %v1000 = vmul.f32 %v616, %v616
    %v1001 = vmul.f32 %v617, %v617
    %v1002 = vmul.f32 %v618, %v618
    %v1003 = vmul.f32 %v619, %v619
    %v1004 = vmul.f32 %v620, %v620
    %v1005 = vmul.f32 %v621, %v621
    %v1006 = vmul.f32 %v622, %v622
    %v1007 = vmul.f32 %v623, %v623
    %v1008 = vmul.f32 %v624, %v624
    %v1009 = vmul.f32 %v625, %v625
    %v1010 = vmul.f32 %v626, %v626
    %v1011 = vmul.f32 %v627, %v627
    %v1012 = vmul.f32 %v628, %v628
    %v1013 = vmul.f32 %v629, %v629
    %v1014 = vmul.f32 %v630, %v630
    %v1015 = vmul.f32 %v631, %v631
    %v1016 = vmul.f32 %v632, %v632
    %v1017 = vmul.f32 %v633, %v633
    %v1018 = vmul.f32 %v634, %v634
    %v1019 = vmul.f32 %v635, %v635
    %v1020 = vmul.f32 %v636, %v636
    %v1021 = vmul.f32 %v637, %v637
    %v1022 = vmul.f32 %v638, %v638
    %v1023 = vmul.f32 %v639, %v639
    %v1024 = vmul.f32 %v640, %v640
    %v1025 = vmul.f32 %v641, %v641
    %v1026 = vmul.f32 %v642, %v642
    %v1027 = vmul.f32 %v643, %v643
    %v1028 = vmul.f32 %v644, %v644
    %v1029 = vmul.f32 %v645, %v645
    %v1030 = vmul.f32 %v646, %v646
    %v1031 = vmul.f32 %v647, %v647
    %v1032 = vmul.f32 %v648, %v648
    %v1033 = vmul.f32 %v649, %v649
    %v1034 = vmul.f32 %v650, %v650
    %v1035 = vmul.f32 %v651, %v651
    %v1036 = vmul.f32 %v652, %v652
    %v1037 = vmul.f32 %v653, %v653
    %v1038 = vmul.f32 %v654, %v654
    %v1039 = vmul.f32 %v655, %v655
    %v1040 = vmul.f32 %v656, %v656
    %v1041 = vmul.f32 %v657, %v657
    %v1042 = vmul.f32 %v658, %v658
    %v1043 = vmul.f32 %v659, %v659
    %v1044 = vmul.f32 %v660, %v660
    %v1045 = vmul.f32 %v661, %v661
    %v1046 = vmul.f32 %v662, %v662
    %v1047 = vmul.f32 %v663, %v663
    %v1048 = vmul.f32 %v664, %v664
    %v1049 = vmul.f32 %v665, %v665
    %v1050 = vmul.f32 %v666, %v666
    %v1051 = vmul.f32 %v667, %v667
    %v1052 = vmul.f32 %v668, %v668
    %v1053 = vmul.f32 %v669, %v669
    %v1054 = vmul.f32 %v670, %v670
    %v1055 = vmul.f32 %v671, %v671
    %v1056 = vmul.f32 %v672, %v672
    %v1057 = vmul.f32 %v673, %v673
    %v1058 = vmul.f32 %v674, %v674
    %v1059 = vmul.f32 %v675, %v675
    %v1060 = vmul.f32 %v676, %v676
    %v1061 = vmul.f32 %v677, %v677
    %v1062 = vmul.f32 %v678, %v678
    %v1063 = vmul.f32 %v679, %v679
    %v1064 = vmul.f32 %v680, %v680
    %v1065 = vmul.f32 %v681, %v681
    %v1066 = vmul.f32 %v682, %v682
    %v1067 = vmul.f32 %v683, %v683
    %v1068 = vmul.f32 %v684, %v684
    %v1069 = vmul.f32 %v685, %v685
    %v1070 = vmul.f32 %v686, %v686
    %v1071 = vmul.f32 %v687, %v687
    %v1072 = vmul.f32 %v688, %v688
    %v1073 = vmul.f32 %v689, %v689
    %v1074 = vmul.f32 %v690, %v690
    %v1075 = vmul.f32 %v691, %v691
    %v1076 = vmul.f32 %v692, %v692
    %v1077 = vmul.f32 %v693, %v693
    %v1078 = vmul.f32 %v694, %v694
    %v1079 = vmul.f32 %v695, %v695
    %v1080 = vmul.f32 %v696, %v696
    %v1081 = vmul.f32 %v697, %v697
    %v1082 = vmul.f32 %v698, %v698
    %v1083 = vmul.f32 %v699, %v699
    %v1084 = vmul.f32 %v700, %v700
    %v1085 = vmul.f32 %v701, %v701
    %v1086 = vmul.f32 %v702, %v702
    %v1087 = vmul.f32 %v703, %v703
    %v1088 = vmul.f32 %v704, %v704
    %v1089 = vmul.f32 %v705, %v705
    %v1090 = vmul.f32 %v706, %v706
    %v1091 = vmul.f32 %v707, %v707
    %v1092 = vmul.f32 %v708, %v708
    %v1093 = vmul.f32 %v709, %v709
    %v1094 = vmul.f32 %v710, %v710
    %v1095 = vmul.f32 %v711, %v711
    %v1096 = vmul.f32 %v712, %v712
    %v1097 = vmul.f32 %v713, %v713
    %v1098 = vmul.f32 %v714, %v714
    %v1099 = vmul.f32 %v715, %v715
    %v1100 = vmul.f32 %v716, %v716
    %v1101 = vmul.f32 %v717, %v717
    %v1102 = vmul.f32 %v718, %v718
    %v1103 = vmul.f32 %v719, %v719
    %v1104 = vmul.f32 %v720, %v720
    %v1105 = vmul.f32 %v721, %v721
    %v1106 = vmul.f32 %v722, %v722
    %v1107 = vmul.f32 %v723, %v723
    %v1108 = vmul.f32 %v724, %v724
    %v1109 = vmul.f32 %v725, %v725
    %v1110 = vmul.f32 %v726, %v726
    %v1111 = vmul.f32 %v727, %v727
    %v1112 = vmul.f32 %v728, %v728
    %v1113 = vmul.f32 %v729, %v729
    %v1114 = vmul.f32 %v730, %v730
    %v1115 = vmul.f32 %v731, %v731
    %v1116 = vmul.f32 %v732, %v732
    %v1117 = vmul.f32 %v733, %v733
    %v1118 = vmul.f32 %v734, %v734
    %v1119 = vmul.f32 %v735, %v735
    %v1120 = vmul.f32 %v736, %v736
    %v1121 = vmul.f32 %v737, %v737
    %v1122 = vmul.f32 %v738, %v738
    %v1123 = vmul.f32 %v739, %v739
    %v1124 = vmul.f32 %v740, %v740
    %v1125 = vmul.f32 %v741, %v741
    %v1126 = vmul.f32 %v742, %v742
    %v1127 = vmul.f32 %v743, %v743
    %v1128 = vmul.f32 %v744, %v744
    %v1129 = vmul.f32 %v745, %v745
    %v1130 = vmul.f32 %v746, %v746
    %v1131 = vmul.f32 %v747, %v747
    %v1132 = vmul.f32 %v748, %v748
    %v1133 = vmul.f32 %v749, %v749
    %v1134 = vmul.f32 %v750, %v750
    %v1135 = vmul.f32 %v751, %v751
    %v1136 = vmul.f32 %v752, %v752
    %v1137 = vmul.f32 %v753, %v753
    %v1138 = vmul.f32 %v754, %v754
    %v1139 = vmul.f32 %v755, %v755
    %v1140 = vmul.f32 %v756, %v756
    %v1141 = vmul.f32 %v757, %v757
    %v1142 = vmul.f32 %v758, %v758
    %v1143 = vmul.f32 %v759, %v759
    %v1144 = vmul.f32 %v760, %v760
    %v1145 = vmul.f32 %v761, %v761
    %v1146 = vmul.f32 %v762, %v762
    %v1147 = vmul.f32 %v763, %v763
    %v1148 = vmul.f32 %v764, %v764
    %v1149 = vmul.f32 %v765, %v765
    %v1150 = vmul.f32 %v766, %v766
    %v1151 = vmul.f32 %v767, %v767
    %v1152 = vmul.f32 %v768, %v768
    %v1153 = vmul.f32 %v769, %v769
    %v1154 = vmul.f32 %v770, %v770
    %v1155 = vmul.f32 %v771, %v771
    %v1156 = vmul.f32 %v772, %v772
    %v1157 = vmul.f32 %v773, %v773
    %v1158 = vmul.f32 %v774, %v774
    %v1159 = vmul.f32 %v775, %v775
    %v1160 = vmul.f32 %v776, %v776
    %v1161 = vmul.f32 %v777, %v777
    %v1162 = vmul.f32 %v778, %v778
    %v1163 = vmul.f32 %v779, %v779
    %v1164 = vmul.f32 %v780, %v780
    %v1165 = vmul.f32 %v781, %v781
    %v1166 = vmul.f32 %v782, %v782
    %v1167 = vmul.f32 %v783, %v783
    %v1168 = vmul.f32 %v784, %v784
    %v1169 = vmul.f32 %v785, %v785
    %v1170 = vmul.f32 %v786, %v786
    %v1171 = vmul.f32 %v787, %v787
    %v1172 = vmul.f32 %v788, %v788
    %v1173 = vmul.f32 %v789, %v789
    %v1174 = vmul.f32 %v790, %v790
    %v1175 = vmul.f32 %v791, %v791
    %v1176 = vmul.f32 %v792, %v792
    %v1177 = vmul.f32 %v793, %v793
    %v1178 = vmul.f32 %v794, %v794
    %v1179 = vmul.f32 %v795, %v795
    %v1180 = vmul.f32 %v796, %v796
    %v1181 = vmul.f32 %v797, %v797
    %v1182 = vmul.f32 %v798, %v798
    %v1183 = vmul.f32 %v799, %v799
    %v1184 = vmul.f32 %v800, %v800
    %v1185 = vmul.f32 %v801, %v801
    %v1186 = vmul.f32 %v802, %v802
    %v1187 = vmul.f32 %v803, %v803
    %v1188 = vmul.f32 %v804, %v804
    %v1189 = vmul.f32 %v805, %v805
    %v1190 = vmul.f32 %v806, %v806
    %v1191 = vmul.f32 %v807, %v807
    %v1192 = vmul.f32 %v808, %v808
    %v1193 = vmul.f32 %v809, %v809
    %v1194 = vmul.f32 %v810, %v810
    %v1195 = vmul.f32 %v811, %v811
    %v1196 = vmul.f32 %v812, %v812
    %v1197 = vmul.f32 %v813, %v429
    %v1198 = vmul.f32 %v814, %v430
    %v1199 = vmul.f32 %v815, %v431
    %v1200 = vmul.f32 %v816, %v432
    %v1201 = vmul.f32 %v817, %v433
    %v1202 = vmul.f32 %v818, %v434
    %v1203 = vmul.f32 %v819, %v435
    %v1204 = vmul.f32 %v820, %v436
    %v1205 = vmul.f32 %v821, %v437
    %v1206 = vmul.f32 %v822, %v438
    %v1207 = vmul.f32 %v823, %v439
    %v1208 = vmul.f32 %v824, %v440
    %v1209 = vmul.f32 %v825, %v441
    %v1210 = vmul.f32 %v826, %v442
    %v1211 = vmul.f32 %v827, %v443
    %v1212 = vmul.f32 %v828, %v444
    %v1213 = vmul.f32 %v829, %v445
    %v1214 = vmul.f32 %v830, %v446
    %v1215 = vmul.f32 %v831, %v447
    %v1216 = vmul.f32 %v832, %v448
    %v1217 = vmul.f32 %v833, %v449
    %v1218 = vmul.f32 %v834, %v450
    %v1219 = vmul.f32 %v835, %v451
    %v1220 = vmul.f32 %v836, %v452
    %v1221 = vmul.f32 %v837, %v453
    %v1222 = vmul.f32 %v838, %v454
    %v1223 = vmul.f32 %v839, %v455
    %v1224 = vmul.f32 %v840, %v456
    %v1225 = vmul.f32 %v841, %v457
    %v1226 = vmul.f32 %v842, %v458
    %v1227 = vmul.f32 %v843, %v459
    %v1228 = vmul.f32 %v844, %v460
    %v1229 = vmul.f32 %v845, %v461
    %v1230 = vmul.f32 %v846, %v462
    %v1231 = vmul.f32 %v847, %v463
    %v1232 = vmul.f32 %v848, %v464
    %v1233 = vmul.f32 %v849, %v465
    %v1234 = vmul.f32 %v850, %v466
    %v1235 = vmul.f32 %v851, %v467
    %v1236 = vmul.f32 %v852, %v468
    %v1237 = vmul.f32 %v853, %v469
    %v1238 = vmul.f32 %v854, %v470
    %v1239 = vmul.f32 %v855, %v471
    %v1240 = vmul.f32 %v856, %v472
    %v1241 = vmul.f32 %v857, %v473
    %v1242 = vmul.f32 %v858, %v474
    %v1243 = vmul.f32 %v859, %v475
    %v1244 = vmul.f32 %v860, %v476
    %v1245 = vmul.f32 %v861, %v477
    %v1246 = vmul.f32 %v862, %v478
    %v1247 = vmul.f32 %v863, %v479
    %v1248 = vmul.f32 %v864, %v480
    %v1249 = vmul.f32 %v865, %v481
    %v1250 = vmul.f32 %v866, %v482
    %v1251 = vmul.f32 %v867, %v483
    %v1252 = vmul.f32 %v868, %v484
    %v1253 = vmul.f32 %v869, %v485
    %v1254 = vmul.f32 %v870, %v486
    %v1255 = vmul.f32 %v871, %v487
    %v1256 = vmul.f32 %v872, %v488
    %v1257 = vmul.f32 %v873, %v489
    %v1258 = vmul.f32 %v874, %v490
    %v1259 = vmul.f32 %v875, %v491
    %v1260 = vmul.f32 %v876, %v492
    %v1261 = vmul.f32 %v877, %v493
    %v1262 = vmul.f32 %v878, %v494
    %v1263 = vmul.f32 %v879, %v495
    %v1264 = vmul.f32 %v880, %v496
    %v1265 = vmul.f32 %v881, %v497
    %v1266 = vmul.f32 %v882, %v498
    %v1267 = vmul.f32 %v883, %v499
    %v1268 = vmul.f32 %v884, %v500
    %v1269 = vmul.f32 %v885, %v501
    %v1270 = vmul.f32 %v886, %v502
    %v1271 = vmul.f32 %v887, %v503
    %v1272 = vmul.f32 %v888, %v504
    %v1273 = vmul.f32 %v889, %v505
    %v1274 = vmul.f32 %v890, %v506
    %v1275 = vmul.f32 %v891, %v507
    %v1276 = vmul.f32 %v892, %v508
    %v1277 = vmul.f32 %v893, %v509
    %v1278 = vmul.f32 %v894, %v510
    %v1279 = vmul.f32 %v895, %v511
    %v1280 = vmul.f32 %v896, %v512
    %v1281 = vmul.f32 %v897, %v513
    %v1282 = vmul.f32 %v898, %v514
    %v1283 = vmul.f32 %v899, %v515
    %v1284 = vmul.f32 %v900, %v516
    %v1285 = vmul.f32 %v901, %v517
    %v1286 = vmul.f32 %v902, %v518
    %v1287 = vmul.f32 %v903, %v519
    %v1288 = vmul.f32 %v904, %v520
    %v1289 = vmul.f32 %v905, %v521
    %v1290 = vmul.f32 %v906, %v522
    %v1291 = vmul.f32 %v907, %v523
    %v1292 = vmul.f32 %v908, %v524
    %v1293 = vmul.f32 %v909, %v525
    %v1294 = vmul.f32 %v910, %v526
    %v1295 = vmul.f32 %v911, %v527
    %v1296 = vmul.f32 %v912, %v528
    %v1297 = vmul.f32 %v913, %v529
    %v1298 = vmul.f32 %v914, %v530
    %v1299 = vmul.f32 %v915, %v531
    %v1300 = vmul.f32 %v916, %v532
    %v1301 = vmul.f32 %v917, %v533
    %v1302 = vmul.f32 %v918, %v534
    %v1303 = vmul.f32 %v919, %v535
    %v1304 = vmul.f32 %v920, %v536
    %v1305 = vmul.f32 %v921, %v537
    %v1306 = vmul.f32 %v922, %v538
    %v1307 = vmul.f32 %v923, %v539
    %v1308 = vmul.f32 %v924, %v540
    %v1309 = vmul.f32 %v925, %v541
    %v1310 = vmul.f32 %v926, %v542
    %v1311 = vmul.f32 %v927, %v543
    %v1312 = vmul.f32 %v928, %v544
    %v1313 = vmul.f32 %v929, %v545
    %v1314 = vmul.f32 %v930, %v546
    %v1315 = vmul.f32 %v931, %v547
    %v1316 = vmul.f32 %v932, %v548
    %v1317 = vmul.f32 %v933, %v549
    %v1318 = vmul.f32 %v934, %v550
    %v1319 = vmul.f32 %v935, %v551
    %v1320 = vmul.f32 %v936, %v552
    %v1321 = vmul.f32 %v937, %v553
    %v1322 = vmul.f32 %v938, %v554
    %v1323 = vmul.f32 %v939, %v555
    %v1324 = vmul.f32 %v940, %v556
    %v1325 = vmul.f32 %v941, %v557
    %v1326 = vmul.f32 %v942, %v558
    %v1327 = vmul.f32 %v943, %v559
    %v1328 = vmul.f32 %v944, %v560
    %v1329 = vmul.f32 %v945, %v561
    %v1330 = vmul.f32 %v946, %v562
    %v1331 = vmul.f32 %v947, %v563
    %v1332 = vmul.f32 %v948, %v564
    %v1333 = vmul.f32 %v949, %v565
    %v1334 = vmul.f32 %v950, %v566
    %v1335 = vmul.f32 %v951, %v567
    %v1336 = vmul.f32 %v952, %v568
    %v1337 = vmul.f32 %v953, %v569
    %v1338 = vmul.f32 %v954, %v570
    %v1339 = vmul.f32 %v955, %v571
    %v1340 = vmul.f32 %v956, %v572
    %v1341 = vmul.f32 %v957, %v573
    %v1342 = vmul.f32 %v958, %v574
    %v1343 = vmul.f32 %v959, %v575
    %v1344 = vmul.f32 %v960, %v576
    %v1345 = vmul.f32 %v961, %v577
    %v1346 = vmul.f32 %v962, %v578
    %v1347 = vmul.f32 %v963, %v579
    %v1348 = vmul.f32 %v964, %v580
    %v1349 = vmul.f32 %v965, %v581
    %v1350 = vmul.f32 %v966, %v582
    %v1351 = vmul.f32 %v967, %v583
    %v1352 = vmul.f32 %v968, %v584
    %v1353 = vmul.f32 %v969, %v585
    %v1354 = vmul.f32 %v970, %v586
    %v1355 = vmul.f32 %v971, %v587
    %v1356 = vmul.f32 %v972, %v588
    %v1357 = vmul.f32 %v973, %v589
    %v1358 = vmul.f32 %v974, %v590
    %v1359 = vmul.f32 %v975, %v591
    %v1360 = vmul.f32 %v976, %v592
    %v1361 = vmul.f32 %v977, %v593
    %v1362 = vmul.f32 %v978, %v594
    %v1363 = vmul.f32 %v979, %v595
    %v1364 = vmul.f32 %v980, %v596
    %v1365 = vmul.f32 %v981, %v597
    %v1366 = vmul.f32 %v982, %v598
    %v1367 = vmul.f32 %v983, %v599
    %v1368 = vmul.f32 %v984, %v600
    %v1369 = vmul.f32 %v985, %v601
    %v1370 = vmul.f32 %v986, %v602
    %v1371 = vmul.f32 %v987, %v603
    %v1372 = vmul.f32 %v988, %v604
    %v1373 = vmul.f32 %v989, %v605
    %v1374 = vmul.f32 %v990, %v606
    %v1375 = vmul.f32 %v991, %v607
    %v1376 = vmul.f32 %v992, %v608
    %v1377 = vmul.f32 %v993, %v609
    %v1378 = vmul.f32 %v994, %v610
    %v1379 = vmul.f32 %v995, %v611
    %v1380 = vmul.f32 %v996, %v612
    %v1381 = vmul.f32 %v997, %v613
    %v1382 = vmul.f32 %v998, %v614
    %v1383 = vmul.f32 %v999, %v615
    %v1384 = vmul.f32 %v1000, %v616
    %v1385 = vmul.f32 %v1001, %v617
    %v1386 = vmul.f32 %v1002, %v618
    %v1387 = vmul.f32 %v1003, %v619
    %v1388 = vmul.f32 %v1004, %v620
    %v1389 = vmul.f32 %v1005, %v621
    %v1390 = vmul.f32 %v1006, %v622
    %v1391 = vmul.f32 %v1007, %v623
    %v1392 = vmul.f32 %v1008, %v624
    %v1393 = vmul.f32 %v1009, %v625
    %v1394 = vmul.f32 %v1010, %v626
    %v1395 = vmul.f32 %v1011, %v627
    %v1396 = vmul.f32 %v1012, %v628
    %v1397 = vmul.f32 %v1013, %v629
    %v1398 = vmul.f32 %v1014, %v630
    %v1399 = vmul.f32 %v1015, %v631
    %v1400 = vmul.f32 %v1016, %v632
    %v1401 = vmul.f32 %v1017, %v633
    %v1402 = vmul.f32 %v1018, %v634
    %v1403 = vmul.f32 %v1019, %v635
    %v1404 = vmul.f32 %v1020, %v636
    %v1405 = vmul.f32 %v1021, %v637
    %v1406 = vmul.f32 %v1022, %v638
    %v1407 = vmul.f32 %v1023, %v639
    %v1408 = vmul.f32 %v1024, %v640
    %v1409 = vmul.f32 %v1025, %v641
    %v1410 = vmul.f32 %v1026, %v642
    %v1411 = vmul.f32 %v1027, %v643
    %v1412 = vmul.f32 %v1028, %v644
    %v1413 = vmul.f32 %v1029, %v645
    %v1414 = vmul.f32 %v1030, %v646
    %v1415 = vmul.f32 %v1031, %v647
    %v1416 = vmul.f32 %v1032, %v648
    %v1417 = vmul.f32 %v1033, %v649
    %v1418 = vmul.f32 %v1034, %v650
    %v1419 = vmul.f32 %v1035, %v651
    %v1420 = vmul.f32 %v1036, %v652
    %v1421 = vmul.f32 %v1037, %v653
    %v1422 = vmul.f32 %v1038, %v654
    %v1423 = vmul.f32 %v1039, %v655
    %v1424 = vmul.f32 %v1040, %v656
    %v1425 = vmul.f32 %v1041, %v657
    %v1426 = vmul.f32 %v1042, %v658
    %v1427 = vmul.f32 %v1043, %v659
    %v1428 = vmul.f32 %v1044, %v660
    %v1429 = vmul.f32 %v1045, %v661
    %v1430 = vmul.f32 %v1046, %v662
    %v1431 = vmul.f32 %v1047, %v663
    %v1432 = vmul.f32 %v1048, %v664
    %v1433 = vmul.f32 %v1049, %v665
    %v1434 = vmul.f32 %v1050, %v666
    %v1435 = vmul.f32 %v1051, %v667
    %v1436 = vmul.f32 %v1052, %v668
    %v1437 = vmul.f32 %v1053, %v669
    %v1438 = vmul.f32 %v1054, %v670
    %v1439 = vmul.f32 %v1055, %v671
    %v1440 = vmul.f32 %v1056, %v672
    %v1441 = vmul.f32 %v1057, %v673
    %v1442 = vmul.f32 %v1058, %v674
    %v1443 = vmul.f32 %v1059, %v675
    %v1444 = vmul.f32 %v1060, %v676
    %v1445 = vmul.f32 %v1061, %v677
    %v1446 = vmul.f32 %v1062, %v678
    %v1447 = vmul.f32 %v1063, %v679
    %v1448 = vmul.f32 %v1064, %v680
    %v1449 = vmul.f32 %v1065, %v681
    %v1450 = vmul.f32 %v1066, %v682
    %v1451 = vmul.f32 %v1067, %v683
    %v1452 = vmul.f32 %v1068, %v684
    %v1453 = vmul.f32 %v1069, %v685
    %v1454 = vmul.f32 %v1070, %v686
    %v1455 = vmul.f32 %v1071, %v687
    %v1456 = vmul.f32 %v1072, %v688
    %v1457 = vmul.f32 %v1073, %v689
    %v1458 = vmul.f32 %v1074, %v690
    %v1459 = vmul.f32 %v1075, %v691
    %v1460 = vmul.f32 %v1076, %v692
    %v1461 = vmul.f32 %v1077, %v693
    %v1462 = vmul.f32 %v1078, %v694
    %v1463 = vmul.f32 %v1079, %v695
    %v1464 = vmul.f32 %v1080, %v696
    %v1465 = vmul.f32 %v1081, %v697
    %v1466 = vmul.f32 %v1082, %v698
    %v1467 = vmul.f32 %v1083, %v699
    %v1468 = vmul.f32 %v1084, %v700
    %v1469 = vmul.f32 %v1085, %v701
    %v1470 = vmul.f32 %v1086, %v702
    %v1471 = vmul.f32 %v1087, %v703
    %v1472 = vmul.f32 %v1088, %v704
    %v1473 = vmul.f32 %v1089, %v705
    %v1474 = vmul.f32 %v1090, %v706
    %v1475 = vmul.f32 %v1091, %v707
    %v1476 = vmul.f32 %v1092, %v708
    %v1477 = vmul.f32 %v1093, %v709
    %v1478 = vmul.f32 %v1094, %v710
    %v1479 = vmul.f32 %v1095, %v711
    %v1480 = vmul.f32 %v1096, %v712
    %v1481 = vmul.f32 %v1097, %v713
    %v1482 = vmul.f32 %v1098, %v714
    %v1483 = vmul.f32 %v1099, %v715
    %v1484 = vmul.f32 %v1100, %v716
    %v1485 = vmul.f32 %v1101, %v717
    %v1486 = vmul.f32 %v1102, %v718
    %v1487 = vmul.f32 %v1103, %v719
    %v1488 = vmul.f32 %v1104, %v720
    %v1489 = vmul.f32 %v1105, %v721
    %v1490 = vmul.f32 %v1106, %v722
    %v1491 = vmul.f32 %v1107, %v723
    %v1492 = vmul.f32 %v1108, %v724
    %v1493 = vmul.f32 %v1109, %v725
    %v1494 = vmul.f32 %v1110, %v726
    %v1495 = vmul.f32 %v1111, %v727
    %v1496 = vmul.f32 %v1112, %v728
    %v1497 = vmul.f32 %v1113, %v729
    %v1498 = vmul.f32 %v1114, %v730
    %v1499 = vmul.f32 %v1115, %v731
    %v1500 = vmul.f32 %v1116, %v732
    %v1501 = vmul.f32 %v1117, %v733
    %v1502 = vmul.f32 %v1118, %v734
    %v1503 = vmul.f32 %v1119, %v735
    %v1504 = vmul.f32 %v1120, %v736
    %v1505 = vmul.f32 %v1121, %v737
    %v1506 = vmul.f32 %v1122, %v738
    %v1507 = vmul.f32 %v1123, %v739
    %v1508 = vmul.f32 %v1124, %v740
    %v1509 = vmul.f32 %v1125, %v741
    %v1510 = vmul.f32 %v1126, %v742
    %v1511 = vmul.f32 %v1127, %v743
    %v1512 = vmul.f32 %v1128, %v744
    %v1513 = vmul.f32 %v1129, %v745
    %v1514 = vmul.f32 %v1130, %v746
    %v1515 = vmul.f32 %v1131, %v747
    %v1516 = vmul.f32 %v1132, %v748
    %v1517 = vmul.f32 %v1133, %v749
    %v1518 = vmul.f32 %v1134, %v750
    %v1519 = vmul.f32 %v1135, %v751
    %v1520 = vmul.f32 %v1136, %v752
    %v1521 = vmul.f32 %v1137, %v753
    %v1522 = vmul.f32 %v1138, %v754
    %v1523 = vmul.f32 %v1139, %v755
    %v1524 = vmul.f32 %v1140, %v756
    %v1525 = vmul.f32 %v1141, %v757
    %v1526 = vmul.f32 %v1142, %v758
    %v1527 = vmul.f32 %v1143, %v759
    %v1528 = vmul.f32 %v1144, %v760
    %v1529 = vmul.f32 %v1145, %v761
    %v1530 = vmul.f32 %v1146, %v762
    %v1531 = vmul.f32 %v1147, %v763
    %v1532 = vmul.f32 %v1148, %v764
    %v1533 = vmul.f32 %v1149, %v765
    %v1534 = vmul.f32 %v1150, %v766
    %v1535 = vmul.f32 %v1151, %v767
    %v1536 = vmul.f32 %v1152, %v768
    %v1537 = vmul.f32 %v1153, %v769
    %v1538 = vmul.f32 %v1154, %v770
    %v1539 = vmul.f32 %v1155, %v771
    %v1540 = vmul.f32 %v1156, %v772
    %v1541 = vmul.f32 %v1157, %v773
    %v1542 = vmul.f32 %v1158, %v774
    %v1543 = vmul.f32 %v1159, %v775
    %v1544 = vmul.f32 %v1160, %v776
    %v1545 = vmul.f32 %v1161, %v777
    %v1546 = vmul.f32 %v1162, %v778
    %v1547 = vmul.f32 %v1163, %v779
    %v1548 = vmul.f32 %v1164, %v780
    %v1549 = vmul.f32 %v1165, %v781
    %v1550 = vmul.f32 %v1166, %v782
    %v1551 = vmul.f32 %v1167, %v783
    %v1552 = vmul.f32 %v1168, %v784
    %v1553 = vmul.f32 %v1169, %v785
    %v1554 = vmul.f32 %v1170, %v786
    %v1555 = vmul.f32 %v1171, %v787
    %v1556 = vmul.f32 %v1172, %v788
    %v1557 = vmul.f32 %v1173, %v789
    %v1558 = vmul.f32 %v1174, %v790
    %v1559 = vmul.f32 %v1175, %v791
    %v1560 = vmul.f32 %v1176, %v792
    %v1561 = vmul.f32 %v1177, %v793
    %v1562 = vmul.f32 %v1178, %v794
    %v1563 = vmul.f32 %v1179, %v795
    %v1564 = vmul.f32 %v1180, %v796
    %v1565 = vmul.f32 %v1181, %v797
    %v1566 = vmul.f32 %v1182, %v798
    %v1567 = vmul.f32 %v1183, %v799
    %v1568 = vmul.f32 %v1184, %v800
    %v1569 = vmul.f32 %v1185, %v801
    %v1570 = vmul.f32 %v1186, %v802
    %v1571 = vmul.f32 %v1187, %v803
    %v1572 = vmul.f32 %v1188, %v804
    %v1573 = vmul.f32 %v1189, %v805
    %v1574 = vmul.f32 %v1190, %v806
    %v1575 = vmul.f32 %v1191, %v807
    %v1576 = vmul.f32 %v1192, %v808
    %v1577 = vmul.f32 %v1193, %v809
    %v1578 = vmul.f32 %v1194, %v810
    %v1579 = vmul.f32 %v1195, %v811
    %v1580 = vmul.f32 %v1196, %v812
    %vm1581 = vcmask 523264
    %v1582 = vsel %vm1581, %v1197, 0.0
    %1583 = vadd.xlane.f32.xlu0 %v1582
    %v1584 = vpop.xlane.xlu0 %1583
    %v1585 = vsel %vm1581, %v1198, 0.0
    %1586 = vadd.xlane.f32.xlu0 %v1585
    %v1587 = vpop.xlane.xlu0 %1586
    %v1588 = vsel %vm1581, %v1199, 0.0
    %1589 = vadd.xlane.f32.xlu0 %v1588
    %v1590 = vpop.xlane.xlu0 %1589
    %v1591 = vsel %vm1581, %v1200, 0.0
    %1592 = vadd.xlane.f32.xlu0 %v1591
    %v1593 = vpop.xlane.xlu0 %1592
    %v1594 = vsel %vm1581, %v1201, 0.0
    %1595 = vadd.xlane.f32.xlu0 %v1594
    %v1596 = vpop.xlane.xlu0 %1595
    %v1597 = vsel %vm1581, %v1202, 0.0
    %1598 = vadd.xlane.f32.xlu0 %v1597
    %v1599 = vpop.xlane.xlu0 %1598
    %v1600 = vsel %vm1581, %v1203, 0.0
    %1601 = vadd.xlane.f32.xlu0 %v1600
    %v1602 = vpop.xlane.xlu0 %1601
    %v1603 = vsel %vm1581, %v1204, 0.0
    %1604 = vadd.xlane.f32.xlu0 %v1603
    %v1605 = vpop.xlane.xlu0 %1604
    %v1606 = vsel %vm1581, %v1205, 0.0
    %1607 = vadd.xlane.f32.xlu0 %v1606
    %v1608 = vpop.xlane.xlu0 %1607
    %v1609 = vsel %vm1581, %v1206, 0.0
    %1610 = vadd.xlane.f32.xlu0 %v1609
    %v1611 = vpop.xlane.xlu0 %1610
    %v1612 = vsel %vm1581, %v1207, 0.0
    %1613 = vadd.xlane.f32.xlu0 %v1612
    %v1614 = vpop.xlane.xlu0 %1613
    %v1615 = vsel %vm1581, %v1208, 0.0
    %1616 = vadd.xlane.f32.xlu0 %v1615
    %v1617 = vpop.xlane.xlu0 %1616
    %v1618 = vsel %vm1581, %v1209, 0.0
    %1619 = vadd.xlane.f32.xlu0 %v1618
    %v1620 = vpop.xlane.xlu0 %1619
    %v1621 = vsel %vm1581, %v1210, 0.0
    %1622 = vadd.xlane.f32.xlu0 %v1621
    %v1623 = vpop.xlane.xlu0 %1622
    %v1624 = vsel %vm1581, %v1211, 0.0
    %1625 = vadd.xlane.f32.xlu0 %v1624
    %v1626 = vpop.xlane.xlu0 %1625
    %v1627 = vsel %vm1581, %v1212, 0.0
    %1628 = vadd.xlane.f32.xlu0 %v1627
    %v1629 = vpop.xlane.xlu0 %1628
    %v1630 = vsel %vm1581, %v1213, 0.0
    %1631 = vadd.xlane.f32.xlu0 %v1630
    %v1632 = vpop.xlane.xlu0 %1631
    %v1633 = vsel %vm1581, %v1214, 0.0
    %1634 = vadd.xlane.f32.xlu0 %v1633
    %v1635 = vpop.xlane.xlu0 %1634
    %v1636 = vsel %vm1581, %v1215, 0.0
    %1637 = vadd.xlane.f32.xlu0 %v1636
    %v1638 = vpop.xlane.xlu0 %1637
    %v1639 = vsel %vm1581, %v1216, 0.0
    %1640 = vadd.xlane.f32.xlu0 %v1639
    %v1641 = vpop.xlane.xlu0 %1640
    %v1642 = vsel %vm1581, %v1217, 0.0
    %1643 = vadd.xlane.f32.xlu0 %v1642
    %v1644 = vpop.xlane.xlu0 %1643
    %v1645 = vsel %vm1581, %v1218, 0.0
    %1646 = vadd.xlane.f32.xlu0 %v1645
    %v1647 = vpop.xlane.xlu0 %1646
    %v1648 = vsel %vm1581, %v1219, 0.0
    %1649 = vadd.xlane.f32.xlu0 %v1648
    %v1650 = vpop.xlane.xlu0 %1649
    %v1651 = vsel %vm1581, %v1220, 0.0
    %1652 = vadd.xlane.f32.xlu0 %v1651
    %v1653 = vpop.xlane.xlu0 %1652
    %v1654 = vsel %vm1581, %v1221, 0.0
    %1655 = vadd.xlane.f32.xlu0 %v1654
    %v1656 = vpop.xlane.xlu0 %1655
    %v1657 = vsel %vm1581, %v1222, 0.0
    %1658 = vadd.xlane.f32.xlu0 %v1657
    %v1659 = vpop.xlane.xlu0 %1658
    %v1660 = vsel %vm1581, %v1223, 0.0
    %1661 = vadd.xlane.f32.xlu0 %v1660
    %v1662 = vpop.xlane.xlu0 %1661
    %v1663 = vsel %vm1581, %v1224, 0.0
    %1664 = vadd.xlane.f32.xlu0 %v1663
    %v1665 = vpop.xlane.xlu0 %1664
    %v1666 = vsel %vm1581, %v1225, 0.0
    %1667 = vadd.xlane.f32.xlu0 %v1666
    %v1668 = vpop.xlane.xlu0 %1667
    %v1669 = vsel %vm1581, %v1226, 0.0
    %1670 = vadd.xlane.f32.xlu0 %v1669
    %v1671 = vpop.xlane.xlu0 %1670
    %v1672 = vsel %vm1581, %v1227, 0.0
    %1673 = vadd.xlane.f32.xlu0 %v1672
    %v1674 = vpop.xlane.xlu0 %1673
    %v1675 = vsel %vm1581, %v1228, 0.0
    %1676 = vadd.xlane.f32.xlu0 %v1675
    %v1677 = vpop.xlane.xlu0 %1676
    %v1678 = vsel %vm1581, %v1229, 0.0
    %1679 = vadd.xlane.f32.xlu0 %v1678
    %v1680 = vpop.xlane.xlu0 %1679
    %v1681 = vsel %vm1581, %v1230, 0.0
    %1682 = vadd.xlane.f32.xlu0 %v1681
    %v1683 = vpop.xlane.xlu0 %1682
    %v1684 = vsel %vm1581, %v1231, 0.0
    %1685 = vadd.xlane.f32.xlu0 %v1684
    %v1686 = vpop.xlane.xlu0 %1685
    %v1687 = vsel %vm1581, %v1232, 0.0
    %1688 = vadd.xlane.f32.xlu0 %v1687
    %v1689 = vpop.xlane.xlu0 %1688
    %v1690 = vsel %vm1581, %v1233, 0.0
    %1691 = vadd.xlane.f32.xlu0 %v1690
    %v1692 = vpop.xlane.xlu0 %1691
    %v1693 = vsel %vm1581, %v1234, 0.0
    %1694 = vadd.xlane.f32.xlu0 %v1693
    %v1695 = vpop.xlane.xlu0 %1694
    %v1696 = vsel %vm1581, %v1235, 0.0
    %1697 = vadd.xlane.f32.xlu0 %v1696
    %v1698 = vpop.xlane.xlu0 %1697
    %v1699 = vsel %vm1581, %v1236, 0.0
    %1700 = vadd.xlane.f32.xlu0 %v1699
    %v1701 = vpop.xlane.xlu0 %1700
    %v1702 = vsel %vm1581, %v1237, 0.0
    %1703 = vadd.xlane.f32.xlu0 %v1702
    %v1704 = vpop.xlane.xlu0 %1703
    %v1705 = vsel %vm1581, %v1238, 0.0
    %1706 = vadd.xlane.f32.xlu0 %v1705
    %v1707 = vpop.xlane.xlu0 %1706
    %v1708 = vsel %vm1581, %v1239, 0.0
    %1709 = vadd.xlane.f32.xlu0 %v1708
    %v1710 = vpop.xlane.xlu0 %1709
    %v1711 = vsel %vm1581, %v1240, 0.0
    %1712 = vadd.xlane.f32.xlu0 %v1711
    %v1713 = vpop.xlane.xlu0 %1712
    %v1714 = vsel %vm1581, %v1241, 0.0
    %1715 = vadd.xlane.f32.xlu0 %v1714
    %v1716 = vpop.xlane.xlu0 %1715
    %v1717 = vsel %vm1581, %v1242, 0.0
    %1718 = vadd.xlane.f32.xlu0 %v1717
    %v1719 = vpop.xlane.xlu0 %1718
    %v1720 = vsel %vm1581, %v1243, 0.0
    %1721 = vadd.xlane.f32.xlu0 %v1720
    %v1722 = vpop.xlane.xlu0 %1721
    %v1723 = vsel %vm1581, %v1244, 0.0
    %1724 = vadd.xlane.f32.xlu0 %v1723
    %v1725 = vpop.xlane.xlu0 %1724
    %v1726 = vsel %vm1581, %v1245, 0.0
    %1727 = vadd.xlane.f32.xlu0 %v1726
    %v1728 = vpop.xlane.xlu0 %1727
    %v1729 = vsel %vm1581, %v1246, 0.0
    %1730 = vadd.xlane.f32.xlu0 %v1729
    %v1731 = vpop.xlane.xlu0 %1730
    %v1732 = vsel %vm1581, %v1247, 0.0
    %1733 = vadd.xlane.f32.xlu0 %v1732
    %v1734 = vpop.xlane.xlu0 %1733
    %v1735 = vsel %vm1581, %v1248, 0.0
    %1736 = vadd.xlane.f32.xlu0 %v1735
    %v1737 = vpop.xlane.xlu0 %1736
    %v1738 = vsel %vm1581, %v1249, 0.0
    %1739 = vadd.xlane.f32.xlu0 %v1738
    %v1740 = vpop.xlane.xlu0 %1739
    %v1741 = vsel %vm1581, %v1250, 0.0
    %1742 = vadd.xlane.f32.xlu0 %v1741
    %v1743 = vpop.xlane.xlu0 %1742
    %v1744 = vsel %vm1581, %v1251, 0.0
    %1745 = vadd.xlane.f32.xlu0 %v1744
    %v1746 = vpop.xlane.xlu0 %1745
    %v1747 = vsel %vm1581, %v1252, 0.0
    %1748 = vadd.xlane.f32.xlu0 %v1747
    %v1749 = vpop.xlane.xlu0 %1748
    %v1750 = vsel %vm1581, %v1253, 0.0
    %1751 = vadd.xlane.f32.xlu0 %v1750
    %v1752 = vpop.xlane.xlu0 %1751
    %v1753 = vsel %vm1581, %v1254, 0.0
    %1754 = vadd.xlane.f32.xlu0 %v1753
    %v1755 = vpop.xlane.xlu0 %1754
    %v1756 = vsel %vm1581, %v1255, 0.0
    %1757 = vadd.xlane.f32.xlu0 %v1756
    %v1758 = vpop.xlane.xlu0 %1757
    %v1759 = vsel %vm1581, %v1256, 0.0
    %1760 = vadd.xlane.f32.xlu0 %v1759
    %v1761 = vpop.xlane.xlu0 %1760
    %v1762 = vsel %vm1581, %v1257, 0.0
    %1763 = vadd.xlane.f32.xlu0 %v1762
    %v1764 = vpop.xlane.xlu0 %1763
    %v1765 = vsel %vm1581, %v1258, 0.0
    %1766 = vadd.xlane.f32.xlu0 %v1765
    %v1767 = vpop.xlane.xlu0 %1766
    %v1768 = vsel %vm1581, %v1259, 0.0
    %1769 = vadd.xlane.f32.xlu0 %v1768
    %v1770 = vpop.xlane.xlu0 %1769
    %v1771 = vsel %vm1581, %v1260, 0.0
    %1772 = vadd.xlane.f32.xlu0 %v1771
    %v1773 = vpop.xlane.xlu0 %1772
    %v1774 = vsel %vm1581, %v1261, 0.0
    %1775 = vadd.xlane.f32.xlu0 %v1774
    %v1776 = vpop.xlane.xlu0 %1775
    %v1777 = vsel %vm1581, %v1262, 0.0
    %1778 = vadd.xlane.f32.xlu0 %v1777
    %v1779 = vpop.xlane.xlu0 %1778
    %v1780 = vsel %vm1581, %v1263, 0.0
    %1781 = vadd.xlane.f32.xlu0 %v1780
    %v1782 = vpop.xlane.xlu0 %1781
    %v1783 = vsel %vm1581, %v1264, 0.0
    %1784 = vadd.xlane.f32.xlu0 %v1783
    %v1785 = vpop.xlane.xlu0 %1784
    %v1786 = vsel %vm1581, %v1265, 0.0
    %1787 = vadd.xlane.f32.xlu0 %v1786
    %v1788 = vpop.xlane.xlu0 %1787
    %v1789 = vsel %vm1581, %v1266, 0.0
    %1790 = vadd.xlane.f32.xlu0 %v1789
    %v1791 = vpop.xlane.xlu0 %1790
    %v1792 = vsel %vm1581, %v1267, 0.0
    %1793 = vadd.xlane.f32.xlu0 %v1792
    %v1794 = vpop.xlane.xlu0 %1793
    %v1795 = vsel %vm1581, %v1268, 0.0
    %1796 = vadd.xlane.f32.xlu0 %v1795
    %v1797 = vpop.xlane.xlu0 %1796
    %v1798 = vsel %vm1581, %v1269, 0.0
    %1799 = vadd.xlane.f32.xlu0 %v1798
    %v1800 = vpop.xlane.xlu0 %1799
    %v1801 = vsel %vm1581, %v1270, 0.0
    %1802 = vadd.xlane.f32.xlu0 %v1801
    %v1803 = vpop.xlane.xlu0 %1802
    %v1804 = vsel %vm1581, %v1271, 0.0
    %1805 = vadd.xlane.f32.xlu0 %v1804
    %v1806 = vpop.xlane.xlu0 %1805
    %v1807 = vsel %vm1581, %v1272, 0.0
    %1808 = vadd.xlane.f32.xlu0 %v1807
    %v1809 = vpop.xlane.xlu0 %1808
    %v1810 = vsel %vm1581, %v1273, 0.0
    %1811 = vadd.xlane.f32.xlu0 %v1810
    %v1812 = vpop.xlane.xlu0 %1811
    %v1813 = vsel %vm1581, %v1274, 0.0
    %1814 = vadd.xlane.f32.xlu0 %v1813
    %v1815 = vpop.xlane.xlu0 %1814
    %v1816 = vsel %vm1581, %v1275, 0.0
    %1817 = vadd.xlane.f32.xlu0 %v1816
    %v1818 = vpop.xlane.xlu0 %1817
    %v1819 = vsel %vm1581, %v1276, 0.0
    %1820 = vadd.xlane.f32.xlu0 %v1819
    %v1821 = vpop.xlane.xlu0 %1820
    %v1822 = vsel %vm1581, %v1277, 0.0
    %1823 = vadd.xlane.f32.xlu0 %v1822
    %v1824 = vpop.xlane.xlu0 %1823
    %v1825 = vsel %vm1581, %v1278, 0.0
    %1826 = vadd.xlane.f32.xlu0 %v1825
    %v1827 = vpop.xlane.xlu0 %1826
    %v1828 = vsel %vm1581, %v1279, 0.0
    %1829 = vadd.xlane.f32.xlu0 %v1828
    %v1830 = vpop.xlane.xlu0 %1829
    %v1831 = vsel %vm1581, %v1280, 0.0
    %1832 = vadd.xlane.f32.xlu0 %v1831
    %v1833 = vpop.xlane.xlu0 %1832
    %v1834 = vsel %vm1581, %v1281, 0.0
    %1835 = vadd.xlane.f32.xlu0 %v1834
    %v1836 = vpop.xlane.xlu0 %1835
    %v1837 = vsel %vm1581, %v1282, 0.0
    %1838 = vadd.xlane.f32.xlu0 %v1837
    %v1839 = vpop.xlane.xlu0 %1838
    %v1840 = vsel %vm1581, %v1283, 0.0
    %1841 = vadd.xlane.f32.xlu0 %v1840
    %v1842 = vpop.xlane.xlu0 %1841
    %v1843 = vsel %vm1581, %v1284, 0.0
    %1844 = vadd.xlane.f32.xlu0 %v1843
    %v1845 = vpop.xlane.xlu0 %1844
    %v1846 = vsel %vm1581, %v1285, 0.0
    %1847 = vadd.xlane.f32.xlu0 %v1846
    %v1848 = vpop.xlane.xlu0 %1847
    %v1849 = vsel %vm1581, %v1286, 0.0
    %1850 = vadd.xlane.f32.xlu0 %v1849
    %v1851 = vpop.xlane.xlu0 %1850
    %v1852 = vsel %vm1581, %v1287, 0.0
    %1853 = vadd.xlane.f32.xlu0 %v1852
    %v1854 = vpop.xlane.xlu0 %1853
    %v1855 = vsel %vm1581, %v1288, 0.0
    %1856 = vadd.xlane.f32.xlu0 %v1855
    %v1857 = vpop.xlane.xlu0 %1856
    %v1858 = vsel %vm1581, %v1289, 0.0
    %1859 = vadd.xlane.f32.xlu0 %v1858
    %v1860 = vpop.xlane.xlu0 %1859
    %v1861 = vsel %vm1581, %v1290, 0.0
    %1862 = vadd.xlane.f32.xlu0 %v1861
    %v1863 = vpop.xlane.xlu0 %1862
    %v1864 = vsel %vm1581, %v1291, 0.0
    %1865 = vadd.xlane.f32.xlu0 %v1864
    %v1866 = vpop.xlane.xlu0 %1865
    %v1867 = vsel %vm1581, %v1292, 0.0
    %1868 = vadd.xlane.f32.xlu0 %v1867
    %v1869 = vpop.xlane.xlu0 %1868
    %v1870 = vsel %vm1581, %v1293, 0.0
    %1871 = vadd.xlane.f32.xlu0 %v1870
    %v1872 = vpop.xlane.xlu0 %1871
    %v1873 = vsel %vm1581, %v1294, 0.0
    %1874 = vadd.xlane.f32.xlu0 %v1873
    %v1875 = vpop.xlane.xlu0 %1874
    %v1876 = vsel %vm1581, %v1295, 0.0
    %1877 = vadd.xlane.f32.xlu0 %v1876
    %v1878 = vpop.xlane.xlu0 %1877
    %v1879 = vsel %vm1581, %v1296, 0.0
    %1880 = vadd.xlane.f32.xlu0 %v1879
    %v1881 = vpop.xlane.xlu0 %1880
    %v1882 = vsel %vm1581, %v1297, 0.0
    %1883 = vadd.xlane.f32.xlu0 %v1882
    %v1884 = vpop.xlane.xlu0 %1883
    %v1885 = vsel %vm1581, %v1298, 0.0
    %1886 = vadd.xlane.f32.xlu0 %v1885
    %v1887 = vpop.xlane.xlu0 %1886
    %v1888 = vsel %vm1581, %v1299, 0.0
    %1889 = vadd.xlane.f32.xlu0 %v1888
    %v1890 = vpop.xlane.xlu0 %1889
    %v1891 = vsel %vm1581, %v1300, 0.0
    %1892 = vadd.xlane.f32.xlu0 %v1891
    %v1893 = vpop.xlane.xlu0 %1892
    %v1894 = vsel %vm1581, %v1301, 0.0
    %1895 = vadd.xlane.f32.xlu0 %v1894
    %v1896 = vpop.xlane.xlu0 %1895
    %v1897 = vsel %vm1581, %v1302, 0.0
    %1898 = vadd.xlane.f32.xlu0 %v1897
    %v1899 = vpop.xlane.xlu0 %1898
    %v1900 = vsel %vm1581, %v1303, 0.0
    %1901 = vadd.xlane.f32.xlu0 %v1900
    %v1902 = vpop.xlane.xlu0 %1901
    %v1903 = vsel %vm1581, %v1304, 0.0
    %1904 = vadd.xlane.f32.xlu0 %v1903
    %v1905 = vpop.xlane.xlu0 %1904
    %v1906 = vsel %vm1581, %v1305, 0.0
    %1907 = vadd.xlane.f32.xlu0 %v1906
    %v1908 = vpop.xlane.xlu0 %1907
    %v1909 = vsel %vm1581, %v1306, 0.0
    %1910 = vadd.xlane.f32.xlu0 %v1909
    %v1911 = vpop.xlane.xlu0 %1910
    %v1912 = vsel %vm1581, %v1307, 0.0
    %1913 = vadd.xlane.f32.xlu0 %v1912
    %v1914 = vpop.xlane.xlu0 %1913
    %v1915 = vsel %vm1581, %v1308, 0.0
    %1916 = vadd.xlane.f32.xlu0 %v1915
    %v1917 = vpop.xlane.xlu0 %1916
    %v1918 = vsel %vm1581, %v1309, 0.0
    %1919 = vadd.xlane.f32.xlu0 %v1918
    %v1920 = vpop.xlane.xlu0 %1919
    %v1921 = vsel %vm1581, %v1310, 0.0
    %1922 = vadd.xlane.f32.xlu0 %v1921
    %v1923 = vpop.xlane.xlu0 %1922
    %v1924 = vsel %vm1581, %v1311, 0.0
    %1925 = vadd.xlane.f32.xlu0 %v1924
    %v1926 = vpop.xlane.xlu0 %1925
    %v1927 = vsel %vm1581, %v1312, 0.0
    %1928 = vadd.xlane.f32.xlu0 %v1927
    %v1929 = vpop.xlane.xlu0 %1928
    %v1930 = vsel %vm1581, %v1313, 0.0
    %1931 = vadd.xlane.f32.xlu0 %v1930
    %v1932 = vpop.xlane.xlu0 %1931
    %v1933 = vsel %vm1581, %v1314, 0.0
    %1934 = vadd.xlane.f32.xlu0 %v1933
    %v1935 = vpop.xlane.xlu0 %1934
    %v1936 = vsel %vm1581, %v1315, 0.0
    %1937 = vadd.xlane.f32.xlu0 %v1936
    %v1938 = vpop.xlane.xlu0 %1937
    %v1939 = vsel %vm1581, %v1316, 0.0
    %1940 = vadd.xlane.f32.xlu0 %v1939
    %v1941 = vpop.xlane.xlu0 %1940
    %v1942 = vsel %vm1581, %v1317, 0.0
    %1943 = vadd.xlane.f32.xlu0 %v1942
    %v1944 = vpop.xlane.xlu0 %1943
    %v1945 = vsel %vm1581, %v1318, 0.0
    %1946 = vadd.xlane.f32.xlu0 %v1945
    %v1947 = vpop.xlane.xlu0 %1946
    %v1948 = vsel %vm1581, %v1319, 0.0
    %1949 = vadd.xlane.f32.xlu0 %v1948
    %v1950 = vpop.xlane.xlu0 %1949
    %v1951 = vsel %vm1581, %v1320, 0.0
    %1952 = vadd.xlane.f32.xlu0 %v1951
    %v1953 = vpop.xlane.xlu0 %1952
    %v1954 = vsel %vm1581, %v1321, 0.0
    %1955 = vadd.xlane.f32.xlu0 %v1954
    %v1956 = vpop.xlane.xlu0 %1955
    %v1957 = vsel %vm1581, %v1322, 0.0
    %1958 = vadd.xlane.f32.xlu0 %v1957
    %v1959 = vpop.xlane.xlu0 %1958
    %v1960 = vsel %vm1581, %v1323, 0.0
    %1961 = vadd.xlane.f32.xlu0 %v1960
    %v1962 = vpop.xlane.xlu0 %1961
    %v1963 = vsel %vm1581, %v1324, 0.0
    %1964 = vadd.xlane.f32.xlu0 %v1963
    %v1965 = vpop.xlane.xlu0 %1964
    %v1966 = vsel %vm1581, %v1325, 0.0
    %1967 = vadd.xlane.f32.xlu0 %v1966
    %v1968 = vpop.xlane.xlu0 %1967
    %v1969 = vsel %vm1581, %v1326, 0.0
    %1970 = vadd.xlane.f32.xlu0 %v1969
    %v1971 = vpop.xlane.xlu0 %1970
    %v1972 = vsel %vm1581, %v1327, 0.0
    %1973 = vadd.xlane.f32.xlu0 %v1972
    %v1974 = vpop.xlane.xlu0 %1973
    %v1975 = vsel %vm1581, %v1328, 0.0
    %1976 = vadd.xlane.f32.xlu0 %v1975
    %v1977 = vpop.xlane.xlu0 %1976
    %v1978 = vsel %vm1581, %v1329, 0.0
    %1979 = vadd.xlane.f32.xlu0 %v1978
    %v1980 = vpop.xlane.xlu0 %1979
    %v1981 = vsel %vm1581, %v1330, 0.0
    %1982 = vadd.xlane.f32.xlu0 %v1981
    %v1983 = vpop.xlane.xlu0 %1982
    %v1984 = vsel %vm1581, %v1331, 0.0
    %1985 = vadd.xlane.f32.xlu0 %v1984
    %v1986 = vpop.xlane.xlu0 %1985
    %v1987 = vsel %vm1581, %v1332, 0.0
    %1988 = vadd.xlane.f32.xlu0 %v1987
    %v1989 = vpop.xlane.xlu0 %1988
    %v1990 = vsel %vm1581, %v1333, 0.0
    %1991 = vadd.xlane.f32.xlu0 %v1990
    %v1992 = vpop.xlane.xlu0 %1991
    %v1993 = vsel %vm1581, %v1334, 0.0
    %1994 = vadd.xlane.f32.xlu0 %v1993
    %v1995 = vpop.xlane.xlu0 %1994
    %v1996 = vsel %vm1581, %v1335, 0.0
    %1997 = vadd.xlane.f32.xlu0 %v1996
    %v1998 = vpop.xlane.xlu0 %1997
    %v1999 = vsel %vm1581, %v1336, 0.0
    %2000 = vadd.xlane.f32.xlu0 %v1999
    %v2001 = vpop.xlane.xlu0 %2000
    %v2002 = vsel %vm1581, %v1337, 0.0
    %2003 = vadd.xlane.f32.xlu0 %v2002
    %v2004 = vpop.xlane.xlu0 %2003
    %v2005 = vsel %vm1581, %v1338, 0.0
    %2006 = vadd.xlane.f32.xlu0 %v2005
    %v2007 = vpop.xlane.xlu0 %2006
    %v2008 = vsel %vm1581, %v1339, 0.0
    %2009 = vadd.xlane.f32.xlu0 %v2008
    %v2010 = vpop.xlane.xlu0 %2009
    %v2011 = vsel %vm1581, %v1340, 0.0
    %2012 = vadd.xlane.f32.xlu0 %v2011
    %v2013 = vpop.xlane.xlu0 %2012
    %v2014 = vsel %vm1581, %v1341, 0.0
    %2015 = vadd.xlane.f32.xlu0 %v2014
    %v2016 = vpop.xlane.xlu0 %2015
    %v2017 = vsel %vm1581, %v1342, 0.0
    %2018 = vadd.xlane.f32.xlu0 %v2017
    %v2019 = vpop.xlane.xlu0 %2018
    %v2020 = vsel %vm1581, %v1343, 0.0
    %2021 = vadd.xlane.f32.xlu0 %v2020
    %v2022 = vpop.xlane.xlu0 %2021
    %v2023 = vsel %vm1581, %v1344, 0.0
    %2024 = vadd.xlane.f32.xlu0 %v2023
    %v2025 = vpop.xlane.xlu0 %2024
    %v2026 = vsel %vm1581, %v1345, 0.0
    %2027 = vadd.xlane.f32.xlu0 %v2026
    %v2028 = vpop.xlane.xlu0 %2027
    %v2029 = vsel %vm1581, %v1346, 0.0
    %2030 = vadd.xlane.f32.xlu0 %v2029
    %v2031 = vpop.xlane.xlu0 %2030
    %v2032 = vsel %vm1581, %v1347, 0.0
    %2033 = vadd.xlane.f32.xlu0 %v2032
    %v2034 = vpop.xlane.xlu0 %2033
    %v2035 = vsel %vm1581, %v1348, 0.0
    %2036 = vadd.xlane.f32.xlu0 %v2035
    %v2037 = vpop.xlane.xlu0 %2036
    %v2038 = vsel %vm1581, %v1349, 0.0
    %2039 = vadd.xlane.f32.xlu0 %v2038
    %v2040 = vpop.xlane.xlu0 %2039
    %v2041 = vsel %vm1581, %v1350, 0.0
    %2042 = vadd.xlane.f32.xlu0 %v2041
    %v2043 = vpop.xlane.xlu0 %2042
    %v2044 = vsel %vm1581, %v1351, 0.0
    %2045 = vadd.xlane.f32.xlu0 %v2044
    %v2046 = vpop.xlane.xlu0 %2045
    %v2047 = vsel %vm1581, %v1352, 0.0
    %2048 = vadd.xlane.f32.xlu0 %v2047
    %v2049 = vpop.xlane.xlu0 %2048
    %v2050 = vsel %vm1581, %v1353, 0.0
    %2051 = vadd.xlane.f32.xlu0 %v2050
    %v2052 = vpop.xlane.xlu0 %2051
    %v2053 = vsel %vm1581, %v1354, 0.0
    %2054 = vadd.xlane.f32.xlu0 %v2053
    %v2055 = vpop.xlane.xlu0 %2054
    %v2056 = vsel %vm1581, %v1355, 0.0
    %2057 = vadd.xlane.f32.xlu0 %v2056
    %v2058 = vpop.xlane.xlu0 %2057
    %v2059 = vsel %vm1581, %v1356, 0.0
    %2060 = vadd.xlane.f32.xlu0 %v2059
    %v2061 = vpop.xlane.xlu0 %2060
    %v2062 = vsel %vm1581, %v1357, 0.0
    %2063 = vadd.xlane.f32.xlu0 %v2062
    %v2064 = vpop.xlane.xlu0 %2063
    %v2065 = vsel %vm1581, %v1358, 0.0
    %2066 = vadd.xlane.f32.xlu0 %v2065
    %v2067 = vpop.xlane.xlu0 %2066
    %v2068 = vsel %vm1581, %v1359, 0.0
    %2069 = vadd.xlane.f32.xlu0 %v2068
    %v2070 = vpop.xlane.xlu0 %2069
    %v2071 = vsel %vm1581, %v1360, 0.0
    %2072 = vadd.xlane.f32.xlu0 %v2071
    %v2073 = vpop.xlane.xlu0 %2072
    %v2074 = vsel %vm1581, %v1361, 0.0
    %2075 = vadd.xlane.f32.xlu0 %v2074
    %v2076 = vpop.xlane.xlu0 %2075
    %v2077 = vsel %vm1581, %v1362, 0.0
    %2078 = vadd.xlane.f32.xlu0 %v2077
    %v2079 = vpop.xlane.xlu0 %2078
    %v2080 = vsel %vm1581, %v1363, 0.0
    %2081 = vadd.xlane.f32.xlu0 %v2080
    %v2082 = vpop.xlane.xlu0 %2081
    %v2083 = vsel %vm1581, %v1364, 0.0
    %2084 = vadd.xlane.f32.xlu0 %v2083
    %v2085 = vpop.xlane.xlu0 %2084
    %v2086 = vsel %vm1581, %v1365, 0.0
    %2087 = vadd.xlane.f32.xlu0 %v2086
    %v2088 = vpop.xlane.xlu0 %2087
    %v2089 = vsel %vm1581, %v1366, 0.0
    %2090 = vadd.xlane.f32.xlu0 %v2089
    %v2091 = vpop.xlane.xlu0 %2090
    %v2092 = vsel %vm1581, %v1367, 0.0
    %2093 = vadd.xlane.f32.xlu0 %v2092
    %v2094 = vpop.xlane.xlu0 %2093
    %v2095 = vsel %vm1581, %v1368, 0.0
    %2096 = vadd.xlane.f32.xlu0 %v2095
    %v2097 = vpop.xlane.xlu0 %2096
    %v2098 = vsel %vm1581, %v1369, 0.0
    %2099 = vadd.xlane.f32.xlu0 %v2098
    %v2100 = vpop.xlane.xlu0 %2099
    %v2101 = vsel %vm1581, %v1370, 0.0
    %2102 = vadd.xlane.f32.xlu0 %v2101
    %v2103 = vpop.xlane.xlu0 %2102
    %v2104 = vsel %vm1581, %v1371, 0.0
    %2105 = vadd.xlane.f32.xlu0 %v2104
    %v2106 = vpop.xlane.xlu0 %2105
    %v2107 = vsel %vm1581, %v1372, 0.0
    %2108 = vadd.xlane.f32.xlu0 %v2107
    %v2109 = vpop.xlane.xlu0 %2108
    %v2110 = vsel %vm1581, %v1373, 0.0
    %2111 = vadd.xlane.f32.xlu0 %v2110
    %v2112 = vpop.xlane.xlu0 %2111
    %v2113 = vsel %vm1581, %v1374, 0.0
    %2114 = vadd.xlane.f32.xlu0 %v2113
    %v2115 = vpop.xlane.xlu0 %2114
    %v2116 = vsel %vm1581, %v1375, 0.0
    %2117 = vadd.xlane.f32.xlu0 %v2116
    %v2118 = vpop.xlane.xlu0 %2117
    %v2119 = vsel %vm1581, %v1376, 0.0
    %2120 = vadd.xlane.f32.xlu0 %v2119
    %v2121 = vpop.xlane.xlu0 %2120
    %v2122 = vsel %vm1581, %v1377, 0.0
    %2123 = vadd.xlane.f32.xlu0 %v2122
    %v2124 = vpop.xlane.xlu0 %2123
    %v2125 = vsel %vm1581, %v1378, 0.0
    %2126 = vadd.xlane.f32.xlu0 %v2125
    %v2127 = vpop.xlane.xlu0 %2126
    %v2128 = vsel %vm1581, %v1379, 0.0
    %2129 = vadd.xlane.f32.xlu0 %v2128
    %v2130 = vpop.xlane.xlu0 %2129
    %v2131 = vsel %vm1581, %v1380, 0.0
    %2132 = vadd.xlane.f32.xlu0 %v2131
    %v2133 = vpop.xlane.xlu0 %2132
    %v2134 = vsel %vm1581, %v1381, 0.0
    %2135 = vadd.xlane.f32.xlu0 %v2134
    %v2136 = vpop.xlane.xlu0 %2135
    %v2137 = vsel %vm1581, %v1382, 0.0
    %2138 = vadd.xlane.f32.xlu0 %v2137
    %v2139 = vpop.xlane.xlu0 %2138
    %v2140 = vsel %vm1581, %v1383, 0.0
    %2141 = vadd.xlane.f32.xlu0 %v2140
    %v2142 = vpop.xlane.xlu0 %2141
    %v2143 = vsel %vm1581, %v1384, 0.0
    %2144 = vadd.xlane.f32.xlu0 %v2143
    %v2145 = vpop.xlane.xlu0 %2144
    %v2146 = vsel %vm1581, %v1385, 0.0
    %2147 = vadd.xlane.f32.xlu0 %v2146
    %v2148 = vpop.xlane.xlu0 %2147
    %v2149 = vsel %vm1581, %v1386, 0.0
    %2150 = vadd.xlane.f32.xlu0 %v2149
    %v2151 = vpop.xlane.xlu0 %2150
    %v2152 = vsel %vm1581, %v1387, 0.0
    %2153 = vadd.xlane.f32.xlu0 %v2152
    %v2154 = vpop.xlane.xlu0 %2153
    %v2155 = vsel %vm1581, %v1388, 0.0
    %2156 = vadd.xlane.f32.xlu0 %v2155
    %v2157 = vpop.xlane.xlu0 %2156
    %v2158 = vsel %vm1581, %v1389, 0.0
    %2159 = vadd.xlane.f32.xlu0 %v2158
    %v2160 = vpop.xlane.xlu0 %2159
    %v2161 = vsel %vm1581, %v1390, 0.0
    %2162 = vadd.xlane.f32.xlu0 %v2161
    %v2163 = vpop.xlane.xlu0 %2162
    %v2164 = vsel %vm1581, %v1391, 0.0
    %2165 = vadd.xlane.f32.xlu0 %v2164
    %v2166 = vpop.xlane.xlu0 %2165
    %v2167 = vsel %vm1581, %v1392, 0.0
    %2168 = vadd.xlane.f32.xlu0 %v2167
    %v2169 = vpop.xlane.xlu0 %2168
    %v2170 = vsel %vm1581, %v1393, 0.0
    %2171 = vadd.xlane.f32.xlu0 %v2170
    %v2172 = vpop.xlane.xlu0 %2171
    %v2173 = vsel %vm1581, %v1394, 0.0
    %2174 = vadd.xlane.f32.xlu0 %v2173
    %v2175 = vpop.xlane.xlu0 %2174
    %v2176 = vsel %vm1581, %v1395, 0.0
    %2177 = vadd.xlane.f32.xlu0 %v2176
    %v2178 = vpop.xlane.xlu0 %2177
    %v2179 = vsel %vm1581, %v1396, 0.0
    %2180 = vadd.xlane.f32.xlu0 %v2179
    %v2181 = vpop.xlane.xlu0 %2180
    %v2182 = vsel %vm1581, %v1397, 0.0
    %2183 = vadd.xlane.f32.xlu0 %v2182
    %v2184 = vpop.xlane.xlu0 %2183
    %v2185 = vsel %vm1581, %v1398, 0.0
    %2186 = vadd.xlane.f32.xlu0 %v2185
    %v2187 = vpop.xlane.xlu0 %2186
    %v2188 = vsel %vm1581, %v1399, 0.0
    %2189 = vadd.xlane.f32.xlu0 %v2188
    %v2190 = vpop.xlane.xlu0 %2189
    %v2191 = vsel %vm1581, %v1400, 0.0
    %2192 = vadd.xlane.f32.xlu0 %v2191
    %v2193 = vpop.xlane.xlu0 %2192
    %v2194 = vsel %vm1581, %v1401, 0.0
    %2195 = vadd.xlane.f32.xlu0 %v2194
    %v2196 = vpop.xlane.xlu0 %2195
    %v2197 = vsel %vm1581, %v1402, 0.0
    %2198 = vadd.xlane.f32.xlu0 %v2197
    %v2199 = vpop.xlane.xlu0 %2198
    %v2200 = vsel %vm1581, %v1403, 0.0
    %2201 = vadd.xlane.f32.xlu0 %v2200
    %v2202 = vpop.xlane.xlu0 %2201
    %v2203 = vsel %vm1581, %v1404, 0.0
    %2204 = vadd.xlane.f32.xlu0 %v2203
    %v2205 = vpop.xlane.xlu0 %2204
    %v2206 = vsel %vm1581, %v1405, 0.0
    %2207 = vadd.xlane.f32.xlu0 %v2206
    %v2208 = vpop.xlane.xlu0 %2207
    %v2209 = vsel %vm1581, %v1406, 0.0
    %2210 = vadd.xlane.f32.xlu0 %v2209
    %v2211 = vpop.xlane.xlu0 %2210
    %v2212 = vsel %vm1581, %v1407, 0.0
    %2213 = vadd.xlane.f32.xlu0 %v2212
    %v2214 = vpop.xlane.xlu0 %2213
    %v2215 = vsel %vm1581, %v1408, 0.0
    %2216 = vadd.xlane.f32.xlu0 %v2215
    %v2217 = vpop.xlane.xlu0 %2216
    %v2218 = vsel %vm1581, %v1409, 0.0
    %2219 = vadd.xlane.f32.xlu0 %v2218
    %v2220 = vpop.xlane.xlu0 %2219
    %v2221 = vsel %vm1581, %v1410, 0.0
    %2222 = vadd.xlane.f32.xlu0 %v2221
    %v2223 = vpop.xlane.xlu0 %2222
    %v2224 = vsel %vm1581, %v1411, 0.0
    %2225 = vadd.xlane.f32.xlu0 %v2224
    %v2226 = vpop.xlane.xlu0 %2225
    %v2227 = vsel %vm1581, %v1412, 0.0
    %2228 = vadd.xlane.f32.xlu0 %v2227
    %v2229 = vpop.xlane.xlu0 %2228
    %v2230 = vsel %vm1581, %v1413, 0.0
    %2231 = vadd.xlane.f32.xlu0 %v2230
    %v2232 = vpop.xlane.xlu0 %2231
    %v2233 = vsel %vm1581, %v1414, 0.0
    %2234 = vadd.xlane.f32.xlu0 %v2233
    %v2235 = vpop.xlane.xlu0 %2234
    %v2236 = vsel %vm1581, %v1415, 0.0
    %2237 = vadd.xlane.f32.xlu0 %v2236
    %v2238 = vpop.xlane.xlu0 %2237
    %v2239 = vsel %vm1581, %v1416, 0.0
    %2240 = vadd.xlane.f32.xlu0 %v2239
    %v2241 = vpop.xlane.xlu0 %2240
    %v2242 = vsel %vm1581, %v1417, 0.0
    %2243 = vadd.xlane.f32.xlu0 %v2242
    %v2244 = vpop.xlane.xlu0 %2243
    %v2245 = vsel %vm1581, %v1418, 0.0
    %2246 = vadd.xlane.f32.xlu0 %v2245
    %v2247 = vpop.xlane.xlu0 %2246
    %v2248 = vsel %vm1581, %v1419, 0.0
    %2249 = vadd.xlane.f32.xlu0 %v2248
    %v2250 = vpop.xlane.xlu0 %2249
    %v2251 = vsel %vm1581, %v1420, 0.0
    %2252 = vadd.xlane.f32.xlu0 %v2251
    %v2253 = vpop.xlane.xlu0 %2252
    %v2254 = vsel %vm1581, %v1421, 0.0
    %2255 = vadd.xlane.f32.xlu0 %v2254
    %v2256 = vpop.xlane.xlu0 %2255
    %v2257 = vsel %vm1581, %v1422, 0.0
    %2258 = vadd.xlane.f32.xlu0 %v2257
    %v2259 = vpop.xlane.xlu0 %2258
    %v2260 = vsel %vm1581, %v1423, 0.0
    %2261 = vadd.xlane.f32.xlu0 %v2260
    %v2262 = vpop.xlane.xlu0 %2261
    %v2263 = vsel %vm1581, %v1424, 0.0
    %2264 = vadd.xlane.f32.xlu0 %v2263
    %v2265 = vpop.xlane.xlu0 %2264
    %v2266 = vsel %vm1581, %v1425, 0.0
    %2267 = vadd.xlane.f32.xlu0 %v2266
    %v2268 = vpop.xlane.xlu0 %2267
    %v2269 = vsel %vm1581, %v1426, 0.0
    %2270 = vadd.xlane.f32.xlu0 %v2269
    %v2271 = vpop.xlane.xlu0 %2270
    %v2272 = vsel %vm1581, %v1427, 0.0
    %2273 = vadd.xlane.f32.xlu0 %v2272
    %v2274 = vpop.xlane.xlu0 %2273
    %v2275 = vsel %vm1581, %v1428, 0.0
    %2276 = vadd.xlane.f32.xlu0 %v2275
    %v2277 = vpop.xlane.xlu0 %2276
    %v2278 = vsel %vm1581, %v1429, 0.0
    %2279 = vadd.xlane.f32.xlu0 %v2278
    %v2280 = vpop.xlane.xlu0 %2279
    %v2281 = vsel %vm1581, %v1430, 0.0
    %2282 = vadd.xlane.f32.xlu0 %v2281
    %v2283 = vpop.xlane.xlu0 %2282
    %v2284 = vsel %vm1581, %v1431, 0.0
    %2285 = vadd.xlane.f32.xlu0 %v2284
    %v2286 = vpop.xlane.xlu0 %2285
    %v2287 = vsel %vm1581, %v1432, 0.0
    %2288 = vadd.xlane.f32.xlu0 %v2287
    %v2289 = vpop.xlane.xlu0 %2288
    %v2290 = vsel %vm1581, %v1433, 0.0
    %2291 = vadd.xlane.f32.xlu0 %v2290
    %v2292 = vpop.xlane.xlu0 %2291
    %v2293 = vsel %vm1581, %v1434, 0.0
    %2294 = vadd.xlane.f32.xlu0 %v2293
    %v2295 = vpop.xlane.xlu0 %2294
    %v2296 = vsel %vm1581, %v1435, 0.0
    %2297 = vadd.xlane.f32.xlu0 %v2296
    %v2298 = vpop.xlane.xlu0 %2297
    %v2299 = vsel %vm1581, %v1436, 0.0
    %2300 = vadd.xlane.f32.xlu0 %v2299
    %v2301 = vpop.xlane.xlu0 %2300
    %v2302 = vsel %vm1581, %v1437, 0.0
    %2303 = vadd.xlane.f32.xlu0 %v2302
    %v2304 = vpop.xlane.xlu0 %2303
    %v2305 = vsel %vm1581, %v1438, 0.0
    %2306 = vadd.xlane.f32.xlu0 %v2305
    %v2307 = vpop.xlane.xlu0 %2306
    %v2308 = vsel %vm1581, %v1439, 0.0
    %2309 = vadd.xlane.f32.xlu0 %v2308
    %v2310 = vpop.xlane.xlu0 %2309
    %v2311 = vsel %vm1581, %v1440, 0.0
    %2312 = vadd.xlane.f32.xlu0 %v2311
    %v2313 = vpop.xlane.xlu0 %2312
    %v2314 = vsel %vm1581, %v1441, 0.0
    %2315 = vadd.xlane.f32.xlu0 %v2314
    %v2316 = vpop.xlane.xlu0 %2315
    %v2317 = vsel %vm1581, %v1442, 0.0
    %2318 = vadd.xlane.f32.xlu0 %v2317
    %v2319 = vpop.xlane.xlu0 %2318
    %v2320 = vsel %vm1581, %v1443, 0.0
    %2321 = vadd.xlane.f32.xlu0 %v2320
    %v2322 = vpop.xlane.xlu0 %2321
    %v2323 = vsel %vm1581, %v1444, 0.0
    %2324 = vadd.xlane.f32.xlu0 %v2323
    %v2325 = vpop.xlane.xlu0 %2324
    %v2326 = vsel %vm1581, %v1445, 0.0
    %2327 = vadd.xlane.f32.xlu0 %v2326
    %v2328 = vpop.xlane.xlu0 %2327
    %v2329 = vsel %vm1581, %v1446, 0.0
    %2330 = vadd.xlane.f32.xlu0 %v2329
    %v2331 = vpop.xlane.xlu0 %2330
    %v2332 = vsel %vm1581, %v1447, 0.0
    %2333 = vadd.xlane.f32.xlu0 %v2332
    %v2334 = vpop.xlane.xlu0 %2333
    %v2335 = vsel %vm1581, %v1448, 0.0
    %2336 = vadd.xlane.f32.xlu0 %v2335
    %v2337 = vpop.xlane.xlu0 %2336
    %v2338 = vsel %vm1581, %v1449, 0.0
    %2339 = vadd.xlane.f32.xlu0 %v2338
    %v2340 = vpop.xlane.xlu0 %2339
    %v2341 = vsel %vm1581, %v1450, 0.0
    %2342 = vadd.xlane.f32.xlu0 %v2341
    %v2343 = vpop.xlane.xlu0 %2342
    %v2344 = vsel %vm1581, %v1451, 0.0
    %2345 = vadd.xlane.f32.xlu0 %v2344
    %v2346 = vpop.xlane.xlu0 %2345
    %v2347 = vsel %vm1581, %v1452, 0.0
    %2348 = vadd.xlane.f32.xlu0 %v2347
    %v2349 = vpop.xlane.xlu0 %2348
    %v2350 = vsel %vm1581, %v1453, 0.0
    %2351 = vadd.xlane.f32.xlu0 %v2350
    %v2352 = vpop.xlane.xlu0 %2351
    %v2353 = vsel %vm1581, %v1454, 0.0
    %2354 = vadd.xlane.f32.xlu0 %v2353
    %v2355 = vpop.xlane.xlu0 %2354
    %v2356 = vsel %vm1581, %v1455, 0.0
    %2357 = vadd.xlane.f32.xlu0 %v2356
    %v2358 = vpop.xlane.xlu0 %2357
    %v2359 = vsel %vm1581, %v1456, 0.0
    %2360 = vadd.xlane.f32.xlu0 %v2359
    %v2361 = vpop.xlane.xlu0 %2360
    %v2362 = vsel %vm1581, %v1457, 0.0
    %2363 = vadd.xlane.f32.xlu0 %v2362
    %v2364 = vpop.xlane.xlu0 %2363
    %v2365 = vsel %vm1581, %v1458, 0.0
    %2366 = vadd.xlane.f32.xlu0 %v2365
    %v2367 = vpop.xlane.xlu0 %2366
    %v2368 = vsel %vm1581, %v1459, 0.0
    %2369 = vadd.xlane.f32.xlu0 %v2368
    %v2370 = vpop.xlane.xlu0 %2369
    %v2371 = vsel %vm1581, %v1460, 0.0
    %2372 = vadd.xlane.f32.xlu0 %v2371
    %v2373 = vpop.xlane.xlu0 %2372
    %v2374 = vsel %vm1581, %v1461, 0.0
    %2375 = vadd.xlane.f32.xlu0 %v2374
    %v2376 = vpop.xlane.xlu0 %2375
    %v2377 = vsel %vm1581, %v1462, 0.0
    %2378 = vadd.xlane.f32.xlu0 %v2377
    %v2379 = vpop.xlane.xlu0 %2378
    %v2380 = vsel %vm1581, %v1463, 0.0
    %2381 = vadd.xlane.f32.xlu0 %v2380
    %v2382 = vpop.xlane.xlu0 %2381
    %v2383 = vsel %vm1581, %v1464, 0.0
    %2384 = vadd.xlane.f32.xlu0 %v2383
    %v2385 = vpop.xlane.xlu0 %2384
    %v2386 = vsel %vm1581, %v1465, 0.0
    %2387 = vadd.xlane.f32.xlu0 %v2386
    %v2388 = vpop.xlane.xlu0 %2387
    %v2389 = vsel %vm1581, %v1466, 0.0
    %2390 = vadd.xlane.f32.xlu0 %v2389
    %v2391 = vpop.xlane.xlu0 %2390
    %v2392 = vsel %vm1581, %v1467, 0.0
    %2393 = vadd.xlane.f32.xlu0 %v2392
    %v2394 = vpop.xlane.xlu0 %2393
    %v2395 = vsel %vm1581, %v1468, 0.0
    %2396 = vadd.xlane.f32.xlu0 %v2395
    %v2397 = vpop.xlane.xlu0 %2396
    %v2398 = vsel %vm1581, %v1469, 0.0
    %2399 = vadd.xlane.f32.xlu0 %v2398
    %v2400 = vpop.xlane.xlu0 %2399
    %v2401 = vsel %vm1581, %v1470, 0.0
    %2402 = vadd.xlane.f32.xlu0 %v2401
    %v2403 = vpop.xlane.xlu0 %2402
    %v2404 = vsel %vm1581, %v1471, 0.0
    %2405 = vadd.xlane.f32.xlu0 %v2404
    %v2406 = vpop.xlane.xlu0 %2405
    %v2407 = vsel %vm1581, %v1472, 0.0
    %2408 = vadd.xlane.f32.xlu0 %v2407
    %v2409 = vpop.xlane.xlu0 %2408
    %v2410 = vsel %vm1581, %v1473, 0.0
    %2411 = vadd.xlane.f32.xlu0 %v2410
    %v2412 = vpop.xlane.xlu0 %2411
    %v2413 = vsel %vm1581, %v1474, 0.0
    %2414 = vadd.xlane.f32.xlu0 %v2413
    %v2415 = vpop.xlane.xlu0 %2414
    %v2416 = vsel %vm1581, %v1475, 0.0
    %2417 = vadd.xlane.f32.xlu0 %v2416
    %v2418 = vpop.xlane.xlu0 %2417
    %v2419 = vsel %vm1581, %v1476, 0.0
    %2420 = vadd.xlane.f32.xlu0 %v2419
    %v2421 = vpop.xlane.xlu0 %2420
    %v2422 = vsel %vm1581, %v1477, 0.0
    %2423 = vadd.xlane.f32.xlu0 %v2422
    %v2424 = vpop.xlane.xlu0 %2423
    %v2425 = vsel %vm1581, %v1478, 0.0
    %2426 = vadd.xlane.f32.xlu0 %v2425
    %v2427 = vpop.xlane.xlu0 %2426
    %v2428 = vsel %vm1581, %v1479, 0.0
    %2429 = vadd.xlane.f32.xlu0 %v2428
    %v2430 = vpop.xlane.xlu0 %2429
    %v2431 = vsel %vm1581, %v1480, 0.0
    %2432 = vadd.xlane.f32.xlu0 %v2431
    %v2433 = vpop.xlane.xlu0 %2432
    %v2434 = vsel %vm1581, %v1481, 0.0
    %2435 = vadd.xlane.f32.xlu0 %v2434
    %v2436 = vpop.xlane.xlu0 %2435
    %v2437 = vsel %vm1581, %v1482, 0.0
    %2438 = vadd.xlane.f32.xlu0 %v2437
    %v2439 = vpop.xlane.xlu0 %2438
    %v2440 = vsel %vm1581, %v1483, 0.0
    %2441 = vadd.xlane.f32.xlu0 %v2440
    %v2442 = vpop.xlane.xlu0 %2441
    %v2443 = vsel %vm1581, %v1484, 0.0
    %2444 = vadd.xlane.f32.xlu0 %v2443
    %v2445 = vpop.xlane.xlu0 %2444
    %v2446 = vsel %vm1581, %v1485, 0.0
    %2447 = vadd.xlane.f32.xlu0 %v2446
    %v2448 = vpop.xlane.xlu0 %2447
    %v2449 = vsel %vm1581, %v1486, 0.0
    %2450 = vadd.xlane.f32.xlu0 %v2449
    %v2451 = vpop.xlane.xlu0 %2450
    %v2452 = vsel %vm1581, %v1487, 0.0
    %2453 = vadd.xlane.f32.xlu0 %v2452
    %v2454 = vpop.xlane.xlu0 %2453
    %v2455 = vsel %vm1581, %v1488, 0.0
    %2456 = vadd.xlane.f32.xlu0 %v2455
    %v2457 = vpop.xlane.xlu0 %2456
    %v2458 = vsel %vm1581, %v1489, 0.0
    %2459 = vadd.xlane.f32.xlu0 %v2458
    %v2460 = vpop.xlane.xlu0 %2459
    %v2461 = vsel %vm1581, %v1490, 0.0
    %2462 = vadd.xlane.f32.xlu0 %v2461
    %v2463 = vpop.xlane.xlu0 %2462
    %v2464 = vsel %vm1581, %v1491, 0.0
    %2465 = vadd.xlane.f32.xlu0 %v2464
    %v2466 = vpop.xlane.xlu0 %2465
    %v2467 = vsel %vm1581, %v1492, 0.0
    %2468 = vadd.xlane.f32.xlu0 %v2467
    %v2469 = vpop.xlane.xlu0 %2468
    %v2470 = vsel %vm1581, %v1493, 0.0
    %2471 = vadd.xlane.f32.xlu0 %v2470
    %v2472 = vpop.xlane.xlu0 %2471
    %v2473 = vsel %vm1581, %v1494, 0.0
    %2474 = vadd.xlane.f32.xlu0 %v2473
    %v2475 = vpop.xlane.xlu0 %2474
    %v2476 = vsel %vm1581, %v1495, 0.0
    %2477 = vadd.xlane.f32.xlu0 %v2476
    %v2478 = vpop.xlane.xlu0 %2477
    %v2479 = vsel %vm1581, %v1496, 0.0
    %2480 = vadd.xlane.f32.xlu0 %v2479
    %v2481 = vpop.xlane.xlu0 %2480
    %v2482 = vsel %vm1581, %v1497, 0.0
    %2483 = vadd.xlane.f32.xlu0 %v2482
    %v2484 = vpop.xlane.xlu0 %2483
    %v2485 = vsel %vm1581, %v1498, 0.0
    %2486 = vadd.xlane.f32.xlu0 %v2485
    %v2487 = vpop.xlane.xlu0 %2486
    %v2488 = vsel %vm1581, %v1499, 0.0
    %2489 = vadd.xlane.f32.xlu0 %v2488
    %v2490 = vpop.xlane.xlu0 %2489
    %v2491 = vsel %vm1581, %v1500, 0.0
    %2492 = vadd.xlane.f32.xlu0 %v2491
    %v2493 = vpop.xlane.xlu0 %2492
    %v2494 = vsel %vm1581, %v1501, 0.0
    %2495 = vadd.xlane.f32.xlu0 %v2494
    %v2496 = vpop.xlane.xlu0 %2495
    %v2497 = vsel %vm1581, %v1502, 0.0
    %2498 = vadd.xlane.f32.xlu0 %v2497
    %v2499 = vpop.xlane.xlu0 %2498
    %v2500 = vsel %vm1581, %v1503, 0.0
    %2501 = vadd.xlane.f32.xlu0 %v2500
    %v2502 = vpop.xlane.xlu0 %2501
    %v2503 = vsel %vm1581, %v1504, 0.0
    %2504 = vadd.xlane.f32.xlu0 %v2503
    %v2505 = vpop.xlane.xlu0 %2504
    %v2506 = vsel %vm1581, %v1505, 0.0
    %2507 = vadd.xlane.f32.xlu0 %v2506
    %v2508 = vpop.xlane.xlu0 %2507
    %v2509 = vsel %vm1581, %v1506, 0.0
    %2510 = vadd.xlane.f32.xlu0 %v2509
    %v2511 = vpop.xlane.xlu0 %2510
    %v2512 = vsel %vm1581, %v1507, 0.0
    %2513 = vadd.xlane.f32.xlu0 %v2512
    %v2514 = vpop.xlane.xlu0 %2513
    %v2515 = vsel %vm1581, %v1508, 0.0
    %2516 = vadd.xlane.f32.xlu0 %v2515
    %v2517 = vpop.xlane.xlu0 %2516
    %v2518 = vsel %vm1581, %v1509, 0.0
    %2519 = vadd.xlane.f32.xlu0 %v2518
    %v2520 = vpop.xlane.xlu0 %2519
    %v2521 = vsel %vm1581, %v1510, 0.0
    %2522 = vadd.xlane.f32.xlu0 %v2521
    %v2523 = vpop.xlane.xlu0 %2522
    %v2524 = vsel %vm1581, %v1511, 0.0
    %2525 = vadd.xlane.f32.xlu0 %v2524
    %v2526 = vpop.xlane.xlu0 %2525
    %v2527 = vsel %vm1581, %v1512, 0.0
    %2528 = vadd.xlane.f32.xlu0 %v2527
    %v2529 = vpop.xlane.xlu0 %2528
    %v2530 = vsel %vm1581, %v1513, 0.0
    %2531 = vadd.xlane.f32.xlu0 %v2530
    %v2532 = vpop.xlane.xlu0 %2531
    %v2533 = vsel %vm1581, %v1514, 0.0
    %2534 = vadd.xlane.f32.xlu0 %v2533
    %v2535 = vpop.xlane.xlu0 %2534
    %v2536 = vsel %vm1581, %v1515, 0.0
    %2537 = vadd.xlane.f32.xlu0 %v2536
    %v2538 = vpop.xlane.xlu0 %2537
    %v2539 = vsel %vm1581, %v1516, 0.0
    %2540 = vadd.xlane.f32.xlu0 %v2539
    %v2541 = vpop.xlane.xlu0 %2540
    %v2542 = vsel %vm1581, %v1517, 0.0
    %2543 = vadd.xlane.f32.xlu0 %v2542
    %v2544 = vpop.xlane.xlu0 %2543
    %v2545 = vsel %vm1581, %v1518, 0.0
    %2546 = vadd.xlane.f32.xlu0 %v2545
    %v2547 = vpop.xlane.xlu0 %2546
    %v2548 = vsel %vm1581, %v1519, 0.0
    %2549 = vadd.xlane.f32.xlu0 %v2548
    %v2550 = vpop.xlane.xlu0 %2549
    %v2551 = vsel %vm1581, %v1520, 0.0
    %2552 = vadd.xlane.f32.xlu0 %v2551
    %v2553 = vpop.xlane.xlu0 %2552
    %v2554 = vsel %vm1581, %v1521, 0.0
    %2555 = vadd.xlane.f32.xlu0 %v2554
    %v2556 = vpop.xlane.xlu0 %2555
    %v2557 = vsel %vm1581, %v1522, 0.0
    %2558 = vadd.xlane.f32.xlu0 %v2557
    %v2559 = vpop.xlane.xlu0 %2558
    %v2560 = vsel %vm1581, %v1523, 0.0
    %2561 = vadd.xlane.f32.xlu0 %v2560
    %v2562 = vpop.xlane.xlu0 %2561
    %v2563 = vsel %vm1581, %v1524, 0.0
    %2564 = vadd.xlane.f32.xlu0 %v2563
    %v2565 = vpop.xlane.xlu0 %2564
    %v2566 = vsel %vm1581, %v1525, 0.0
    %2567 = vadd.xlane.f32.xlu0 %v2566
    %v2568 = vpop.xlane.xlu0 %2567
    %v2569 = vsel %vm1581, %v1526, 0.0
    %2570 = vadd.xlane.f32.xlu0 %v2569
    %v2571 = vpop.xlane.xlu0 %2570
    %v2572 = vsel %vm1581, %v1527, 0.0
    %2573 = vadd.xlane.f32.xlu0 %v2572
    %v2574 = vpop.xlane.xlu0 %2573
    %v2575 = vsel %vm1581, %v1528, 0.0
    %2576 = vadd.xlane.f32.xlu0 %v2575
    %v2577 = vpop.xlane.xlu0 %2576
    %v2578 = vsel %vm1581, %v1529, 0.0
    %2579 = vadd.xlane.f32.xlu0 %v2578
    %v2580 = vpop.xlane.xlu0 %2579
    %v2581 = vsel %vm1581, %v1530, 0.0
    %2582 = vadd.xlane.f32.xlu0 %v2581
    %v2583 = vpop.xlane.xlu0 %2582
    %v2584 = vsel %vm1581, %v1531, 0.0
    %2585 = vadd.xlane.f32.xlu0 %v2584
    %v2586 = vpop.xlane.xlu0 %2585
    %v2587 = vsel %vm1581, %v1532, 0.0
    %2588 = vadd.xlane.f32.xlu0 %v2587
    %v2589 = vpop.xlane.xlu0 %2588
    %v2590 = vsel %vm1581, %v1533, 0.0
    %2591 = vadd.xlane.f32.xlu0 %v2590
    %v2592 = vpop.xlane.xlu0 %2591
    %v2593 = vsel %vm1581, %v1534, 0.0
    %2594 = vadd.xlane.f32.xlu0 %v2593
    %v2595 = vpop.xlane.xlu0 %2594
    %v2596 = vsel %vm1581, %v1535, 0.0
    %2597 = vadd.xlane.f32.xlu0 %v2596
    %v2598 = vpop.xlane.xlu0 %2597
    %v2599 = vsel %vm1581, %v1536, 0.0
    %2600 = vadd.xlane.f32.xlu0 %v2599
    %v2601 = vpop.xlane.xlu0 %2600
    %v2602 = vsel %vm1581, %v1537, 0.0
    %2603 = vadd.xlane.f32.xlu0 %v2602
    %v2604 = vpop.xlane.xlu0 %2603
    %v2605 = vsel %vm1581, %v1538, 0.0
    %2606 = vadd.xlane.f32.xlu0 %v2605
    %v2607 = vpop.xlane.xlu0 %2606
    %v2608 = vsel %vm1581, %v1539, 0.0
    %2609 = vadd.xlane.f32.xlu0 %v2608
    %v2610 = vpop.xlane.xlu0 %2609
    %v2611 = vsel %vm1581, %v1540, 0.0
    %2612 = vadd.xlane.f32.xlu0 %v2611
    %v2613 = vpop.xlane.xlu0 %2612
    %v2614 = vsel %vm1581, %v1541, 0.0
    %2615 = vadd.xlane.f32.xlu0 %v2614
    %v2616 = vpop.xlane.xlu0 %2615
    %v2617 = vsel %vm1581, %v1542, 0.0
    %2618 = vadd.xlane.f32.xlu0 %v2617
    %v2619 = vpop.xlane.xlu0 %2618
    %v2620 = vsel %vm1581, %v1543, 0.0
    %2621 = vadd.xlane.f32.xlu0 %v2620
    %v2622 = vpop.xlane.xlu0 %2621
    %v2623 = vsel %vm1581, %v1544, 0.0
    %2624 = vadd.xlane.f32.xlu0 %v2623
    %v2625 = vpop.xlane.xlu0 %2624
    %v2626 = vsel %vm1581, %v1545, 0.0
    %2627 = vadd.xlane.f32.xlu0 %v2626
    %v2628 = vpop.xlane.xlu0 %2627
    %v2629 = vsel %vm1581, %v1546, 0.0
    %2630 = vadd.xlane.f32.xlu0 %v2629
    %v2631 = vpop.xlane.xlu0 %2630
    %v2632 = vsel %vm1581, %v1547, 0.0
    %2633 = vadd.xlane.f32.xlu0 %v2632
    %v2634 = vpop.xlane.xlu0 %2633
    %v2635 = vsel %vm1581, %v1548, 0.0
    %2636 = vadd.xlane.f32.xlu0 %v2635
    %v2637 = vpop.xlane.xlu0 %2636
    %v2638 = vsel %vm1581, %v1549, 0.0
    %2639 = vadd.xlane.f32.xlu0 %v2638
    %v2640 = vpop.xlane.xlu0 %2639
    %v2641 = vsel %vm1581, %v1550, 0.0
    %2642 = vadd.xlane.f32.xlu0 %v2641
    %v2643 = vpop.xlane.xlu0 %2642
    %v2644 = vsel %vm1581, %v1551, 0.0
    %2645 = vadd.xlane.f32.xlu0 %v2644
    %v2646 = vpop.xlane.xlu0 %2645
    %v2647 = vsel %vm1581, %v1552, 0.0
    %2648 = vadd.xlane.f32.xlu0 %v2647
    %v2649 = vpop.xlane.xlu0 %2648
    %v2650 = vsel %vm1581, %v1553, 0.0
    %2651 = vadd.xlane.f32.xlu0 %v2650
    %v2652 = vpop.xlane.xlu0 %2651
    %v2653 = vsel %vm1581, %v1554, 0.0
    %2654 = vadd.xlane.f32.xlu0 %v2653
    %v2655 = vpop.xlane.xlu0 %2654
    %v2656 = vsel %vm1581, %v1555, 0.0
    %2657 = vadd.xlane.f32.xlu0 %v2656
    %v2658 = vpop.xlane.xlu0 %2657
    %v2659 = vsel %vm1581, %v1556, 0.0
    %2660 = vadd.xlane.f32.xlu0 %v2659
    %v2661 = vpop.xlane.xlu0 %2660
    %v2662 = vsel %vm1581, %v1557, 0.0
    %2663 = vadd.xlane.f32.xlu0 %v2662
    %v2664 = vpop.xlane.xlu0 %2663
    %v2665 = vsel %vm1581, %v1558, 0.0
    %2666 = vadd.xlane.f32.xlu0 %v2665
    %v2667 = vpop.xlane.xlu0 %2666
    %v2668 = vsel %vm1581, %v1559, 0.0
    %2669 = vadd.xlane.f32.xlu0 %v2668
    %v2670 = vpop.xlane.xlu0 %2669
    %v2671 = vsel %vm1581, %v1560, 0.0
    %2672 = vadd.xlane.f32.xlu0 %v2671
    %v2673 = vpop.xlane.xlu0 %2672
    %v2674 = vsel %vm1581, %v1561, 0.0
    %2675 = vadd.xlane.f32.xlu0 %v2674
    %v2676 = vpop.xlane.xlu0 %2675
    %v2677 = vsel %vm1581, %v1562, 0.0
    %2678 = vadd.xlane.f32.xlu0 %v2677
    %v2679 = vpop.xlane.xlu0 %2678
    %v2680 = vsel %vm1581, %v1563, 0.0
    %2681 = vadd.xlane.f32.xlu0 %v2680
    %v2682 = vpop.xlane.xlu0 %2681
    %v2683 = vsel %vm1581, %v1564, 0.0
    %2684 = vadd.xlane.f32.xlu0 %v2683
    %v2685 = vpop.xlane.xlu0 %2684
    %v2686 = vsel %vm1581, %v1565, 0.0
    %2687 = vadd.xlane.f32.xlu0 %v2686
    %v2688 = vpop.xlane.xlu0 %2687
    %v2689 = vsel %vm1581, %v1566, 0.0
    %2690 = vadd.xlane.f32.xlu0 %v2689
    %v2691 = vpop.xlane.xlu0 %2690
    %v2692 = vsel %vm1581, %v1567, 0.0
    %2693 = vadd.xlane.f32.xlu0 %v2692
    %v2694 = vpop.xlane.xlu0 %2693
    %v2695 = vsel %vm1581, %v1568, 0.0
    %2696 = vadd.xlane.f32.xlu0 %v2695
    %v2697 = vpop.xlane.xlu0 %2696
    %v2698 = vsel %vm1581, %v1569, 0.0
    %2699 = vadd.xlane.f32.xlu0 %v2698
    %v2700 = vpop.xlane.xlu0 %2699
    %v2701 = vsel %vm1581, %v1570, 0.0
    %2702 = vadd.xlane.f32.xlu0 %v2701
    %v2703 = vpop.xlane.xlu0 %2702
    %v2704 = vsel %vm1581, %v1571, 0.0
    %2705 = vadd.xlane.f32.xlu0 %v2704
    %v2706 = vpop.xlane.xlu0 %2705
    %v2707 = vsel %vm1581, %v1572, 0.0
    %2708 = vadd.xlane.f32.xlu0 %v2707
    %v2709 = vpop.xlane.xlu0 %2708
    %v2710 = vsel %vm1581, %v1573, 0.0
    %2711 = vadd.xlane.f32.xlu0 %v2710
    %v2712 = vpop.xlane.xlu0 %2711
    %v2713 = vsel %vm1581, %v1574, 0.0
    %2714 = vadd.xlane.f32.xlu0 %v2713
    %v2715 = vpop.xlane.xlu0 %2714
    %v2716 = vsel %vm1581, %v1575, 0.0
    %2717 = vadd.xlane.f32.xlu0 %v2716
    %v2718 = vpop.xlane.xlu0 %2717
    %v2719 = vsel %vm1581, %v1576, 0.0
    %2720 = vadd.xlane.f32.xlu0 %v2719
    %v2721 = vpop.xlane.xlu0 %2720
    %v2722 = vsel %vm1581, %v1577, 0.0
    %2723 = vadd.xlane.f32.xlu0 %v2722
    %v2724 = vpop.xlane.xlu0 %2723
    %v2725 = vsel %vm1581, %v1578, 0.0
    %2726 = vadd.xlane.f32.xlu0 %v2725
    %v2727 = vpop.xlane.xlu0 %2726
    %v2728 = vsel %vm1581, %v1579, 0.0
    %2729 = vadd.xlane.f32.xlu0 %v2728
    %v2730 = vpop.xlane.xlu0 %2729
    %v2731 = vsel %vm1581, %v1580, 0.0
    %2732 = vadd.xlane.f32.xlu0 %v2731
    %v2733 = vpop.xlane.xlu0 %2732
    %v2734 = vrcp.pop 64.0
    %v2735 = vmul.f32 64.0, %v2734
    %v2736 = vsub.f32 1.0, %v2735
    %v2737 = vmul.f32 %v2734, %v2736
    %v2738 = vadd.f32 %v2734, %v2737
    %vm2739 = vweird.f32 %v2734
    %v2740 = vsel %vm2739, %v2734, %v2738
    %v2741 = vmul.f32 %v1584, %v2740
    %v2742 = vmul.f32 %v1587, %v2740
    %v2743 = vmul.f32 %v1590, %v2740
    %v2744 = vmul.f32 %v1593, %v2740
    %v2745 = vmul.f32 %v1596, %v2740
    %v2746 = vmul.f32 %v1599, %v2740
    %v2747 = vmul.f32 %v1602, %v2740
    %v2748 = vmul.f32 %v1605, %v2740
    %v2749 = vmul.f32 %v1608, %v2740
    %v2750 = vmul.f32 %v1611, %v2740
    %v2751 = vmul.f32 %v1614, %v2740
    %v2752 = vmul.f32 %v1617, %v2740
    %v2753 = vmul.f32 %v1620, %v2740
    %v2754 = vmul.f32 %v1623, %v2740
    %v2755 = vmul.f32 %v1626, %v2740
    %v2756 = vmul.f32 %v1629, %v2740
    %v2757 = vmul.f32 %v1632, %v2740
    %v2758 = vmul.f32 %v1635, %v2740
    %v2759 = vmul.f32 %v1638, %v2740
    %v2760 = vmul.f32 %v1641, %v2740
    %v2761 = vmul.f32 %v1644, %v2740
    %v2762 = vmul.f32 %v1647, %v2740
    %v2763 = vmul.f32 %v1650, %v2740
    %v2764 = vmul.f32 %v1653, %v2740
    %v2765 = vmul.f32 %v1656, %v2740
    %v2766 = vmul.f32 %v1659, %v2740
    %v2767 = vmul.f32 %v1662, %v2740
    %v2768 = vmul.f32 %v1665, %v2740
    %v2769 = vmul.f32 %v1668, %v2740
    %v2770 = vmul.f32 %v1671, %v2740
    %v2771 = vmul.f32 %v1674, %v2740
    %v2772 = vmul.f32 %v1677, %v2740
    %v2773 = vmul.f32 %v1680, %v2740
    %v2774 = vmul.f32 %v1683, %v2740
    %v2775 = vmul.f32 %v1686, %v2740
    %v2776 = vmul.f32 %v1689, %v2740
    %v2777 = vmul.f32 %v1692, %v2740
    %v2778 = vmul.f32 %v1695, %v2740
    %v2779 = vmul.f32 %v1698, %v2740
    %v2780 = vmul.f32 %v1701, %v2740
    %v2781 = vmul.f32 %v1704, %v2740
    %v2782 = vmul.f32 %v1707, %v2740
    %v2783 = vmul.f32 %v1710, %v2740
    %v2784 = vmul.f32 %v1713, %v2740
    %v2785 = vmul.f32 %v1716, %v2740
    %v2786 = vmul.f32 %v1719, %v2740
    %v2787 = vmul.f32 %v1722, %v2740
    %v2788 = vmul.f32 %v1725, %v2740
    %v2789 = vmul.f32 %v1728, %v2740
    %v2790 = vmul.f32 %v1731, %v2740
    %v2791 = vmul.f32 %v1734, %v2740
    %v2792 = vmul.f32 %v1737, %v2740
    %v2793 = vmul.f32 %v1740, %v2740
    %v2794 = vmul.f32 %v1743, %v2740
    %v2795 = vmul.f32 %v1746, %v2740
    %v2796 = vmul.f32 %v1749, %v2740
    %v2797 = vmul.f32 %v1752, %v2740
    %v2798 = vmul.f32 %v1755, %v2740
    %v2799 = vmul.f32 %v1758, %v2740
    %v2800 = vmul.f32 %v1761, %v2740
    %v2801 = vmul.f32 %v1764, %v2740
    %v2802 = vmul.f32 %v1767, %v2740
    %v2803 = vmul.f32 %v1770, %v2740
    %v2804 = vmul.f32 %v1773, %v2740
    %v2805 = vmul.f32 %v1776, %v2740
    %v2806 = vmul.f32 %v1779, %v2740
    %v2807 = vmul.f32 %v1782, %v2740
    %v2808 = vmul.f32 %v1785, %v2740
    %v2809 = vmul.f32 %v1788, %v2740
    %v2810 = vmul.f32 %v1791, %v2740
    %v2811 = vmul.f32 %v1794, %v2740
    %v2812 = vmul.f32 %v1797, %v2740
    %v2813 = vmul.f32 %v1800, %v2740
    %v2814 = vmul.f32 %v1803, %v2740
    %v2815 = vmul.f32 %v1806, %v2740
    %v2816 = vmul.f32 %v1809, %v2740
    %v2817 = vmul.f32 %v1812, %v2740
    %v2818 = vmul.f32 %v1815, %v2740
    %v2819 = vmul.f32 %v1818, %v2740
    %v2820 = vmul.f32 %v1821, %v2740
    %v2821 = vmul.f32 %v1824, %v2740
    %v2822 = vmul.f32 %v1827, %v2740
    %v2823 = vmul.f32 %v1830, %v2740
    %v2824 = vmul.f32 %v1833, %v2740
    %v2825 = vmul.f32 %v1836, %v2740
    %v2826 = vmul.f32 %v1839, %v2740
    %v2827 = vmul.f32 %v1842, %v2740
    %v2828 = vmul.f32 %v1845, %v2740
    %v2829 = vmul.f32 %v1848, %v2740
    %v2830 = vmul.f32 %v1851, %v2740
    %v2831 = vmul.f32 %v1854, %v2740
    %v2832 = vmul.f32 %v1857, %v2740
    %v2833 = vmul.f32 %v1860, %v2740
    %v2834 = vmul.f32 %v1863, %v2740
    %v2835 = vmul.f32 %v1866, %v2740
    %v2836 = vmul.f32 %v1869, %v2740
    %v2837 = vmul.f32 %v1872, %v2740
    %v2838 = vmul.f32 %v1875, %v2740
    %v2839 = vmul.f32 %v1878, %v2740
    %v2840 = vmul.f32 %v1881, %v2740
    %v2841 = vmul.f32 %v1884, %v2740
    %v2842 = vmul.f32 %v1887, %v2740
    %v2843 = vmul.f32 %v1890, %v2740
    %v2844 = vmul.f32 %v1893, %v2740
    %v2845 = vmul.f32 %v1896, %v2740
    %v2846 = vmul.f32 %v1899, %v2740
    %v2847 = vmul.f32 %v1902, %v2740
    %v2848 = vmul.f32 %v1905, %v2740
    %v2849 = vmul.f32 %v1908, %v2740
    %v2850 = vmul.f32 %v1911, %v2740
    %v2851 = vmul.f32 %v1914, %v2740
    %v2852 = vmul.f32 %v1917, %v2740
    %v2853 = vmul.f32 %v1920, %v2740
    %v2854 = vmul.f32 %v1923, %v2740
    %v2855 = vmul.f32 %v1926, %v2740
    %v2856 = vmul.f32 %v1929, %v2740
    %v2857 = vmul.f32 %v1932, %v2740
    %v2858 = vmul.f32 %v1935, %v2740
    %v2859 = vmul.f32 %v1938, %v2740
    %v2860 = vmul.f32 %v1941, %v2740
    %v2861 = vmul.f32 %v1944, %v2740
    %v2862 = vmul.f32 %v1947, %v2740
    %v2863 = vmul.f32 %v1950, %v2740
    %v2864 = vmul.f32 %v1953, %v2740
    %v2865 = vmul.f32 %v1956, %v2740
    %v2866 = vmul.f32 %v1959, %v2740
    %v2867 = vmul.f32 %v1962, %v2740
    %v2868 = vmul.f32 %v1965, %v2740
    %v2869 = vmul.f32 %v1968, %v2740
    %v2870 = vmul.f32 %v1971, %v2740
    %v2871 = vmul.f32 %v1974, %v2740
    %v2872 = vmul.f32 %v1977, %v2740
    %v2873 = vmul.f32 %v1980, %v2740
    %v2874 = vmul.f32 %v1983, %v2740
    %v2875 = vmul.f32 %v1986, %v2740
    %v2876 = vmul.f32 %v1989, %v2740
    %v2877 = vmul.f32 %v1992, %v2740
    %v2878 = vmul.f32 %v1995, %v2740
    %v2879 = vmul.f32 %v1998, %v2740
    %v2880 = vmul.f32 %v2001, %v2740
    %v2881 = vmul.f32 %v2004, %v2740
    %v2882 = vmul.f32 %v2007, %v2740
    %v2883 = vmul.f32 %v2010, %v2740
    %v2884 = vmul.f32 %v2013, %v2740
    %v2885 = vmul.f32 %v2016, %v2740
    %v2886 = vmul.f32 %v2019, %v2740
    %v2887 = vmul.f32 %v2022, %v2740
    %v2888 = vmul.f32 %v2025, %v2740
    %v2889 = vmul.f32 %v2028, %v2740
    %v2890 = vmul.f32 %v2031, %v2740
    %v2891 = vmul.f32 %v2034, %v2740
    %v2892 = vmul.f32 %v2037, %v2740
    %v2893 = vmul.f32 %v2040, %v2740
    %v2894 = vmul.f32 %v2043, %v2740
    %v2895 = vmul.f32 %v2046, %v2740
    %v2896 = vmul.f32 %v2049, %v2740
    %v2897 = vmul.f32 %v2052, %v2740
    %v2898 = vmul.f32 %v2055, %v2740
    %v2899 = vmul.f32 %v2058, %v2740
    %v2900 = vmul.f32 %v2061, %v2740
    %v2901 = vmul.f32 %v2064, %v2740
    %v2902 = vmul.f32 %v2067, %v2740
    %v2903 = vmul.f32 %v2070, %v2740
    %v2904 = vmul.f32 %v2073, %v2740
    %v2905 = vmul.f32 %v2076, %v2740
    %v2906 = vmul.f32 %v2079, %v2740
    %v2907 = vmul.f32 %v2082, %v2740
    %v2908 = vmul.f32 %v2085, %v2740
    %v2909 = vmul.f32 %v2088, %v2740
    %v2910 = vmul.f32 %v2091, %v2740
    %v2911 = vmul.f32 %v2094, %v2740
    %v2912 = vmul.f32 %v2097, %v2740
    %v2913 = vmul.f32 %v2100, %v2740
    %v2914 = vmul.f32 %v2103, %v2740
    %v2915 = vmul.f32 %v2106, %v2740
    %v2916 = vmul.f32 %v2109, %v2740
    %v2917 = vmul.f32 %v2112, %v2740
    %v2918 = vmul.f32 %v2115, %v2740
    %v2919 = vmul.f32 %v2118, %v2740
    %v2920 = vmul.f32 %v2121, %v2740
    %v2921 = vmul.f32 %v2124, %v2740
    %v2922 = vmul.f32 %v2127, %v2740
    %v2923 = vmul.f32 %v2130, %v2740
    %v2924 = vmul.f32 %v2133, %v2740
    %v2925 = vmul.f32 %v2136, %v2740
    %v2926 = vmul.f32 %v2139, %v2740
    %v2927 = vmul.f32 %v2142, %v2740
    %v2928 = vmul.f32 %v2145, %v2740
    %v2929 = vmul.f32 %v2148, %v2740
    %v2930 = vmul.f32 %v2151, %v2740
    %v2931 = vmul.f32 %v2154, %v2740
    %v2932 = vmul.f32 %v2157, %v2740
    %v2933 = vmul.f32 %v2160, %v2740
    %v2934 = vmul.f32 %v2163, %v2740
    %v2935 = vmul.f32 %v2166, %v2740
    %v2936 = vmul.f32 %v2169, %v2740
    %v2937 = vmul.f32 %v2172, %v2740
    %v2938 = vmul.f32 %v2175, %v2740
    %v2939 = vmul.f32 %v2178, %v2740
    %v2940 = vmul.f32 %v2181, %v2740
    %v2941 = vmul.f32 %v2184, %v2740
    %v2942 = vmul.f32 %v2187, %v2740
    %v2943 = vmul.f32 %v2190, %v2740
    %v2944 = vmul.f32 %v2193, %v2740
    %v2945 = vmul.f32 %v2196, %v2740
    %v2946 = vmul.f32 %v2199, %v2740
    %v2947 = vmul.f32 %v2202, %v2740
    %v2948 = vmul.f32 %v2205, %v2740
    %v2949 = vmul.f32 %v2208, %v2740
    %v2950 = vmul.f32 %v2211, %v2740
    %v2951 = vmul.f32 %v2214, %v2740
    %v2952 = vmul.f32 %v2217, %v2740
    %v2953 = vmul.f32 %v2220, %v2740
    %v2954 = vmul.f32 %v2223, %v2740
    %v2955 = vmul.f32 %v2226, %v2740
    %v2956 = vmul.f32 %v2229, %v2740
    %v2957 = vmul.f32 %v2232, %v2740
    %v2958 = vmul.f32 %v2235, %v2740
    %v2959 = vmul.f32 %v2238, %v2740
    %v2960 = vmul.f32 %v2241, %v2740
    %v2961 = vmul.f32 %v2244, %v2740
    %v2962 = vmul.f32 %v2247, %v2740
    %v2963 = vmul.f32 %v2250, %v2740
    %v2964 = vmul.f32 %v2253, %v2740
    %v2965 = vmul.f32 %v2256, %v2740
    %v2966 = vmul.f32 %v2259, %v2740
    %v2967 = vmul.f32 %v2262, %v2740
    %v2968 = vmul.f32 %v2265, %v2740
    %v2969 = vmul.f32 %v2268, %v2740
    %v2970 = vmul.f32 %v2271, %v2740
    %v2971 = vmul.f32 %v2274, %v2740
    %v2972 = vmul.f32 %v2277, %v2740
    %v2973 = vmul.f32 %v2280, %v2740
    %v2974 = vmul.f32 %v2283, %v2740
    %v2975 = vmul.f32 %v2286, %v2740
    %v2976 = vmul.f32 %v2289, %v2740
    %v2977 = vmul.f32 %v2292, %v2740
    %v2978 = vmul.f32 %v2295, %v2740
    %v2979 = vmul.f32 %v2298, %v2740
    %v2980 = vmul.f32 %v2301, %v2740
    %v2981 = vmul.f32 %v2304, %v2740
    %v2982 = vmul.f32 %v2307, %v2740
    %v2983 = vmul.f32 %v2310, %v2740
    %v2984 = vmul.f32 %v2313, %v2740
    %v2985 = vmul.f32 %v2316, %v2740
    %v2986 = vmul.f32 %v2319, %v2740
    %v2987 = vmul.f32 %v2322, %v2740
    %v2988 = vmul.f32 %v2325, %v2740
    %v2989 = vmul.f32 %v2328, %v2740
    %v2990 = vmul.f32 %v2331, %v2740
    %v2991 = vmul.f32 %v2334, %v2740
    %v2992 = vmul.f32 %v2337, %v2740
    %v2993 = vmul.f32 %v2340, %v2740
    %v2994 = vmul.f32 %v2343, %v2740
    %v2995 = vmul.f32 %v2346, %v2740
    %v2996 = vmul.f32 %v2349, %v2740
    %v2997 = vmul.f32 %v2352, %v2740
    %v2998 = vmul.f32 %v2355, %v2740
    %v2999 = vmul.f32 %v2358, %v2740
    %v3000 = vmul.f32 %v2361, %v2740
    %v3001 = vmul.f32 %v2364, %v2740
    %v3002 = vmul.f32 %v2367, %v2740
    %v3003 = vmul.f32 %v2370, %v2740
    %v3004 = vmul.f32 %v2373, %v2740
    %v3005 = vmul.f32 %v2376, %v2740
    %v3006 = vmul.f32 %v2379, %v2740
    %v3007 = vmul.f32 %v2382, %v2740
    %v3008 = vmul.f32 %v2385, %v2740
    %v3009 = vmul.f32 %v2388, %v2740
    %v3010 = vmul.f32 %v2391, %v2740
    %v3011 = vmul.f32 %v2394, %v2740
    %v3012 = vmul.f32 %v2397, %v2740
    %v3013 = vmul.f32 %v2400, %v2740
    %v3014 = vmul.f32 %v2403, %v2740
    %v3015 = vmul.f32 %v2406, %v2740
    %v3016 = vmul.f32 %v2409, %v2740
    %v3017 = vmul.f32 %v2412, %v2740
    %v3018 = vmul.f32 %v2415, %v2740
    %v3019 = vmul.f32 %v2418, %v2740
    %v3020 = vmul.f32 %v2421, %v2740
    %v3021 = vmul.f32 %v2424, %v2740
    %v3022 = vmul.f32 %v2427, %v2740
    %v3023 = vmul.f32 %v2430, %v2740
    %v3024 = vmul.f32 %v2433, %v2740
    %v3025 = vmul.f32 %v2436, %v2740
    %v3026 = vmul.f32 %v2439, %v2740
    %v3027 = vmul.f32 %v2442, %v2740
    %v3028 = vmul.f32 %v2445, %v2740
    %v3029 = vmul.f32 %v2448, %v2740
    %v3030 = vmul.f32 %v2451, %v2740
    %v3031 = vmul.f32 %v2454, %v2740
    %v3032 = vmul.f32 %v2457, %v2740
    %v3033 = vmul.f32 %v2460, %v2740
    %v3034 = vmul.f32 %v2463, %v2740
    %v3035 = vmul.f32 %v2466, %v2740
    %v3036 = vmul.f32 %v2469, %v2740
    %v3037 = vmul.f32 %v2472, %v2740
    %v3038 = vmul.f32 %v2475, %v2740
    %v3039 = vmul.f32 %v2478, %v2740
    %v3040 = vmul.f32 %v2481, %v2740
    %v3041 = vmul.f32 %v2484, %v2740
    %v3042 = vmul.f32 %v2487, %v2740
    %v3043 = vmul.f32 %v2490, %v2740
    %v3044 = vmul.f32 %v2493, %v2740
    %v3045 = vmul.f32 %v2496, %v2740
    %v3046 = vmul.f32 %v2499, %v2740
    %v3047 = vmul.f32 %v2502, %v2740
    %v3048 = vmul.f32 %v2505, %v2740
    %v3049 = vmul.f32 %v2508, %v2740
    %v3050 = vmul.f32 %v2511, %v2740
    %v3051 = vmul.f32 %v2514, %v2740
    %v3052 = vmul.f32 %v2517, %v2740
    %v3053 = vmul.f32 %v2520, %v2740
    %v3054 = vmul.f32 %v2523, %v2740
    %v3055 = vmul.f32 %v2526, %v2740
    %v3056 = vmul.f32 %v2529, %v2740
    %v3057 = vmul.f32 %v2532, %v2740
    %v3058 = vmul.f32 %v2535, %v2740
    %v3059 = vmul.f32 %v2538, %v2740
    %v3060 = vmul.f32 %v2541, %v2740
    %v3061 = vmul.f32 %v2544, %v2740
    %v3062 = vmul.f32 %v2547, %v2740
    %v3063 = vmul.f32 %v2550, %v2740
    %v3064 = vmul.f32 %v2553, %v2740
    %v3065 = vmul.f32 %v2556, %v2740
    %v3066 = vmul.f32 %v2559, %v2740
    %v3067 = vmul.f32 %v2562, %v2740
    %v3068 = vmul.f32 %v2565, %v2740
    %v3069 = vmul.f32 %v2568, %v2740
    %v3070 = vmul.f32 %v2571, %v2740
    %v3071 = vmul.f32 %v2574, %v2740
    %v3072 = vmul.f32 %v2577, %v2740
    %v3073 = vmul.f32 %v2580, %v2740
    %v3074 = vmul.f32 %v2583, %v2740
    %v3075 = vmul.f32 %v2586, %v2740
    %v3076 = vmul.f32 %v2589, %v2740
    %v3077 = vmul.f32 %v2592, %v2740
    %v3078 = vmul.f32 %v2595, %v2740
    %v3079 = vmul.f32 %v2598, %v2740
    %v3080 = vmul.f32 %v2601, %v2740
    %v3081 = vmul.f32 %v2604, %v2740
    %v3082 = vmul.f32 %v2607, %v2740
    %v3083 = vmul.f32 %v2610, %v2740
    %v3084 = vmul.f32 %v2613, %v2740
    %v3085 = vmul.f32 %v2616, %v2740
    %v3086 = vmul.f32 %v2619, %v2740
    %v3087 = vmul.f32 %v2622, %v2740
    %v3088 = vmul.f32 %v2625, %v2740
    %v3089 = vmul.f32 %v2628, %v2740
    %v3090 = vmul.f32 %v2631, %v2740
    %v3091 = vmul.f32 %v2634, %v2740
    %v3092 = vmul.f32 %v2637, %v2740
    %v3093 = vmul.f32 %v2640, %v2740
    %v3094 = vmul.f32 %v2643, %v2740
    %v3095 = vmul.f32 %v2646, %v2740
    %v3096 = vmul.f32 %v2649, %v2740
    %v3097 = vmul.f32 %v2652, %v2740
    %v3098 = vmul.f32 %v2655, %v2740
    %v3099 = vmul.f32 %v2658, %v2740
    %v3100 = vmul.f32 %v2661, %v2740
    %v3101 = vmul.f32 %v2664, %v2740
    %v3102 = vmul.f32 %v2667, %v2740
    %v3103 = vmul.f32 %v2670, %v2740
    %v3104 = vmul.f32 %v2673, %v2740
    %v3105 = vmul.f32 %v2676, %v2740
    %v3106 = vmul.f32 %v2679, %v2740
    %v3107 = vmul.f32 %v2682, %v2740
    %v3108 = vmul.f32 %v2685, %v2740
    %v3109 = vmul.f32 %v2688, %v2740
    %v3110 = vmul.f32 %v2691, %v2740
    %v3111 = vmul.f32 %v2694, %v2740
    %v3112 = vmul.f32 %v2697, %v2740
    %v3113 = vmul.f32 %v2700, %v2740
    %v3114 = vmul.f32 %v2703, %v2740
    %v3115 = vmul.f32 %v2706, %v2740
    %v3116 = vmul.f32 %v2709, %v2740
    %v3117 = vmul.f32 %v2712, %v2740
    %v3118 = vmul.f32 %v2715, %v2740
    %v3119 = vmul.f32 %v2718, %v2740
    %v3120 = vmul.f32 %v2721, %v2740
    %v3121 = vmul.f32 %v2724, %v2740
    %v3122 = vmul.f32 %v2727, %v2740
    %v3123 = vmul.f32 %v2730, %v2740
    %v3124 = vmul.f32 %v2733, %v2740
    %v3125 = vlog2.pop %v2741
    %v3126 = vmul.f32 %v3125, 0.6931472
    %v3127 = vlog2.pop %v2742
    %v3128 = vmul.f32 %v3127, 0.6931472
    %v3129 = vlog2.pop %v2743
    %v3130 = vmul.f32 %v3129, 0.6931472
    %v3131 = vlog2.pop %v2744
    %v3132 = vmul.f32 %v3131, 0.6931472
    %v3133 = vlog2.pop %v2745
    %v3134 = vmul.f32 %v3133, 0.6931472
    %v3135 = vlog2.pop %v2746
    %v3136 = vmul.f32 %v3135, 0.6931472
    %v3137 = vlog2.pop %v2747
    %v3138 = vmul.f32 %v3137, 0.6931472
    %v3139 = vlog2.pop %v2748
    %v3140 = vmul.f32 %v3139, 0.6931472
    %v3141 = vlog2.pop %v2749
    %v3142 = vmul.f32 %v3141, 0.6931472
    %v3143 = vlog2.pop %v2750
    %v3144 = vmul.f32 %v3143, 0.6931472
    %v3145 = vlog2.pop %v2751
    %v3146 = vmul.f32 %v3145, 0.6931472
    %v3147 = vlog2.pop %v2752
    %v3148 = vmul.f32 %v3147, 0.6931472
    %v3149 = vlog2.pop %v2753
    %v3150 = vmul.f32 %v3149, 0.6931472
    %v3151 = vlog2.pop %v2754
    %v3152 = vmul.f32 %v3151, 0.6931472
    %v3153 = vlog2.pop %v2755
    %v3154 = vmul.f32 %v3153, 0.6931472
    %v3155 = vlog2.pop %v2756
    %v3156 = vmul.f32 %v3155, 0.6931472
    %v3157 = vlog2.pop %v2757
    %v3158 = vmul.f32 %v3157, 0.6931472
    %v3159 = vlog2.pop %v2758
    %v3160 = vmul.f32 %v3159, 0.6931472
    %v3161 = vlog2.pop %v2759
    %v3162 = vmul.f32 %v3161, 0.6931472
    %v3163 = vlog2.pop %v2760
    %v3164 = vmul.f32 %v3163, 0.6931472
    %v3165 = vlog2.pop %v2761
    %v3166 = vmul.f32 %v3165, 0.6931472
    %v3167 = vlog2.pop %v2762
    %v3168 = vmul.f32 %v3167, 0.6931472
    %v3169 = vlog2.pop %v2763
    %v3170 = vmul.f32 %v3169, 0.6931472
    %v3171 = vlog2.pop %v2764
    %v3172 = vmul.f32 %v3171, 0.6931472
    %v3173 = vlog2.pop %v2765
    %v3174 = vmul.f32 %v3173, 0.6931472
    %v3175 = vlog2.pop %v2766
    %v3176 = vmul.f32 %v3175, 0.6931472
    %v3177 = vlog2.pop %v2767
    %v3178 = vmul.f32 %v3177, 0.6931472
    %v3179 = vlog2.pop %v2768
    %v3180 = vmul.f32 %v3179, 0.6931472
    %v3181 = vlog2.pop %v2769
    %v3182 = vmul.f32 %v3181, 0.6931472
    %v3183 = vlog2.pop %v2770
    %v3184 = vmul.f32 %v3183, 0.6931472
    %v3185 = vlog2.pop %v2771
    %v3186 = vmul.f32 %v3185, 0.6931472
    %v3187 = vlog2.pop %v2772
    %v3188 = vmul.f32 %v3187, 0.6931472
    %v3189 = vlog2.pop %v2773
    %v3190 = vmul.f32 %v3189, 0.6931472
    %v3191 = vlog2.pop %v2774
    %v3192 = vmul.f32 %v3191, 0.6931472
    %v3193 = vlog2.pop %v2775
    %v3194 = vmul.f32 %v3193, 0.6931472
    %v3195 = vlog2.pop %v2776
    %v3196 = vmul.f32 %v3195, 0.6931472
    %v3197 = vlog2.pop %v2777
    %v3198 = vmul.f32 %v3197, 0.6931472
    %v3199 = vlog2.pop %v2778
    %v3200 = vmul.f32 %v3199, 0.6931472
    %v3201 = vlog2.pop %v2779
    %v3202 = vmul.f32 %v3201, 0.6931472
    %v3203 = vlog2.pop %v2780
    %v3204 = vmul.f32 %v3203, 0.6931472
    %v3205 = vlog2.pop %v2781
    %v3206 = vmul.f32 %v3205, 0.6931472
    %v3207 = vlog2.pop %v2782
    %v3208 = vmul.f32 %v3207, 0.6931472
    %v3209 = vlog2.pop %v2783
    %v3210 = vmul.f32 %v3209, 0.6931472
    %v3211 = vlog2.pop %v2784
    %v3212 = vmul.f32 %v3211, 0.6931472
    %v3213 = vlog2.pop %v2785
    %v3214 = vmul.f32 %v3213, 0.6931472
    %v3215 = vlog2.pop %v2786
    %v3216 = vmul.f32 %v3215, 0.6931472
    %v3217 = vlog2.pop %v2787
    %v3218 = vmul.f32 %v3217, 0.6931472
    %v3219 = vlog2.pop %v2788
    %v3220 = vmul.f32 %v3219, 0.6931472
    %v3221 = vlog2.pop %v2789
    %v3222 = vmul.f32 %v3221, 0.6931472
    %v3223 = vlog2.pop %v2790
    %v3224 = vmul.f32 %v3223, 0.6931472
    %v3225 = vlog2.pop %v2791
    %v3226 = vmul.f32 %v3225, 0.6931472
    %v3227 = vlog2.pop %v2792
    %v3228 = vmul.f32 %v3227, 0.6931472
    %v3229 = vlog2.pop %v2793
    %v3230 = vmul.f32 %v3229, 0.6931472
    %v3231 = vlog2.pop %v2794
    %v3232 = vmul.f32 %v3231, 0.6931472
    %v3233 = vlog2.pop %v2795
    %v3234 = vmul.f32 %v3233, 0.6931472
    %v3235 = vlog2.pop %v2796
    %v3236 = vmul.f32 %v3235, 0.6931472
    %v3237 = vlog2.pop %v2797
    %v3238 = vmul.f32 %v3237, 0.6931472
    %v3239 = vlog2.pop %v2798
    %v3240 = vmul.f32 %v3239, 0.6931472
    %v3241 = vlog2.pop %v2799
    %v3242 = vmul.f32 %v3241, 0.6931472
    %v3243 = vlog2.pop %v2800
    %v3244 = vmul.f32 %v3243, 0.6931472
    %v3245 = vlog2.pop %v2801
    %v3246 = vmul.f32 %v3245, 0.6931472
    %v3247 = vlog2.pop %v2802
    %v3248 = vmul.f32 %v3247, 0.6931472
    %v3249 = vlog2.pop %v2803
    %v3250 = vmul.f32 %v3249, 0.6931472
    %v3251 = vlog2.pop %v2804
    %v3252 = vmul.f32 %v3251, 0.6931472
    %v3253 = vlog2.pop %v2805
    %v3254 = vmul.f32 %v3253, 0.6931472
    %v3255 = vlog2.pop %v2806
    %v3256 = vmul.f32 %v3255, 0.6931472
    %v3257 = vlog2.pop %v2807
    %v3258 = vmul.f32 %v3257, 0.6931472
    %v3259 = vlog2.pop %v2808
    %v3260 = vmul.f32 %v3259, 0.6931472
    %v3261 = vlog2.pop %v2809
    %v3262 = vmul.f32 %v3261, 0.6931472
    %v3263 = vlog2.pop %v2810
    %v3264 = vmul.f32 %v3263, 0.6931472
    %v3265 = vlog2.pop %v2811
    %v3266 = vmul.f32 %v3265, 0.6931472
    %v3267 = vlog2.pop %v2812
    %v3268 = vmul.f32 %v3267, 0.6931472
    %v3269 = vlog2.pop %v2813
    %v3270 = vmul.f32 %v3269, 0.6931472
    %v3271 = vlog2.pop %v2814
    %v3272 = vmul.f32 %v3271, 0.6931472
    %v3273 = vlog2.pop %v2815
    %v3274 = vmul.f32 %v3273, 0.6931472
    %v3275 = vlog2.pop %v2816
    %v3276 = vmul.f32 %v3275, 0.6931472
    %v3277 = vlog2.pop %v2817
    %v3278 = vmul.f32 %v3277, 0.6931472
    %v3279 = vlog2.pop %v2818
    %v3280 = vmul.f32 %v3279, 0.6931472
    %v3281 = vlog2.pop %v2819
    %v3282 = vmul.f32 %v3281, 0.6931472
    %v3283 = vlog2.pop %v2820
    %v3284 = vmul.f32 %v3283, 0.6931472
    %v3285 = vlog2.pop %v2821
    %v3286 = vmul.f32 %v3285, 0.6931472
    %v3287 = vlog2.pop %v2822
    %v3288 = vmul.f32 %v3287, 0.6931472
    %v3289 = vlog2.pop %v2823
    %v3290 = vmul.f32 %v3289, 0.6931472
    %v3291 = vlog2.pop %v2824
    %v3292 = vmul.f32 %v3291, 0.6931472
    %v3293 = vlog2.pop %v2825
    %v3294 = vmul.f32 %v3293, 0.6931472
    %v3295 = vlog2.pop %v2826
    %v3296 = vmul.f32 %v3295, 0.6931472
    %v3297 = vlog2.pop %v2827
    %v3298 = vmul.f32 %v3297, 0.6931472
    %v3299 = vlog2.pop %v2828
    %v3300 = vmul.f32 %v3299, 0.6931472
    %v3301 = vlog2.pop %v2829
    %v3302 = vmul.f32 %v3301, 0.6931472
    %v3303 = vlog2.pop %v2830
    %v3304 = vmul.f32 %v3303, 0.6931472
    %v3305 = vlog2.pop %v2831
    %v3306 = vmul.f32 %v3305, 0.6931472
    %v3307 = vlog2.pop %v2832
    %v3308 = vmul.f32 %v3307, 0.6931472
    %v3309 = vlog2.pop %v2833
    %v3310 = vmul.f32 %v3309, 0.6931472
    %v3311 = vlog2.pop %v2834
    %v3312 = vmul.f32 %v3311, 0.6931472
    %v3313 = vlog2.pop %v2835
    %v3314 = vmul.f32 %v3313, 0.6931472
    %v3315 = vlog2.pop %v2836
    %v3316 = vmul.f32 %v3315, 0.6931472
    %v3317 = vlog2.pop %v2837
    %v3318 = vmul.f32 %v3317, 0.6931472
    %v3319 = vlog2.pop %v2838
    %v3320 = vmul.f32 %v3319, 0.6931472
    %v3321 = vlog2.pop %v2839
    %v3322 = vmul.f32 %v3321, 0.6931472
    %v3323 = vlog2.pop %v2840
    %v3324 = vmul.f32 %v3323, 0.6931472
    %v3325 = vlog2.pop %v2841
    %v3326 = vmul.f32 %v3325, 0.6931472
    %v3327 = vlog2.pop %v2842
    %v3328 = vmul.f32 %v3327, 0.6931472
    %v3329 = vlog2.pop %v2843
    %v3330 = vmul.f32 %v3329, 0.6931472
    %v3331 = vlog2.pop %v2844
    %v3332 = vmul.f32 %v3331, 0.6931472
    %v3333 = vlog2.pop %v2845
    %v3334 = vmul.f32 %v3333, 0.6931472
    %v3335 = vlog2.pop %v2846
    %v3336 = vmul.f32 %v3335, 0.6931472
    %v3337 = vlog2.pop %v2847
    %v3338 = vmul.f32 %v3337, 0.6931472
    %v3339 = vlog2.pop %v2848
    %v3340 = vmul.f32 %v3339, 0.6931472
    %v3341 = vlog2.pop %v2849
    %v3342 = vmul.f32 %v3341, 0.6931472
    %v3343 = vlog2.pop %v2850
    %v3344 = vmul.f32 %v3343, 0.6931472
    %v3345 = vlog2.pop %v2851
    %v3346 = vmul.f32 %v3345, 0.6931472
    %v3347 = vlog2.pop %v2852
    %v3348 = vmul.f32 %v3347, 0.6931472
    %v3349 = vlog2.pop %v2853
    %v3350 = vmul.f32 %v3349, 0.6931472
    %v3351 = vlog2.pop %v2854
    %v3352 = vmul.f32 %v3351, 0.6931472
    %v3353 = vlog2.pop %v2855
    %v3354 = vmul.f32 %v3353, 0.6931472
    %v3355 = vlog2.pop %v2856
    %v3356 = vmul.f32 %v3355, 0.6931472
    %v3357 = vlog2.pop %v2857
    %v3358 = vmul.f32 %v3357, 0.6931472
    %v3359 = vlog2.pop %v2858
    %v3360 = vmul.f32 %v3359, 0.6931472
    %v3361 = vlog2.pop %v2859
    %v3362 = vmul.f32 %v3361, 0.6931472
    %v3363 = vlog2.pop %v2860
    %v3364 = vmul.f32 %v3363, 0.6931472
    %v3365 = vlog2.pop %v2861
    %v3366 = vmul.f32 %v3365, 0.6931472
    %v3367 = vlog2.pop %v2862
    %v3368 = vmul.f32 %v3367, 0.6931472
    %v3369 = vlog2.pop %v2863
    %v3370 = vmul.f32 %v3369, 0.6931472
    %v3371 = vlog2.pop %v2864
    %v3372 = vmul.f32 %v3371, 0.6931472
    %v3373 = vlog2.pop %v2865
    %v3374 = vmul.f32 %v3373, 0.6931472
    %v3375 = vlog2.pop %v2866
    %v3376 = vmul.f32 %v3375, 0.6931472
    %v3377 = vlog2.pop %v2867
    %v3378 = vmul.f32 %v3377, 0.6931472
    %v3379 = vlog2.pop %v2868
    %v3380 = vmul.f32 %v3379, 0.6931472
    %v3381 = vlog2.pop %v2869
    %v3382 = vmul.f32 %v3381, 0.6931472
    %v3383 = vlog2.pop %v2870
    %v3384 = vmul.f32 %v3383, 0.6931472
    %v3385 = vlog2.pop %v2871
    %v3386 = vmul.f32 %v3385, 0.6931472
    %v3387 = vlog2.pop %v2872
    %v3388 = vmul.f32 %v3387, 0.6931472
    %v3389 = vlog2.pop %v2873
    %v3390 = vmul.f32 %v3389, 0.6931472
    %v3391 = vlog2.pop %v2874
    %v3392 = vmul.f32 %v3391, 0.6931472
    %v3393 = vlog2.pop %v2875
    %v3394 = vmul.f32 %v3393, 0.6931472
    %v3395 = vlog2.pop %v2876
    %v3396 = vmul.f32 %v3395, 0.6931472
    %v3397 = vlog2.pop %v2877
    %v3398 = vmul.f32 %v3397, 0.6931472
    %v3399 = vlog2.pop %v2878
    %v3400 = vmul.f32 %v3399, 0.6931472
    %v3401 = vlog2.pop %v2879
    %v3402 = vmul.f32 %v3401, 0.6931472
    %v3403 = vlog2.pop %v2880
    %v3404 = vmul.f32 %v3403, 0.6931472
    %v3405 = vlog2.pop %v2881
    %v3406 = vmul.f32 %v3405, 0.6931472
    %v3407 = vlog2.pop %v2882
    %v3408 = vmul.f32 %v3407, 0.6931472
    %v3409 = vlog2.pop %v2883
    %v3410 = vmul.f32 %v3409, 0.6931472
    %v3411 = vlog2.pop %v2884
    %v3412 = vmul.f32 %v3411, 0.6931472
    %v3413 = vlog2.pop %v2885
    %v3414 = vmul.f32 %v3413, 0.6931472
    %v3415 = vlog2.pop %v2886
    %v3416 = vmul.f32 %v3415, 0.6931472
    %v3417 = vlog2.pop %v2887
    %v3418 = vmul.f32 %v3417, 0.6931472
    %v3419 = vlog2.pop %v2888
    %v3420 = vmul.f32 %v3419, 0.6931472
    %v3421 = vlog2.pop %v2889
    %v3422 = vmul.f32 %v3421, 0.6931472
    %v3423 = vlog2.pop %v2890
    %v3424 = vmul.f32 %v3423, 0.6931472
    %v3425 = vlog2.pop %v2891
    %v3426 = vmul.f32 %v3425, 0.6931472
    %v3427 = vlog2.pop %v2892
    %v3428 = vmul.f32 %v3427, 0.6931472
    %v3429 = vlog2.pop %v2893
    %v3430 = vmul.f32 %v3429, 0.6931472
    %v3431 = vlog2.pop %v2894
    %v3432 = vmul.f32 %v3431, 0.6931472
    %v3433 = vlog2.pop %v2895
    %v3434 = vmul.f32 %v3433, 0.6931472
    %v3435 = vlog2.pop %v2896
    %v3436 = vmul.f32 %v3435, 0.6931472
    %v3437 = vlog2.pop %v2897
    %v3438 = vmul.f32 %v3437, 0.6931472
    %v3439 = vlog2.pop %v2898
    %v3440 = vmul.f32 %v3439, 0.6931472
    %v3441 = vlog2.pop %v2899
    %v3442 = vmul.f32 %v3441, 0.6931472
    %v3443 = vlog2.pop %v2900
    %v3444 = vmul.f32 %v3443, 0.6931472
    %v3445 = vlog2.pop %v2901
    %v3446 = vmul.f32 %v3445, 0.6931472
    %v3447 = vlog2.pop %v2902
    %v3448 = vmul.f32 %v3447, 0.6931472
    %v3449 = vlog2.pop %v2903
    %v3450 = vmul.f32 %v3449, 0.6931472
    %v3451 = vlog2.pop %v2904
    %v3452 = vmul.f32 %v3451, 0.6931472
    %v3453 = vlog2.pop %v2905
    %v3454 = vmul.f32 %v3453, 0.6931472
    %v3455 = vlog2.pop %v2906
    %v3456 = vmul.f32 %v3455, 0.6931472
    %v3457 = vlog2.pop %v2907
    %v3458 = vmul.f32 %v3457, 0.6931472
    %v3459 = vlog2.pop %v2908
    %v3460 = vmul.f32 %v3459, 0.6931472
    %v3461 = vlog2.pop %v2909
    %v3462 = vmul.f32 %v3461, 0.6931472
    %v3463 = vlog2.pop %v2910
    %v3464 = vmul.f32 %v3463, 0.6931472
    %v3465 = vlog2.pop %v2911
    %v3466 = vmul.f32 %v3465, 0.6931472
    %v3467 = vlog2.pop %v2912
    %v3468 = vmul.f32 %v3467, 0.6931472
    %v3469 = vlog2.pop %v2913
    %v3470 = vmul.f32 %v3469, 0.6931472
    %v3471 = vlog2.pop %v2914
    %v3472 = vmul.f32 %v3471, 0.6931472
    %v3473 = vlog2.pop %v2915
    %v3474 = vmul.f32 %v3473, 0.6931472
    %v3475 = vlog2.pop %v2916
    %v3476 = vmul.f32 %v3475, 0.6931472
    %v3477 = vlog2.pop %v2917
    %v3478 = vmul.f32 %v3477, 0.6931472
    %v3479 = vlog2.pop %v2918
    %v3480 = vmul.f32 %v3479, 0.6931472
    %v3481 = vlog2.pop %v2919
    %v3482 = vmul.f32 %v3481, 0.6931472
    %v3483 = vlog2.pop %v2920
    %v3484 = vmul.f32 %v3483, 0.6931472
    %v3485 = vlog2.pop %v2921
    %v3486 = vmul.f32 %v3485, 0.6931472
    %v3487 = vlog2.pop %v2922
    %v3488 = vmul.f32 %v3487, 0.6931472
    %v3489 = vlog2.pop %v2923
    %v3490 = vmul.f32 %v3489, 0.6931472
    %v3491 = vlog2.pop %v2924
    %v3492 = vmul.f32 %v3491, 0.6931472
    %v3493 = vlog2.pop %v2925
    %v3494 = vmul.f32 %v3493, 0.6931472
    %v3495 = vlog2.pop %v2926
    %v3496 = vmul.f32 %v3495, 0.6931472
    %v3497 = vlog2.pop %v2927
    %v3498 = vmul.f32 %v3497, 0.6931472
    %v3499 = vlog2.pop %v2928
    %v3500 = vmul.f32 %v3499, 0.6931472
    %v3501 = vlog2.pop %v2929
    %v3502 = vmul.f32 %v3501, 0.6931472
    %v3503 = vlog2.pop %v2930
    %v3504 = vmul.f32 %v3503, 0.6931472
    %v3505 = vlog2.pop %v2931
    %v3506 = vmul.f32 %v3505, 0.6931472
    %v3507 = vlog2.pop %v2932
    %v3508 = vmul.f32 %v3507, 0.6931472
    %v3509 = vlog2.pop %v2933
    %v3510 = vmul.f32 %v3509, 0.6931472
    %v3511 = vlog2.pop %v2934
    %v3512 = vmul.f32 %v3511, 0.6931472
    %v3513 = vlog2.pop %v2935
    %v3514 = vmul.f32 %v3513, 0.6931472
    %v3515 = vlog2.pop %v2936
    %v3516 = vmul.f32 %v3515, 0.6931472
    %v3517 = vlog2.pop %v2937
    %v3518 = vmul.f32 %v3517, 0.6931472
    %v3519 = vlog2.pop %v2938
    %v3520 = vmul.f32 %v3519, 0.6931472
    %v3521 = vlog2.pop %v2939
    %v3522 = vmul.f32 %v3521, 0.6931472
    %v3523 = vlog2.pop %v2940
    %v3524 = vmul.f32 %v3523, 0.6931472
    %v3525 = vlog2.pop %v2941
    %v3526 = vmul.f32 %v3525, 0.6931472
    %v3527 = vlog2.pop %v2942
    %v3528 = vmul.f32 %v3527, 0.6931472
    %v3529 = vlog2.pop %v2943
    %v3530 = vmul.f32 %v3529, 0.6931472
    %v3531 = vlog2.pop %v2944
    %v3532 = vmul.f32 %v3531, 0.6931472
    %v3533 = vlog2.pop %v2945
    %v3534 = vmul.f32 %v3533, 0.6931472
    %v3535 = vlog2.pop %v2946
    %v3536 = vmul.f32 %v3535, 0.6931472
    %v3537 = vlog2.pop %v2947
    %v3538 = vmul.f32 %v3537, 0.6931472
    %v3539 = vlog2.pop %v2948
    %v3540 = vmul.f32 %v3539, 0.6931472
    %v3541 = vlog2.pop %v2949
    %v3542 = vmul.f32 %v3541, 0.6931472
    %v3543 = vlog2.pop %v2950
    %v3544 = vmul.f32 %v3543, 0.6931472
    %v3545 = vlog2.pop %v2951
    %v3546 = vmul.f32 %v3545, 0.6931472
    %v3547 = vlog2.pop %v2952
    %v3548 = vmul.f32 %v3547, 0.6931472
    %v3549 = vlog2.pop %v2953
    %v3550 = vmul.f32 %v3549, 0.6931472
    %v3551 = vlog2.pop %v2954
    %v3552 = vmul.f32 %v3551, 0.6931472
    %v3553 = vlog2.pop %v2955
    %v3554 = vmul.f32 %v3553, 0.6931472
    %v3555 = vlog2.pop %v2956
    %v3556 = vmul.f32 %v3555, 0.6931472
    %v3557 = vlog2.pop %v2957
    %v3558 = vmul.f32 %v3557, 0.6931472
    %v3559 = vlog2.pop %v2958
    %v3560 = vmul.f32 %v3559, 0.6931472
    %v3561 = vlog2.pop %v2959
    %v3562 = vmul.f32 %v3561, 0.6931472
    %v3563 = vlog2.pop %v2960
    %v3564 = vmul.f32 %v3563, 0.6931472
    %v3565 = vlog2.pop %v2961
    %v3566 = vmul.f32 %v3565, 0.6931472
    %v3567 = vlog2.pop %v2962
    %v3568 = vmul.f32 %v3567, 0.6931472
    %v3569 = vlog2.pop %v2963
    %v3570 = vmul.f32 %v3569, 0.6931472
    %v3571 = vlog2.pop %v2964
    %v3572 = vmul.f32 %v3571, 0.6931472
    %v3573 = vlog2.pop %v2965
    %v3574 = vmul.f32 %v3573, 0.6931472
    %v3575 = vlog2.pop %v2966
    %v3576 = vmul.f32 %v3575, 0.6931472
    %v3577 = vlog2.pop %v2967
    %v3578 = vmul.f32 %v3577, 0.6931472
    %v3579 = vlog2.pop %v2968
    %v3580 = vmul.f32 %v3579, 0.6931472
    %v3581 = vlog2.pop %v2969
    %v3582 = vmul.f32 %v3581, 0.6931472
    %v3583 = vlog2.pop %v2970
    %v3584 = vmul.f32 %v3583, 0.6931472
    %v3585 = vlog2.pop %v2971
    %v3586 = vmul.f32 %v3585, 0.6931472
    %v3587 = vlog2.pop %v2972
    %v3588 = vmul.f32 %v3587, 0.6931472
    %v3589 = vlog2.pop %v2973
    %v3590 = vmul.f32 %v3589, 0.6931472
    %v3591 = vlog2.pop %v2974
    %v3592 = vmul.f32 %v3591, 0.6931472
    %v3593 = vlog2.pop %v2975
    %v3594 = vmul.f32 %v3593, 0.6931472
    %v3595 = vlog2.pop %v2976
    %v3596 = vmul.f32 %v3595, 0.6931472
    %v3597 = vlog2.pop %v2977
    %v3598 = vmul.f32 %v3597, 0.6931472
    %v3599 = vlog2.pop %v2978
    %v3600 = vmul.f32 %v3599, 0.6931472
    %v3601 = vlog2.pop %v2979
    %v3602 = vmul.f32 %v3601, 0.6931472
    %v3603 = vlog2.pop %v2980
    %v3604 = vmul.f32 %v3603, 0.6931472
    %v3605 = vlog2.pop %v2981
    %v3606 = vmul.f32 %v3605, 0.6931472
    %v3607 = vlog2.pop %v2982
    %v3608 = vmul.f32 %v3607, 0.6931472
    %v3609 = vlog2.pop %v2983
    %v3610 = vmul.f32 %v3609, 0.6931472
    %v3611 = vlog2.pop %v2984
    %v3612 = vmul.f32 %v3611, 0.6931472
    %v3613 = vlog2.pop %v2985
    %v3614 = vmul.f32 %v3613, 0.6931472
    %v3615 = vlog2.pop %v2986
    %v3616 = vmul.f32 %v3615, 0.6931472
    %v3617 = vlog2.pop %v2987
    %v3618 = vmul.f32 %v3617, 0.6931472
    %v3619 = vlog2.pop %v2988
    %v3620 = vmul.f32 %v3619, 0.6931472
    %v3621 = vlog2.pop %v2989
    %v3622 = vmul.f32 %v3621, 0.6931472
    %v3623 = vlog2.pop %v2990
    %v3624 = vmul.f32 %v3623, 0.6931472
    %v3625 = vlog2.pop %v2991
    %v3626 = vmul.f32 %v3625, 0.6931472
    %v3627 = vlog2.pop %v2992
    %v3628 = vmul.f32 %v3627, 0.6931472
    %v3629 = vlog2.pop %v2993
    %v3630 = vmul.f32 %v3629, 0.6931472
    %v3631 = vlog2.pop %v2994
    %v3632 = vmul.f32 %v3631, 0.6931472
    %v3633 = vlog2.pop %v2995
    %v3634 = vmul.f32 %v3633, 0.6931472
    %v3635 = vlog2.pop %v2996
    %v3636 = vmul.f32 %v3635, 0.6931472
    %v3637 = vlog2.pop %v2997
    %v3638 = vmul.f32 %v3637, 0.6931472
    %v3639 = vlog2.pop %v2998
    %v3640 = vmul.f32 %v3639, 0.6931472
    %v3641 = vlog2.pop %v2999
    %v3642 = vmul.f32 %v3641, 0.6931472
    %v3643 = vlog2.pop %v3000
    %v3644 = vmul.f32 %v3643, 0.6931472
    %v3645 = vlog2.pop %v3001
    %v3646 = vmul.f32 %v3645, 0.6931472
    %v3647 = vlog2.pop %v3002
    %v3648 = vmul.f32 %v3647, 0.6931472
    %v3649 = vlog2.pop %v3003
    %v3650 = vmul.f32 %v3649, 0.6931472
    %v3651 = vlog2.pop %v3004
    %v3652 = vmul.f32 %v3651, 0.6931472
    %v3653 = vlog2.pop %v3005
    %v3654 = vmul.f32 %v3653, 0.6931472
    %v3655 = vlog2.pop %v3006
    %v3656 = vmul.f32 %v3655, 0.6931472
    %v3657 = vlog2.pop %v3007
    %v3658 = vmul.f32 %v3657, 0.6931472
    %v3659 = vlog2.pop %v3008
    %v3660 = vmul.f32 %v3659, 0.6931472
    %v3661 = vlog2.pop %v3009
    %v3662 = vmul.f32 %v3661, 0.6931472
    %v3663 = vlog2.pop %v3010
    %v3664 = vmul.f32 %v3663, 0.6931472
    %v3665 = vlog2.pop %v3011
    %v3666 = vmul.f32 %v3665, 0.6931472
    %v3667 = vlog2.pop %v3012
    %v3668 = vmul.f32 %v3667, 0.6931472
    %v3669 = vlog2.pop %v3013
    %v3670 = vmul.f32 %v3669, 0.6931472
    %v3671 = vlog2.pop %v3014
    %v3672 = vmul.f32 %v3671, 0.6931472
    %v3673 = vlog2.pop %v3015
    %v3674 = vmul.f32 %v3673, 0.6931472
    %v3675 = vlog2.pop %v3016
    %v3676 = vmul.f32 %v3675, 0.6931472
    %v3677 = vlog2.pop %v3017
    %v3678 = vmul.f32 %v3677, 0.6931472
    %v3679 = vlog2.pop %v3018
    %v3680 = vmul.f32 %v3679, 0.6931472
    %v3681 = vlog2.pop %v3019
    %v3682 = vmul.f32 %v3681, 0.6931472
    %v3683 = vlog2.pop %v3020
    %v3684 = vmul.f32 %v3683, 0.6931472
    %v3685 = vlog2.pop %v3021
    %v3686 = vmul.f32 %v3685, 0.6931472
    %v3687 = vlog2.pop %v3022
    %v3688 = vmul.f32 %v3687, 0.6931472
    %v3689 = vlog2.pop %v3023
    %v3690 = vmul.f32 %v3689, 0.6931472
    %v3691 = vlog2.pop %v3024
    %v3692 = vmul.f32 %v3691, 0.6931472
    %v3693 = vlog2.pop %v3025
    %v3694 = vmul.f32 %v3693, 0.6931472
    %v3695 = vlog2.pop %v3026
    %v3696 = vmul.f32 %v3695, 0.6931472
    %v3697 = vlog2.pop %v3027
    %v3698 = vmul.f32 %v3697, 0.6931472
    %v3699 = vlog2.pop %v3028
    %v3700 = vmul.f32 %v3699, 0.6931472
    %v3701 = vlog2.pop %v3029
    %v3702 = vmul.f32 %v3701, 0.6931472
    %v3703 = vlog2.pop %v3030
    %v3704 = vmul.f32 %v3703, 0.6931472
    %v3705 = vlog2.pop %v3031
    %v3706 = vmul.f32 %v3705, 0.6931472
    %v3707 = vlog2.pop %v3032
    %v3708 = vmul.f32 %v3707, 0.6931472
    %v3709 = vlog2.pop %v3033
    %v3710 = vmul.f32 %v3709, 0.6931472
    %v3711 = vlog2.pop %v3034
    %v3712 = vmul.f32 %v3711, 0.6931472
    %v3713 = vlog2.pop %v3035
    %v3714 = vmul.f32 %v3713, 0.6931472
    %v3715 = vlog2.pop %v3036
    %v3716 = vmul.f32 %v3715, 0.6931472
    %v3717 = vlog2.pop %v3037
    %v3718 = vmul.f32 %v3717, 0.6931472
    %v3719 = vlog2.pop %v3038
    %v3720 = vmul.f32 %v3719, 0.6931472
    %v3721 = vlog2.pop %v3039
    %v3722 = vmul.f32 %v3721, 0.6931472
    %v3723 = vlog2.pop %v3040
    %v3724 = vmul.f32 %v3723, 0.6931472
    %v3725 = vlog2.pop %v3041
    %v3726 = vmul.f32 %v3725, 0.6931472
    %v3727 = vlog2.pop %v3042
    %v3728 = vmul.f32 %v3727, 0.6931472
    %v3729 = vlog2.pop %v3043
    %v3730 = vmul.f32 %v3729, 0.6931472
    %v3731 = vlog2.pop %v3044
    %v3732 = vmul.f32 %v3731, 0.6931472
    %v3733 = vlog2.pop %v3045
    %v3734 = vmul.f32 %v3733, 0.6931472
    %v3735 = vlog2.pop %v3046
    %v3736 = vmul.f32 %v3735, 0.6931472
    %v3737 = vlog2.pop %v3047
    %v3738 = vmul.f32 %v3737, 0.6931472
    %v3739 = vlog2.pop %v3048
    %v3740 = vmul.f32 %v3739, 0.6931472
    %v3741 = vlog2.pop %v3049
    %v3742 = vmul.f32 %v3741, 0.6931472
    %v3743 = vlog2.pop %v3050
    %v3744 = vmul.f32 %v3743, 0.6931472
    %v3745 = vlog2.pop %v3051
    %v3746 = vmul.f32 %v3745, 0.6931472
    %v3747 = vlog2.pop %v3052
    %v3748 = vmul.f32 %v3747, 0.6931472
    %v3749 = vlog2.pop %v3053
    %v3750 = vmul.f32 %v3749, 0.6931472
    %v3751 = vlog2.pop %v3054
    %v3752 = vmul.f32 %v3751, 0.6931472
    %v3753 = vlog2.pop %v3055
    %v3754 = vmul.f32 %v3753, 0.6931472
    %v3755 = vlog2.pop %v3056
    %v3756 = vmul.f32 %v3755, 0.6931472
    %v3757 = vlog2.pop %v3057
    %v3758 = vmul.f32 %v3757, 0.6931472
    %v3759 = vlog2.pop %v3058
    %v3760 = vmul.f32 %v3759, 0.6931472
    %v3761 = vlog2.pop %v3059
    %v3762 = vmul.f32 %v3761, 0.6931472
    %v3763 = vlog2.pop %v3060
    %v3764 = vmul.f32 %v3763, 0.6931472
    %v3765 = vlog2.pop %v3061
    %v3766 = vmul.f32 %v3765, 0.6931472
    %v3767 = vlog2.pop %v3062
    %v3768 = vmul.f32 %v3767, 0.6931472
    %v3769 = vlog2.pop %v3063
    %v3770 = vmul.f32 %v3769, 0.6931472
    %v3771 = vlog2.pop %v3064
    %v3772 = vmul.f32 %v3771, 0.6931472
    %v3773 = vlog2.pop %v3065
    %v3774 = vmul.f32 %v3773, 0.6931472
    %v3775 = vlog2.pop %v3066
    %v3776 = vmul.f32 %v3775, 0.6931472
    %v3777 = vlog2.pop %v3067
    %v3778 = vmul.f32 %v3777, 0.6931472
    %v3779 = vlog2.pop %v3068
    %v3780 = vmul.f32 %v3779, 0.6931472
    %v3781 = vlog2.pop %v3069
    %v3782 = vmul.f32 %v3781, 0.6931472
    %v3783 = vlog2.pop %v3070
    %v3784 = vmul.f32 %v3783, 0.6931472
    %v3785 = vlog2.pop %v3071
    %v3786 = vmul.f32 %v3785, 0.6931472
    %v3787 = vlog2.pop %v3072
    %v3788 = vmul.f32 %v3787, 0.6931472
    %v3789 = vlog2.pop %v3073
    %v3790 = vmul.f32 %v3789, 0.6931472
    %v3791 = vlog2.pop %v3074
    %v3792 = vmul.f32 %v3791, 0.6931472
    %v3793 = vlog2.pop %v3075
    %v3794 = vmul.f32 %v3793, 0.6931472
    %v3795 = vlog2.pop %v3076
    %v3796 = vmul.f32 %v3795, 0.6931472
    %v3797 = vlog2.pop %v3077
    %v3798 = vmul.f32 %v3797, 0.6931472
    %v3799 = vlog2.pop %v3078
    %v3800 = vmul.f32 %v3799, 0.6931472
    %v3801 = vlog2.pop %v3079
    %v3802 = vmul.f32 %v3801, 0.6931472
    %v3803 = vlog2.pop %v3080
    %v3804 = vmul.f32 %v3803, 0.6931472
    %v3805 = vlog2.pop %v3081
    %v3806 = vmul.f32 %v3805, 0.6931472
    %v3807 = vlog2.pop %v3082
    %v3808 = vmul.f32 %v3807, 0.6931472
    %v3809 = vlog2.pop %v3083
    %v3810 = vmul.f32 %v3809, 0.6931472
    %v3811 = vlog2.pop %v3084
    %v3812 = vmul.f32 %v3811, 0.6931472
    %v3813 = vlog2.pop %v3085
    %v3814 = vmul.f32 %v3813, 0.6931472
    %v3815 = vlog2.pop %v3086
    %v3816 = vmul.f32 %v3815, 0.6931472
    %v3817 = vlog2.pop %v3087
    %v3818 = vmul.f32 %v3817, 0.6931472
    %v3819 = vlog2.pop %v3088
    %v3820 = vmul.f32 %v3819, 0.6931472
    %v3821 = vlog2.pop %v3089
    %v3822 = vmul.f32 %v3821, 0.6931472
    %v3823 = vlog2.pop %v3090
    %v3824 = vmul.f32 %v3823, 0.6931472
    %v3825 = vlog2.pop %v3091
    %v3826 = vmul.f32 %v3825, 0.6931472
    %v3827 = vlog2.pop %v3092
    %v3828 = vmul.f32 %v3827, 0.6931472
    %v3829 = vlog2.pop %v3093
    %v3830 = vmul.f32 %v3829, 0.6931472
    %v3831 = vlog2.pop %v3094
    %v3832 = vmul.f32 %v3831, 0.6931472
    %v3833 = vlog2.pop %v3095
    %v3834 = vmul.f32 %v3833, 0.6931472
    %v3835 = vlog2.pop %v3096
    %v3836 = vmul.f32 %v3835, 0.6931472
    %v3837 = vlog2.pop %v3097
    %v3838 = vmul.f32 %v3837, 0.6931472
    %v3839 = vlog2.pop %v3098
    %v3840 = vmul.f32 %v3839, 0.6931472
    %v3841 = vlog2.pop %v3099
    %v3842 = vmul.f32 %v3841, 0.6931472
    %v3843 = vlog2.pop %v3100
    %v3844 = vmul.f32 %v3843, 0.6931472
    %v3845 = vlog2.pop %v3101
    %v3846 = vmul.f32 %v3845, 0.6931472
    %v3847 = vlog2.pop %v3102
    %v3848 = vmul.f32 %v3847, 0.6931472
    %v3849 = vlog2.pop %v3103
    %v3850 = vmul.f32 %v3849, 0.6931472
    %v3851 = vlog2.pop %v3104
    %v3852 = vmul.f32 %v3851, 0.6931472
    %v3853 = vlog2.pop %v3105
    %v3854 = vmul.f32 %v3853, 0.6931472
    %v3855 = vlog2.pop %v3106
    %v3856 = vmul.f32 %v3855, 0.6931472
    %v3857 = vlog2.pop %v3107
    %v3858 = vmul.f32 %v3857, 0.6931472
    %v3859 = vlog2.pop %v3108
    %v3860 = vmul.f32 %v3859, 0.6931472
    %v3861 = vlog2.pop %v3109
    %v3862 = vmul.f32 %v3861, 0.6931472
    %v3863 = vlog2.pop %v3110
    %v3864 = vmul.f32 %v3863, 0.6931472
    %v3865 = vlog2.pop %v3111
    %v3866 = vmul.f32 %v3865, 0.6931472
    %v3867 = vlog2.pop %v3112
    %v3868 = vmul.f32 %v3867, 0.6931472
    %v3869 = vlog2.pop %v3113
    %v3870 = vmul.f32 %v3869, 0.6931472
    %v3871 = vlog2.pop %v3114
    %v3872 = vmul.f32 %v3871, 0.6931472
    %v3873 = vlog2.pop %v3115
    %v3874 = vmul.f32 %v3873, 0.6931472
    %v3875 = vlog2.pop %v3116
    %v3876 = vmul.f32 %v3875, 0.6931472
    %v3877 = vlog2.pop %v3117
    %v3878 = vmul.f32 %v3877, 0.6931472
    %v3879 = vlog2.pop %v3118
    %v3880 = vmul.f32 %v3879, 0.6931472
    %v3881 = vlog2.pop %v3119
    %v3882 = vmul.f32 %v3881, 0.6931472
    %v3883 = vlog2.pop %v3120
    %v3884 = vmul.f32 %v3883, 0.6931472
    %v3885 = vlog2.pop %v3121
    %v3886 = vmul.f32 %v3885, 0.6931472
    %v3887 = vlog2.pop %v3122
    %v3888 = vmul.f32 %v3887, 0.6931472
    %v3889 = vlog2.pop %v3123
    %v3890 = vmul.f32 %v3889, 0.6931472
    %v3891 = vlog2.pop %v3124
    %v3892 = vmul.f32 %v3891, 0.6931472
    %v3893 = vmul.f32 %v3126, 0.33333334
    %v3894 = vmul.f32 %v3128, 0.33333334
    %v3895 = vmul.f32 %v3130, 0.33333334
    %v3896 = vmul.f32 %v3132, 0.33333334
    %v3897 = vmul.f32 %v3134, 0.33333334
    %v3898 = vmul.f32 %v3136, 0.33333334
    %v3899 = vmul.f32 %v3138, 0.33333334
    %v3900 = vmul.f32 %v3140, 0.33333334
    %v3901 = vmul.f32 %v3142, 0.33333334
    %v3902 = vmul.f32 %v3144, 0.33333334
    %v3903 = vmul.f32 %v3146, 0.33333334
    %v3904 = vmul.f32 %v3148, 0.33333334
    %v3905 = vmul.f32 %v3150, 0.33333334
    %v3906 = vmul.f32 %v3152, 0.33333334
    %v3907 = vmul.f32 %v3154, 0.33333334
    %v3908 = vmul.f32 %v3156, 0.33333334
    %v3909 = vmul.f32 %v3158, 0.33333334
    %v3910 = vmul.f32 %v3160, 0.33333334
    %v3911 = vmul.f32 %v3162, 0.33333334
    %v3912 = vmul.f32 %v3164, 0.33333334
    %v3913 = vmul.f32 %v3166, 0.33333334
    %v3914 = vmul.f32 %v3168, 0.33333334
    %v3915 = vmul.f32 %v3170, 0.33333334
    %v3916 = vmul.f32 %v3172, 0.33333334
    %v3917 = vmul.f32 %v3174, 0.33333334
    %v3918 = vmul.f32 %v3176, 0.33333334
    %v3919 = vmul.f32 %v3178, 0.33333334
    %v3920 = vmul.f32 %v3180, 0.33333334
    %v3921 = vmul.f32 %v3182, 0.33333334
    %v3922 = vmul.f32 %v3184, 0.33333334
    %v3923 = vmul.f32 %v3186, 0.33333334
    %v3924 = vmul.f32 %v3188, 0.33333334
    %v3925 = vmul.f32 %v3190, 0.33333334
    %v3926 = vmul.f32 %v3192, 0.33333334
    %v3927 = vmul.f32 %v3194, 0.33333334
    %v3928 = vmul.f32 %v3196, 0.33333334
    %v3929 = vmul.f32 %v3198, 0.33333334
    %v3930 = vmul.f32 %v3200, 0.33333334
    %v3931 = vmul.f32 %v3202, 0.33333334
    %v3932 = vmul.f32 %v3204, 0.33333334
    %v3933 = vmul.f32 %v3206, 0.33333334
    %v3934 = vmul.f32 %v3208, 0.33333334
    %v3935 = vmul.f32 %v3210, 0.33333334
    %v3936 = vmul.f32 %v3212, 0.33333334
    %v3937 = vmul.f32 %v3214, 0.33333334
    %v3938 = vmul.f32 %v3216, 0.33333334
    %v3939 = vmul.f32 %v3218, 0.33333334
    %v3940 = vmul.f32 %v3220, 0.33333334
    %v3941 = vmul.f32 %v3222, 0.33333334
    %v3942 = vmul.f32 %v3224, 0.33333334
    %v3943 = vmul.f32 %v3226, 0.33333334
    %v3944 = vmul.f32 %v3228, 0.33333334
    %v3945 = vmul.f32 %v3230, 0.33333334
    %v3946 = vmul.f32 %v3232, 0.33333334
    %v3947 = vmul.f32 %v3234, 0.33333334
    %v3948 = vmul.f32 %v3236, 0.33333334
    %v3949 = vmul.f32 %v3238, 0.33333334
    %v3950 = vmul.f32 %v3240, 0.33333334
    %v3951 = vmul.f32 %v3242, 0.33333334
    %v3952 = vmul.f32 %v3244, 0.33333334
    %v3953 = vmul.f32 %v3246, 0.33333334
    %v3954 = vmul.f32 %v3248, 0.33333334
    %v3955 = vmul.f32 %v3250, 0.33333334
    %v3956 = vmul.f32 %v3252, 0.33333334
    %v3957 = vmul.f32 %v3254, 0.33333334
    %v3958 = vmul.f32 %v3256, 0.33333334
    %v3959 = vmul.f32 %v3258, 0.33333334
    %v3960 = vmul.f32 %v3260, 0.33333334
    %v3961 = vmul.f32 %v3262, 0.33333334
    %v3962 = vmul.f32 %v3264, 0.33333334
    %v3963 = vmul.f32 %v3266, 0.33333334
    %v3964 = vmul.f32 %v3268, 0.33333334
    %v3965 = vmul.f32 %v3270, 0.33333334
    %v3966 = vmul.f32 %v3272, 0.33333334
    %v3967 = vmul.f32 %v3274, 0.33333334
    %v3968 = vmul.f32 %v3276, 0.33333334
    %v3969 = vmul.f32 %v3278, 0.33333334
    %v3970 = vmul.f32 %v3280, 0.33333334
    %v3971 = vmul.f32 %v3282, 0.33333334
    %v3972 = vmul.f32 %v3284, 0.33333334
    %v3973 = vmul.f32 %v3286, 0.33333334
    %v3974 = vmul.f32 %v3288, 0.33333334
    %v3975 = vmul.f32 %v3290, 0.33333334
    %v3976 = vmul.f32 %v3292, 0.33333334
    %v3977 = vmul.f32 %v3294, 0.33333334
    %v3978 = vmul.f32 %v3296, 0.33333334
    %v3979 = vmul.f32 %v3298, 0.33333334
    %v3980 = vmul.f32 %v3300, 0.33333334
    %v3981 = vmul.f32 %v3302, 0.33333334
    %v3982 = vmul.f32 %v3304, 0.33333334
    %v3983 = vmul.f32 %v3306, 0.33333334
    %v3984 = vmul.f32 %v3308, 0.33333334
    %v3985 = vmul.f32 %v3310, 0.33333334
    %v3986 = vmul.f32 %v3312, 0.33333334
    %v3987 = vmul.f32 %v3314, 0.33333334
    %v3988 = vmul.f32 %v3316, 0.33333334
    %v3989 = vmul.f32 %v3318, 0.33333334
    %v3990 = vmul.f32 %v3320, 0.33333334
    %v3991 = vmul.f32 %v3322, 0.33333334
    %v3992 = vmul.f32 %v3324, 0.33333334
    %v3993 = vmul.f32 %v3326, 0.33333334
    %v3994 = vmul.f32 %v3328, 0.33333334
    %v3995 = vmul.f32 %v3330, 0.33333334
    %v3996 = vmul.f32 %v3332, 0.33333334
    %v3997 = vmul.f32 %v3334, 0.33333334
    %v3998 = vmul.f32 %v3336, 0.33333334
    %v3999 = vmul.f32 %v3338, 0.33333334
    %v4000 = vmul.f32 %v3340, 0.33333334
    %v4001 = vmul.f32 %v3342, 0.33333334
    %v4002 = vmul.f32 %v3344, 0.33333334
    %v4003 = vmul.f32 %v3346, 0.33333334
    %v4004 = vmul.f32 %v3348, 0.33333334
    %v4005 = vmul.f32 %v3350, 0.33333334
    %v4006 = vmul.f32 %v3352, 0.33333334
    %v4007 = vmul.f32 %v3354, 0.33333334
    %v4008 = vmul.f32 %v3356, 0.33333334
    %v4009 = vmul.f32 %v3358, 0.33333334
    %v4010 = vmul.f32 %v3360, 0.33333334
    %v4011 = vmul.f32 %v3362, 0.33333334
    %v4012 = vmul.f32 %v3364, 0.33333334
    %v4013 = vmul.f32 %v3366, 0.33333334
    %v4014 = vmul.f32 %v3368, 0.33333334
    %v4015 = vmul.f32 %v3370, 0.33333334
    %v4016 = vmul.f32 %v3372, 0.33333334
    %v4017 = vmul.f32 %v3374, 0.33333334
    %v4018 = vmul.f32 %v3376, 0.33333334
    %v4019 = vmul.f32 %v3378, 0.33333334
    %v4020 = vmul.f32 %v3380, 0.33333334
    %v4021 = vmul.f32 %v3382, 0.33333334
    %v4022 = vmul.f32 %v3384, 0.33333334
    %v4023 = vmul.f32 %v3386, 0.33333334
    %v4024 = vmul.f32 %v3388, 0.33333334
    %v4025 = vmul.f32 %v3390, 0.33333334
    %v4026 = vmul.f32 %v3392, 0.33333334
    %v4027 = vmul.f32 %v3394, 0.33333334
    %v4028 = vmul.f32 %v3396, 0.33333334
    %v4029 = vmul.f32 %v3398, 0.33333334
    %v4030 = vmul.f32 %v3400, 0.33333334
    %v4031 = vmul.f32 %v3402, 0.33333334
    %v4032 = vmul.f32 %v3404, 0.33333334
    %v4033 = vmul.f32 %v3406, 0.33333334
    %v4034 = vmul.f32 %v3408, 0.33333334
    %v4035 = vmul.f32 %v3410, 0.33333334
    %v4036 = vmul.f32 %v3412, 0.33333334
    %v4037 = vmul.f32 %v3414, 0.33333334
    %v4038 = vmul.f32 %v3416, 0.33333334
    %v4039 = vmul.f32 %v3418, 0.33333334
    %v4040 = vmul.f32 %v3420, 0.33333334
    %v4041 = vmul.f32 %v3422, 0.33333334
    %v4042 = vmul.f32 %v3424, 0.33333334
    %v4043 = vmul.f32 %v3426, 0.33333334
    %v4044 = vmul.f32 %v3428, 0.33333334
    %v4045 = vmul.f32 %v3430, 0.33333334
    %v4046 = vmul.f32 %v3432, 0.33333334
    %v4047 = vmul.f32 %v3434, 0.33333334
    %v4048 = vmul.f32 %v3436, 0.33333334
    %v4049 = vmul.f32 %v3438, 0.33333334
    %v4050 = vmul.f32 %v3440, 0.33333334
    %v4051 = vmul.f32 %v3442, 0.33333334
    %v4052 = vmul.f32 %v3444, 0.33333334
    %v4053 = vmul.f32 %v3446, 0.33333334
    %v4054 = vmul.f32 %v3448, 0.33333334
    %v4055 = vmul.f32 %v3450, 0.33333334
    %v4056 = vmul.f32 %v3452, 0.33333334
    %v4057 = vmul.f32 %v3454, 0.33333334
    %v4058 = vmul.f32 %v3456, 0.33333334
    %v4059 = vmul.f32 %v3458, 0.33333334
    %v4060 = vmul.f32 %v3460, 0.33333334
    %v4061 = vmul.f32 %v3462, 0.33333334
    %v4062 = vmul.f32 %v3464, 0.33333334
    %v4063 = vmul.f32 %v3466, 0.33333334
    %v4064 = vmul.f32 %v3468, 0.33333334
    %v4065 = vmul.f32 %v3470, 0.33333334
    %v4066 = vmul.f32 %v3472, 0.33333334
    %v4067 = vmul.f32 %v3474, 0.33333334
    %v4068 = vmul.f32 %v3476, 0.33333334
    %v4069 = vmul.f32 %v3478, 0.33333334
    %v4070 = vmul.f32 %v3480, 0.33333334
    %v4071 = vmul.f32 %v3482, 0.33333334
    %v4072 = vmul.f32 %v3484, 0.33333334
    %v4073 = vmul.f32 %v3486, 0.33333334
    %v4074 = vmul.f32 %v3488, 0.33333334
    %v4075 = vmul.f32 %v3490, 0.33333334
    %v4076 = vmul.f32 %v3492, 0.33333334
    %v4077 = vmul.f32 %v3494, 0.33333334
    %v4078 = vmul.f32 %v3496, 0.33333334
    %v4079 = vmul.f32 %v3498, 0.33333334
    %v4080 = vmul.f32 %v3500, 0.33333334
    %v4081 = vmul.f32 %v3502, 0.33333334
    %v4082 = vmul.f32 %v3504, 0.33333334
    %v4083 = vmul.f32 %v3506, 0.33333334
    %v4084 = vmul.f32 %v3508, 0.33333334
    %v4085 = vmul.f32 %v3510, 0.33333334
    %v4086 = vmul.f32 %v3512, 0.33333334
    %v4087 = vmul.f32 %v3514, 0.33333334
    %v4088 = vmul.f32 %v3516, 0.33333334
    %v4089 = vmul.f32 %v3518, 0.33333334
    %v4090 = vmul.f32 %v3520, 0.33333334
    %v4091 = vmul.f32 %v3522, 0.33333334
    %v4092 = vmul.f32 %v3524, 0.33333334
    %v4093 = vmul.f32 %v3526, 0.33333334
    %v4094 = vmul.f32 %v3528, 0.33333334
    %v4095 = vmul.f32 %v3530, 0.33333334
    %v4096 = vmul.f32 %v3532, 0.33333334
    %v4097 = vmul.f32 %v3534, 0.33333334
    %v4098 = vmul.f32 %v3536, 0.33333334
    %v4099 = vmul.f32 %v3538, 0.33333334
    %v4100 = vmul.f32 %v3540, 0.33333334
    %v4101 = vmul.f32 %v3542, 0.33333334
    %v4102 = vmul.f32 %v3544, 0.33333334
    %v4103 = vmul.f32 %v3546, 0.33333334
    %v4104 = vmul.f32 %v3548, 0.33333334
    %v4105 = vmul.f32 %v3550, 0.33333334
    %v4106 = vmul.f32 %v3552, 0.33333334
    %v4107 = vmul.f32 %v3554, 0.33333334
    %v4108 = vmul.f32 %v3556, 0.33333334
    %v4109 = vmul.f32 %v3558, 0.33333334
    %v4110 = vmul.f32 %v3560, 0.33333334
    %v4111 = vmul.f32 %v3562, 0.33333334
    %v4112 = vmul.f32 %v3564, 0.33333334
    %v4113 = vmul.f32 %v3566, 0.33333334
    %v4114 = vmul.f32 %v3568, 0.33333334
    %v4115 = vmul.f32 %v3570, 0.33333334
    %v4116 = vmul.f32 %v3572, 0.33333334
    %v4117 = vmul.f32 %v3574, 0.33333334
    %v4118 = vmul.f32 %v3576, 0.33333334
    %v4119 = vmul.f32 %v3578, 0.33333334
    %v4120 = vmul.f32 %v3580, 0.33333334
    %v4121 = vmul.f32 %v3582, 0.33333334
    %v4122 = vmul.f32 %v3584, 0.33333334
    %v4123 = vmul.f32 %v3586, 0.33333334
    %v4124 = vmul.f32 %v3588, 0.33333334
    %v4125 = vmul.f32 %v3590, 0.33333334
    %v4126 = vmul.f32 %v3592, 0.33333334
    %v4127 = vmul.f32 %v3594, 0.33333334
    %v4128 = vmul.f32 %v3596, 0.33333334
    %v4129 = vmul.f32 %v3598, 0.33333334
    %v4130 = vmul.f32 %v3600, 0.33333334
    %v4131 = vmul.f32 %v3602, 0.33333334
    %v4132 = vmul.f32 %v3604, 0.33333334
    %v4133 = vmul.f32 %v3606, 0.33333334
    %v4134 = vmul.f32 %v3608, 0.33333334
    %v4135 = vmul.f32 %v3610, 0.33333334
    %v4136 = vmul.f32 %v3612, 0.33333334
    %v4137 = vmul.f32 %v3614, 0.33333334
    %v4138 = vmul.f32 %v3616, 0.33333334
    %v4139 = vmul.f32 %v3618, 0.33333334
    %v4140 = vmul.f32 %v3620, 0.33333334
    %v4141 = vmul.f32 %v3622, 0.33333334
    %v4142 = vmul.f32 %v3624, 0.33333334
    %v4143 = vmul.f32 %v3626, 0.33333334
    %v4144 = vmul.f32 %v3628, 0.33333334
    %v4145 = vmul.f32 %v3630, 0.33333334
    %v4146 = vmul.f32 %v3632, 0.33333334
    %v4147 = vmul.f32 %v3634, 0.33333334
    %v4148 = vmul.f32 %v3636, 0.33333334
    %v4149 = vmul.f32 %v3638, 0.33333334
    %v4150 = vmul.f32 %v3640, 0.33333334
    %v4151 = vmul.f32 %v3642, 0.33333334
    %v4152 = vmul.f32 %v3644, 0.33333334
    %v4153 = vmul.f32 %v3646, 0.33333334
    %v4154 = vmul.f32 %v3648, 0.33333334
    %v4155 = vmul.f32 %v3650, 0.33333334
    %v4156 = vmul.f32 %v3652, 0.33333334
    %v4157 = vmul.f32 %v3654, 0.33333334
    %v4158 = vmul.f32 %v3656, 0.33333334
    %v4159 = vmul.f32 %v3658, 0.33333334
    %v4160 = vmul.f32 %v3660, 0.33333334
    %v4161 = vmul.f32 %v3662, 0.33333334
    %v4162 = vmul.f32 %v3664, 0.33333334
    %v4163 = vmul.f32 %v3666, 0.33333334
    %v4164 = vmul.f32 %v3668, 0.33333334
    %v4165 = vmul.f32 %v3670, 0.33333334
    %v4166 = vmul.f32 %v3672, 0.33333334
    %v4167 = vmul.f32 %v3674, 0.33333334
    %v4168 = vmul.f32 %v3676, 0.33333334
    %v4169 = vmul.f32 %v3678, 0.33333334
    %v4170 = vmul.f32 %v3680, 0.33333334
    %v4171 = vmul.f32 %v3682, 0.33333334
    %v4172 = vmul.f32 %v3684, 0.33333334
    %v4173 = vmul.f32 %v3686, 0.33333334
    %v4174 = vmul.f32 %v3688, 0.33333334
    %v4175 = vmul.f32 %v3690, 0.33333334
    %v4176 = vmul.f32 %v3692, 0.33333334
    %v4177 = vmul.f32 %v3694, 0.33333334
    %v4178 = vmul.f32 %v3696, 0.33333334
    %v4179 = vmul.f32 %v3698, 0.33333334
    %v4180 = vmul.f32 %v3700, 0.33333334
    %v4181 = vmul.f32 %v3702, 0.33333334
    %v4182 = vmul.f32 %v3704, 0.33333334
    %v4183 = vmul.f32 %v3706, 0.33333334
    %v4184 = vmul.f32 %v3708, 0.33333334
    %v4185 = vmul.f32 %v3710, 0.33333334
    %v4186 = vmul.f32 %v3712, 0.33333334
    %v4187 = vmul.f32 %v3714, 0.33333334
    %v4188 = vmul.f32 %v3716, 0.33333334
    %v4189 = vmul.f32 %v3718, 0.33333334
    %v4190 = vmul.f32 %v3720, 0.33333334
    %v4191 = vmul.f32 %v3722, 0.33333334
    %v4192 = vmul.f32 %v3724, 0.33333334
    %v4193 = vmul.f32 %v3726, 0.33333334
    %v4194 = vmul.f32 %v3728, 0.33333334
    %v4195 = vmul.f32 %v3730, 0.33333334
    %v4196 = vmul.f32 %v3732, 0.33333334
    %v4197 = vmul.f32 %v3734, 0.33333334
    %v4198 = vmul.f32 %v3736, 0.33333334
    %v4199 = vmul.f32 %v3738, 0.33333334
    %v4200 = vmul.f32 %v3740, 0.33333334
    %v4201 = vmul.f32 %v3742, 0.33333334
    %v4202 = vmul.f32 %v3744, 0.33333334
    %v4203 = vmul.f32 %v3746, 0.33333334
    %v4204 = vmul.f32 %v3748, 0.33333334
    %v4205 = vmul.f32 %v3750, 0.33333334
    %v4206 = vmul.f32 %v3752, 0.33333334
    %v4207 = vmul.f32 %v3754, 0.33333334
    %v4208 = vmul.f32 %v3756, 0.33333334
    %v4209 = vmul.f32 %v3758, 0.33333334
    %v4210 = vmul.f32 %v3760, 0.33333334
    %v4211 = vmul.f32 %v3762, 0.33333334
    %v4212 = vmul.f32 %v3764, 0.33333334
    %v4213 = vmul.f32 %v3766, 0.33333334
    %v4214 = vmul.f32 %v3768, 0.33333334
    %v4215 = vmul.f32 %v3770, 0.33333334
    %v4216 = vmul.f32 %v3772, 0.33333334
    %v4217 = vmul.f32 %v3774, 0.33333334
    %v4218 = vmul.f32 %v3776, 0.33333334
    %v4219 = vmul.f32 %v3778, 0.33333334
    %v4220 = vmul.f32 %v3780, 0.33333334
    %v4221 = vmul.f32 %v3782, 0.33333334
    %v4222 = vmul.f32 %v3784, 0.33333334
    %v4223 = vmul.f32 %v3786, 0.33333334
    %v4224 = vmul.f32 %v3788, 0.33333334
    %v4225 = vmul.f32 %v3790, 0.33333334
    %v4226 = vmul.f32 %v3792, 0.33333334
    %v4227 = vmul.f32 %v3794, 0.33333334
    %v4228 = vmul.f32 %v3796, 0.33333334
    %v4229 = vmul.f32 %v3798, 0.33333334
    %v4230 = vmul.f32 %v3800, 0.33333334
    %v4231 = vmul.f32 %v3802, 0.33333334
    %v4232 = vmul.f32 %v3804, 0.33333334
    %v4233 = vmul.f32 %v3806, 0.33333334
    %v4234 = vmul.f32 %v3808, 0.33333334
    %v4235 = vmul.f32 %v3810, 0.33333334
    %v4236 = vmul.f32 %v3812, 0.33333334
    %v4237 = vmul.f32 %v3814, 0.33333334
    %v4238 = vmul.f32 %v3816, 0.33333334
    %v4239 = vmul.f32 %v3818, 0.33333334
    %v4240 = vmul.f32 %v3820, 0.33333334
    %v4241 = vmul.f32 %v3822, 0.33333334
    %v4242 = vmul.f32 %v3824, 0.33333334
    %v4243 = vmul.f32 %v3826, 0.33333334
    %v4244 = vmul.f32 %v3828, 0.33333334
    %v4245 = vmul.f32 %v3830, 0.33333334
    %v4246 = vmul.f32 %v3832, 0.33333334
    %v4247 = vmul.f32 %v3834, 0.33333334
    %v4248 = vmul.f32 %v3836, 0.33333334
    %v4249 = vmul.f32 %v3838, 0.33333334
    %v4250 = vmul.f32 %v3840, 0.33333334
    %v4251 = vmul.f32 %v3842, 0.33333334
    %v4252 = vmul.f32 %v3844, 0.33333334
    %v4253 = vmul.f32 %v3846, 0.33333334
    %v4254 = vmul.f32 %v3848, 0.33333334
    %v4255 = vmul.f32 %v3850, 0.33333334
    %v4256 = vmul.f32 %v3852, 0.33333334
    %v4257 = vmul.f32 %v3854, 0.33333334
    %v4258 = vmul.f32 %v3856, 0.33333334
    %v4259 = vmul.f32 %v3858, 0.33333334
    %v4260 = vmul.f32 %v3860, 0.33333334
    %v4261 = vmul.f32 %v3862, 0.33333334
    %v4262 = vmul.f32 %v3864, 0.33333334
    %v4263 = vmul.f32 %v3866, 0.33333334
    %v4264 = vmul.f32 %v3868, 0.33333334
    %v4265 = vmul.f32 %v3870, 0.33333334
    %v4266 = vmul.f32 %v3872, 0.33333334
    %v4267 = vmul.f32 %v3874, 0.33333334
    %v4268 = vmul.f32 %v3876, 0.33333334
    %v4269 = vmul.f32 %v3878, 0.33333334
    %v4270 = vmul.f32 %v3880, 0.33333334
    %v4271 = vmul.f32 %v3882, 0.33333334
    %v4272 = vmul.f32 %v3884, 0.33333334
    %v4273 = vmul.f32 %v3886, 0.33333334
    %v4274 = vmul.f32 %v3888, 0.33333334
    %v4275 = vmul.f32 %v3890, 0.33333334
    %v4276 = vmul.f32 %v3892, 0.33333334
    %v4277 = vmul.f32 %v3893, 1.442695
    %v4278 = vpow.pop %v4277
    %v4279 = vmul.f32 %v3894, 1.442695
    %v4280 = vpow.pop %v4279
    %v4281 = vmul.f32 %v3895, 1.442695
    %v4282 = vpow.pop %v4281
    %v4283 = vmul.f32 %v3896, 1.442695
    %v4284 = vpow.pop %v4283
    %v4285 = vmul.f32 %v3897, 1.442695
    %v4286 = vpow.pop %v4285
    %v4287 = vmul.f32 %v3898, 1.442695
    %v4288 = vpow.pop %v4287
    %v4289 = vmul.f32 %v3899, 1.442695
    %v4290 = vpow.pop %v4289
    %v4291 = vmul.f32 %v3900, 1.442695
    %v4292 = vpow.pop %v4291
    %v4293 = vmul.f32 %v3901, 1.442695
    %v4294 = vpow.pop %v4293
    %v4295 = vmul.f32 %v3902, 1.442695
    %v4296 = vpow.pop %v4295
    %v4297 = vmul.f32 %v3903, 1.442695
    %v4298 = vpow.pop %v4297
    %v4299 = vmul.f32 %v3904, 1.442695
    %v4300 = vpow.pop %v4299
    %v4301 = vmul.f32 %v3905, 1.442695
    %v4302 = vpow.pop %v4301
    %v4303 = vmul.f32 %v3906, 1.442695
    %v4304 = vpow.pop %v4303
    %v4305 = vmul.f32 %v3907, 1.442695
    %v4306 = vpow.pop %v4305
    %v4307 = vmul.f32 %v3908, 1.442695
    %v4308 = vpow.pop %v4307
    %v4309 = vmul.f32 %v3909, 1.442695
    %v4310 = vpow.pop %v4309
    %v4311 = vmul.f32 %v3910, 1.442695
    %v4312 = vpow.pop %v4311
    %v4313 = vmul.f32 %v3911, 1.442695
    %v4314 = vpow.pop %v4313
    %v4315 = vmul.f32 %v3912, 1.442695
    %v4316 = vpow.pop %v4315
    %v4317 = vmul.f32 %v3913, 1.442695
    %v4318 = vpow.pop %v4317
    %v4319 = vmul.f32 %v3914, 1.442695
    %v4320 = vpow.pop %v4319
    %v4321 = vmul.f32 %v3915, 1.442695
    %v4322 = vpow.pop %v4321
    %v4323 = vmul.f32 %v3916, 1.442695
    %v4324 = vpow.pop %v4323
    %v4325 = vmul.f32 %v3917, 1.442695
    %v4326 = vpow.pop %v4325
    %v4327 = vmul.f32 %v3918, 1.442695
    %v4328 = vpow.pop %v4327
    %v4329 = vmul.f32 %v3919, 1.442695
    %v4330 = vpow.pop %v4329
    %v4331 = vmul.f32 %v3920, 1.442695
    %v4332 = vpow.pop %v4331
    %v4333 = vmul.f32 %v3921, 1.442695
    %v4334 = vpow.pop %v4333
    %v4335 = vmul.f32 %v3922, 1.442695
    %v4336 = vpow.pop %v4335
    %v4337 = vmul.f32 %v3923, 1.442695
    %v4338 = vpow.pop %v4337
    %v4339 = vmul.f32 %v3924, 1.442695
    %v4340 = vpow.pop %v4339
    %v4341 = vmul.f32 %v3925, 1.442695
    %v4342 = vpow.pop %v4341
    %v4343 = vmul.f32 %v3926, 1.442695
    %v4344 = vpow.pop %v4343
    %v4345 = vmul.f32 %v3927, 1.442695
    %v4346 = vpow.pop %v4345
    %v4347 = vmul.f32 %v3928, 1.442695
    %v4348 = vpow.pop %v4347
    %v4349 = vmul.f32 %v3929, 1.442695
    %v4350 = vpow.pop %v4349
    %v4351 = vmul.f32 %v3930, 1.442695
    %v4352 = vpow.pop %v4351
    %v4353 = vmul.f32 %v3931, 1.442695
    %v4354 = vpow.pop %v4353
    %v4355 = vmul.f32 %v3932, 1.442695
    %v4356 = vpow.pop %v4355
    %v4357 = vmul.f32 %v3933, 1.442695
    %v4358 = vpow.pop %v4357
    %v4359 = vmul.f32 %v3934, 1.442695
    %v4360 = vpow.pop %v4359
    %v4361 = vmul.f32 %v3935, 1.442695
    %v4362 = vpow.pop %v4361
    %v4363 = vmul.f32 %v3936, 1.442695
    %v4364 = vpow.pop %v4363
    %v4365 = vmul.f32 %v3937, 1.442695
    %v4366 = vpow.pop %v4365
    %v4367 = vmul.f32 %v3938, 1.442695
    %v4368 = vpow.pop %v4367
    %v4369 = vmul.f32 %v3939, 1.442695
    %v4370 = vpow.pop %v4369
    %v4371 = vmul.f32 %v3940, 1.442695
    %v4372 = vpow.pop %v4371
    %v4373 = vmul.f32 %v3941, 1.442695
    %v4374 = vpow.pop %v4373
    %v4375 = vmul.f32 %v3942, 1.442695
    %v4376 = vpow.pop %v4375
    %v4377 = vmul.f32 %v3943, 1.442695
    %v4378 = vpow.pop %v4377
    %v4379 = vmul.f32 %v3944, 1.442695
    %v4380 = vpow.pop %v4379
    %v4381 = vmul.f32 %v3945, 1.442695
    %v4382 = vpow.pop %v4381
    %v4383 = vmul.f32 %v3946, 1.442695
    %v4384 = vpow.pop %v4383
    %v4385 = vmul.f32 %v3947, 1.442695
    %v4386 = vpow.pop %v4385
    %v4387 = vmul.f32 %v3948, 1.442695
    %v4388 = vpow.pop %v4387
    %v4389 = vmul.f32 %v3949, 1.442695
    %v4390 = vpow.pop %v4389
    %v4391 = vmul.f32 %v3950, 1.442695
    %v4392 = vpow.pop %v4391
    %v4393 = vmul.f32 %v3951, 1.442695
    %v4394 = vpow.pop %v4393
    %v4395 = vmul.f32 %v3952, 1.442695
    %v4396 = vpow.pop %v4395
    %v4397 = vmul.f32 %v3953, 1.442695
    %v4398 = vpow.pop %v4397
    %v4399 = vmul.f32 %v3954, 1.442695
    %v4400 = vpow.pop %v4399
    %v4401 = vmul.f32 %v3955, 1.442695
    %v4402 = vpow.pop %v4401
    %v4403 = vmul.f32 %v3956, 1.442695
    %v4404 = vpow.pop %v4403
    %v4405 = vmul.f32 %v3957, 1.442695
    %v4406 = vpow.pop %v4405
    %v4407 = vmul.f32 %v3958, 1.442695
    %v4408 = vpow.pop %v4407
    %v4409 = vmul.f32 %v3959, 1.442695
    %v4410 = vpow.pop %v4409
    %v4411 = vmul.f32 %v3960, 1.442695
    %v4412 = vpow.pop %v4411
    %v4413 = vmul.f32 %v3961, 1.442695
    %v4414 = vpow.pop %v4413
    %v4415 = vmul.f32 %v3962, 1.442695
    %v4416 = vpow.pop %v4415
    %v4417 = vmul.f32 %v3963, 1.442695
    %v4418 = vpow.pop %v4417
    %v4419 = vmul.f32 %v3964, 1.442695
    %v4420 = vpow.pop %v4419
    %v4421 = vmul.f32 %v3965, 1.442695
    %v4422 = vpow.pop %v4421
    %v4423 = vmul.f32 %v3966, 1.442695
    %v4424 = vpow.pop %v4423
    %v4425 = vmul.f32 %v3967, 1.442695
    %v4426 = vpow.pop %v4425
    %v4427 = vmul.f32 %v3968, 1.442695
    %v4428 = vpow.pop %v4427
    %v4429 = vmul.f32 %v3969, 1.442695
    %v4430 = vpow.pop %v4429
    %v4431 = vmul.f32 %v3970, 1.442695
    %v4432 = vpow.pop %v4431
    %v4433 = vmul.f32 %v3971, 1.442695
    %v4434 = vpow.pop %v4433
    %v4435 = vmul.f32 %v3972, 1.442695
    %v4436 = vpow.pop %v4435
    %v4437 = vmul.f32 %v3973, 1.442695
    %v4438 = vpow.pop %v4437
    %v4439 = vmul.f32 %v3974, 1.442695
    %v4440 = vpow.pop %v4439
    %v4441 = vmul.f32 %v3975, 1.442695
    %v4442 = vpow.pop %v4441
    %v4443 = vmul.f32 %v3976, 1.442695
    %v4444 = vpow.pop %v4443
    %v4445 = vmul.f32 %v3977, 1.442695
    %v4446 = vpow.pop %v4445
    %v4447 = vmul.f32 %v3978, 1.442695
    %v4448 = vpow.pop %v4447
    %v4449 = vmul.f32 %v3979, 1.442695
    %v4450 = vpow.pop %v4449
    %v4451 = vmul.f32 %v3980, 1.442695
    %v4452 = vpow.pop %v4451
    %v4453 = vmul.f32 %v3981, 1.442695
    %v4454 = vpow.pop %v4453
    %v4455 = vmul.f32 %v3982, 1.442695
    %v4456 = vpow.pop %v4455
    %v4457 = vmul.f32 %v3983, 1.442695
    %v4458 = vpow.pop %v4457
    %v4459 = vmul.f32 %v3984, 1.442695
    %v4460 = vpow.pop %v4459
    %v4461 = vmul.f32 %v3985, 1.442695
    %v4462 = vpow.pop %v4461
    %v4463 = vmul.f32 %v3986, 1.442695
    %v4464 = vpow.pop %v4463
    %v4465 = vmul.f32 %v3987, 1.442695
    %v4466 = vpow.pop %v4465
    %v4467 = vmul.f32 %v3988, 1.442695
    %v4468 = vpow.pop %v4467
    %v4469 = vmul.f32 %v3989, 1.442695
    %v4470 = vpow.pop %v4469
    %v4471 = vmul.f32 %v3990, 1.442695
    %v4472 = vpow.pop %v4471
    %v4473 = vmul.f32 %v3991, 1.442695
    %v4474 = vpow.pop %v4473
    %v4475 = vmul.f32 %v3992, 1.442695
    %v4476 = vpow.pop %v4475
    %v4477 = vmul.f32 %v3993, 1.442695
    %v4478 = vpow.pop %v4477
    %v4479 = vmul.f32 %v3994, 1.442695
    %v4480 = vpow.pop %v4479
    %v4481 = vmul.f32 %v3995, 1.442695
    %v4482 = vpow.pop %v4481
    %v4483 = vmul.f32 %v3996, 1.442695
    %v4484 = vpow.pop %v4483
    %v4485 = vmul.f32 %v3997, 1.442695
    %v4486 = vpow.pop %v4485
    %v4487 = vmul.f32 %v3998, 1.442695
    %v4488 = vpow.pop %v4487
    %v4489 = vmul.f32 %v3999, 1.442695
    %v4490 = vpow.pop %v4489
    %v4491 = vmul.f32 %v4000, 1.442695
    %v4492 = vpow.pop %v4491
    %v4493 = vmul.f32 %v4001, 1.442695
    %v4494 = vpow.pop %v4493
    %v4495 = vmul.f32 %v4002, 1.442695
    %v4496 = vpow.pop %v4495
    %v4497 = vmul.f32 %v4003, 1.442695
    %v4498 = vpow.pop %v4497
    %v4499 = vmul.f32 %v4004, 1.442695
    %v4500 = vpow.pop %v4499
    %v4501 = vmul.f32 %v4005, 1.442695
    %v4502 = vpow.pop %v4501
    %v4503 = vmul.f32 %v4006, 1.442695
    %v4504 = vpow.pop %v4503
    %v4505 = vmul.f32 %v4007, 1.442695
    %v4506 = vpow.pop %v4505
    %v4507 = vmul.f32 %v4008, 1.442695
    %v4508 = vpow.pop %v4507
    %v4509 = vmul.f32 %v4009, 1.442695
    %v4510 = vpow.pop %v4509
    %v4511 = vmul.f32 %v4010, 1.442695
    %v4512 = vpow.pop %v4511
    %v4513 = vmul.f32 %v4011, 1.442695
    %v4514 = vpow.pop %v4513
    %v4515 = vmul.f32 %v4012, 1.442695
    %v4516 = vpow.pop %v4515
    %v4517 = vmul.f32 %v4013, 1.442695
    %v4518 = vpow.pop %v4517
    %v4519 = vmul.f32 %v4014, 1.442695
    %v4520 = vpow.pop %v4519
    %v4521 = vmul.f32 %v4015, 1.442695
    %v4522 = vpow.pop %v4521
    %v4523 = vmul.f32 %v4016, 1.442695
    %v4524 = vpow.pop %v4523
    %v4525 = vmul.f32 %v4017, 1.442695
    %v4526 = vpow.pop %v4525
    %v4527 = vmul.f32 %v4018, 1.442695
    %v4528 = vpow.pop %v4527
    %v4529 = vmul.f32 %v4019, 1.442695
    %v4530 = vpow.pop %v4529
    %v4531 = vmul.f32 %v4020, 1.442695
    %v4532 = vpow.pop %v4531
    %v4533 = vmul.f32 %v4021, 1.442695
    %v4534 = vpow.pop %v4533
    %v4535 = vmul.f32 %v4022, 1.442695
    %v4536 = vpow.pop %v4535
    %v4537 = vmul.f32 %v4023, 1.442695
    %v4538 = vpow.pop %v4537
    %v4539 = vmul.f32 %v4024, 1.442695
    %v4540 = vpow.pop %v4539
    %v4541 = vmul.f32 %v4025, 1.442695
    %v4542 = vpow.pop %v4541
    %v4543 = vmul.f32 %v4026, 1.442695
    %v4544 = vpow.pop %v4543
    %v4545 = vmul.f32 %v4027, 1.442695
    %v4546 = vpow.pop %v4545
    %v4547 = vmul.f32 %v4028, 1.442695
    %v4548 = vpow.pop %v4547
    %v4549 = vmul.f32 %v4029, 1.442695
    %v4550 = vpow.pop %v4549
    %v4551 = vmul.f32 %v4030, 1.442695
    %v4552 = vpow.pop %v4551
    %v4553 = vmul.f32 %v4031, 1.442695
    %v4554 = vpow.pop %v4553
    %v4555 = vmul.f32 %v4032, 1.442695
    %v4556 = vpow.pop %v4555
    %v4557 = vmul.f32 %v4033, 1.442695
    %v4558 = vpow.pop %v4557
    %v4559 = vmul.f32 %v4034, 1.442695
    %v4560 = vpow.pop %v4559
    %v4561 = vmul.f32 %v4035, 1.442695
    %v4562 = vpow.pop %v4561
    %v4563 = vmul.f32 %v4036, 1.442695
    %v4564 = vpow.pop %v4563
    %v4565 = vmul.f32 %v4037, 1.442695
    %v4566 = vpow.pop %v4565
    %v4567 = vmul.f32 %v4038, 1.442695
    %v4568 = vpow.pop %v4567
    %v4569 = vmul.f32 %v4039, 1.442695
    %v4570 = vpow.pop %v4569
    %v4571 = vmul.f32 %v4040, 1.442695
    %v4572 = vpow.pop %v4571
    %v4573 = vmul.f32 %v4041, 1.442695
    %v4574 = vpow.pop %v4573
    %v4575 = vmul.f32 %v4042, 1.442695
    %v4576 = vpow.pop %v4575
    %v4577 = vmul.f32 %v4043, 1.442695
    %v4578 = vpow.pop %v4577
    %v4579 = vmul.f32 %v4044, 1.442695
    %v4580 = vpow.pop %v4579
    %v4581 = vmul.f32 %v4045, 1.442695
    %v4582 = vpow.pop %v4581
    %v4583 = vmul.f32 %v4046, 1.442695
    %v4584 = vpow.pop %v4583
    %v4585 = vmul.f32 %v4047, 1.442695
    %v4586 = vpow.pop %v4585
    %v4587 = vmul.f32 %v4048, 1.442695
    %v4588 = vpow.pop %v4587
    %v4589 = vmul.f32 %v4049, 1.442695
    %v4590 = vpow.pop %v4589
    %v4591 = vmul.f32 %v4050, 1.442695
    %v4592 = vpow.pop %v4591
    %v4593 = vmul.f32 %v4051, 1.442695
    %v4594 = vpow.pop %v4593
    %v4595 = vmul.f32 %v4052, 1.442695
    %v4596 = vpow.pop %v4595
    %v4597 = vmul.f32 %v4053, 1.442695
    %v4598 = vpow.pop %v4597
    %v4599 = vmul.f32 %v4054, 1.442695
    %v4600 = vpow.pop %v4599
    %v4601 = vmul.f32 %v4055, 1.442695
    %v4602 = vpow.pop %v4601
    %v4603 = vmul.f32 %v4056, 1.442695
    %v4604 = vpow.pop %v4603
    %v4605 = vmul.f32 %v4057, 1.442695
    %v4606 = vpow.pop %v4605
    %v4607 = vmul.f32 %v4058, 1.442695
    %v4608 = vpow.pop %v4607
    %v4609 = vmul.f32 %v4059, 1.442695
    %v4610 = vpow.pop %v4609
    %v4611 = vmul.f32 %v4060, 1.442695
    %v4612 = vpow.pop %v4611
    %v4613 = vmul.f32 %v4061, 1.442695
    %v4614 = vpow.pop %v4613
    %v4615 = vmul.f32 %v4062, 1.442695
    %v4616 = vpow.pop %v4615
    %v4617 = vmul.f32 %v4063, 1.442695
    %v4618 = vpow.pop %v4617
    %v4619 = vmul.f32 %v4064, 1.442695
    %v4620 = vpow.pop %v4619
    %v4621 = vmul.f32 %v4065, 1.442695
    %v4622 = vpow.pop %v4621
    %v4623 = vmul.f32 %v4066, 1.442695
    %v4624 = vpow.pop %v4623
    %v4625 = vmul.f32 %v4067, 1.442695
    %v4626 = vpow.pop %v4625
    %v4627 = vmul.f32 %v4068, 1.442695
    %v4628 = vpow.pop %v4627
    %v4629 = vmul.f32 %v4069, 1.442695
    %v4630 = vpow.pop %v4629
    %v4631 = vmul.f32 %v4070, 1.442695
    %v4632 = vpow.pop %v4631
    %v4633 = vmul.f32 %v4071, 1.442695
    %v4634 = vpow.pop %v4633
    %v4635 = vmul.f32 %v4072, 1.442695
    %v4636 = vpow.pop %v4635
    %v4637 = vmul.f32 %v4073, 1.442695
    %v4638 = vpow.pop %v4637
    %v4639 = vmul.f32 %v4074, 1.442695
    %v4640 = vpow.pop %v4639
    %v4641 = vmul.f32 %v4075, 1.442695
    %v4642 = vpow.pop %v4641
    %v4643 = vmul.f32 %v4076, 1.442695
    %v4644 = vpow.pop %v4643
    %v4645 = vmul.f32 %v4077, 1.442695
    %v4646 = vpow.pop %v4645
    %v4647 = vmul.f32 %v4078, 1.442695
    %v4648 = vpow.pop %v4647
    %v4649 = vmul.f32 %v4079, 1.442695
    %v4650 = vpow.pop %v4649
    %v4651 = vmul.f32 %v4080, 1.442695
    %v4652 = vpow.pop %v4651
    %v4653 = vmul.f32 %v4081, 1.442695
    %v4654 = vpow.pop %v4653
    %v4655 = vmul.f32 %v4082, 1.442695
    %v4656 = vpow.pop %v4655
    %v4657 = vmul.f32 %v4083, 1.442695
    %v4658 = vpow.pop %v4657
    %v4659 = vmul.f32 %v4084, 1.442695
    %v4660 = vpow.pop %v4659
    %v4661 = vmul.f32 %v4085, 1.442695
    %v4662 = vpow.pop %v4661
    %v4663 = vmul.f32 %v4086, 1.442695
    %v4664 = vpow.pop %v4663
    %v4665 = vmul.f32 %v4087, 1.442695
    %v4666 = vpow.pop %v4665
    %v4667 = vmul.f32 %v4088, 1.442695
    %v4668 = vpow.pop %v4667
    %v4669 = vmul.f32 %v4089, 1.442695
    %v4670 = vpow.pop %v4669
    %v4671 = vmul.f32 %v4090, 1.442695
    %v4672 = vpow.pop %v4671
    %v4673 = vmul.f32 %v4091, 1.442695
    %v4674 = vpow.pop %v4673
    %v4675 = vmul.f32 %v4092, 1.442695
    %v4676 = vpow.pop %v4675
    %v4677 = vmul.f32 %v4093, 1.442695
    %v4678 = vpow.pop %v4677
    %v4679 = vmul.f32 %v4094, 1.442695
    %v4680 = vpow.pop %v4679
    %v4681 = vmul.f32 %v4095, 1.442695
    %v4682 = vpow.pop %v4681
    %v4683 = vmul.f32 %v4096, 1.442695
    %v4684 = vpow.pop %v4683
    %v4685 = vmul.f32 %v4097, 1.442695
    %v4686 = vpow.pop %v4685
    %v4687 = vmul.f32 %v4098, 1.442695
    %v4688 = vpow.pop %v4687
    %v4689 = vmul.f32 %v4099, 1.442695
    %v4690 = vpow.pop %v4689
    %v4691 = vmul.f32 %v4100, 1.442695
    %v4692 = vpow.pop %v4691
    %v4693 = vmul.f32 %v4101, 1.442695
    %v4694 = vpow.pop %v4693
    %v4695 = vmul.f32 %v4102, 1.442695
    %v4696 = vpow.pop %v4695
    %v4697 = vmul.f32 %v4103, 1.442695
    %v4698 = vpow.pop %v4697
    %v4699 = vmul.f32 %v4104, 1.442695
    %v4700 = vpow.pop %v4699
    %v4701 = vmul.f32 %v4105, 1.442695
    %v4702 = vpow.pop %v4701
    %v4703 = vmul.f32 %v4106, 1.442695
    %v4704 = vpow.pop %v4703
    %v4705 = vmul.f32 %v4107, 1.442695
    %v4706 = vpow.pop %v4705
    %v4707 = vmul.f32 %v4108, 1.442695
    %v4708 = vpow.pop %v4707
    %v4709 = vmul.f32 %v4109, 1.442695
    %v4710 = vpow.pop %v4709
    %v4711 = vmul.f32 %v4110, 1.442695
    %v4712 = vpow.pop %v4711
    %v4713 = vmul.f32 %v4111, 1.442695
    %v4714 = vpow.pop %v4713
    %v4715 = vmul.f32 %v4112, 1.442695
    %v4716 = vpow.pop %v4715
    %v4717 = vmul.f32 %v4113, 1.442695
    %v4718 = vpow.pop %v4717
    %v4719 = vmul.f32 %v4114, 1.442695
    %v4720 = vpow.pop %v4719
    %v4721 = vmul.f32 %v4115, 1.442695
    %v4722 = vpow.pop %v4721
    %v4723 = vmul.f32 %v4116, 1.442695
    %v4724 = vpow.pop %v4723
    %v4725 = vmul.f32 %v4117, 1.442695
    %v4726 = vpow.pop %v4725
    %v4727 = vmul.f32 %v4118, 1.442695
    %v4728 = vpow.pop %v4727
    %v4729 = vmul.f32 %v4119, 1.442695
    %v4730 = vpow.pop %v4729
    %v4731 = vmul.f32 %v4120, 1.442695
    %v4732 = vpow.pop %v4731
    %v4733 = vmul.f32 %v4121, 1.442695
    %v4734 = vpow.pop %v4733
    %v4735 = vmul.f32 %v4122, 1.442695
    %v4736 = vpow.pop %v4735
    %v4737 = vmul.f32 %v4123, 1.442695
    %v4738 = vpow.pop %v4737
    %v4739 = vmul.f32 %v4124, 1.442695
    %v4740 = vpow.pop %v4739
    %v4741 = vmul.f32 %v4125, 1.442695
    %v4742 = vpow.pop %v4741
    %v4743 = vmul.f32 %v4126, 1.442695
    %v4744 = vpow.pop %v4743
    %v4745 = vmul.f32 %v4127, 1.442695
    %v4746 = vpow.pop %v4745
    %v4747 = vmul.f32 %v4128, 1.442695
    %v4748 = vpow.pop %v4747
    %v4749 = vmul.f32 %v4129, 1.442695
    %v4750 = vpow.pop %v4749
    %v4751 = vmul.f32 %v4130, 1.442695
    %v4752 = vpow.pop %v4751
    %v4753 = vmul.f32 %v4131, 1.442695
    %v4754 = vpow.pop %v4753
    %v4755 = vmul.f32 %v4132, 1.442695
    %v4756 = vpow.pop %v4755
    %v4757 = vmul.f32 %v4133, 1.442695
    %v4758 = vpow.pop %v4757
    %v4759 = vmul.f32 %v4134, 1.442695
    %v4760 = vpow.pop %v4759
    %v4761 = vmul.f32 %v4135, 1.442695
    %v4762 = vpow.pop %v4761
    %v4763 = vmul.f32 %v4136, 1.442695
    %v4764 = vpow.pop %v4763
    %v4765 = vmul.f32 %v4137, 1.442695
    %v4766 = vpow.pop %v4765
    %v4767 = vmul.f32 %v4138, 1.442695
    %v4768 = vpow.pop %v4767
    %v4769 = vmul.f32 %v4139, 1.442695
    %v4770 = vpow.pop %v4769
    %v4771 = vmul.f32 %v4140, 1.442695
    %v4772 = vpow.pop %v4771
    %v4773 = vmul.f32 %v4141, 1.442695
    %v4774 = vpow.pop %v4773
    %v4775 = vmul.f32 %v4142, 1.442695
    %v4776 = vpow.pop %v4775
    %v4777 = vmul.f32 %v4143, 1.442695
    %v4778 = vpow.pop %v4777
    %v4779 = vmul.f32 %v4144, 1.442695
    %v4780 = vpow.pop %v4779
    %v4781 = vmul.f32 %v4145, 1.442695
    %v4782 = vpow.pop %v4781
    %v4783 = vmul.f32 %v4146, 1.442695
    %v4784 = vpow.pop %v4783
    %v4785 = vmul.f32 %v4147, 1.442695
    %v4786 = vpow.pop %v4785
    %v4787 = vmul.f32 %v4148, 1.442695
    %v4788 = vpow.pop %v4787
    %v4789 = vmul.f32 %v4149, 1.442695
    %v4790 = vpow.pop %v4789
    %v4791 = vmul.f32 %v4150, 1.442695
    %v4792 = vpow.pop %v4791
    %v4793 = vmul.f32 %v4151, 1.442695
    %v4794 = vpow.pop %v4793
    %v4795 = vmul.f32 %v4152, 1.442695
    %v4796 = vpow.pop %v4795
    %v4797 = vmul.f32 %v4153, 1.442695
    %v4798 = vpow.pop %v4797
    %v4799 = vmul.f32 %v4154, 1.442695
    %v4800 = vpow.pop %v4799
    %v4801 = vmul.f32 %v4155, 1.442695
    %v4802 = vpow.pop %v4801
    %v4803 = vmul.f32 %v4156, 1.442695
    %v4804 = vpow.pop %v4803
    %v4805 = vmul.f32 %v4157, 1.442695
    %v4806 = vpow.pop %v4805
    %v4807 = vmul.f32 %v4158, 1.442695
    %v4808 = vpow.pop %v4807
    %v4809 = vmul.f32 %v4159, 1.442695
    %v4810 = vpow.pop %v4809
    %v4811 = vmul.f32 %v4160, 1.442695
    %v4812 = vpow.pop %v4811
    %v4813 = vmul.f32 %v4161, 1.442695
    %v4814 = vpow.pop %v4813
    %v4815 = vmul.f32 %v4162, 1.442695
    %v4816 = vpow.pop %v4815
    %v4817 = vmul.f32 %v4163, 1.442695
    %v4818 = vpow.pop %v4817
    %v4819 = vmul.f32 %v4164, 1.442695
    %v4820 = vpow.pop %v4819
    %v4821 = vmul.f32 %v4165, 1.442695
    %v4822 = vpow.pop %v4821
    %v4823 = vmul.f32 %v4166, 1.442695
    %v4824 = vpow.pop %v4823
    %v4825 = vmul.f32 %v4167, 1.442695
    %v4826 = vpow.pop %v4825
    %v4827 = vmul.f32 %v4168, 1.442695
    %v4828 = vpow.pop %v4827
    %v4829 = vmul.f32 %v4169, 1.442695
    %v4830 = vpow.pop %v4829
    %v4831 = vmul.f32 %v4170, 1.442695
    %v4832 = vpow.pop %v4831
    %v4833 = vmul.f32 %v4171, 1.442695
    %v4834 = vpow.pop %v4833
    %v4835 = vmul.f32 %v4172, 1.442695
    %v4836 = vpow.pop %v4835
    %v4837 = vmul.f32 %v4173, 1.442695
    %v4838 = vpow.pop %v4837
    %v4839 = vmul.f32 %v4174, 1.442695
    %v4840 = vpow.pop %v4839
    %v4841 = vmul.f32 %v4175, 1.442695
    %v4842 = vpow.pop %v4841
    %v4843 = vmul.f32 %v4176, 1.442695
    %v4844 = vpow.pop %v4843
    %v4845 = vmul.f32 %v4177, 1.442695
    %v4846 = vpow.pop %v4845
    %v4847 = vmul.f32 %v4178, 1.442695
    %v4848 = vpow.pop %v4847
    %v4849 = vmul.f32 %v4179, 1.442695
    %v4850 = vpow.pop %v4849
    %v4851 = vmul.f32 %v4180, 1.442695
    %v4852 = vpow.pop %v4851
    %v4853 = vmul.f32 %v4181, 1.442695
    %v4854 = vpow.pop %v4853
    %v4855 = vmul.f32 %v4182, 1.442695
    %v4856 = vpow.pop %v4855
    %v4857 = vmul.f32 %v4183, 1.442695
    %v4858 = vpow.pop %v4857
    %v4859 = vmul.f32 %v4184, 1.442695
    %v4860 = vpow.pop %v4859
    %v4861 = vmul.f32 %v4185, 1.442695
    %v4862 = vpow.pop %v4861
    %v4863 = vmul.f32 %v4186, 1.442695
    %v4864 = vpow.pop %v4863
    %v4865 = vmul.f32 %v4187, 1.442695
    %v4866 = vpow.pop %v4865
    %v4867 = vmul.f32 %v4188, 1.442695
    %v4868 = vpow.pop %v4867
    %v4869 = vmul.f32 %v4189, 1.442695
    %v4870 = vpow.pop %v4869
    %v4871 = vmul.f32 %v4190, 1.442695
    %v4872 = vpow.pop %v4871
    %v4873 = vmul.f32 %v4191, 1.442695
    %v4874 = vpow.pop %v4873
    %v4875 = vmul.f32 %v4192, 1.442695
    %v4876 = vpow.pop %v4875
    %v4877 = vmul.f32 %v4193, 1.442695
    %v4878 = vpow.pop %v4877
    %v4879 = vmul.f32 %v4194, 1.442695
    %v4880 = vpow.pop %v4879
    %v4881 = vmul.f32 %v4195, 1.442695
    %v4882 = vpow.pop %v4881
    %v4883 = vmul.f32 %v4196, 1.442695
    %v4884 = vpow.pop %v4883
    %v4885 = vmul.f32 %v4197, 1.442695
    %v4886 = vpow.pop %v4885
    %v4887 = vmul.f32 %v4198, 1.442695
    %v4888 = vpow.pop %v4887
    %v4889 = vmul.f32 %v4199, 1.442695
    %v4890 = vpow.pop %v4889
    %v4891 = vmul.f32 %v4200, 1.442695
    %v4892 = vpow.pop %v4891
    %v4893 = vmul.f32 %v4201, 1.442695
    %v4894 = vpow.pop %v4893
    %v4895 = vmul.f32 %v4202, 1.442695
    %v4896 = vpow.pop %v4895
    %v4897 = vmul.f32 %v4203, 1.442695
    %v4898 = vpow.pop %v4897
    %v4899 = vmul.f32 %v4204, 1.442695
    %v4900 = vpow.pop %v4899
    %v4901 = vmul.f32 %v4205, 1.442695
    %v4902 = vpow.pop %v4901
    %v4903 = vmul.f32 %v4206, 1.442695
    %v4904 = vpow.pop %v4903
    %v4905 = vmul.f32 %v4207, 1.442695
    %v4906 = vpow.pop %v4905
    %v4907 = vmul.f32 %v4208, 1.442695
    %v4908 = vpow.pop %v4907
    %v4909 = vmul.f32 %v4209, 1.442695
    %v4910 = vpow.pop %v4909
    %v4911 = vmul.f32 %v4210, 1.442695
    %v4912 = vpow.pop %v4911
    %v4913 = vmul.f32 %v4211, 1.442695
    %v4914 = vpow.pop %v4913
    %v4915 = vmul.f32 %v4212, 1.442695
    %v4916 = vpow.pop %v4915
    %v4917 = vmul.f32 %v4213, 1.442695
    %v4918 = vpow.pop %v4917
    %v4919 = vmul.f32 %v4214, 1.442695
    %v4920 = vpow.pop %v4919
    %v4921 = vmul.f32 %v4215, 1.442695
    %v4922 = vpow.pop %v4921
    %v4923 = vmul.f32 %v4216, 1.442695
    %v4924 = vpow.pop %v4923
    %v4925 = vmul.f32 %v4217, 1.442695
    %v4926 = vpow.pop %v4925
    %v4927 = vmul.f32 %v4218, 1.442695
    %v4928 = vpow.pop %v4927
    %v4929 = vmul.f32 %v4219, 1.442695
    %v4930 = vpow.pop %v4929
    %v4931 = vmul.f32 %v4220, 1.442695
    %v4932 = vpow.pop %v4931
    %v4933 = vmul.f32 %v4221, 1.442695
    %v4934 = vpow.pop %v4933
    %v4935 = vmul.f32 %v4222, 1.442695
    %v4936 = vpow.pop %v4935
    %v4937 = vmul.f32 %v4223, 1.442695
    %v4938 = vpow.pop %v4937
    %v4939 = vmul.f32 %v4224, 1.442695
    %v4940 = vpow.pop %v4939
    %v4941 = vmul.f32 %v4225, 1.442695
    %v4942 = vpow.pop %v4941
    %v4943 = vmul.f32 %v4226, 1.442695
    %v4944 = vpow.pop %v4943
    %v4945 = vmul.f32 %v4227, 1.442695
    %v4946 = vpow.pop %v4945
    %v4947 = vmul.f32 %v4228, 1.442695
    %v4948 = vpow.pop %v4947
    %v4949 = vmul.f32 %v4229, 1.442695
    %v4950 = vpow.pop %v4949
    %v4951 = vmul.f32 %v4230, 1.442695
    %v4952 = vpow.pop %v4951
    %v4953 = vmul.f32 %v4231, 1.442695
    %v4954 = vpow.pop %v4953
    %v4955 = vmul.f32 %v4232, 1.442695
    %v4956 = vpow.pop %v4955
    %v4957 = vmul.f32 %v4233, 1.442695
    %v4958 = vpow.pop %v4957
    %v4959 = vmul.f32 %v4234, 1.442695
    %v4960 = vpow.pop %v4959
    %v4961 = vmul.f32 %v4235, 1.442695
    %v4962 = vpow.pop %v4961
    %v4963 = vmul.f32 %v4236, 1.442695
    %v4964 = vpow.pop %v4963
    %v4965 = vmul.f32 %v4237, 1.442695
    %v4966 = vpow.pop %v4965
    %v4967 = vmul.f32 %v4238, 1.442695
    %v4968 = vpow.pop %v4967
    %v4969 = vmul.f32 %v4239, 1.442695
    %v4970 = vpow.pop %v4969
    %v4971 = vmul.f32 %v4240, 1.442695
    %v4972 = vpow.pop %v4971
    %v4973 = vmul.f32 %v4241, 1.442695
    %v4974 = vpow.pop %v4973
    %v4975 = vmul.f32 %v4242, 1.442695
    %v4976 = vpow.pop %v4975
    %v4977 = vmul.f32 %v4243, 1.442695
    %v4978 = vpow.pop %v4977
    %v4979 = vmul.f32 %v4244, 1.442695
    %v4980 = vpow.pop %v4979
    %v4981 = vmul.f32 %v4245, 1.442695
    %v4982 = vpow.pop %v4981
    %v4983 = vmul.f32 %v4246, 1.442695
    %v4984 = vpow.pop %v4983
    %v4985 = vmul.f32 %v4247, 1.442695
    %v4986 = vpow.pop %v4985
    %v4987 = vmul.f32 %v4248, 1.442695
    %v4988 = vpow.pop %v4987
    %v4989 = vmul.f32 %v4249, 1.442695
    %v4990 = vpow.pop %v4989
    %v4991 = vmul.f32 %v4250, 1.442695
    %v4992 = vpow.pop %v4991
    %v4993 = vmul.f32 %v4251, 1.442695
    %v4994 = vpow.pop %v4993
    %v4995 = vmul.f32 %v4252, 1.442695
    %v4996 = vpow.pop %v4995
    %v4997 = vmul.f32 %v4253, 1.442695
    %v4998 = vpow.pop %v4997
    %v4999 = vmul.f32 %v4254, 1.442695
    %v5000 = vpow.pop %v4999
    %v5001 = vmul.f32 %v4255, 1.442695
    %v5002 = vpow.pop %v5001
    %v5003 = vmul.f32 %v4256, 1.442695
    %v5004 = vpow.pop %v5003
    %v5005 = vmul.f32 %v4257, 1.442695
    %v5006 = vpow.pop %v5005
    %v5007 = vmul.f32 %v4258, 1.442695
    %v5008 = vpow.pop %v5007
    %v5009 = vmul.f32 %v4259, 1.442695
    %v5010 = vpow.pop %v5009
    %v5011 = vmul.f32 %v4260, 1.442695
    %v5012 = vpow.pop %v5011
    %v5013 = vmul.f32 %v4261, 1.442695
    %v5014 = vpow.pop %v5013
    %v5015 = vmul.f32 %v4262, 1.442695
    %v5016 = vpow.pop %v5015
    %v5017 = vmul.f32 %v4263, 1.442695
    %v5018 = vpow.pop %v5017
    %v5019 = vmul.f32 %v4264, 1.442695
    %v5020 = vpow.pop %v5019
    %v5021 = vmul.f32 %v4265, 1.442695
    %v5022 = vpow.pop %v5021
    %v5023 = vmul.f32 %v4266, 1.442695
    %v5024 = vpow.pop %v5023
    %v5025 = vmul.f32 %v4267, 1.442695
    %v5026 = vpow.pop %v5025
    %v5027 = vmul.f32 %v4268, 1.442695
    %v5028 = vpow.pop %v5027
    %v5029 = vmul.f32 %v4269, 1.442695
    %v5030 = vpow.pop %v5029
    %v5031 = vmul.f32 %v4270, 1.442695
    %v5032 = vpow.pop %v5031
    %v5033 = vmul.f32 %v4271, 1.442695
    %v5034 = vpow.pop %v5033
    %v5035 = vmul.f32 %v4272, 1.442695
    %v5036 = vpow.pop %v5035
    %v5037 = vmul.f32 %v4273, 1.442695
    %v5038 = vpow.pop %v5037
    %v5039 = vmul.f32 %v4274, 1.442695
    %v5040 = vpow.pop %v5039
    %v5041 = vmul.f32 %v4275, 1.442695
    %v5042 = vpow.pop %v5041
    %v5043 = vmul.f32 %v4276, 1.442695
    %v5044 = vpow.pop %v5043
    %v5045 = vpack.c.bf16 %v4280, %v4278
    %v5046 = vpack.c.bf16 %v4284, %v4282
    %v5047 = vpack.c.bf16 %v4288, %v4286
    %v5048 = vpack.c.bf16 %v4292, %v4290
    %v5049 = vpack.c.bf16 %v4296, %v4294
    %v5050 = vpack.c.bf16 %v4300, %v4298
    %v5051 = vpack.c.bf16 %v4304, %v4302
    %v5052 = vpack.c.bf16 %v4308, %v4306
    %v5053 = vpack.c.bf16 %v4312, %v4310
    %v5054 = vpack.c.bf16 %v4316, %v4314
    %v5055 = vpack.c.bf16 %v4320, %v4318
    %v5056 = vpack.c.bf16 %v4324, %v4322
    %v5057 = vpack.c.bf16 %v4328, %v4326
    %v5058 = vpack.c.bf16 %v4332, %v4330
    %v5059 = vpack.c.bf16 %v4336, %v4334
    %v5060 = vpack.c.bf16 %v4340, %v4338
    %v5061 = vpack.c.bf16 %v4344, %v4342
    %v5062 = vpack.c.bf16 %v4348, %v4346
    %v5063 = vpack.c.bf16 %v4352, %v4350
    %v5064 = vpack.c.bf16 %v4356, %v4354
    %v5065 = vpack.c.bf16 %v4360, %v4358
    %v5066 = vpack.c.bf16 %v4364, %v4362
    %v5067 = vpack.c.bf16 %v4368, %v4366
    %v5068 = vpack.c.bf16 %v4372, %v4370
    %v5069 = vpack.c.bf16 %v4376, %v4374
    %v5070 = vpack.c.bf16 %v4380, %v4378
    %v5071 = vpack.c.bf16 %v4384, %v4382
    %v5072 = vpack.c.bf16 %v4388, %v4386
    %v5073 = vpack.c.bf16 %v4392, %v4390
    %v5074 = vpack.c.bf16 %v4396, %v4394
    %v5075 = vpack.c.bf16 %v4400, %v4398
    %v5076 = vpack.c.bf16 %v4404, %v4402
    %v5077 = vpack.c.bf16 %v4408, %v4406
    %v5078 = vpack.c.bf16 %v4412, %v4410
    %v5079 = vpack.c.bf16 %v4416, %v4414
    %v5080 = vpack.c.bf16 %v4420, %v4418
    %v5081 = vpack.c.bf16 %v4424, %v4422
    %v5082 = vpack.c.bf16 %v4428, %v4426
    %v5083 = vpack.c.bf16 %v4432, %v4430
    %v5084 = vpack.c.bf16 %v4436, %v4434
    %v5085 = vpack.c.bf16 %v4440, %v4438
    %v5086 = vpack.c.bf16 %v4444, %v4442
    %v5087 = vpack.c.bf16 %v4448, %v4446
    %v5088 = vpack.c.bf16 %v4452, %v4450
    %v5089 = vpack.c.bf16 %v4456, %v4454
    %v5090 = vpack.c.bf16 %v4460, %v4458
    %v5091 = vpack.c.bf16 %v4464, %v4462
    %v5092 = vpack.c.bf16 %v4468, %v4466
    %v5093 = vpack.c.bf16 %v4472, %v4470
    %v5094 = vpack.c.bf16 %v4476, %v4474
    %v5095 = vpack.c.bf16 %v4480, %v4478
    %v5096 = vpack.c.bf16 %v4484, %v4482
    %v5097 = vpack.c.bf16 %v4488, %v4486
    %v5098 = vpack.c.bf16 %v4492, %v4490
    %v5099 = vpack.c.bf16 %v4496, %v4494
    %v5100 = vpack.c.bf16 %v4500, %v4498
    %v5101 = vpack.c.bf16 %v4504, %v4502
    %v5102 = vpack.c.bf16 %v4508, %v4506
    %v5103 = vpack.c.bf16 %v4512, %v4510
    %v5104 = vpack.c.bf16 %v4516, %v4514
    %v5105 = vpack.c.bf16 %v4520, %v4518
    %v5106 = vpack.c.bf16 %v4524, %v4522
    %v5107 = vpack.c.bf16 %v4528, %v4526
    %v5108 = vpack.c.bf16 %v4532, %v4530
    %v5109 = vpack.c.bf16 %v4536, %v4534
    %v5110 = vpack.c.bf16 %v4540, %v4538
    %v5111 = vpack.c.bf16 %v4544, %v4542
    %v5112 = vpack.c.bf16 %v4548, %v4546
    %v5113 = vpack.c.bf16 %v4552, %v4550
    %v5114 = vpack.c.bf16 %v4556, %v4554
    %v5115 = vpack.c.bf16 %v4560, %v4558
    %v5116 = vpack.c.bf16 %v4564, %v4562
    %v5117 = vpack.c.bf16 %v4568, %v4566
    %v5118 = vpack.c.bf16 %v4572, %v4570
    %v5119 = vpack.c.bf16 %v4576, %v4574
    %v5120 = vpack.c.bf16 %v4580, %v4578
    %v5121 = vpack.c.bf16 %v4584, %v4582
    %v5122 = vpack.c.bf16 %v4588, %v4586
    %v5123 = vpack.c.bf16 %v4592, %v4590
    %v5124 = vpack.c.bf16 %v4596, %v4594
    %v5125 = vpack.c.bf16 %v4600, %v4598
    %v5126 = vpack.c.bf16 %v4604, %v4602
    %v5127 = vpack.c.bf16 %v4608, %v4606
    %v5128 = vpack.c.bf16 %v4612, %v4610
    %v5129 = vpack.c.bf16 %v4616, %v4614
    %v5130 = vpack.c.bf16 %v4620, %v4618
    %v5131 = vpack.c.bf16 %v4624, %v4622
    %v5132 = vpack.c.bf16 %v4628, %v4626
    %v5133 = vpack.c.bf16 %v4632, %v4630
    %v5134 = vpack.c.bf16 %v4636, %v4634
    %v5135 = vpack.c.bf16 %v4640, %v4638
    %v5136 = vpack.c.bf16 %v4644, %v4642
    %v5137 = vpack.c.bf16 %v4648, %v4646
    %v5138 = vpack.c.bf16 %v4652, %v4650
    %v5139 = vpack.c.bf16 %v4656, %v4654
    %v5140 = vpack.c.bf16 %v4660, %v4658
    %v5141 = vpack.c.bf16 %v4664, %v4662
    %v5142 = vpack.c.bf16 %v4668, %v4666
    %v5143 = vpack.c.bf16 %v4672, %v4670
    %v5144 = vpack.c.bf16 %v4676, %v4674
    %v5145 = vpack.c.bf16 %v4680, %v4678
    %v5146 = vpack.c.bf16 %v4684, %v4682
    %v5147 = vpack.c.bf16 %v4688, %v4686
    %v5148 = vpack.c.bf16 %v4692, %v4690
    %v5149 = vpack.c.bf16 %v4696, %v4694
    %v5150 = vpack.c.bf16 %v4700, %v4698
    %v5151 = vpack.c.bf16 %v4704, %v4702
    %v5152 = vpack.c.bf16 %v4708, %v4706
    %v5153 = vpack.c.bf16 %v4712, %v4710
    %v5154 = vpack.c.bf16 %v4716, %v4714
    %v5155 = vpack.c.bf16 %v4720, %v4718
    %v5156 = vpack.c.bf16 %v4724, %v4722
    %v5157 = vpack.c.bf16 %v4728, %v4726
    %v5158 = vpack.c.bf16 %v4732, %v4730
    %v5159 = vpack.c.bf16 %v4736, %v4734
    %v5160 = vpack.c.bf16 %v4740, %v4738
    %v5161 = vpack.c.bf16 %v4744, %v4742
    %v5162 = vpack.c.bf16 %v4748, %v4746
    %v5163 = vpack.c.bf16 %v4752, %v4750
    %v5164 = vpack.c.bf16 %v4756, %v4754
    %v5165 = vpack.c.bf16 %v4760, %v4758
    %v5166 = vpack.c.bf16 %v4764, %v4762
    %v5167 = vpack.c.bf16 %v4768, %v4766
    %v5168 = vpack.c.bf16 %v4772, %v4770
    %v5169 = vpack.c.bf16 %v4776, %v4774
    %v5170 = vpack.c.bf16 %v4780, %v4778
    %v5171 = vpack.c.bf16 %v4784, %v4782
    %v5172 = vpack.c.bf16 %v4788, %v4786
    %v5173 = vpack.c.bf16 %v4792, %v4790
    %v5174 = vpack.c.bf16 %v4796, %v4794
    %v5175 = vpack.c.bf16 %v4800, %v4798
    %v5176 = vpack.c.bf16 %v4804, %v4802
    %v5177 = vpack.c.bf16 %v4808, %v4806
    %v5178 = vpack.c.bf16 %v4812, %v4810
    %v5179 = vpack.c.bf16 %v4816, %v4814
    %v5180 = vpack.c.bf16 %v4820, %v4818
    %v5181 = vpack.c.bf16 %v4824, %v4822
    %v5182 = vpack.c.bf16 %v4828, %v4826
    %v5183 = vpack.c.bf16 %v4832, %v4830
    %v5184 = vpack.c.bf16 %v4836, %v4834
    %v5185 = vpack.c.bf16 %v4840, %v4838
    %v5186 = vpack.c.bf16 %v4844, %v4842
    %v5187 = vpack.c.bf16 %v4848, %v4846
    %v5188 = vpack.c.bf16 %v4852, %v4850
    %v5189 = vpack.c.bf16 %v4856, %v4854
    %v5190 = vpack.c.bf16 %v4860, %v4858
    %v5191 = vpack.c.bf16 %v4864, %v4862
    %v5192 = vpack.c.bf16 %v4868, %v4866
    %v5193 = vpack.c.bf16 %v4872, %v4870
    %v5194 = vpack.c.bf16 %v4876, %v4874
    %v5195 = vpack.c.bf16 %v4880, %v4878
    %v5196 = vpack.c.bf16 %v4884, %v4882
    %v5197 = vpack.c.bf16 %v4888, %v4886
    %v5198 = vpack.c.bf16 %v4892, %v4890
    %v5199 = vpack.c.bf16 %v4896, %v4894
    %v5200 = vpack.c.bf16 %v4900, %v4898
    %v5201 = vpack.c.bf16 %v4904, %v4902
    %v5202 = vpack.c.bf16 %v4908, %v4906
    %v5203 = vpack.c.bf16 %v4912, %v4910
    %v5204 = vpack.c.bf16 %v4916, %v4914
    %v5205 = vpack.c.bf16 %v4920, %v4918
    %v5206 = vpack.c.bf16 %v4924, %v4922
    %v5207 = vpack.c.bf16 %v4928, %v4926
    %v5208 = vpack.c.bf16 %v4932, %v4930
    %v5209 = vpack.c.bf16 %v4936, %v4934
    %v5210 = vpack.c.bf16 %v4940, %v4938
    %v5211 = vpack.c.bf16 %v4944, %v4942
    %v5212 = vpack.c.bf16 %v4948, %v4946
    %v5213 = vpack.c.bf16 %v4952, %v4950
    %v5214 = vpack.c.bf16 %v4956, %v4954
    %v5215 = vpack.c.bf16 %v4960, %v4958
    %v5216 = vpack.c.bf16 %v4964, %v4962
    %v5217 = vpack.c.bf16 %v4968, %v4966
    %v5218 = vpack.c.bf16 %v4972, %v4970
    %v5219 = vpack.c.bf16 %v4976, %v4974
    %v5220 = vpack.c.bf16 %v4980, %v4978
    %v5221 = vpack.c.bf16 %v4984, %v4982
    %v5222 = vpack.c.bf16 %v4988, %v4986
    %v5223 = vpack.c.bf16 %v4992, %v4990
    %v5224 = vpack.c.bf16 %v4996, %v4994
    %v5225 = vpack.c.bf16 %v5000, %v4998
    %v5226 = vpack.c.bf16 %v5004, %v5002
    %v5227 = vpack.c.bf16 %v5008, %v5006
    %v5228 = vpack.c.bf16 %v5012, %v5010
    %v5229 = vpack.c.bf16 %v5016, %v5014
    %v5230 = vpack.c.bf16 %v5020, %v5018
    %v5231 = vpack.c.bf16 %v5024, %v5022
    %v5232 = vpack.c.bf16 %v5028, %v5026
    %v5233 = vpack.c.bf16 %v5032, %v5030
    %v5234 = vpack.c.bf16 %v5036, %v5034
    %v5235 = vpack.c.bf16 %v5040, %v5038
    %v5236 = vpack.c.bf16 %v5044, %v5042
    %v5237 = vld [vmem:[#allocation2] sm:$0xff]
    %v5238 = vld [vmem:[#allocation2 + $0x8] sm:$0xff]
    %v5239 = vld [vmem:[#allocation2 + $0x10] sm:$0xff]
    %v5240 = vld [vmem:[#allocation2 + $0x18] sm:$0xff]
    %v5241 = vld [vmem:[#allocation2 + $0x20] sm:$0xff]
    %v5242 = vld [vmem:[#allocation2 + $0x28] sm:$0xff]
    %v5243 = vld [vmem:[#allocation2 + $0x30] sm:$0xff]
    %v5244 = vld [vmem:[#allocation2 + $0x38] sm:$0xff]
    %v5245 = vld [vmem:[#allocation2 + $0x40] sm:$0xff]
    %v5246 = vld [vmem:[#allocation2 + $0x48] sm:$0xff]
    %v5247 = vld [vmem:[#allocation2 + $0x50] sm:$0xff]
    %v5248 = vld [vmem:[#allocation2 + $0x58] sm:$0xff]
    %v5249 = vld [vmem:[#allocation2 + $0x60] sm:$0xff]
    %v5250 = vld [vmem:[#allocation2 + $0x68] sm:$0xff]
    %v5251 = vld [vmem:[#allocation2 + $0x70] sm:$0xff]
    %v5252 = vld [vmem:[#allocation2 + $0x78] sm:$0xff]
    %v5253 = vld [vmem:[#allocation2 + $0x80] sm:$0xff]
    %v5254 = vld [vmem:[#allocation2 + $0x88] sm:$0xff]
    %v5255 = vld [vmem:[#allocation2 + $0x90] sm:$0xff]
    %v5256 = vld [vmem:[#allocation2 + $0x98] sm:$0xff]
    %v5257 = vld [vmem:[#allocation2 + $0xa0] sm:$0xff]
    %v5258 = vld [vmem:[#allocation2 + $0xa8] sm:$0xff]
    %v5259 = vld [vmem:[#allocation2 + $0xb0] sm:$0xff]
    %v5260 = vld [vmem:[#allocation2 + $0xb8] sm:$0xff]
    %v5261 = vld [vmem:[#allocation2 + $0xc0] sm:$0xff]
    %v5262 = vld [vmem:[#allocation2 + $0xc8] sm:$0xff]
    %v5263 = vld [vmem:[#allocation2 + $0xd0] sm:$0xff]
    %v5264 = vld [vmem:[#allocation2 + $0xd8] sm:$0xff]
    %v5265 = vld [vmem:[#allocation2 + $0xe0] sm:$0xff]
    %v5266 = vld [vmem:[#allocation2 + $0xe8] sm:$0xff]
    %v5267 = vld [vmem:[#allocation2 + $0xf0] sm:$0xff]
    %v5268 = vld [vmem:[#allocation2 + $0xf8] sm:$0xff]
    %v5269 = vld [vmem:[#allocation2 + $0x100] sm:$0xff]
    %v5270 = vld [vmem:[#allocation2 + $0x108] sm:$0xff]
    %v5271 = vld [vmem:[#allocation2 + $0x110] sm:$0xff]
    %v5272 = vld [vmem:[#allocation2 + $0x118] sm:$0xff]
    %v5273 = vld [vmem:[#allocation2 + $0x120] sm:$0xff]
    %v5274 = vld [vmem:[#allocation2 + $0x128] sm:$0xff]
    %v5275 = vld [vmem:[#allocation2 + $0x130] sm:$0xff]
    %v5276 = vld [vmem:[#allocation2 + $0x138] sm:$0xff]
    %v5277 = vld [vmem:[#allocation2 + $0x140] sm:$0xff]
    %v5278 = vld [vmem:[#allocation2 + $0x148] sm:$0xff]
    %v5279 = vld [vmem:[#allocation2 + $0x150] sm:$0xff]
    %v5280 = vld [vmem:[#allocation2 + $0x158] sm:$0xff]
    %v5281 = vld [vmem:[#allocation2 + $0x160] sm:$0xff]
    %v5282 = vld [vmem:[#allocation2 + $0x168] sm:$0xff]
    %v5283 = vld [vmem:[#allocation2 + $0x170] sm:$0xff]
    %v5284 = vld [vmem:[#allocation2 + $0x178] sm:$0xff]
    %v5285 = vld [vmem:[#allocation2 + $0x180] sm:$0xff]
    %v5286 = vld [vmem:[#allocation2 + $0x188] sm:$0xff]
    %v5287 = vld [vmem:[#allocation2 + $0x190] sm:$0xff]
    %v5288 = vld [vmem:[#allocation2 + $0x198] sm:$0xff]
    %v5289 = vld [vmem:[#allocation2 + $0x1a0] sm:$0xff]
    %v5290 = vld [vmem:[#allocation2 + $0x1a8] sm:$0xff]
    %v5291 = vld [vmem:[#allocation2 + $0x1b0] sm:$0xff]
    %v5292 = vld [vmem:[#allocation2 + $0x1b8] sm:$0xff]
    %v5293 = vld [vmem:[#allocation2 + $0x1c0] sm:$0xff]
    %v5294 = vld [vmem:[#allocation2 + $0x1c8] sm:$0xff]
    %v5295 = vld [vmem:[#allocation2 + $0x1d0] sm:$0xff]
    %v5296 = vld [vmem:[#allocation2 + $0x1d8] sm:$0xff]
    %v5297 = vld [vmem:[#allocation2 + $0x1e0] sm:$0xff]
    %v5298 = vld [vmem:[#allocation2 + $0x1e8] sm:$0xff]
    %v5299 = vld [vmem:[#allocation2 + $0x1f0] sm:$0xff]
    %v5300 = vld [vmem:[#allocation2 + $0x1f8] sm:$0xff]
    %v5301 = vld [vmem:[#allocation2 + $0x200] sm:$0xff]
    %v5302 = vld [vmem:[#allocation2 + $0x208] sm:$0xff]
    %v5303 = vld [vmem:[#allocation2 + $0x210] sm:$0xff]
    %v5304 = vld [vmem:[#allocation2 + $0x218] sm:$0xff]
    %v5305 = vld [vmem:[#allocation2 + $0x220] sm:$0xff]
    %v5306 = vld [vmem:[#allocation2 + $0x228] sm:$0xff]
    %v5307 = vld [vmem:[#allocation2 + $0x230] sm:$0xff]
    %v5308 = vld [vmem:[#allocation2 + $0x238] sm:$0xff]
    %v5309 = vld [vmem:[#allocation2 + $0x240] sm:$0xff]
    %v5310 = vld [vmem:[#allocation2 + $0x248] sm:$0xff]
    %v5311 = vld [vmem:[#allocation2 + $0x250] sm:$0xff]
    %v5312 = vld [vmem:[#allocation2 + $0x258] sm:$0xff]
    %v5313 = vld [vmem:[#allocation2 + $0x260] sm:$0xff]
    %v5314 = vld [vmem:[#allocation2 + $0x268] sm:$0xff]
    %v5315 = vld [vmem:[#allocation2 + $0x270] sm:$0xff]
    %v5316 = vld [vmem:[#allocation2 + $0x278] sm:$0xff]
    %v5317 = vld [vmem:[#allocation2 + $0x280] sm:$0xff]
    %v5318 = vld [vmem:[#allocation2 + $0x288] sm:$0xff]
    %v5319 = vld [vmem:[#allocation2 + $0x290] sm:$0xff]
    %v5320 = vld [vmem:[#allocation2 + $0x298] sm:$0xff]
    %v5321 = vld [vmem:[#allocation2 + $0x2a0] sm:$0xff]
    %v5322 = vld [vmem:[#allocation2 + $0x2a8] sm:$0xff]
    %v5323 = vld [vmem:[#allocation2 + $0x2b0] sm:$0xff]
    %v5324 = vld [vmem:[#allocation2 + $0x2b8] sm:$0xff]
    %v5325 = vld [vmem:[#allocation2 + $0x2c0] sm:$0xff]
    %v5326 = vld [vmem:[#allocation2 + $0x2c8] sm:$0xff]
    %v5327 = vld [vmem:[#allocation2 + $0x2d0] sm:$0xff]
    %v5328 = vld [vmem:[#allocation2 + $0x2d8] sm:$0xff]
    %v5329 = vld [vmem:[#allocation2 + $0x2e0] sm:$0xff]
    %v5330 = vld [vmem:[#allocation2 + $0x2e8] sm:$0xff]
    %v5331 = vld [vmem:[#allocation2 + $0x2f0] sm:$0xff]
    %v5332 = vld [vmem:[#allocation2 + $0x2f8] sm:$0xff]
    %v5333 = vld [vmem:[#allocation2 + $0x300] sm:$0xff]
    %v5334 = vld [vmem:[#allocation2 + $0x308] sm:$0xff]
    %v5335 = vld [vmem:[#allocation2 + $0x310] sm:$0xff]
    %v5336 = vld [vmem:[#allocation2 + $0x318] sm:$0xff]
    %v5337 = vld [vmem:[#allocation2 + $0x320] sm:$0xff]
    %v5338 = vld [vmem:[#allocation2 + $0x328] sm:$0xff]
    %v5339 = vld [vmem:[#allocation2 + $0x330] sm:$0xff]
    %v5340 = vld [vmem:[#allocation2 + $0x338] sm:$0xff]
    %v5341 = vld [vmem:[#allocation2 + $0x340] sm:$0xff]
    %v5342 = vld [vmem:[#allocation2 + $0x348] sm:$0xff]
    %v5343 = vld [vmem:[#allocation2 + $0x350] sm:$0xff]
    %v5344 = vld [vmem:[#allocation2 + $0x358] sm:$0xff]
    %v5345 = vld [vmem:[#allocation2 + $0x360] sm:$0xff]
    %v5346 = vld [vmem:[#allocation2 + $0x368] sm:$0xff]
    %v5347 = vld [vmem:[#allocation2 + $0x370] sm:$0xff]
    %v5348 = vld [vmem:[#allocation2 + $0x378] sm:$0xff]
    %v5349 = vld [vmem:[#allocation2 + $0x380] sm:$0xff]
    %v5350 = vld [vmem:[#allocation2 + $0x388] sm:$0xff]
    %v5351 = vld [vmem:[#allocation2 + $0x390] sm:$0xff]
    %v5352 = vld [vmem:[#allocation2 + $0x398] sm:$0xff]
    %v5353 = vld [vmem:[#allocation2 + $0x3a0] sm:$0xff]
    %v5354 = vld [vmem:[#allocation2 + $0x3a8] sm:$0xff]
    %v5355 = vld [vmem:[#allocation2 + $0x3b0] sm:$0xff]
    %v5356 = vld [vmem:[#allocation2 + $0x3b8] sm:$0xff]
    %v5357 = vld [vmem:[#allocation2 + $0x3c0] sm:$0xff]
    %v5358 = vld [vmem:[#allocation2 + $0x3c8] sm:$0xff]
    %v5359 = vld [vmem:[#allocation2 + $0x3d0] sm:$0xff]
    %v5360 = vld [vmem:[#allocation2 + $0x3d8] sm:$0xff]
    %v5361 = vld [vmem:[#allocation2 + $0x3e0] sm:$0xff]
    %v5362 = vld [vmem:[#allocation2 + $0x3e8] sm:$0xff]
    %v5363 = vld [vmem:[#allocation2 + $0x3f0] sm:$0xff]
    %v5364 = vld [vmem:[#allocation2 + $0x3f8] sm:$0xff]
    %v5365 = vld [vmem:[#allocation2 + $0x400] sm:$0xff]
    %v5366 = vld [vmem:[#allocation2 + $0x408] sm:$0xff]
    %v5367 = vld [vmem:[#allocation2 + $0x410] sm:$0xff]
    %v5368 = vld [vmem:[#allocation2 + $0x418] sm:$0xff]
    %v5369 = vld [vmem:[#allocation2 + $0x420] sm:$0xff]
    %v5370 = vld [vmem:[#allocation2 + $0x428] sm:$0xff]
    %v5371 = vld [vmem:[#allocation2 + $0x430] sm:$0xff]
    %v5372 = vld [vmem:[#allocation2 + $0x438] sm:$0xff]
    %v5373 = vld [vmem:[#allocation2 + $0x440] sm:$0xff]
    %v5374 = vld [vmem:[#allocation2 + $0x448] sm:$0xff]
    %v5375 = vld [vmem:[#allocation2 + $0x450] sm:$0xff]
    %v5376 = vld [vmem:[#allocation2 + $0x458] sm:$0xff]
    %v5377 = vld [vmem:[#allocation2 + $0x460] sm:$0xff]
    %v5378 = vld [vmem:[#allocation2 + $0x468] sm:$0xff]
    %v5379 = vld [vmem:[#allocation2 + $0x470] sm:$0xff]
    %v5380 = vld [vmem:[#allocation2 + $0x478] sm:$0xff]
    %v5381 = vld [vmem:[#allocation2 + $0x480] sm:$0xff]
    %v5382 = vld [vmem:[#allocation2 + $0x488] sm:$0xff]
    %v5383 = vld [vmem:[#allocation2 + $0x490] sm:$0xff]
    %v5384 = vld [vmem:[#allocation2 + $0x498] sm:$0xff]
    %v5385 = vld [vmem:[#allocation2 + $0x4a0] sm:$0xff]
    %v5386 = vld [vmem:[#allocation2 + $0x4a8] sm:$0xff]
    %v5387 = vld [vmem:[#allocation2 + $0x4b0] sm:$0xff]
    %v5388 = vld [vmem:[#allocation2 + $0x4b8] sm:$0xff]
    %v5389 = vld [vmem:[#allocation2 + $0x4c0] sm:$0xff]
    %v5390 = vld [vmem:[#allocation2 + $0x4c8] sm:$0xff]
    %v5391 = vld [vmem:[#allocation2 + $0x4d0] sm:$0xff]
    %v5392 = vld [vmem:[#allocation2 + $0x4d8] sm:$0xff]
    %v5393 = vld [vmem:[#allocation2 + $0x4e0] sm:$0xff]
    %v5394 = vld [vmem:[#allocation2 + $0x4e8] sm:$0xff]
    %v5395 = vld [vmem:[#allocation2 + $0x4f0] sm:$0xff]
    %v5396 = vld [vmem:[#allocation2 + $0x4f8] sm:$0xff]
    %v5397 = vld [vmem:[#allocation2 + $0x500] sm:$0xff]
    %v5398 = vld [vmem:[#allocation2 + $0x508] sm:$0xff]
    %v5399 = vld [vmem:[#allocation2 + $0x510] sm:$0xff]
    %v5400 = vld [vmem:[#allocation2 + $0x518] sm:$0xff]
    %v5401 = vld [vmem:[#allocation2 + $0x520] sm:$0xff]
    %v5402 = vld [vmem:[#allocation2 + $0x528] sm:$0xff]
    %v5403 = vld [vmem:[#allocation2 + $0x530] sm:$0xff]
    %v5404 = vld [vmem:[#allocation2 + $0x538] sm:$0xff]
    %v5405 = vld [vmem:[#allocation2 + $0x540] sm:$0xff]
    %v5406 = vld [vmem:[#allocation2 + $0x548] sm:$0xff]
    %v5407 = vld [vmem:[#allocation2 + $0x550] sm:$0xff]
    %v5408 = vld [vmem:[#allocation2 + $0x558] sm:$0xff]
    %v5409 = vld [vmem:[#allocation2 + $0x560] sm:$0xff]
    %v5410 = vld [vmem:[#allocation2 + $0x568] sm:$0xff]
    %v5411 = vld [vmem:[#allocation2 + $0x570] sm:$0xff]
    %v5412 = vld [vmem:[#allocation2 + $0x578] sm:$0xff]
    %v5413 = vld [vmem:[#allocation2 + $0x580] sm:$0xff]
    %v5414 = vld [vmem:[#allocation2 + $0x588] sm:$0xff]
    %v5415 = vld [vmem:[#allocation2 + $0x590] sm:$0xff]
    %v5416 = vld [vmem:[#allocation2 + $0x598] sm:$0xff]
    %v5417 = vld [vmem:[#allocation2 + $0x5a0] sm:$0xff]
    %v5418 = vld [vmem:[#allocation2 + $0x5a8] sm:$0xff]
    %v5419 = vld [vmem:[#allocation2 + $0x5b0] sm:$0xff]
    %v5420 = vld [vmem:[#allocation2 + $0x5b8] sm:$0xff]
    %v5421 = vld [vmem:[#allocation2 + $0x5c0] sm:$0xff]
    %v5422 = vld [vmem:[#allocation2 + $0x5c8] sm:$0xff]
    %v5423 = vld [vmem:[#allocation2 + $0x5d0] sm:$0xff]
    %v5424 = vld [vmem:[#allocation2 + $0x5d8] sm:$0xff]
    %v5425 = vld [vmem:[#allocation2 + $0x5e0] sm:$0xff]
    %v5426 = vld [vmem:[#allocation2 + $0x5e8] sm:$0xff]
    %v5427 = vld [vmem:[#allocation2 + $0x5f0] sm:$0xff]
    %v5428 = vld [vmem:[#allocation2 + $0x5f8] sm:$0xff]
    %v5429 = vld [vmem:[#allocation2 + $0x600] sm:$0xff]
    %v5430 = vld [vmem:[#allocation2 + $0x608] sm:$0xff]
    %v5431 = vld [vmem:[#allocation2 + $0x610] sm:$0xff]
    %v5432 = vld [vmem:[#allocation2 + $0x618] sm:$0xff]
    %v5433 = vld [vmem:[#allocation2 + $0x620] sm:$0xff]
    %v5434 = vld [vmem:[#allocation2 + $0x628] sm:$0xff]
    %v5435 = vld [vmem:[#allocation2 + $0x630] sm:$0xff]
    %v5436 = vld [vmem:[#allocation2 + $0x638] sm:$0xff]
    %v5437 = vld [vmem:[#allocation2 + $0x640] sm:$0xff]
    %v5438 = vld [vmem:[#allocation2 + $0x648] sm:$0xff]
    %v5439 = vld [vmem:[#allocation2 + $0x650] sm:$0xff]
    %v5440 = vld [vmem:[#allocation2 + $0x658] sm:$0xff]
    %v5441 = vld [vmem:[#allocation2 + $0x660] sm:$0xff]
    %v5442 = vld [vmem:[#allocation2 + $0x668] sm:$0xff]
    %v5443 = vld [vmem:[#allocation2 + $0x670] sm:$0xff]
    %v5444 = vld [vmem:[#allocation2 + $0x678] sm:$0xff]
    %v5445 = vld [vmem:[#allocation2 + $0x680] sm:$0xff]
    %v5446 = vld [vmem:[#allocation2 + $0x688] sm:$0xff]
    %v5447 = vld [vmem:[#allocation2 + $0x690] sm:$0xff]
    %v5448 = vld [vmem:[#allocation2 + $0x698] sm:$0xff]
    %v5449 = vld [vmem:[#allocation2 + $0x6a0] sm:$0xff]
    %v5450 = vld [vmem:[#allocation2 + $0x6a8] sm:$0xff]
    %v5451 = vld [vmem:[#allocation2 + $0x6b0] sm:$0xff]
    %v5452 = vld [vmem:[#allocation2 + $0x6b8] sm:$0xff]
    %v5453 = vld [vmem:[#allocation2 + $0x6c0] sm:$0xff]
    %v5454 = vld [vmem:[#allocation2 + $0x6c8] sm:$0xff]
    %v5455 = vld [vmem:[#allocation2 + $0x6d0] sm:$0xff]
    %v5456 = vld [vmem:[#allocation2 + $0x6d8] sm:$0xff]
    %v5457 = vld [vmem:[#allocation2 + $0x6e0] sm:$0xff]
    %v5458 = vld [vmem:[#allocation2 + $0x6e8] sm:$0xff]
    %v5459 = vld [vmem:[#allocation2 + $0x6f0] sm:$0xff]
    %v5460 = vld [vmem:[#allocation2 + $0x6f8] sm:$0xff]
    %v5461 = vld [vmem:[#allocation2 + $0x700] sm:$0xff]
    %v5462 = vld [vmem:[#allocation2 + $0x708] sm:$0xff]
    %v5463 = vld [vmem:[#allocation2 + $0x710] sm:$0xff]
    %v5464 = vld [vmem:[#allocation2 + $0x718] sm:$0xff]
    %v5465 = vld [vmem:[#allocation2 + $0x720] sm:$0xff]
    %v5466 = vld [vmem:[#allocation2 + $0x728] sm:$0xff]
    %v5467 = vld [vmem:[#allocation2 + $0x730] sm:$0xff]
    %v5468 = vld [vmem:[#allocation2 + $0x738] sm:$0xff]
    %v5469 = vld [vmem:[#allocation2 + $0x740] sm:$0xff]
    %v5470 = vld [vmem:[#allocation2 + $0x748] sm:$0xff]
    %v5471 = vld [vmem:[#allocation2 + $0x750] sm:$0xff]
    %v5472 = vld [vmem:[#allocation2 + $0x758] sm:$0xff]
    %v5473 = vld [vmem:[#allocation2 + $0x760] sm:$0xff]
    %v5474 = vld [vmem:[#allocation2 + $0x768] sm:$0xff]
    %v5475 = vld [vmem:[#allocation2 + $0x770] sm:$0xff]
    %v5476 = vld [vmem:[#allocation2 + $0x778] sm:$0xff]
    %v5477 = vld [vmem:[#allocation2 + $0x780] sm:$0xff]
    %v5478 = vld [vmem:[#allocation2 + $0x788] sm:$0xff]
    %v5479 = vld [vmem:[#allocation2 + $0x790] sm:$0xff]
    %v5480 = vld [vmem:[#allocation2 + $0x798] sm:$0xff]
    %v5481 = vld [vmem:[#allocation2 + $0x7a0] sm:$0xff]
    %v5482 = vld [vmem:[#allocation2 + $0x7a8] sm:$0xff]
    %v5483 = vld [vmem:[#allocation2 + $0x7b0] sm:$0xff]
    %v5484 = vld [vmem:[#allocation2 + $0x7b8] sm:$0xff]
    %v5485 = vld [vmem:[#allocation2 + $0x7c0] sm:$0xff]
    %v5486 = vld [vmem:[#allocation2 + $0x7c8] sm:$0xff]
    %v5487 = vld [vmem:[#allocation2 + $0x7d0] sm:$0xff]
    %v5488 = vld [vmem:[#allocation2 + $0x7d8] sm:$0xff]
    %v5489 = vld [vmem:[#allocation2 + $0x7e0] sm:$0xff]
    %v5490 = vld [vmem:[#allocation2 + $0x7e8] sm:$0xff]
    %v5491 = vld [vmem:[#allocation2 + $0x7f0] sm:$0xff]
    %v5492 = vld [vmem:[#allocation2 + $0x7f8] sm:$0xff]
    %v5493 = vld [vmem:[#allocation2 + $0x800] sm:$0xff]
    %v5494 = vld [vmem:[#allocation2 + $0x808] sm:$0xff]
    %v5495 = vld [vmem:[#allocation2 + $0x810] sm:$0xff]
    %v5496 = vld [vmem:[#allocation2 + $0x818] sm:$0xff]
    %v5497 = vld [vmem:[#allocation2 + $0x820] sm:$0xff]
    %v5498 = vld [vmem:[#allocation2 + $0x828] sm:$0xff]
    %v5499 = vld [vmem:[#allocation2 + $0x830] sm:$0xff]
    %v5500 = vld [vmem:[#allocation2 + $0x838] sm:$0xff]
    %v5501 = vld [vmem:[#allocation2 + $0x840] sm:$0xff]
    %v5502 = vld [vmem:[#allocation2 + $0x848] sm:$0xff]
    %v5503 = vld [vmem:[#allocation2 + $0x850] sm:$0xff]
    %v5504 = vld [vmem:[#allocation2 + $0x858] sm:$0xff]
    %v5505 = vld [vmem:[#allocation2 + $0x860] sm:$0xff]
    %v5506 = vld [vmem:[#allocation2 + $0x868] sm:$0xff]
    %v5507 = vld [vmem:[#allocation2 + $0x870] sm:$0xff]
    %v5508 = vld [vmem:[#allocation2 + $0x878] sm:$0xff]
    %v5509 = vld [vmem:[#allocation2 + $0x880] sm:$0xff]
    %v5510 = vld [vmem:[#allocation2 + $0x888] sm:$0xff]
    %v5511 = vld [vmem:[#allocation2 + $0x890] sm:$0xff]
    %v5512 = vld [vmem:[#allocation2 + $0x898] sm:$0xff]
    %v5513 = vld [vmem:[#allocation2 + $0x8a0] sm:$0xff]
    %v5514 = vld [vmem:[#allocation2 + $0x8a8] sm:$0xff]
    %v5515 = vld [vmem:[#allocation2 + $0x8b0] sm:$0xff]
    %v5516 = vld [vmem:[#allocation2 + $0x8b8] sm:$0xff]
    %v5517 = vld [vmem:[#allocation2 + $0x8c0] sm:$0xff]
    %v5518 = vld [vmem:[#allocation2 + $0x8c8] sm:$0xff]
    %v5519 = vld [vmem:[#allocation2 + $0x8d0] sm:$0xff]
    %v5520 = vld [vmem:[#allocation2 + $0x8d8] sm:$0xff]
    %v5521 = vld [vmem:[#allocation2 + $0x8e0] sm:$0xff]
    %v5522 = vld [vmem:[#allocation2 + $0x8e8] sm:$0xff]
    %v5523 = vld [vmem:[#allocation2 + $0x8f0] sm:$0xff]
    %v5524 = vld [vmem:[#allocation2 + $0x8f8] sm:$0xff]
    %v5525 = vld [vmem:[#allocation2 + $0x900] sm:$0xff]
    %v5526 = vld [vmem:[#allocation2 + $0x908] sm:$0xff]
    %v5527 = vld [vmem:[#allocation2 + $0x910] sm:$0xff]
    %v5528 = vld [vmem:[#allocation2 + $0x918] sm:$0xff]
    %v5529 = vld [vmem:[#allocation2 + $0x920] sm:$0xff]
    %v5530 = vld [vmem:[#allocation2 + $0x928] sm:$0xff]
    %v5531 = vld [vmem:[#allocation2 + $0x930] sm:$0xff]
    %v5532 = vld [vmem:[#allocation2 + $0x938] sm:$0xff]
    %v5533 = vld [vmem:[#allocation2 + $0x940] sm:$0xff]
    %v5534 = vld [vmem:[#allocation2 + $0x948] sm:$0xff]
    %v5535 = vld [vmem:[#allocation2 + $0x950] sm:$0xff]
    %v5536 = vld [vmem:[#allocation2 + $0x958] sm:$0xff]
    %v5537 = vld [vmem:[#allocation2 + $0x960] sm:$0xff]
    %v5538 = vld [vmem:[#allocation2 + $0x968] sm:$0xff]
    %v5539 = vld [vmem:[#allocation2 + $0x970] sm:$0xff]
    %v5540 = vld [vmem:[#allocation2 + $0x978] sm:$0xff]
    %v5541 = vld [vmem:[#allocation2 + $0x980] sm:$0xff]
    %v5542 = vld [vmem:[#allocation2 + $0x988] sm:$0xff]
    %v5543 = vld [vmem:[#allocation2 + $0x990] sm:$0xff]
    %v5544 = vld [vmem:[#allocation2 + $0x998] sm:$0xff]
    %v5545 = vld [vmem:[#allocation2 + $0x9a0] sm:$0xff]
    %v5546 = vld [vmem:[#allocation2 + $0x9a8] sm:$0xff]
    %v5547 = vld [vmem:[#allocation2 + $0x9b0] sm:$0xff]
    %v5548 = vld [vmem:[#allocation2 + $0x9b8] sm:$0xff]
    %v5549 = vld [vmem:[#allocation2 + $0x9c0] sm:$0xff]
    %v5550 = vld [vmem:[#allocation2 + $0x9c8] sm:$0xff]
    %v5551 = vld [vmem:[#allocation2 + $0x9d0] sm:$0xff]
    %v5552 = vld [vmem:[#allocation2 + $0x9d8] sm:$0xff]
    %v5553 = vld [vmem:[#allocation2 + $0x9e0] sm:$0xff]
    %v5554 = vld [vmem:[#allocation2 + $0x9e8] sm:$0xff]
    %v5555 = vld [vmem:[#allocation2 + $0x9f0] sm:$0xff]
    %v5556 = vld [vmem:[#allocation2 + $0x9f8] sm:$0xff]
    %v5557 = vld [vmem:[#allocation2 + $0xa00] sm:$0xff]
    %v5558 = vld [vmem:[#allocation2 + $0xa08] sm:$0xff]
    %v5559 = vld [vmem:[#allocation2 + $0xa10] sm:$0xff]
    %v5560 = vld [vmem:[#allocation2 + $0xa18] sm:$0xff]
    %v5561 = vld [vmem:[#allocation2 + $0xa20] sm:$0xff]
    %v5562 = vld [vmem:[#allocation2 + $0xa28] sm:$0xff]
    %v5563 = vld [vmem:[#allocation2 + $0xa30] sm:$0xff]
    %v5564 = vld [vmem:[#allocation2 + $0xa38] sm:$0xff]
    %v5565 = vld [vmem:[#allocation2 + $0xa40] sm:$0xff]
    %v5566 = vld [vmem:[#allocation2 + $0xa48] sm:$0xff]
    %v5567 = vld [vmem:[#allocation2 + $0xa50] sm:$0xff]
    %v5568 = vld [vmem:[#allocation2 + $0xa58] sm:$0xff]
    %v5569 = vld [vmem:[#allocation2 + $0xa60] sm:$0xff]
    %v5570 = vld [vmem:[#allocation2 + $0xa68] sm:$0xff]
    %v5571 = vld [vmem:[#allocation2 + $0xa70] sm:$0xff]
    %v5572 = vld [vmem:[#allocation2 + $0xa78] sm:$0xff]
    %v5573 = vld [vmem:[#allocation2 + $0xa80] sm:$0xff]
    %v5574 = vld [vmem:[#allocation2 + $0xa88] sm:$0xff]
    %v5575 = vld [vmem:[#allocation2 + $0xa90] sm:$0xff]
    %v5576 = vld [vmem:[#allocation2 + $0xa98] sm:$0xff]
    %v5577 = vld [vmem:[#allocation2 + $0xaa0] sm:$0xff]
    %v5578 = vld [vmem:[#allocation2 + $0xaa8] sm:$0xff]
    %v5579 = vld [vmem:[#allocation2 + $0xab0] sm:$0xff]
    %v5580 = vld [vmem:[#allocation2 + $0xab8] sm:$0xff]
    %v5581 = vld [vmem:[#allocation2 + $0xac0] sm:$0xff]
    %v5582 = vld [vmem:[#allocation2 + $0xac8] sm:$0xff]
    %v5583 = vld [vmem:[#allocation2 + $0xad0] sm:$0xff]
    %v5584 = vld [vmem:[#allocation2 + $0xad8] sm:$0xff]
    %v5585 = vld [vmem:[#allocation2 + $0xae0] sm:$0xff]
    %v5586 = vld [vmem:[#allocation2 + $0xae8] sm:$0xff]
    %v5587 = vld [vmem:[#allocation2 + $0xaf0] sm:$0xff]
    %v5588 = vld [vmem:[#allocation2 + $0xaf8] sm:$0xff]
    %v5589 = vld [vmem:[#allocation2 + $0xb00] sm:$0xff]
    %v5590 = vld [vmem:[#allocation2 + $0xb08] sm:$0xff]
    %v5591 = vld [vmem:[#allocation2 + $0xb10] sm:$0xff]
    %v5592 = vld [vmem:[#allocation2 + $0xb18] sm:$0xff]
    %v5593 = vld [vmem:[#allocation2 + $0xb20] sm:$0xff]
    %v5594 = vld [vmem:[#allocation2 + $0xb28] sm:$0xff]
    %v5595 = vld [vmem:[#allocation2 + $0xb30] sm:$0xff]
    %v5596 = vld [vmem:[#allocation2 + $0xb38] sm:$0xff]
    %v5597 = vld [vmem:[#allocation2 + $0xb40] sm:$0xff]
    %v5598 = vld [vmem:[#allocation2 + $0xb48] sm:$0xff]
    %v5599 = vld [vmem:[#allocation2 + $0xb50] sm:$0xff]
    %v5600 = vld [vmem:[#allocation2 + $0xb58] sm:$0xff]
    %v5601 = vld [vmem:[#allocation2 + $0xb60] sm:$0xff]
    %v5602 = vld [vmem:[#allocation2 + $0xb68] sm:$0xff]
    %v5603 = vld [vmem:[#allocation2 + $0xb70] sm:$0xff]
    %v5604 = vld [vmem:[#allocation2 + $0xb78] sm:$0xff]
    %v5605 = vld [vmem:[#allocation2 + $0xb80] sm:$0xff]
    %v5606 = vld [vmem:[#allocation2 + $0xb88] sm:$0xff]
    %v5607 = vld [vmem:[#allocation2 + $0xb90] sm:$0xff]
    %v5608 = vld [vmem:[#allocation2 + $0xb98] sm:$0xff]
    %v5609 = vld [vmem:[#allocation2 + $0xba0] sm:$0xff]
    %v5610 = vld [vmem:[#allocation2 + $0xba8] sm:$0xff]
    %v5611 = vld [vmem:[#allocation2 + $0xbb0] sm:$0xff]
    %v5612 = vld [vmem:[#allocation2 + $0xbb8] sm:$0xff]
    %v5613 = vld [vmem:[#allocation2 + $0xbc0] sm:$0xff]
    %v5614 = vld [vmem:[#allocation2 + $0xbc8] sm:$0xff]
    %v5615 = vld [vmem:[#allocation2 + $0xbd0] sm:$0xff]
    %v5616 = vld [vmem:[#allocation2 + $0xbd8] sm:$0xff]
    %v5617 = vld [vmem:[#allocation2 + $0xbe0] sm:$0xff]
    %v5618 = vld [vmem:[#allocation2 + $0xbe8] sm:$0xff]
    %v5619 = vld [vmem:[#allocation2 + $0xbf0] sm:$0xff]
    %v5620 = vld [vmem:[#allocation2 + $0xbf8] sm:$0xff]
    %v5621 = vld [vmem:[#allocation2 + $0xc00] sm:$0xff]
    %v5622 = vld [vmem:[#allocation2 + $0xc08] sm:$0xff]
    %v5623 = vld [vmem:[#allocation2 + $0xc10] sm:$0xff]
    %v5624 = vld [vmem:[#allocation2 + $0xc18] sm:$0xff]
    %v5625 = vld [vmem:[#allocation2 + $0xc20] sm:$0xff]
    %v5626 = vld [vmem:[#allocation2 + $0xc28] sm:$0xff]
    %v5627 = vld [vmem:[#allocation2 + $0xc30] sm:$0xff]
    %v5628 = vld [vmem:[#allocation2 + $0xc38] sm:$0xff]
    %v5629 = vld [vmem:[#allocation2 + $0xc40] sm:$0xff]
    %v5630 = vld [vmem:[#allocation2 + $0xc48] sm:$0xff]
    %v5631 = vld [vmem:[#allocation2 + $0xc50] sm:$0xff]
    %v5632 = vld [vmem:[#allocation2 + $0xc58] sm:$0xff]
    %v5633 = vld [vmem:[#allocation2 + $0xc60] sm:$0xff]
    %v5634 = vld [vmem:[#allocation2 + $0xc68] sm:$0xff]
    %v5635 = vld [vmem:[#allocation2 + $0xc70] sm:$0xff]
    %v5636 = vld [vmem:[#allocation2 + $0xc78] sm:$0xff]
    %v5637 = vld [vmem:[#allocation2 + $0xc80] sm:$0xff]
    %v5638 = vld [vmem:[#allocation2 + $0xc88] sm:$0xff]
    %v5639 = vld [vmem:[#allocation2 + $0xc90] sm:$0xff]
    %v5640 = vld [vmem:[#allocation2 + $0xc98] sm:$0xff]
    %v5641 = vld [vmem:[#allocation2 + $0xca0] sm:$0xff]
    %v5642 = vld [vmem:[#allocation2 + $0xca8] sm:$0xff]
    %v5643 = vld [vmem:[#allocation2 + $0xcb0] sm:$0xff]
    %v5644 = vld [vmem:[#allocation2 + $0xcb8] sm:$0xff]
    %v5645 = vld [vmem:[#allocation2 + $0xcc0] sm:$0xff]
    %v5646 = vld [vmem:[#allocation2 + $0xcc8] sm:$0xff]
    %v5647 = vld [vmem:[#allocation2 + $0xcd0] sm:$0xff]
    %v5648 = vld [vmem:[#allocation2 + $0xcd8] sm:$0xff]
    %v5649 = vld [vmem:[#allocation2 + $0xce0] sm:$0xff]
    %v5650 = vld [vmem:[#allocation2 + $0xce8] sm:$0xff]
    %v5651 = vld [vmem:[#allocation2 + $0xcf0] sm:$0xff]
    %v5652 = vld [vmem:[#allocation2 + $0xcf8] sm:$0xff]
    %v5653 = vld [vmem:[#allocation2 + $0xd00] sm:$0xff]
    %v5654 = vld [vmem:[#allocation2 + $0xd08] sm:$0xff]
    %v5655 = vld [vmem:[#allocation2 + $0xd10] sm:$0xff]
    %v5656 = vld [vmem:[#allocation2 + $0xd18] sm:$0xff]
    %v5657 = vld [vmem:[#allocation2 + $0xd20] sm:$0xff]
    %v5658 = vld [vmem:[#allocation2 + $0xd28] sm:$0xff]
    %v5659 = vld [vmem:[#allocation2 + $0xd30] sm:$0xff]
    %v5660 = vld [vmem:[#allocation2 + $0xd38] sm:$0xff]
    %v5661 = vld [vmem:[#allocation2 + $0xd40] sm:$0xff]
    %v5662 = vld [vmem:[#allocation2 + $0xd48] sm:$0xff]
    %v5663 = vld [vmem:[#allocation2 + $0xd50] sm:$0xff]
    %v5664 = vld [vmem:[#allocation2 + $0xd58] sm:$0xff]
    %v5665 = vld [vmem:[#allocation2 + $0xd60] sm:$0xff]
    %v5666 = vld [vmem:[#allocation2 + $0xd68] sm:$0xff]
    %v5667 = vld [vmem:[#allocation2 + $0xd70] sm:$0xff]
    %v5668 = vld [vmem:[#allocation2 + $0xd78] sm:$0xff]
    %v5669 = vld [vmem:[#allocation2 + $0xd80] sm:$0xff]
    %v5670 = vld [vmem:[#allocation2 + $0xd88] sm:$0xff]
    %v5671 = vld [vmem:[#allocation2 + $0xd90] sm:$0xff]
    %v5672 = vld [vmem:[#allocation2 + $0xd98] sm:$0xff]
    %v5673 = vld [vmem:[#allocation2 + $0xda0] sm:$0xff]
    %v5674 = vld [vmem:[#allocation2 + $0xda8] sm:$0xff]
    %v5675 = vld [vmem:[#allocation2 + $0xdb0] sm:$0xff]
    %v5676 = vld [vmem:[#allocation2 + $0xdb8] sm:$0xff]
    %v5677 = vld [vmem:[#allocation2 + $0xdc0] sm:$0xff]
    %v5678 = vld [vmem:[#allocation2 + $0xdc8] sm:$0xff]
    %v5679 = vld [vmem:[#allocation2 + $0xdd0] sm:$0xff]
    %v5680 = vld [vmem:[#allocation2 + $0xdd8] sm:$0xff]
    %v5681 = vld [vmem:[#allocation2 + $0xde0] sm:$0xff]
    %v5682 = vld [vmem:[#allocation2 + $0xde8] sm:$0xff]
    %v5683 = vld [vmem:[#allocation2 + $0xdf0] sm:$0xff]
    %v5684 = vld [vmem:[#allocation2 + $0xdf8] sm:$0xff]
    %v5685 = vld [vmem:[#allocation2 + $0xe00] sm:$0xff]
    %v5686 = vld [vmem:[#allocation2 + $0xe08] sm:$0xff]
    %v5687 = vld [vmem:[#allocation2 + $0xe10] sm:$0xff]
    %v5688 = vld [vmem:[#allocation2 + $0xe18] sm:$0xff]
    %v5689 = vld [vmem:[#allocation2 + $0xe20] sm:$0xff]
    %v5690 = vld [vmem:[#allocation2 + $0xe28] sm:$0xff]
    %v5691 = vld [vmem:[#allocation2 + $0xe30] sm:$0xff]
    %v5692 = vld [vmem:[#allocation2 + $0xe38] sm:$0xff]
    %v5693 = vld [vmem:[#allocation2 + $0xe40] sm:$0xff]
    %v5694 = vld [vmem:[#allocation2 + $0xe48] sm:$0xff]
    %v5695 = vld [vmem:[#allocation2 + $0xe50] sm:$0xff]
    %v5696 = vld [vmem:[#allocation2 + $0xe58] sm:$0xff]
    %v5697 = vld [vmem:[#allocation2 + $0xe60] sm:$0xff]
    %v5698 = vld [vmem:[#allocation2 + $0xe68] sm:$0xff]
    %v5699 = vld [vmem:[#allocation2 + $0xe70] sm:$0xff]
    %v5700 = vld [vmem:[#allocation2 + $0xe78] sm:$0xff]
    %v5701 = vld [vmem:[#allocation2 + $0xe80] sm:$0xff]
    %v5702 = vld [vmem:[#allocation2 + $0xe88] sm:$0xff]
    %v5703 = vld [vmem:[#allocation2 + $0xe90] sm:$0xff]
    %v5704 = vld [vmem:[#allocation2 + $0xe98] sm:$0xff]
    %v5705 = vld [vmem:[#allocation2 + $0xea0] sm:$0xff]
    %v5706 = vld [vmem:[#allocation2 + $0xea8] sm:$0xff]
    %v5707 = vld [vmem:[#allocation2 + $0xeb0] sm:$0xff]
    %v5708 = vld [vmem:[#allocation2 + $0xeb8] sm:$0xff]
    %v5709 = vld [vmem:[#allocation2 + $0xec0] sm:$0xff]
    %v5710 = vld [vmem:[#allocation2 + $0xec8] sm:$0xff]
    %v5711 = vld [vmem:[#allocation2 + $0xed0] sm:$0xff]
    %v5712 = vld [vmem:[#allocation2 + $0xed8] sm:$0xff]
    %v5713 = vld [vmem:[#allocation2 + $0xee0] sm:$0xff]
    %v5714 = vld [vmem:[#allocation2 + $0xee8] sm:$0xff]
    %v5715 = vld [vmem:[#allocation2 + $0xef0] sm:$0xff]
    %v5716 = vld [vmem:[#allocation2 + $0xef8] sm:$0xff]
    %v5717 = vld [vmem:[#allocation2 + $0xf00] sm:$0xff]
    %v5718 = vld [vmem:[#allocation2 + $0xf08] sm:$0xff]
    %v5719 = vld [vmem:[#allocation2 + $0xf10] sm:$0xff]
    %v5720 = vld [vmem:[#allocation2 + $0xf18] sm:$0xff]
    %v5721 = vld [vmem:[#allocation2 + $0xf20] sm:$0xff]
    %v5722 = vld [vmem:[#allocation2 + $0xf28] sm:$0xff]
    %v5723 = vld [vmem:[#allocation2 + $0xf30] sm:$0xff]
    %v5724 = vld [vmem:[#allocation2 + $0xf38] sm:$0xff]
    %v5725 = vld [vmem:[#allocation2 + $0xf40] sm:$0xff]
    %v5726 = vld [vmem:[#allocation2 + $0xf48] sm:$0xff]
    %v5727 = vld [vmem:[#allocation2 + $0xf50] sm:$0xff]
    %v5728 = vld [vmem:[#allocation2 + $0xf58] sm:$0xff]
    %v5729 = vld [vmem:[#allocation2 + $0xf60] sm:$0xff]
    %v5730 = vld [vmem:[#allocation2 + $0xf68] sm:$0xff]
    %v5731 = vld [vmem:[#allocation2 + $0xf70] sm:$0xff]
    %v5732 = vld [vmem:[#allocation2 + $0xf78] sm:$0xff]
    %v5733 = vld [vmem:[#allocation2 + $0xf80] sm:$0xff]
    %v5734 = vld [vmem:[#allocation2 + $0xf88] sm:$0xff]
    %v5735 = vld [vmem:[#allocation2 + $0xf90] sm:$0xff]
    %v5736 = vld [vmem:[#allocation2 + $0xf98] sm:$0xff]
    %v5737 = vld [vmem:[#allocation2 + $0xfa0] sm:$0xff]
    %v5738 = vld [vmem:[#allocation2 + $0xfa8] sm:$0xff]
    %v5739 = vld [vmem:[#allocation2 + $0xfb0] sm:$0xff]
    %v5740 = vld [vmem:[#allocation2 + $0xfb8] sm:$0xff]
    %v5741 = vld [vmem:[#allocation2 + $0xfc0] sm:$0xff]
    %v5742 = vld [vmem:[#allocation2 + $0xfc8] sm:$0xff]
    %v5743 = vld [vmem:[#allocation2 + $0xfd0] sm:$0xff]
    %v5744 = vld [vmem:[#allocation2 + $0xfd8] sm:$0xff]
    %v5745 = vld [vmem:[#allocation2 + $0xfe0] sm:$0xff]
    %v5746 = vld [vmem:[#allocation2 + $0xfe8] sm:$0xff]
    %v5747 = vld [vmem:[#allocation2 + $0xff0] sm:$0xff]
    %v5748 = vld [vmem:[#allocation2 + $0xff8] sm:$0xff]
    %v5749 = vld [vmem:[#allocation2 + $0x1000] sm:$0xff]
    %v5750 = vld [vmem:[#allocation2 + $0x1008] sm:$0xff]
    %v5751 = vld [vmem:[#allocation2 + $0x1010] sm:$0xff]
    %v5752 = vld [vmem:[#allocation2 + $0x1018] sm:$0xff]
    %v5753 = vld [vmem:[#allocation2 + $0x1020] sm:$0xff]
    %v5754 = vld [vmem:[#allocation2 + $0x1028] sm:$0xff]
    %v5755 = vld [vmem:[#allocation2 + $0x1030] sm:$0xff]
    %v5756 = vld [vmem:[#allocation2 + $0x1038] sm:$0xff]
    %v5757 = vld [vmem:[#allocation2 + $0x1040] sm:$0xff]
    %v5758 = vld [vmem:[#allocation2 + $0x1048] sm:$0xff]
    %v5759 = vld [vmem:[#allocation2 + $0x1050] sm:$0xff]
    %v5760 = vld [vmem:[#allocation2 + $0x1058] sm:$0xff]
    %v5761 = vld [vmem:[#allocation2 + $0x1060] sm:$0xff]
    %v5762 = vld [vmem:[#allocation2 + $0x1068] sm:$0xff]
    %v5763 = vld [vmem:[#allocation2 + $0x1070] sm:$0xff]
    %v5764 = vld [vmem:[#allocation2 + $0x1078] sm:$0xff]
    %v5765 = vld [vmem:[#allocation2 + $0x1080] sm:$0xff]
    %v5766 = vld [vmem:[#allocation2 + $0x1088] sm:$0xff]
    %v5767 = vld [vmem:[#allocation2 + $0x1090] sm:$0xff]
    %v5768 = vld [vmem:[#allocation2 + $0x1098] sm:$0xff]
    %v5769 = vld [vmem:[#allocation2 + $0x10a0] sm:$0xff]
    %v5770 = vld [vmem:[#allocation2 + $0x10a8] sm:$0xff]
    %v5771 = vld [vmem:[#allocation2 + $0x10b0] sm:$0xff]
    %v5772 = vld [vmem:[#allocation2 + $0x10b8] sm:$0xff]
    %v5773 = vld [vmem:[#allocation2 + $0x10c0] sm:$0xff]
    %v5774 = vld [vmem:[#allocation2 + $0x10c8] sm:$0xff]
    %v5775 = vld [vmem:[#allocation2 + $0x10d0] sm:$0xff]
    %v5776 = vld [vmem:[#allocation2 + $0x10d8] sm:$0xff]
    %v5777 = vld [vmem:[#allocation2 + $0x10e0] sm:$0xff]
    %v5778 = vld [vmem:[#allocation2 + $0x10e8] sm:$0xff]
    %v5779 = vld [vmem:[#allocation2 + $0x10f0] sm:$0xff]
    %v5780 = vld [vmem:[#allocation2 + $0x10f8] sm:$0xff]
    %v5781 = vld [vmem:[#allocation2 + $0x1100] sm:$0xff]
    %v5782 = vld [vmem:[#allocation2 + $0x1108] sm:$0xff]
    %v5783 = vld [vmem:[#allocation2 + $0x1110] sm:$0xff]
    %v5784 = vld [vmem:[#allocation2 + $0x1118] sm:$0xff]
    %v5785 = vld [vmem:[#allocation2 + $0x1120] sm:$0xff]
    %v5786 = vld [vmem:[#allocation2 + $0x1128] sm:$0xff]
    %v5787 = vld [vmem:[#allocation2 + $0x1130] sm:$0xff]
    %v5788 = vld [vmem:[#allocation2 + $0x1138] sm:$0xff]
    %v5789 = vld [vmem:[#allocation2 + $0x1140] sm:$0xff]
    %v5790 = vld [vmem:[#allocation2 + $0x1148] sm:$0xff]
    %v5791 = vld [vmem:[#allocation2 + $0x1150] sm:$0xff]
    %v5792 = vld [vmem:[#allocation2 + $0x1158] sm:$0xff]
    %v5793 = vld [vmem:[#allocation2 + $0x1160] sm:$0xff]
    %v5794 = vld [vmem:[#allocation2 + $0x1168] sm:$0xff]
    %v5795 = vld [vmem:[#allocation2 + $0x1170] sm:$0xff]
    %v5796 = vld [vmem:[#allocation2 + $0x1178] sm:$0xff]
    %v5797 = vld [vmem:[#allocation2 + $0x1180] sm:$0xff]
    %v5798 = vld [vmem:[#allocation2 + $0x1188] sm:$0xff]
    %v5799 = vld [vmem:[#allocation2 + $0x1190] sm:$0xff]
    %v5800 = vld [vmem:[#allocation2 + $0x1198] sm:$0xff]
    %v5801 = vld [vmem:[#allocation2 + $0x11a0] sm:$0xff]
    %v5802 = vld [vmem:[#allocation2 + $0x11a8] sm:$0xff]
    %v5803 = vld [vmem:[#allocation2 + $0x11b0] sm:$0xff]
    %v5804 = vld [vmem:[#allocation2 + $0x11b8] sm:$0xff]
    %v5805 = vld [vmem:[#allocation2 + $0x11c0] sm:$0xff]
    %v5806 = vld [vmem:[#allocation2 + $0x11c8] sm:$0xff]
    %v5807 = vld [vmem:[#allocation2 + $0x11d0] sm:$0xff]
    %v5808 = vld [vmem:[#allocation2 + $0x11d8] sm:$0xff]
    %v5809 = vld [vmem:[#allocation2 + $0x11e0] sm:$0xff]
    %v5810 = vld [vmem:[#allocation2 + $0x11e8] sm:$0xff]
    %v5811 = vld [vmem:[#allocation2 + $0x11f0] sm:$0xff]
    %v5812 = vld [vmem:[#allocation2 + $0x11f8] sm:$0xff]
    %v5813 = vld [vmem:[#allocation2 + $0x1200] sm:$0xff]
    %v5814 = vld [vmem:[#allocation2 + $0x1208] sm:$0xff]
    %v5815 = vld [vmem:[#allocation2 + $0x1210] sm:$0xff]
    %v5816 = vld [vmem:[#allocation2 + $0x1218] sm:$0xff]
    %v5817 = vld [vmem:[#allocation2 + $0x1220] sm:$0xff]
    %v5818 = vld [vmem:[#allocation2 + $0x1228] sm:$0xff]
    %v5819 = vld [vmem:[#allocation2 + $0x1230] sm:$0xff]
    %v5820 = vld [vmem:[#allocation2 + $0x1238] sm:$0xff]
    %v5821 = vld [vmem:[#allocation2 + $0x1240] sm:$0xff]
    %v5822 = vld [vmem:[#allocation2 + $0x1248] sm:$0xff]
    %v5823 = vld [vmem:[#allocation2 + $0x1250] sm:$0xff]
    %v5824 = vld [vmem:[#allocation2 + $0x1258] sm:$0xff]
    %v5825 = vld [vmem:[#allocation2 + $0x1260] sm:$0xff]
    %v5826 = vld [vmem:[#allocation2 + $0x1268] sm:$0xff]
    %v5827 = vld [vmem:[#allocation2 + $0x1270] sm:$0xff]
    %v5828 = vld [vmem:[#allocation2 + $0x1278] sm:$0xff]
    %v5829 = vld [vmem:[#allocation2 + $0x1280] sm:$0xff]
    %v5830 = vld [vmem:[#allocation2 + $0x1288] sm:$0xff]
    %v5831 = vld [vmem:[#allocation2 + $0x1290] sm:$0xff]
    %v5832 = vld [vmem:[#allocation2 + $0x1298] sm:$0xff]
    %v5833 = vld [vmem:[#allocation2 + $0x12a0] sm:$0xff]
    %v5834 = vld [vmem:[#allocation2 + $0x12a8] sm:$0xff]
    %v5835 = vld [vmem:[#allocation2 + $0x12b0] sm:$0xff]
    %v5836 = vld [vmem:[#allocation2 + $0x12b8] sm:$0xff]
    %v5837 = vld [vmem:[#allocation2 + $0x12c0] sm:$0xff]
    %v5838 = vld [vmem:[#allocation2 + $0x12c8] sm:$0xff]
    %v5839 = vld [vmem:[#allocation2 + $0x12d0] sm:$0xff]
    %v5840 = vld [vmem:[#allocation2 + $0x12d8] sm:$0xff]
    %v5841 = vld [vmem:[#allocation2 + $0x12e0] sm:$0xff]
    %v5842 = vld [vmem:[#allocation2 + $0x12e8] sm:$0xff]
    %v5843 = vld [vmem:[#allocation2 + $0x12f0] sm:$0xff]
    %v5844 = vld [vmem:[#allocation2 + $0x12f8] sm:$0xff]
    %v5845 = vld [vmem:[#allocation2 + $0x1300] sm:$0xff]
    %v5846 = vld [vmem:[#allocation2 + $0x1308] sm:$0xff]
    %v5847 = vld [vmem:[#allocation2 + $0x1310] sm:$0xff]
    %v5848 = vld [vmem:[#allocation2 + $0x1318] sm:$0xff]
    %v5849 = vld [vmem:[#allocation2 + $0x1320] sm:$0xff]
    %v5850 = vld [vmem:[#allocation2 + $0x1328] sm:$0xff]
    %v5851 = vld [vmem:[#allocation2 + $0x1330] sm:$0xff]
    %v5852 = vld [vmem:[#allocation2 + $0x1338] sm:$0xff]
    %v5853 = vld [vmem:[#allocation2 + $0x1340] sm:$0xff]
    %v5854 = vld [vmem:[#allocation2 + $0x1348] sm:$0xff]
    %v5855 = vld [vmem:[#allocation2 + $0x1350] sm:$0xff]
    %v5856 = vld [vmem:[#allocation2 + $0x1358] sm:$0xff]
    %v5857 = vld [vmem:[#allocation2 + $0x1360] sm:$0xff]
    %v5858 = vld [vmem:[#allocation2 + $0x1368] sm:$0xff]
    %v5859 = vld [vmem:[#allocation2 + $0x1370] sm:$0xff]
    %v5860 = vld [vmem:[#allocation2 + $0x1378] sm:$0xff]
    %v5861 = vld [vmem:[#allocation2 + $0x1380] sm:$0xff]
    %v5862 = vld [vmem:[#allocation2 + $0x1388] sm:$0xff]
    %v5863 = vld [vmem:[#allocation2 + $0x1390] sm:$0xff]
    %v5864 = vld [vmem:[#allocation2 + $0x1398] sm:$0xff]
    %v5865 = vld [vmem:[#allocation2 + $0x13a0] sm:$0xff]
    %v5866 = vld [vmem:[#allocation2 + $0x13a8] sm:$0xff]
    %v5867 = vld [vmem:[#allocation2 + $0x13b0] sm:$0xff]
    %v5868 = vld [vmem:[#allocation2 + $0x13b8] sm:$0xff]
    %v5869 = vld [vmem:[#allocation2 + $0x13c0] sm:$0xff]
    %v5870 = vld [vmem:[#allocation2 + $0x13c8] sm:$0xff]
    %v5871 = vld [vmem:[#allocation2 + $0x13d0] sm:$0xff]
    %v5872 = vld [vmem:[#allocation2 + $0x13d8] sm:$0xff]
    %v5873 = vld [vmem:[#allocation2 + $0x13e0] sm:$0xff]
    %v5874 = vld [vmem:[#allocation2 + $0x13e8] sm:$0xff]
    %v5875 = vld [vmem:[#allocation2 + $0x13f0] sm:$0xff]
    %v5876 = vld [vmem:[#allocation2 + $0x13f8] sm:$0xff]
    %v5877 = vld [vmem:[#allocation2 + $0x1400] sm:$0xff]
    %v5878 = vld [vmem:[#allocation2 + $0x1408] sm:$0xff]
    %v5879 = vld [vmem:[#allocation2 + $0x1410] sm:$0xff]
    %v5880 = vld [vmem:[#allocation2 + $0x1418] sm:$0xff]
    %v5881 = vld [vmem:[#allocation2 + $0x1420] sm:$0xff]
    %v5882 = vld [vmem:[#allocation2 + $0x1428] sm:$0xff]
    %v5883 = vld [vmem:[#allocation2 + $0x1430] sm:$0xff]
    %v5884 = vld [vmem:[#allocation2 + $0x1438] sm:$0xff]
    %v5885 = vld [vmem:[#allocation2 + $0x1440] sm:$0xff]
    %v5886 = vld [vmem:[#allocation2 + $0x1448] sm:$0xff]
    %v5887 = vld [vmem:[#allocation2 + $0x1450] sm:$0xff]
    %v5888 = vld [vmem:[#allocation2 + $0x1458] sm:$0xff]
    %v5889 = vld [vmem:[#allocation2 + $0x1460] sm:$0xff]
    %v5890 = vld [vmem:[#allocation2 + $0x1468] sm:$0xff]
    %v5891 = vld [vmem:[#allocation2 + $0x1470] sm:$0xff]
    %v5892 = vld [vmem:[#allocation2 + $0x1478] sm:$0xff]
    %v5893 = vld [vmem:[#allocation2 + $0x1480] sm:$0xff]
    %v5894 = vld [vmem:[#allocation2 + $0x1488] sm:$0xff]
    %v5895 = vld [vmem:[#allocation2 + $0x1490] sm:$0xff]
    %v5896 = vld [vmem:[#allocation2 + $0x1498] sm:$0xff]
    %v5897 = vld [vmem:[#allocation2 + $0x14a0] sm:$0xff]
    %v5898 = vld [vmem:[#allocation2 + $0x14a8] sm:$0xff]
    %v5899 = vld [vmem:[#allocation2 + $0x14b0] sm:$0xff]
    %v5900 = vld [vmem:[#allocation2 + $0x14b8] sm:$0xff]
    %v5901 = vld [vmem:[#allocation2 + $0x14c0] sm:$0xff]
    %v5902 = vld [vmem:[#allocation2 + $0x14c8] sm:$0xff]
    %v5903 = vld [vmem:[#allocation2 + $0x14d0] sm:$0xff]
    %v5904 = vld [vmem:[#allocation2 + $0x14d8] sm:$0xff]
    %v5905 = vld [vmem:[#allocation2 + $0x14e0] sm:$0xff]
    %v5906 = vld [vmem:[#allocation2 + $0x14e8] sm:$0xff]
    %v5907 = vld [vmem:[#allocation2 + $0x14f0] sm:$0xff]
    %v5908 = vld [vmem:[#allocation2 + $0x14f8] sm:$0xff]
    %v5909 = vld [vmem:[#allocation2 + $0x1500] sm:$0xff]
    %v5910 = vld [vmem:[#allocation2 + $0x1508] sm:$0xff]
    %v5911 = vld [vmem:[#allocation2 + $0x1510] sm:$0xff]
    %v5912 = vld [vmem:[#allocation2 + $0x1518] sm:$0xff]
    %v5913 = vld [vmem:[#allocation2 + $0x1520] sm:$0xff]
    %v5914 = vld [vmem:[#allocation2 + $0x1528] sm:$0xff]
    %v5915 = vld [vmem:[#allocation2 + $0x1530] sm:$0xff]
    %v5916 = vld [vmem:[#allocation2 + $0x1538] sm:$0xff]
    %v5917 = vld [vmem:[#allocation2 + $0x1540] sm:$0xff]
    %v5918 = vld [vmem:[#allocation2 + $0x1548] sm:$0xff]
    %v5919 = vld [vmem:[#allocation2 + $0x1550] sm:$0xff]
    %v5920 = vld [vmem:[#allocation2 + $0x1558] sm:$0xff]
    %v5921 = vld [vmem:[#allocation2 + $0x1560] sm:$0xff]
    %v5922 = vld [vmem:[#allocation2 + $0x1568] sm:$0xff]
    %v5923 = vld [vmem:[#allocation2 + $0x1570] sm:$0xff]
    %v5924 = vld [vmem:[#allocation2 + $0x1578] sm:$0xff]
    %v5925 = vld [vmem:[#allocation2 + $0x1580] sm:$0xff]
    %v5926 = vld [vmem:[#allocation2 + $0x1588] sm:$0xff]
    %v5927 = vld [vmem:[#allocation2 + $0x1590] sm:$0xff]
    %v5928 = vld [vmem:[#allocation2 + $0x1598] sm:$0xff]
    %v5929 = vld [vmem:[#allocation2 + $0x15a0] sm:$0xff]
    %v5930 = vld [vmem:[#allocation2 + $0x15a8] sm:$0xff]
    %v5931 = vld [vmem:[#allocation2 + $0x15b0] sm:$0xff]
    %v5932 = vld [vmem:[#allocation2 + $0x15b8] sm:$0xff]
    %v5933 = vld [vmem:[#allocation2 + $0x15c0] sm:$0xff]
    %v5934 = vld [vmem:[#allocation2 + $0x15c8] sm:$0xff]
    %v5935 = vld [vmem:[#allocation2 + $0x15d0] sm:$0xff]
    %v5936 = vld [vmem:[#allocation2 + $0x15d8] sm:$0xff]
    %v5937 = vld [vmem:[#allocation2 + $0x15e0] sm:$0xff]
    %v5938 = vld [vmem:[#allocation2 + $0x15e8] sm:$0xff]
    %v5939 = vld [vmem:[#allocation2 + $0x15f0] sm:$0xff]
    %v5940 = vld [vmem:[#allocation2 + $0x15f8] sm:$0xff]
    %v5941 = vld [vmem:[#allocation2 + $0x1600] sm:$0xff]
    %v5942 = vld [vmem:[#allocation2 + $0x1608] sm:$0xff]
    %v5943 = vld [vmem:[#allocation2 + $0x1610] sm:$0xff]
    %v5944 = vld [vmem:[#allocation2 + $0x1618] sm:$0xff]
    %v5945 = vld [vmem:[#allocation2 + $0x1620] sm:$0xff]
    %v5946 = vld [vmem:[#allocation2 + $0x1628] sm:$0xff]
    %v5947 = vld [vmem:[#allocation2 + $0x1630] sm:$0xff]
    %v5948 = vld [vmem:[#allocation2 + $0x1638] sm:$0xff]
    %v5949 = vld [vmem:[#allocation2 + $0x1640] sm:$0xff]
    %v5950 = vld [vmem:[#allocation2 + $0x1648] sm:$0xff]
    %v5951 = vld [vmem:[#allocation2 + $0x1650] sm:$0xff]
    %v5952 = vld [vmem:[#allocation2 + $0x1658] sm:$0xff]
    %v5953 = vld [vmem:[#allocation2 + $0x1660] sm:$0xff]
    %v5954 = vld [vmem:[#allocation2 + $0x1668] sm:$0xff]
    %v5955 = vld [vmem:[#allocation2 + $0x1670] sm:$0xff]
    %v5956 = vld [vmem:[#allocation2 + $0x1678] sm:$0xff]
    %v5957 = vld [vmem:[#allocation2 + $0x1680] sm:$0xff]
    %v5958 = vld [vmem:[#allocation2 + $0x1688] sm:$0xff]
    %v5959 = vld [vmem:[#allocation2 + $0x1690] sm:$0xff]
    %v5960 = vld [vmem:[#allocation2 + $0x1698] sm:$0xff]
    %v5961 = vld [vmem:[#allocation2 + $0x16a0] sm:$0xff]
    %v5962 = vld [vmem:[#allocation2 + $0x16a8] sm:$0xff]
    %v5963 = vld [vmem:[#allocation2 + $0x16b0] sm:$0xff]
    %v5964 = vld [vmem:[#allocation2 + $0x16b8] sm:$0xff]
    %v5965 = vld [vmem:[#allocation2 + $0x16c0] sm:$0xff]
    %v5966 = vld [vmem:[#allocation2 + $0x16c8] sm:$0xff]
    %v5967 = vld [vmem:[#allocation2 + $0x16d0] sm:$0xff]
    %v5968 = vld [vmem:[#allocation2 + $0x16d8] sm:$0xff]
    %v5969 = vld [vmem:[#allocation2 + $0x16e0] sm:$0xff]
    %v5970 = vld [vmem:[#allocation2 + $0x16e8] sm:$0xff]
    %v5971 = vld [vmem:[#allocation2 + $0x16f0] sm:$0xff]
    %v5972 = vld [vmem:[#allocation2 + $0x16f8] sm:$0xff]
    %v5973 = vld [vmem:[#allocation2 + $0x1700] sm:$0xff]
    %v5974 = vld [vmem:[#allocation2 + $0x1708] sm:$0xff]
    %v5975 = vld [vmem:[#allocation2 + $0x1710] sm:$0xff]
    %v5976 = vld [vmem:[#allocation2 + $0x1718] sm:$0xff]
    %v5977 = vld [vmem:[#allocation2 + $0x1720] sm:$0xff]
    %v5978 = vld [vmem:[#allocation2 + $0x1728] sm:$0xff]
    %v5979 = vld [vmem:[#allocation2 + $0x1730] sm:$0xff]
    %v5980 = vld [vmem:[#allocation2 + $0x1738] sm:$0xff]
    %v5981 = vld [vmem:[#allocation2 + $0x1740] sm:$0xff]
    %v5982 = vld [vmem:[#allocation2 + $0x1748] sm:$0xff]
    %v5983 = vld [vmem:[#allocation2 + $0x1750] sm:$0xff]
    %v5984 = vld [vmem:[#allocation2 + $0x1758] sm:$0xff]
    %v5985 = vld [vmem:[#allocation2 + $0x1760] sm:$0xff]
    %v5986 = vld [vmem:[#allocation2 + $0x1768] sm:$0xff]
    %v5987 = vld [vmem:[#allocation2 + $0x1770] sm:$0xff]
    %v5988 = vld [vmem:[#allocation2 + $0x1778] sm:$0xff]
    %v5989 = vld [vmem:[#allocation2 + $0x1780] sm:$0xff]
    %v5990 = vld [vmem:[#allocation2 + $0x1788] sm:$0xff]
    %v5991 = vld [vmem:[#allocation2 + $0x1790] sm:$0xff]
    %v5992 = vld [vmem:[#allocation2 + $0x1798] sm:$0xff]
    %v5993 = vld [vmem:[#allocation2 + $0x17a0] sm:$0xff]
    %v5994 = vld [vmem:[#allocation2 + $0x17a8] sm:$0xff]
    %v5995 = vld [vmem:[#allocation2 + $0x17b0] sm:$0xff]
    %v5996 = vld [vmem:[#allocation2 + $0x17b8] sm:$0xff]
    %v5997 = vld [vmem:[#allocation2 + $0x17c0] sm:$0xff]
    %v5998 = vld [vmem:[#allocation2 + $0x17c8] sm:$0xff]
    %v5999 = vld [vmem:[#allocation2 + $0x17d0] sm:$0xff]
    %v6000 = vld [vmem:[#allocation2 + $0x17d8] sm:$0xff]
    %v6001 = vld [vmem:[#allocation2 + $0x17e0] sm:$0xff]
    %v6002 = vld [vmem:[#allocation2 + $0x17e8] sm:$0xff]
    %v6003 = vld [vmem:[#allocation2 + $0x17f0] sm:$0xff]
    %v6004 = vld [vmem:[#allocation2 + $0x17f8] sm:$0xff]
    %v6005 = vld [vmem:[#allocation5] sm:$0xff]
    %v6007 = vperm.slane %v6005, 0
    %v6008 = vperm.slane %v6005, 1
    %v6009 = vperm.slane %v6005, 2
    %v6010 = vperm.slane %v6005, 3
    %v6011 = vperm.slane %v6005, 4
    %v6012 = vperm.slane %v6005, 5
    %v6013 = vperm.slane %v6005, 6
    %v6014 = vperm.slane %v6005, 7
    %v6215 = vunpack.c.l.b16 %v5045
    %v6216 = vunpack.c.h.b16 %v5045
    %v6217 = vunpack.c.l.b16 %v5046
    %v6218 = vunpack.c.h.b16 %v5046
    %v6219 = vunpack.c.l.b16 %v5047
    %v6220 = vunpack.c.h.b16 %v5047
    %v6221 = vunpack.c.l.b16 %v5048
    %v6222 = vunpack.c.h.b16 %v5048
    %v6223 = vunpack.c.l.b16 %v5049
    %v6224 = vunpack.c.h.b16 %v5049
    %v6225 = vunpack.c.l.b16 %v5050
    %v6226 = vunpack.c.h.b16 %v5050
    %v6227 = vunpack.c.l.b16 %v5051
    %v6228 = vunpack.c.h.b16 %v5051
    %v6229 = vunpack.c.l.b16 %v5052
    %v6230 = vunpack.c.h.b16 %v5052
    %v6231 = vunpack.c.l.b16 %v5053
    %v6232 = vunpack.c.h.b16 %v5053
    %v6233 = vunpack.c.l.b16 %v5054
    %v6234 = vunpack.c.h.b16 %v5054
    %v6235 = vunpack.c.l.b16 %v5055
    %v6236 = vunpack.c.h.b16 %v5055
    %v6237 = vunpack.c.l.b16 %v5056
    %v6238 = vunpack.c.h.b16 %v5056
    %v6239 = vunpack.c.l.b16 %v5057
    %v6240 = vunpack.c.h.b16 %v5057
    %v6241 = vunpack.c.l.b16 %v5058
    %v6242 = vunpack.c.h.b16 %v5058
    %v6243 = vunpack.c.l.b16 %v5059
    %v6244 = vunpack.c.h.b16 %v5059
    %v6245 = vunpack.c.l.b16 %v5060
    %v6246 = vunpack.c.h.b16 %v5060
    %v6247 = vunpack.c.l.b16 %v5061
    %v6248 = vunpack.c.h.b16 %v5061
    %v6249 = vunpack.c.l.b16 %v5062
    %v6250 = vunpack.c.h.b16 %v5062
    %v6251 = vunpack.c.l.b16 %v5063
    %v6252 = vunpack.c.h.b16 %v5063
    %v6253 = vunpack.c.l.b16 %v5064
    %v6254 = vunpack.c.h.b16 %v5064
    %v6255 = vunpack.c.l.b16 %v5065
    %v6256 = vunpack.c.h.b16 %v5065
    %v6257 = vunpack.c.l.b16 %v5066
    %v6258 = vunpack.c.h.b16 %v5066
    %v6259 = vunpack.c.l.b16 %v5067
    %v6260 = vunpack.c.h.b16 %v5067
    %v6261 = vunpack.c.l.b16 %v5068
    %v6262 = vunpack.c.h.b16 %v5068
    %v6263 = vunpack.c.l.b16 %v5069
    %v6264 = vunpack.c.h.b16 %v5069
    %v6265 = vunpack.c.l.b16 %v5070
    %v6266 = vunpack.c.h.b16 %v5070
    %v6267 = vunpack.c.l.b16 %v5071
    %v6268 = vunpack.c.h.b16 %v5071
    %v6269 = vunpack.c.l.b16 %v5072
    %v6270 = vunpack.c.h.b16 %v5072
    %v6271 = vunpack.c.l.b16 %v5073
    %v6272 = vunpack.c.h.b16 %v5073
    %v6273 = vunpack.c.l.b16 %v5074
    %v6274 = vunpack.c.h.b16 %v5074
    %v6275 = vunpack.c.l.b16 %v5075
    %v6276 = vunpack.c.h.b16 %v5075
    %v6277 = vunpack.c.l.b16 %v5076
    %v6278 = vunpack.c.h.b16 %v5076
    %v6279 = vunpack.c.l.b16 %v5077
    %v6280 = vunpack.c.h.b16 %v5077
    %v6281 = vunpack.c.l.b16 %v5078
    %v6282 = vunpack.c.h.b16 %v5078
    %v6283 = vunpack.c.l.b16 %v5079
    %v6284 = vunpack.c.h.b16 %v5079
    %v6285 = vunpack.c.l.b16 %v5080
    %v6286 = vunpack.c.h.b16 %v5080
    %v6287 = vunpack.c.l.b16 %v5081
    %v6288 = vunpack.c.h.b16 %v5081
    %v6289 = vunpack.c.l.b16 %v5082
    %v6290 = vunpack.c.h.b16 %v5082
    %v6291 = vunpack.c.l.b16 %v5083
    %v6292 = vunpack.c.h.b16 %v5083
    %v6293 = vunpack.c.l.b16 %v5084
    %v6294 = vunpack.c.h.b16 %v5084
    %v6295 = vunpack.c.l.b16 %v5085
    %v6296 = vunpack.c.h.b16 %v5085
    %v6297 = vunpack.c.l.b16 %v5086
    %v6298 = vunpack.c.h.b16 %v5086
    %v6299 = vunpack.c.l.b16 %v5087
    %v6300 = vunpack.c.h.b16 %v5087
    %v6301 = vunpack.c.l.b16 %v5088
    %v6302 = vunpack.c.h.b16 %v5088
    %v6303 = vunpack.c.l.b16 %v5089
    %v6304 = vunpack.c.h.b16 %v5089
    %v6305 = vunpack.c.l.b16 %v5090
    %v6306 = vunpack.c.h.b16 %v5090
    %v6307 = vunpack.c.l.b16 %v5091
    %v6308 = vunpack.c.h.b16 %v5091
    %v6309 = vunpack.c.l.b16 %v5092
    %v6310 = vunpack.c.h.b16 %v5092
    %v6311 = vunpack.c.l.b16 %v5093
    %v6312 = vunpack.c.h.b16 %v5093
    %v6313 = vunpack.c.l.b16 %v5094
    %v6314 = vunpack.c.h.b16 %v5094
    %v6315 = vunpack.c.l.b16 %v5095
    %v6316 = vunpack.c.h.b16 %v5095
    %v6317 = vunpack.c.l.b16 %v5096
    %v6318 = vunpack.c.h.b16 %v5096
    %v6319 = vunpack.c.l.b16 %v5097
    %v6320 = vunpack.c.h.b16 %v5097
    %v6321 = vunpack.c.l.b16 %v5098
    %v6322 = vunpack.c.h.b16 %v5098
    %v6323 = vunpack.c.l.b16 %v5099
    %v6324 = vunpack.c.h.b16 %v5099
    %v6325 = vunpack.c.l.b16 %v5100
    %v6326 = vunpack.c.h.b16 %v5100
    %v6327 = vunpack.c.l.b16 %v5101
    %v6328 = vunpack.c.h.b16 %v5101
    %v6329 = vunpack.c.l.b16 %v5102
    %v6330 = vunpack.c.h.b16 %v5102
    %v6331 = vunpack.c.l.b16 %v5103
    %v6332 = vunpack.c.h.b16 %v5103
    %v6333 = vunpack.c.l.b16 %v5104
    %v6334 = vunpack.c.h.b16 %v5104
    %v6335 = vunpack.c.l.b16 %v5105
    %v6336 = vunpack.c.h.b16 %v5105
    %v6337 = vunpack.c.l.b16 %v5106
    %v6338 = vunpack.c.h.b16 %v5106
    %v6339 = vunpack.c.l.b16 %v5107
    %v6340 = vunpack.c.h.b16 %v5107
    %v6341 = vunpack.c.l.b16 %v5108
    %v6342 = vunpack.c.h.b16 %v5108
    %v6343 = vunpack.c.l.b16 %v5109
    %v6344 = vunpack.c.h.b16 %v5109
    %v6345 = vunpack.c.l.b16 %v5110
    %v6346 = vunpack.c.h.b16 %v5110
    %v6347 = vunpack.c.l.b16 %v5111
    %v6348 = vunpack.c.h.b16 %v5111
    %v6349 = vunpack.c.l.b16 %v5112
    %v6350 = vunpack.c.h.b16 %v5112
    %v6351 = vunpack.c.l.b16 %v5113
    %v6352 = vunpack.c.h.b16 %v5113
    %v6353 = vunpack.c.l.b16 %v5114
    %v6354 = vunpack.c.h.b16 %v5114
    %v6355 = vunpack.c.l.b16 %v5115
    %v6356 = vunpack.c.h.b16 %v5115
    %v6357 = vunpack.c.l.b16 %v5116
    %v6358 = vunpack.c.h.b16 %v5116
    %v6359 = vunpack.c.l.b16 %v5117
    %v6360 = vunpack.c.h.b16 %v5117
    %v6361 = vunpack.c.l.b16 %v5118
    %v6362 = vunpack.c.h.b16 %v5118
    %v6363 = vunpack.c.l.b16 %v5119
    %v6364 = vunpack.c.h.b16 %v5119
    %v6365 = vunpack.c.l.b16 %v5120
    %v6366 = vunpack.c.h.b16 %v5120
    %v6367 = vunpack.c.l.b16 %v5121
    %v6368 = vunpack.c.h.b16 %v5121
    %v6369 = vunpack.c.l.b16 %v5122
    %v6370 = vunpack.c.h.b16 %v5122
    %v6371 = vunpack.c.l.b16 %v5123
    %v6372 = vunpack.c.h.b16 %v5123
    %v6373 = vunpack.c.l.b16 %v5124
    %v6374 = vunpack.c.h.b16 %v5124
    %v6375 = vunpack.c.l.b16 %v5125
    %v6376 = vunpack.c.h.b16 %v5125
    %v6377 = vunpack.c.l.b16 %v5126
    %v6378 = vunpack.c.h.b16 %v5126
    %v6379 = vunpack.c.l.b16 %v5127
    %v6380 = vunpack.c.h.b16 %v5127
    %v6381 = vunpack.c.l.b16 %v5128
    %v6382 = vunpack.c.h.b16 %v5128
    %v6383 = vunpack.c.l.b16 %v5129
    %v6384 = vunpack.c.h.b16 %v5129
    %v6385 = vunpack.c.l.b16 %v5130
    %v6386 = vunpack.c.h.b16 %v5130
    %v6387 = vunpack.c.l.b16 %v5131
    %v6388 = vunpack.c.h.b16 %v5131
    %v6389 = vunpack.c.l.b16 %v5132
    %v6390 = vunpack.c.h.b16 %v5132
    %v6391 = vunpack.c.l.b16 %v5133
    %v6392 = vunpack.c.h.b16 %v5133
    %v6393 = vunpack.c.l.b16 %v5134
    %v6394 = vunpack.c.h.b16 %v5134
    %v6395 = vunpack.c.l.b16 %v5135
    %v6396 = vunpack.c.h.b16 %v5135
    %v6397 = vunpack.c.l.b16 %v5136
    %v6398 = vunpack.c.h.b16 %v5136
    %v6399 = vunpack.c.l.b16 %v5137
    %v6400 = vunpack.c.h.b16 %v5137
    %v6401 = vunpack.c.l.b16 %v5138
    %v6402 = vunpack.c.h.b16 %v5138
    %v6403 = vunpack.c.l.b16 %v5139
    %v6404 = vunpack.c.h.b16 %v5139
    %v6405 = vunpack.c.l.b16 %v5140
    %v6406 = vunpack.c.h.b16 %v5140
    %v6407 = vunpack.c.l.b16 %v5141
    %v6408 = vunpack.c.h.b16 %v5141
    %v6409 = vunpack.c.l.b16 %v5142
    %v6410 = vunpack.c.h.b16 %v5142
    %v6411 = vunpack.c.l.b16 %v5143
    %v6412 = vunpack.c.h.b16 %v5143
    %v6413 = vunpack.c.l.b16 %v5144
    %v6414 = vunpack.c.h.b16 %v5144
    %v6415 = vunpack.c.l.b16 %v5145
    %v6416 = vunpack.c.h.b16 %v5145
    %v6417 = vunpack.c.l.b16 %v5146
    %v6418 = vunpack.c.h.b16 %v5146
    %v6419 = vunpack.c.l.b16 %v5147
    %v6420 = vunpack.c.h.b16 %v5147
    %v6421 = vunpack.c.l.b16 %v5148
    %v6422 = vunpack.c.h.b16 %v5148
    %v6423 = vunpack.c.l.b16 %v5149
    %v6424 = vunpack.c.h.b16 %v5149
    %v6425 = vunpack.c.l.b16 %v5150
    %v6426 = vunpack.c.h.b16 %v5150
    %v6427 = vunpack.c.l.b16 %v5151
    %v6428 = vunpack.c.h.b16 %v5151
    %v6429 = vunpack.c.l.b16 %v5152
    %v6430 = vunpack.c.h.b16 %v5152
    %v6431 = vunpack.c.l.b16 %v5153
    %v6432 = vunpack.c.h.b16 %v5153
    %v6433 = vunpack.c.l.b16 %v5154
    %v6434 = vunpack.c.h.b16 %v5154
    %v6435 = vunpack.c.l.b16 %v5155
    %v6436 = vunpack.c.h.b16 %v5155
    %v6437 = vunpack.c.l.b16 %v5156
    %v6438 = vunpack.c.h.b16 %v5156
    %v6439 = vunpack.c.l.b16 %v5157
    %v6440 = vunpack.c.h.b16 %v5157
    %v6441 = vunpack.c.l.b16 %v5158
    %v6442 = vunpack.c.h.b16 %v5158
    %v6443 = vunpack.c.l.b16 %v5159
    %v6444 = vunpack.c.h.b16 %v5159
    %v6445 = vunpack.c.l.b16 %v5160
    %v6446 = vunpack.c.h.b16 %v5160
    %v6447 = vunpack.c.l.b16 %v5161
    %v6448 = vunpack.c.h.b16 %v5161
    %v6449 = vunpack.c.l.b16 %v5162
    %v6450 = vunpack.c.h.b16 %v5162
    %v6451 = vunpack.c.l.b16 %v5163
    %v6452 = vunpack.c.h.b16 %v5163
    %v6453 = vunpack.c.l.b16 %v5164
    %v6454 = vunpack.c.h.b16 %v5164
    %v6455 = vunpack.c.l.b16 %v5165
    %v6456 = vunpack.c.h.b16 %v5165
    %v6457 = vunpack.c.l.b16 %v5166
    %v6458 = vunpack.c.h.b16 %v5166
    %v6459 = vunpack.c.l.b16 %v5167
    %v6460 = vunpack.c.h.b16 %v5167
    %v6461 = vunpack.c.l.b16 %v5168
    %v6462 = vunpack.c.h.b16 %v5168
    %v6463 = vunpack.c.l.b16 %v5169
    %v6464 = vunpack.c.h.b16 %v5169
    %v6465 = vunpack.c.l.b16 %v5170
    %v6466 = vunpack.c.h.b16 %v5170
    %v6467 = vunpack.c.l.b16 %v5171
    %v6468 = vunpack.c.h.b16 %v5171
    %v6469 = vunpack.c.l.b16 %v5172
    %v6470 = vunpack.c.h.b16 %v5172
    %v6471 = vunpack.c.l.b16 %v5173
    %v6472 = vunpack.c.h.b16 %v5173
    %v6473 = vunpack.c.l.b16 %v5174
    %v6474 = vunpack.c.h.b16 %v5174
    %v6475 = vunpack.c.l.b16 %v5175
    %v6476 = vunpack.c.h.b16 %v5175
    %v6477 = vunpack.c.l.b16 %v5176
    %v6478 = vunpack.c.h.b16 %v5176
    %v6479 = vunpack.c.l.b16 %v5177
    %v6480 = vunpack.c.h.b16 %v5177
    %v6481 = vunpack.c.l.b16 %v5178
    %v6482 = vunpack.c.h.b16 %v5178
    %v6483 = vunpack.c.l.b16 %v5179
    %v6484 = vunpack.c.h.b16 %v5179
    %v6485 = vunpack.c.l.b16 %v5180
    %v6486 = vunpack.c.h.b16 %v5180
    %v6487 = vunpack.c.l.b16 %v5181
    %v6488 = vunpack.c.h.b16 %v5181
    %v6489 = vunpack.c.l.b16 %v5182
    %v6490 = vunpack.c.h.b16 %v5182
    %v6491 = vunpack.c.l.b16 %v5183
    %v6492 = vunpack.c.h.b16 %v5183
    %v6493 = vunpack.c.l.b16 %v5184
    %v6494 = vunpack.c.h.b16 %v5184
    %v6495 = vunpack.c.l.b16 %v5185
    %v6496 = vunpack.c.h.b16 %v5185
    %v6497 = vunpack.c.l.b16 %v5186
    %v6498 = vunpack.c.h.b16 %v5186
    %v6499 = vunpack.c.l.b16 %v5187
    %v6500 = vunpack.c.h.b16 %v5187
    %v6501 = vunpack.c.l.b16 %v5188
    %v6502 = vunpack.c.h.b16 %v5188
    %v6503 = vunpack.c.l.b16 %v5189
    %v6504 = vunpack.c.h.b16 %v5189
    %v6505 = vunpack.c.l.b16 %v5190
    %v6506 = vunpack.c.h.b16 %v5190
    %v6507 = vunpack.c.l.b16 %v5191
    %v6508 = vunpack.c.h.b16 %v5191
    %v6509 = vunpack.c.l.b16 %v5192
    %v6510 = vunpack.c.h.b16 %v5192
    %v6511 = vunpack.c.l.b16 %v5193
    %v6512 = vunpack.c.h.b16 %v5193
    %v6513 = vunpack.c.l.b16 %v5194
    %v6514 = vunpack.c.h.b16 %v5194
    %v6515 = vunpack.c.l.b16 %v5195
    %v6516 = vunpack.c.h.b16 %v5195
    %v6517 = vunpack.c.l.b16 %v5196
    %v6518 = vunpack.c.h.b16 %v5196
    %v6519 = vunpack.c.l.b16 %v5197
    %v6520 = vunpack.c.h.b16 %v5197
    %v6521 = vunpack.c.l.b16 %v5198
    %v6522 = vunpack.c.h.b16 %v5198
    %v6523 = vunpack.c.l.b16 %v5199
    %v6524 = vunpack.c.h.b16 %v5199
    %v6525 = vunpack.c.l.b16 %v5200
    %v6526 = vunpack.c.h.b16 %v5200
    %v6527 = vunpack.c.l.b16 %v5201
    %v6528 = vunpack.c.h.b16 %v5201
    %v6529 = vunpack.c.l.b16 %v5202
    %v6530 = vunpack.c.h.b16 %v5202
    %v6531 = vunpack.c.l.b16 %v5203
    %v6532 = vunpack.c.h.b16 %v5203
    %v6533 = vunpack.c.l.b16 %v5204
    %v6534 = vunpack.c.h.b16 %v5204
    %v6535 = vunpack.c.l.b16 %v5205
    %v6536 = vunpack.c.h.b16 %v5205
    %v6537 = vunpack.c.l.b16 %v5206
    %v6538 = vunpack.c.h.b16 %v5206
    %v6539 = vunpack.c.l.b16 %v5207
    %v6540 = vunpack.c.h.b16 %v5207
    %v6541 = vunpack.c.l.b16 %v5208
    %v6542 = vunpack.c.h.b16 %v5208
    %v6543 = vunpack.c.l.b16 %v5209
    %v6544 = vunpack.c.h.b16 %v5209
    %v6545 = vunpack.c.l.b16 %v5210
    %v6546 = vunpack.c.h.b16 %v5210
    %v6547 = vunpack.c.l.b16 %v5211
    %v6548 = vunpack.c.h.b16 %v5211
    %v6549 = vunpack.c.l.b16 %v5212
    %v6550 = vunpack.c.h.b16 %v5212
    %v6551 = vunpack.c.l.b16 %v5213
    %v6552 = vunpack.c.h.b16 %v5213
    %v6553 = vunpack.c.l.b16 %v5214
    %v6554 = vunpack.c.h.b16 %v5214
    %v6555 = vunpack.c.l.b16 %v5215
    %v6556 = vunpack.c.h.b16 %v5215
    %v6557 = vunpack.c.l.b16 %v5216
    %v6558 = vunpack.c.h.b16 %v5216
    %v6559 = vunpack.c.l.b16 %v5217
    %v6560 = vunpack.c.h.b16 %v5217
    %v6561 = vunpack.c.l.b16 %v5218
    %v6562 = vunpack.c.h.b16 %v5218
    %v6563 = vunpack.c.l.b16 %v5219
    %v6564 = vunpack.c.h.b16 %v5219
    %v6565 = vunpack.c.l.b16 %v5220
    %v6566 = vunpack.c.h.b16 %v5220
    %v6567 = vunpack.c.l.b16 %v5221
    %v6568 = vunpack.c.h.b16 %v5221
    %v6569 = vunpack.c.l.b16 %v5222
    %v6570 = vunpack.c.h.b16 %v5222
    %v6571 = vunpack.c.l.b16 %v5223
    %v6572 = vunpack.c.h.b16 %v5223
    %v6573 = vunpack.c.l.b16 %v5224
    %v6574 = vunpack.c.h.b16 %v5224
    %v6575 = vunpack.c.l.b16 %v5225
    %v6576 = vunpack.c.h.b16 %v5225
    %v6577 = vunpack.c.l.b16 %v5226
    %v6578 = vunpack.c.h.b16 %v5226
    %v6579 = vunpack.c.l.b16 %v5227
    %v6580 = vunpack.c.h.b16 %v5227
    %v6581 = vunpack.c.l.b16 %v5228
    %v6582 = vunpack.c.h.b16 %v5228
    %v6583 = vunpack.c.l.b16 %v5229
    %v6584 = vunpack.c.h.b16 %v5229
    %v6585 = vunpack.c.l.b16 %v5230
    %v6586 = vunpack.c.h.b16 %v5230
    %v6587 = vunpack.c.l.b16 %v5231
    %v6588 = vunpack.c.h.b16 %v5231
    %v6589 = vunpack.c.l.b16 %v5232
    %v6590 = vunpack.c.h.b16 %v5232
    %v6591 = vunpack.c.l.b16 %v5233
    %v6592 = vunpack.c.h.b16 %v5233
    %v6593 = vunpack.c.l.b16 %v5234
    %v6594 = vunpack.c.h.b16 %v5234
    %v6595 = vunpack.c.l.b16 %v5235
    %v6596 = vunpack.c.h.b16 %v5235
    %v6597 = vunpack.c.l.b16 %v5236
    %v6598 = vunpack.c.h.b16 %v5236
    %v6599 = vlaneseq
    %v6600 = vand.u32 %v6599, 127
    %v6601 = vperm.slane %v6215, %v6600
    %v6602 = vadd.s32 %v6600, 4294967288
    %v6603 = vperm.slane %v6216, %v6602
    %vm6604 = vcmask 130112
    %v6605 = vsel %vm6604, %v6603, %v6601
    %v6606 = vadd.s32 %v6600, 4294967280
    %v6607 = vperm.slane %v6217, %v6606
    %vm6608 = vcmask 195712
    %v6609 = vsel %vm6608, %v6607, %v6605
    %v6610 = vadd.s32 %v6600, 4294967272
    %v6611 = vperm.slane %v6218, %v6610
    %vm6612 = vcmask 261312
    %v6613 = vsel %vm6612, %v6611, %v6609
    %v6614 = vadd.s32 %v6600, 4294967264
    %v6615 = vperm.slane %v6219, %v6614
    %vm6616 = vcmask 326912
    %v6617 = vsel %vm6616, %v6615, %v6613
    %v6618 = vadd.s32 %v6600, 4294967256
    %v6619 = vperm.slane %v6220, %v6618
    %vm6620 = vcmask 392512
    %v6621 = vsel %vm6620, %v6619, %v6617
    %v6622 = vadd.s32 %v6600, 4294967248
    %v6623 = vperm.slane %v6221, %v6622
    %vm6624 = vcmask 458112
    %v6625 = vsel %vm6624, %v6623, %v6621
    %v6626 = vadd.s32 %v6600, 4294967240
    %v6627 = vperm.slane %v6222, %v6626
    %vm6628 = vcmask 523712
    %v6629 = vsel %vm6628, %v6627, %v6625
    %v6630 = vadd.s32 %v6600, 4294967232
    %v6631 = vperm.slane %v6223, %v6630
    %vm6632 = vcmask 589312
    %v6633 = vsel %vm6632, %v6631, %v6629
    %v6634 = vadd.s32 %v6600, 4294967224
    %v6635 = vperm.slane %v6224, %v6634
    %vm6636 = vcmask 654912
    %v6637 = vsel %vm6636, %v6635, %v6633
    %v6638 = vadd.s32 %v6600, 4294967216
    %v6639 = vperm.slane %v6225, %v6638
    %vm6640 = vcmask 720512
    %v6641 = vsel %vm6640, %v6639, %v6637
    %v6642 = vadd.s32 %v6600, 4294967208
    %v6643 = vperm.slane %v6226, %v6642
    %vm6644 = vcmask 786112
    %v6645 = vsel %vm6644, %v6643, %v6641
    %v6646 = vadd.s32 %v6600, 4294967200
    %v6647 = vperm.slane %v6227, %v6646
    %vm6648 = vcmask 851712
    %v6649 = vsel %vm6648, %v6647, %v6645
    %v6650 = vadd.s32 %v6600, 4294967192
    %v6651 = vperm.slane %v6228, %v6650
    %vm6652 = vcmask 917312
    %v6653 = vsel %vm6652, %v6651, %v6649
    %v6654 = vadd.s32 %v6600, 4294967184
    %v6655 = vperm.slane %v6229, %v6654
    %vm6656 = vcmask 982912
    %v6657 = vsel %vm6656, %v6655, %v6653
    %v6658 = vadd.s32 %v6600, 4294967176
    %v6659 = vperm.slane %v6230, %v6658
    %vm6660 = vcmask 1048512
    %v6661 = vsel %vm6660, %v6659, %v6657
    %v6662 = vperm.slane %v6231, %v6600
    %v6663 = vperm.slane %v6232, %v6602
    %v6664 = vsel %vm6604, %v6663, %v6662
    %v6665 = vperm.slane %v6233, %v6606
    %v6666 = vsel %vm6608, %v6665, %v6664
    %v6667 = vperm.slane %v6234, %v6610
    %v6668 = vsel %vm6612, %v6667, %v6666
    %v6669 = vperm.slane %v6235, %v6614
    %v6670 = vsel %vm6616, %v6669, %v6668
    %v6671 = vperm.slane %v6236, %v6618
    %v6672 = vsel %vm6620, %v6671, %v6670
    %v6673 = vperm.slane %v6237, %v6622
    %v6674 = vsel %vm6624, %v6673, %v6672
    %v6675 = vperm.slane %v6238, %v6626
    %v6676 = vsel %vm6628, %v6675, %v6674
    %v6677 = vperm.slane %v6239, %v6630
    %v6678 = vsel %vm6632, %v6677, %v6676
    %v6679 = vperm.slane %v6240, %v6634
    %v6680 = vsel %vm6636, %v6679, %v6678
    %v6681 = vperm.slane %v6241, %v6638
    %v6682 = vsel %vm6640, %v6681, %v6680
    %v6683 = vperm.slane %v6242, %v6642
    %v6684 = vsel %vm6644, %v6683, %v6682
    %v6685 = vperm.slane %v6243, %v6646
    %v6686 = vsel %vm6648, %v6685, %v6684
    %v6687 = vperm.slane %v6244, %v6650
    %v6688 = vsel %vm6652, %v6687, %v6686
    %v6689 = vperm.slane %v6245, %v6654
    %v6690 = vsel %vm6656, %v6689, %v6688
    %v6691 = vperm.slane %v6246, %v6658
    %v6692 = vsel %vm6660, %v6691, %v6690
    %v6693 = vperm.slane %v6247, %v6600
    %v6694 = vperm.slane %v6248, %v6602
    %v6695 = vsel %vm6604, %v6694, %v6693
    %v6696 = vperm.slane %v6249, %v6606
    %v6697 = vsel %vm6608, %v6696, %v6695
    %v6698 = vperm.slane %v6250, %v6610
    %v6699 = vsel %vm6612, %v6698, %v6697
    %v6700 = vperm.slane %v6251, %v6614
    %v6701 = vsel %vm6616, %v6700, %v6699
    %v6702 = vperm.slane %v6252, %v6618
    %v6703 = vsel %vm6620, %v6702, %v6701
    %v6704 = vperm.slane %v6253, %v6622
    %v6705 = vsel %vm6624, %v6704, %v6703
    %v6706 = vperm.slane %v6254, %v6626
    %v6707 = vsel %vm6628, %v6706, %v6705
    %v6708 = vperm.slane %v6255, %v6630
    %v6709 = vsel %vm6632, %v6708, %v6707
    %v6710 = vperm.slane %v6256, %v6634
    %v6711 = vsel %vm6636, %v6710, %v6709
    %v6712 = vperm.slane %v6257, %v6638
    %v6713 = vsel %vm6640, %v6712, %v6711
    %v6714 = vperm.slane %v6258, %v6642
    %v6715 = vsel %vm6644, %v6714, %v6713
    %v6716 = vperm.slane %v6259, %v6646
    %v6717 = vsel %vm6648, %v6716, %v6715
    %v6718 = vperm.slane %v6260, %v6650
    %v6719 = vsel %vm6652, %v6718, %v6717
    %v6720 = vperm.slane %v6261, %v6654
    %v6721 = vsel %vm6656, %v6720, %v6719
    %v6722 = vperm.slane %v6262, %v6658
    %v6723 = vsel %vm6660, %v6722, %v6721
    %v6724 = vperm.slane %v6263, %v6600
    %v6725 = vperm.slane %v6264, %v6602
    %v6726 = vsel %vm6604, %v6725, %v6724
    %v6727 = vperm.slane %v6265, %v6606
    %v6728 = vsel %vm6608, %v6727, %v6726
    %v6729 = vperm.slane %v6266, %v6610
    %v6730 = vsel %vm6612, %v6729, %v6728
    %v6731 = vperm.slane %v6267, %v6614
    %v6732 = vsel %vm6616, %v6731, %v6730
    %v6733 = vperm.slane %v6268, %v6618
    %v6734 = vsel %vm6620, %v6733, %v6732
    %v6735 = vperm.slane %v6269, %v6622
    %v6736 = vsel %vm6624, %v6735, %v6734
    %v6737 = vperm.slane %v6270, %v6626
    %v6738 = vsel %vm6628, %v6737, %v6736
    %v6739 = vperm.slane %v6271, %v6630
    %v6740 = vsel %vm6632, %v6739, %v6738
    %v6741 = vperm.slane %v6272, %v6634
    %v6742 = vsel %vm6636, %v6741, %v6740
    %v6743 = vperm.slane %v6273, %v6638
    %v6744 = vsel %vm6640, %v6743, %v6742
    %v6745 = vperm.slane %v6274, %v6642
    %v6746 = vsel %vm6644, %v6745, %v6744
    %v6747 = vperm.slane %v6275, %v6646
    %v6748 = vsel %vm6648, %v6747, %v6746
    %v6749 = vperm.slane %v6276, %v6650
    %v6750 = vsel %vm6652, %v6749, %v6748
    %v6751 = vperm.slane %v6277, %v6654
    %v6752 = vsel %vm6656, %v6751, %v6750
    %v6753 = vperm.slane %v6278, %v6658
    %v6754 = vsel %vm6660, %v6753, %v6752
    %v6755 = vperm.slane %v6279, %v6600
    %v6756 = vperm.slane %v6280, %v6602
    %v6757 = vsel %vm6604, %v6756, %v6755
    %v6758 = vperm.slane %v6281, %v6606
    %v6759 = vsel %vm6608, %v6758, %v6757
    %v6760 = vperm.slane %v6282, %v6610
    %v6761 = vsel %vm6612, %v6760, %v6759
    %v6762 = vperm.slane %v6283, %v6614
    %v6763 = vsel %vm6616, %v6762, %v6761
    %v6764 = vperm.slane %v6284, %v6618
    %v6765 = vsel %vm6620, %v6764, %v6763
    %v6766 = vperm.slane %v6285, %v6622
    %v6767 = vsel %vm6624, %v6766, %v6765
    %v6768 = vperm.slane %v6286, %v6626
    %v6769 = vsel %vm6628, %v6768, %v6767
    %v6770 = vperm.slane %v6287, %v6630
    %v6771 = vsel %vm6632, %v6770, %v6769
    %v6772 = vperm.slane %v6288, %v6634
    %v6773 = vsel %vm6636, %v6772, %v6771
    %v6774 = vperm.slane %v6289, %v6638
    %v6775 = vsel %vm6640, %v6774, %v6773
    %v6776 = vperm.slane %v6290, %v6642
    %v6777 = vsel %vm6644, %v6776, %v6775
    %v6778 = vperm.slane %v6291, %v6646
    %v6779 = vsel %vm6648, %v6778, %v6777
    %v6780 = vperm.slane %v6292, %v6650
    %v6781 = vsel %vm6652, %v6780, %v6779
    %v6782 = vperm.slane %v6293, %v6654
    %v6783 = vsel %vm6656, %v6782, %v6781
    %v6784 = vperm.slane %v6294, %v6658
    %v6785 = vsel %vm6660, %v6784, %v6783
    %v6786 = vperm.slane %v6295, %v6600
    %v6787 = vperm.slane %v6296, %v6602
    %v6788 = vsel %vm6604, %v6787, %v6786
    %v6789 = vperm.slane %v6297, %v6606
    %v6790 = vsel %vm6608, %v6789, %v6788
    %v6791 = vperm.slane %v6298, %v6610
    %v6792 = vsel %vm6612, %v6791, %v6790
    %v6793 = vperm.slane %v6299, %v6614
    %v6794 = vsel %vm6616, %v6793, %v6792
    %v6795 = vperm.slane %v6300, %v6618
    %v6796 = vsel %vm6620, %v6795, %v6794
    %v6797 = vperm.slane %v6301, %v6622
    %v6798 = vsel %vm6624, %v6797, %v6796
    %v6799 = vperm.slane %v6302, %v6626
    %v6800 = vsel %vm6628, %v6799, %v6798
    %v6801 = vperm.slane %v6303, %v6630
    %v6802 = vsel %vm6632, %v6801, %v6800
    %v6803 = vperm.slane %v6304, %v6634
    %v6804 = vsel %vm6636, %v6803, %v6802
    %v6805 = vperm.slane %v6305, %v6638
    %v6806 = vsel %vm6640, %v6805, %v6804
    %v6807 = vperm.slane %v6306, %v6642
    %v6808 = vsel %vm6644, %v6807, %v6806
    %v6809 = vperm.slane %v6307, %v6646
    %v6810 = vsel %vm6648, %v6809, %v6808
    %v6811 = vperm.slane %v6308, %v6650
    %v6812 = vsel %vm6652, %v6811, %v6810
    %v6813 = vperm.slane %v6309, %v6654
    %v6814 = vsel %vm6656, %v6813, %v6812
    %v6815 = vperm.slane %v6310, %v6658
    %v6816 = vsel %vm6660, %v6815, %v6814
    %v6817 = vperm.slane %v6311, %v6600
    %v6818 = vperm.slane %v6312, %v6602
    %v6819 = vsel %vm6604, %v6818, %v6817
    %v6820 = vperm.slane %v6313, %v6606
    %v6821 = vsel %vm6608, %v6820, %v6819
    %v6822 = vperm.slane %v6314, %v6610
    %v6823 = vsel %vm6612, %v6822, %v6821
    %v6824 = vperm.slane %v6315, %v6614
    %v6825 = vsel %vm6616, %v6824, %v6823
    %v6826 = vperm.slane %v6316, %v6618
    %v6827 = vsel %vm6620, %v6826, %v6825
    %v6828 = vperm.slane %v6317, %v6622
    %v6829 = vsel %vm6624, %v6828, %v6827
    %v6830 = vperm.slane %v6318, %v6626
    %v6831 = vsel %vm6628, %v6830, %v6829
    %v6832 = vperm.slane %v6319, %v6630
    %v6833 = vsel %vm6632, %v6832, %v6831
    %v6834 = vperm.slane %v6320, %v6634
    %v6835 = vsel %vm6636, %v6834, %v6833
    %v6836 = vperm.slane %v6321, %v6638
    %v6837 = vsel %vm6640, %v6836, %v6835
    %v6838 = vperm.slane %v6322, %v6642
    %v6839 = vsel %vm6644, %v6838, %v6837
    %v6840 = vperm.slane %v6323, %v6646
    %v6841 = vsel %vm6648, %v6840, %v6839
    %v6842 = vperm.slane %v6324, %v6650
    %v6843 = vsel %vm6652, %v6842, %v6841
    %v6844 = vperm.slane %v6325, %v6654
    %v6845 = vsel %vm6656, %v6844, %v6843
    %v6846 = vperm.slane %v6326, %v6658
    %v6847 = vsel %vm6660, %v6846, %v6845
    %v6848 = vperm.slane %v6327, %v6600
    %v6849 = vperm.slane %v6328, %v6602
    %v6850 = vsel %vm6604, %v6849, %v6848
    %v6851 = vperm.slane %v6329, %v6606
    %v6852 = vsel %vm6608, %v6851, %v6850
    %v6853 = vperm.slane %v6330, %v6610
    %v6854 = vsel %vm6612, %v6853, %v6852
    %v6855 = vperm.slane %v6331, %v6614
    %v6856 = vsel %vm6616, %v6855, %v6854
    %v6857 = vperm.slane %v6332, %v6618
    %v6858 = vsel %vm6620, %v6857, %v6856
    %v6859 = vperm.slane %v6333, %v6622
    %v6860 = vsel %vm6624, %v6859, %v6858
    %v6861 = vperm.slane %v6334, %v6626
    %v6862 = vsel %vm6628, %v6861, %v6860
    %v6863 = vperm.slane %v6335, %v6630
    %v6864 = vsel %vm6632, %v6863, %v6862
    %v6865 = vperm.slane %v6336, %v6634
    %v6866 = vsel %vm6636, %v6865, %v6864
    %v6867 = vperm.slane %v6337, %v6638
    %v6868 = vsel %vm6640, %v6867, %v6866
    %v6869 = vperm.slane %v6338, %v6642
    %v6870 = vsel %vm6644, %v6869, %v6868
    %v6871 = vperm.slane %v6339, %v6646
    %v6872 = vsel %vm6648, %v6871, %v6870
    %v6873 = vperm.slane %v6340, %v6650
    %v6874 = vsel %vm6652, %v6873, %v6872
    %v6875 = vperm.slane %v6341, %v6654
    %v6876 = vsel %vm6656, %v6875, %v6874
    %v6877 = vperm.slane %v6342, %v6658
    %v6878 = vsel %vm6660, %v6877, %v6876
    %v6879 = vperm.slane %v6343, %v6600
    %v6880 = vperm.slane %v6344, %v6602
    %v6881 = vsel %vm6604, %v6880, %v6879
    %v6882 = vperm.slane %v6345, %v6606
    %v6883 = vsel %vm6608, %v6882, %v6881
    %v6884 = vperm.slane %v6346, %v6610
    %v6885 = vsel %vm6612, %v6884, %v6883
    %v6886 = vperm.slane %v6347, %v6614
    %v6887 = vsel %vm6616, %v6886, %v6885
    %v6888 = vperm.slane %v6348, %v6618
    %v6889 = vsel %vm6620, %v6888, %v6887
    %v6890 = vperm.slane %v6349, %v6622
    %v6891 = vsel %vm6624, %v6890, %v6889
    %v6892 = vperm.slane %v6350, %v6626
    %v6893 = vsel %vm6628, %v6892, %v6891
    %v6894 = vperm.slane %v6351, %v6630
    %v6895 = vsel %vm6632, %v6894, %v6893
    %v6896 = vperm.slane %v6352, %v6634
    %v6897 = vsel %vm6636, %v6896, %v6895
    %v6898 = vperm.slane %v6353, %v6638
    %v6899 = vsel %vm6640, %v6898, %v6897
    %v6900 = vperm.slane %v6354, %v6642
    %v6901 = vsel %vm6644, %v6900, %v6899
    %v6902 = vperm.slane %v6355, %v6646
    %v6903 = vsel %vm6648, %v6902, %v6901
    %v6904 = vperm.slane %v6356, %v6650
    %v6905 = vsel %vm6652, %v6904, %v6903
    %v6906 = vperm.slane %v6357, %v6654
    %v6907 = vsel %vm6656, %v6906, %v6905
    %v6908 = vperm.slane %v6358, %v6658
    %v6909 = vsel %vm6660, %v6908, %v6907
    %v6910 = vperm.slane %v6359, %v6600
    %v6911 = vperm.slane %v6360, %v6602
    %v6912 = vsel %vm6604, %v6911, %v6910
    %v6913 = vperm.slane %v6361, %v6606
    %v6914 = vsel %vm6608, %v6913, %v6912
    %v6915 = vperm.slane %v6362, %v6610
    %v6916 = vsel %vm6612, %v6915, %v6914
    %v6917 = vperm.slane %v6363, %v6614
    %v6918 = vsel %vm6616, %v6917, %v6916
    %v6919 = vperm.slane %v6364, %v6618
    %v6920 = vsel %vm6620, %v6919, %v6918
    %v6921 = vperm.slane %v6365, %v6622
    %v6922 = vsel %vm6624, %v6921, %v6920
    %v6923 = vperm.slane %v6366, %v6626
    %v6924 = vsel %vm6628, %v6923, %v6922
    %v6925 = vperm.slane %v6367, %v6630
    %v6926 = vsel %vm6632, %v6925, %v6924
    %v6927 = vperm.slane %v6368, %v6634
    %v6928 = vsel %vm6636, %v6927, %v6926
    %v6929 = vperm.slane %v6369, %v6638
    %v6930 = vsel %vm6640, %v6929, %v6928
    %v6931 = vperm.slane %v6370, %v6642
    %v6932 = vsel %vm6644, %v6931, %v6930
    %v6933 = vperm.slane %v6371, %v6646
    %v6934 = vsel %vm6648, %v6933, %v6932
    %v6935 = vperm.slane %v6372, %v6650
    %v6936 = vsel %vm6652, %v6935, %v6934
    %v6937 = vperm.slane %v6373, %v6654
    %v6938 = vsel %vm6656, %v6937, %v6936
    %v6939 = vperm.slane %v6374, %v6658
    %v6940 = vsel %vm6660, %v6939, %v6938
    %v6941 = vperm.slane %v6375, %v6600
    %v6942 = vperm.slane %v6376, %v6602
    %v6943 = vsel %vm6604, %v6942, %v6941
    %v6944 = vperm.slane %v6377, %v6606
    %v6945 = vsel %vm6608, %v6944, %v6943
    %v6946 = vperm.slane %v6378, %v6610
    %v6947 = vsel %vm6612, %v6946, %v6945
    %v6948 = vperm.slane %v6379, %v6614
    %v6949 = vsel %vm6616, %v6948, %v6947
    %v6950 = vperm.slane %v6380, %v6618
    %v6951 = vsel %vm6620, %v6950, %v6949
    %v6952 = vperm.slane %v6381, %v6622
    %v6953 = vsel %vm6624, %v6952, %v6951
    %v6954 = vperm.slane %v6382, %v6626
    %v6955 = vsel %vm6628, %v6954, %v6953
    %v6956 = vperm.slane %v6383, %v6630
    %v6957 = vsel %vm6632, %v6956, %v6955
    %v6958 = vperm.slane %v6384, %v6634
    %v6959 = vsel %vm6636, %v6958, %v6957
    %v6960 = vperm.slane %v6385, %v6638
    %v6961 = vsel %vm6640, %v6960, %v6959
    %v6962 = vperm.slane %v6386, %v6642
    %v6963 = vsel %vm6644, %v6962, %v6961
    %v6964 = vperm.slane %v6387, %v6646
    %v6965 = vsel %vm6648, %v6964, %v6963
    %v6966 = vperm.slane %v6388, %v6650
    %v6967 = vsel %vm6652, %v6966, %v6965
    %v6968 = vperm.slane %v6389, %v6654
    %v6969 = vsel %vm6656, %v6968, %v6967
    %v6970 = vperm.slane %v6390, %v6658
    %v6971 = vsel %vm6660, %v6970, %v6969
    %v6972 = vperm.slane %v6391, %v6600
    %v6973 = vperm.slane %v6392, %v6602
    %v6974 = vsel %vm6604, %v6973, %v6972
    %v6975 = vperm.slane %v6393, %v6606
    %v6976 = vsel %vm6608, %v6975, %v6974
    %v6977 = vperm.slane %v6394, %v6610
    %v6978 = vsel %vm6612, %v6977, %v6976
    %v6979 = vperm.slane %v6395, %v6614
    %v6980 = vsel %vm6616, %v6979, %v6978
    %v6981 = vperm.slane %v6396, %v6618
    %v6982 = vsel %vm6620, %v6981, %v6980
    %v6983 = vperm.slane %v6397, %v6622
    %v6984 = vsel %vm6624, %v6983, %v6982
    %v6985 = vperm.slane %v6398, %v6626
    %v6986 = vsel %vm6628, %v6985, %v6984
    %v6987 = vperm.slane %v6399, %v6630
    %v6988 = vsel %vm6632, %v6987, %v6986
    %v6989 = vperm.slane %v6400, %v6634
    %v6990 = vsel %vm6636, %v6989, %v6988
    %v6991 = vperm.slane %v6401, %v6638
    %v6992 = vsel %vm6640, %v6991, %v6990
    %v6993 = vperm.slane %v6402, %v6642
    %v6994 = vsel %vm6644, %v6993, %v6992
    %v6995 = vperm.slane %v6403, %v6646
    %v6996 = vsel %vm6648, %v6995, %v6994
    %v6997 = vperm.slane %v6404, %v6650
    %v6998 = vsel %vm6652, %v6997, %v6996
    %v6999 = vperm.slane %v6405, %v6654
    %v7000 = vsel %vm6656, %v6999, %v6998
    %v7001 = vperm.slane %v6406, %v6658
    %v7002 = vsel %vm6660, %v7001, %v7000
    %v7003 = vperm.slane %v6407, %v6600
    %v7004 = vperm.slane %v6408, %v6602
    %v7005 = vsel %vm6604, %v7004, %v7003
    %v7006 = vperm.slane %v6409, %v6606
    %v7007 = vsel %vm6608, %v7006, %v7005
    %v7008 = vperm.slane %v6410, %v6610
    %v7009 = vsel %vm6612, %v7008, %v7007
    %v7010 = vperm.slane %v6411, %v6614
    %v7011 = vsel %vm6616, %v7010, %v7009
    %v7012 = vperm.slane %v6412, %v6618
    %v7013 = vsel %vm6620, %v7012, %v7011
    %v7014 = vperm.slane %v6413, %v6622
    %v7015 = vsel %vm6624, %v7014, %v7013
    %v7016 = vperm.slane %v6414, %v6626
    %v7017 = vsel %vm6628, %v7016, %v7015
    %v7018 = vperm.slane %v6415, %v6630
    %v7019 = vsel %vm6632, %v7018, %v7017
    %v7020 = vperm.slane %v6416, %v6634
    %v7021 = vsel %vm6636, %v7020, %v7019
    %v7022 = vperm.slane %v6417, %v6638
    %v7023 = vsel %vm6640, %v7022, %v7021
    %v7024 = vperm.slane %v6418, %v6642
    %v7025 = vsel %vm6644, %v7024, %v7023
    %v7026 = vperm.slane %v6419, %v6646
    %v7027 = vsel %vm6648, %v7026, %v7025
    %v7028 = vperm.slane %v6420, %v6650
    %v7029 = vsel %vm6652, %v7028, %v7027
    %v7030 = vperm.slane %v6421, %v6654
    %v7031 = vsel %vm6656, %v7030, %v7029
    %v7032 = vperm.slane %v6422, %v6658
    %v7033 = vsel %vm6660, %v7032, %v7031
    %v7034 = vperm.slane %v6423, %v6600
    %v7035 = vperm.slane %v6424, %v6602
    %v7036 = vsel %vm6604, %v7035, %v7034
    %v7037 = vperm.slane %v6425, %v6606
    %v7038 = vsel %vm6608, %v7037, %v7036
    %v7039 = vperm.slane %v6426, %v6610
    %v7040 = vsel %vm6612, %v7039, %v7038
    %v7041 = vperm.slane %v6427, %v6614
    %v7042 = vsel %vm6616, %v7041, %v7040
    %v7043 = vperm.slane %v6428, %v6618
    %v7044 = vsel %vm6620, %v7043, %v7042
    %v7045 = vperm.slane %v6429, %v6622
    %v7046 = vsel %vm6624, %v7045, %v7044
    %v7047 = vperm.slane %v6430, %v6626
    %v7048 = vsel %vm6628, %v7047, %v7046
    %v7049 = vperm.slane %v6431, %v6630
    %v7050 = vsel %vm6632, %v7049, %v7048
    %v7051 = vperm.slane %v6432, %v6634
    %v7052 = vsel %vm6636, %v7051, %v7050
    %v7053 = vperm.slane %v6433, %v6638
    %v7054 = vsel %vm6640, %v7053, %v7052
    %v7055 = vperm.slane %v6434, %v6642
    %v7056 = vsel %vm6644, %v7055, %v7054
    %v7057 = vperm.slane %v6435, %v6646
    %v7058 = vsel %vm6648, %v7057, %v7056
    %v7059 = vperm.slane %v6436, %v6650
    %v7060 = vsel %vm6652, %v7059, %v7058
    %v7061 = vperm.slane %v6437, %v6654
    %v7062 = vsel %vm6656, %v7061, %v7060
    %v7063 = vperm.slane %v6438, %v6658
    %v7064 = vsel %vm6660, %v7063, %v7062
    %v7065 = vperm.slane %v6439, %v6600
    %v7066 = vperm.slane %v6440, %v6602
    %v7067 = vsel %vm6604, %v7066, %v7065
    %v7068 = vperm.slane %v6441, %v6606
    %v7069 = vsel %vm6608, %v7068, %v7067
    %v7070 = vperm.slane %v6442, %v6610
    %v7071 = vsel %vm6612, %v7070, %v7069
    %v7072 = vperm.slane %v6443, %v6614
    %v7073 = vsel %vm6616, %v7072, %v7071
    %v7074 = vperm.slane %v6444, %v6618
    %v7075 = vsel %vm6620, %v7074, %v7073
    %v7076 = vperm.slane %v6445, %v6622
    %v7077 = vsel %vm6624, %v7076, %v7075
    %v7078 = vperm.slane %v6446, %v6626
    %v7079 = vsel %vm6628, %v7078, %v7077
    %v7080 = vperm.slane %v6447, %v6630
    %v7081 = vsel %vm6632, %v7080, %v7079
    %v7082 = vperm.slane %v6448, %v6634
    %v7083 = vsel %vm6636, %v7082, %v7081
    %v7084 = vperm.slane %v6449, %v6638
    %v7085 = vsel %vm6640, %v7084, %v7083
    %v7086 = vperm.slane %v6450, %v6642
    %v7087 = vsel %vm6644, %v7086, %v7085
    %v7088 = vperm.slane %v6451, %v6646
    %v7089 = vsel %vm6648, %v7088, %v7087
    %v7090 = vperm.slane %v6452, %v6650
    %v7091 = vsel %vm6652, %v7090, %v7089
    %v7092 = vperm.slane %v6453, %v6654
    %v7093 = vsel %vm6656, %v7092, %v7091
    %v7094 = vperm.slane %v6454, %v6658
    %v7095 = vsel %vm6660, %v7094, %v7093
    %v7096 = vperm.slane %v6455, %v6600
    %v7097 = vperm.slane %v6456, %v6602
    %v7098 = vsel %vm6604, %v7097, %v7096
    %v7099 = vperm.slane %v6457, %v6606
    %v7100 = vsel %vm6608, %v7099, %v7098
    %v7101 = vperm.slane %v6458, %v6610
    %v7102 = vsel %vm6612, %v7101, %v7100
    %v7103 = vperm.slane %v6459, %v6614
    %v7104 = vsel %vm6616, %v7103, %v7102
    %v7105 = vperm.slane %v6460, %v6618
    %v7106 = vsel %vm6620, %v7105, %v7104
    %v7107 = vperm.slane %v6461, %v6622
    %v7108 = vsel %vm6624, %v7107, %v7106
    %v7109 = vperm.slane %v6462, %v6626
    %v7110 = vsel %vm6628, %v7109, %v7108
    %v7111 = vperm.slane %v6463, %v6630
    %v7112 = vsel %vm6632, %v7111, %v7110
    %v7113 = vperm.slane %v6464, %v6634
    %v7114 = vsel %vm6636, %v7113, %v7112
    %v7115 = vperm.slane %v6465, %v6638
    %v7116 = vsel %vm6640, %v7115, %v7114
    %v7117 = vperm.slane %v6466, %v6642
    %v7118 = vsel %vm6644, %v7117, %v7116
    %v7119 = vperm.slane %v6467, %v6646
    %v7120 = vsel %vm6648, %v7119, %v7118
    %v7121 = vperm.slane %v6468, %v6650
    %v7122 = vsel %vm6652, %v7121, %v7120
    %v7123 = vperm.slane %v6469, %v6654
    %v7124 = vsel %vm6656, %v7123, %v7122
    %v7125 = vperm.slane %v6470, %v6658
    %v7126 = vsel %vm6660, %v7125, %v7124
    %v7127 = vperm.slane %v6471, %v6600
    %v7128 = vperm.slane %v6472, %v6602
    %v7129 = vsel %vm6604, %v7128, %v7127
    %v7130 = vperm.slane %v6473, %v6606
    %v7131 = vsel %vm6608, %v7130, %v7129
    %v7132 = vperm.slane %v6474, %v6610
    %v7133 = vsel %vm6612, %v7132, %v7131
    %v7134 = vperm.slane %v6475, %v6614
    %v7135 = vsel %vm6616, %v7134, %v7133
    %v7136 = vperm.slane %v6476, %v6618
    %v7137 = vsel %vm6620, %v7136, %v7135
    %v7138 = vperm.slane %v6477, %v6622
    %v7139 = vsel %vm6624, %v7138, %v7137
    %v7140 = vperm.slane %v6478, %v6626
    %v7141 = vsel %vm6628, %v7140, %v7139
    %v7142 = vperm.slane %v6479, %v6630
    %v7143 = vsel %vm6632, %v7142, %v7141
    %v7144 = vperm.slane %v6480, %v6634
    %v7145 = vsel %vm6636, %v7144, %v7143
    %v7146 = vperm.slane %v6481, %v6638
    %v7147 = vsel %vm6640, %v7146, %v7145
    %v7148 = vperm.slane %v6482, %v6642
    %v7149 = vsel %vm6644, %v7148, %v7147
    %v7150 = vperm.slane %v6483, %v6646
    %v7151 = vsel %vm6648, %v7150, %v7149
    %v7152 = vperm.slane %v6484, %v6650
    %v7153 = vsel %vm6652, %v7152, %v7151
    %v7154 = vperm.slane %v6485, %v6654
    %v7155 = vsel %vm6656, %v7154, %v7153
    %v7156 = vperm.slane %v6486, %v6658
    %v7157 = vsel %vm6660, %v7156, %v7155
    %v7158 = vperm.slane %v6487, %v6600
    %v7159 = vperm.slane %v6488, %v6602
    %v7160 = vsel %vm6604, %v7159, %v7158
    %v7161 = vperm.slane %v6489, %v6606
    %v7162 = vsel %vm6608, %v7161, %v7160
    %v7163 = vperm.slane %v6490, %v6610
    %v7164 = vsel %vm6612, %v7163, %v7162
    %v7165 = vperm.slane %v6491, %v6614
    %v7166 = vsel %vm6616, %v7165, %v7164
    %v7167 = vperm.slane %v6492, %v6618
    %v7168 = vsel %vm6620, %v7167, %v7166
    %v7169 = vperm.slane %v6493, %v6622
    %v7170 = vsel %vm6624, %v7169, %v7168
    %v7171 = vperm.slane %v6494, %v6626
    %v7172 = vsel %vm6628, %v7171, %v7170
    %v7173 = vperm.slane %v6495, %v6630
    %v7174 = vsel %vm6632, %v7173, %v7172
    %v7175 = vperm.slane %v6496, %v6634
    %v7176 = vsel %vm6636, %v7175, %v7174
    %v7177 = vperm.slane %v6497, %v6638
    %v7178 = vsel %vm6640, %v7177, %v7176
    %v7179 = vperm.slane %v6498, %v6642
    %v7180 = vsel %vm6644, %v7179, %v7178
    %v7181 = vperm.slane %v6499, %v6646
    %v7182 = vsel %vm6648, %v7181, %v7180
    %v7183 = vperm.slane %v6500, %v6650
    %v7184 = vsel %vm6652, %v7183, %v7182
    %v7185 = vperm.slane %v6501, %v6654
    %v7186 = vsel %vm6656, %v7185, %v7184
    %v7187 = vperm.slane %v6502, %v6658
    %v7188 = vsel %vm6660, %v7187, %v7186
    %v7189 = vperm.slane %v6503, %v6600
    %v7190 = vperm.slane %v6504, %v6602
    %v7191 = vsel %vm6604, %v7190, %v7189
    %v7192 = vperm.slane %v6505, %v6606
    %v7193 = vsel %vm6608, %v7192, %v7191
    %v7194 = vperm.slane %v6506, %v6610
    %v7195 = vsel %vm6612, %v7194, %v7193
    %v7196 = vperm.slane %v6507, %v6614
    %v7197 = vsel %vm6616, %v7196, %v7195
    %v7198 = vperm.slane %v6508, %v6618
    %v7199 = vsel %vm6620, %v7198, %v7197
    %v7200 = vperm.slane %v6509, %v6622
    %v7201 = vsel %vm6624, %v7200, %v7199
    %v7202 = vperm.slane %v6510, %v6626
    %v7203 = vsel %vm6628, %v7202, %v7201
    %v7204 = vperm.slane %v6511, %v6630
    %v7205 = vsel %vm6632, %v7204, %v7203
    %v7206 = vperm.slane %v6512, %v6634
    %v7207 = vsel %vm6636, %v7206, %v7205
    %v7208 = vperm.slane %v6513, %v6638
    %v7209 = vsel %vm6640, %v7208, %v7207
    %v7210 = vperm.slane %v6514, %v6642
    %v7211 = vsel %vm6644, %v7210, %v7209
    %v7212 = vperm.slane %v6515, %v6646
    %v7213 = vsel %vm6648, %v7212, %v7211
    %v7214 = vperm.slane %v6516, %v6650
    %v7215 = vsel %vm6652, %v7214, %v7213
    %v7216 = vperm.slane %v6517, %v6654
    %v7217 = vsel %vm6656, %v7216, %v7215
    %v7218 = vperm.slane %v6518, %v6658
    %v7219 = vsel %vm6660, %v7218, %v7217
    %v7220 = vperm.slane %v6519, %v6600
    %v7221 = vperm.slane %v6520, %v6602
    %v7222 = vsel %vm6604, %v7221, %v7220
    %v7223 = vperm.slane %v6521, %v6606
    %v7224 = vsel %vm6608, %v7223, %v7222
    %v7225 = vperm.slane %v6522, %v6610
    %v7226 = vsel %vm6612, %v7225, %v7224
    %v7227 = vperm.slane %v6523, %v6614
    %v7228 = vsel %vm6616, %v7227, %v7226
    %v7229 = vperm.slane %v6524, %v6618
    %v7230 = vsel %vm6620, %v7229, %v7228
    %v7231 = vperm.slane %v6525, %v6622
    %v7232 = vsel %vm6624, %v7231, %v7230
    %v7233 = vperm.slane %v6526, %v6626
    %v7234 = vsel %vm6628, %v7233, %v7232
    %v7235 = vperm.slane %v6527, %v6630
    %v7236 = vsel %vm6632, %v7235, %v7234
    %v7237 = vperm.slane %v6528, %v6634
    %v7238 = vsel %vm6636, %v7237, %v7236
    %v7239 = vperm.slane %v6529, %v6638
    %v7240 = vsel %vm6640, %v7239, %v7238
    %v7241 = vperm.slane %v6530, %v6642
    %v7242 = vsel %vm6644, %v7241, %v7240
    %v7243 = vperm.slane %v6531, %v6646
    %v7244 = vsel %vm6648, %v7243, %v7242
    %v7245 = vperm.slane %v6532, %v6650
    %v7246 = vsel %vm6652, %v7245, %v7244
    %v7247 = vperm.slane %v6533, %v6654
    %v7248 = vsel %vm6656, %v7247, %v7246
    %v7249 = vperm.slane %v6534, %v6658
    %v7250 = vsel %vm6660, %v7249, %v7248
    %v7251 = vperm.slane %v6535, %v6600
    %v7252 = vperm.slane %v6536, %v6602
    %v7253 = vsel %vm6604, %v7252, %v7251
    %v7254 = vperm.slane %v6537, %v6606
    %v7255 = vsel %vm6608, %v7254, %v7253
    %v7256 = vperm.slane %v6538, %v6610
    %v7257 = vsel %vm6612, %v7256, %v7255
    %v7258 = vperm.slane %v6539, %v6614
    %v7259 = vsel %vm6616, %v7258, %v7257
    %v7260 = vperm.slane %v6540, %v6618
    %v7261 = vsel %vm6620, %v7260, %v7259
    %v7262 = vperm.slane %v6541, %v6622
    %v7263 = vsel %vm6624, %v7262, %v7261
    %v7264 = vperm.slane %v6542, %v6626
    %v7265 = vsel %vm6628, %v7264, %v7263
    %v7266 = vperm.slane %v6543, %v6630
    %v7267 = vsel %vm6632, %v7266, %v7265
    %v7268 = vperm.slane %v6544, %v6634
    %v7269 = vsel %vm6636, %v7268, %v7267
    %v7270 = vperm.slane %v6545, %v6638
    %v7271 = vsel %vm6640, %v7270, %v7269
    %v7272 = vperm.slane %v6546, %v6642
    %v7273 = vsel %vm6644, %v7272, %v7271
    %v7274 = vperm.slane %v6547, %v6646
    %v7275 = vsel %vm6648, %v7274, %v7273
    %v7276 = vperm.slane %v6548, %v6650
    %v7277 = vsel %vm6652, %v7276, %v7275
    %v7278 = vperm.slane %v6549, %v6654
    %v7279 = vsel %vm6656, %v7278, %v7277
    %v7280 = vperm.slane %v6550, %v6658
    %v7281 = vsel %vm6660, %v7280, %v7279
    %v7282 = vperm.slane %v6551, %v6600
    %v7283 = vperm.slane %v6552, %v6602
    %v7284 = vsel %vm6604, %v7283, %v7282
    %v7285 = vperm.slane %v6553, %v6606
    %v7286 = vsel %vm6608, %v7285, %v7284
    %v7287 = vperm.slane %v6554, %v6610
    %v7288 = vsel %vm6612, %v7287, %v7286
    %v7289 = vperm.slane %v6555, %v6614
    %v7290 = vsel %vm6616, %v7289, %v7288
    %v7291 = vperm.slane %v6556, %v6618
    %v7292 = vsel %vm6620, %v7291, %v7290
    %v7293 = vperm.slane %v6557, %v6622
    %v7294 = vsel %vm6624, %v7293, %v7292
    %v7295 = vperm.slane %v6558, %v6626
    %v7296 = vsel %vm6628, %v7295, %v7294
    %v7297 = vperm.slane %v6559, %v6630
    %v7298 = vsel %vm6632, %v7297, %v7296
    %v7299 = vperm.slane %v6560, %v6634
    %v7300 = vsel %vm6636, %v7299, %v7298
    %v7301 = vperm.slane %v6561, %v6638
    %v7302 = vsel %vm6640, %v7301, %v7300
    %v7303 = vperm.slane %v6562, %v6642
    %v7304 = vsel %vm6644, %v7303, %v7302
    %v7305 = vperm.slane %v6563, %v6646
    %v7306 = vsel %vm6648, %v7305, %v7304
    %v7307 = vperm.slane %v6564, %v6650
    %v7308 = vsel %vm6652, %v7307, %v7306
    %v7309 = vperm.slane %v6565, %v6654
    %v7310 = vsel %vm6656, %v7309, %v7308
    %v7311 = vperm.slane %v6566, %v6658
    %v7312 = vsel %vm6660, %v7311, %v7310
    %v7313 = vperm.slane %v6567, %v6600
    %v7314 = vperm.slane %v6568, %v6602
    %v7315 = vsel %vm6604, %v7314, %v7313
    %v7316 = vperm.slane %v6569, %v6606
    %v7317 = vsel %vm6608, %v7316, %v7315
    %v7318 = vperm.slane %v6570, %v6610
    %v7319 = vsel %vm6612, %v7318, %v7317
    %v7320 = vperm.slane %v6571, %v6614
    %v7321 = vsel %vm6616, %v7320, %v7319
    %v7322 = vperm.slane %v6572, %v6618
    %v7323 = vsel %vm6620, %v7322, %v7321
    %v7324 = vperm.slane %v6573, %v6622
    %v7325 = vsel %vm6624, %v7324, %v7323
    %v7326 = vperm.slane %v6574, %v6626
    %v7327 = vsel %vm6628, %v7326, %v7325
    %v7328 = vperm.slane %v6575, %v6630
    %v7329 = vsel %vm6632, %v7328, %v7327
    %v7330 = vperm.slane %v6576, %v6634
    %v7331 = vsel %vm6636, %v7330, %v7329
    %v7332 = vperm.slane %v6577, %v6638
    %v7333 = vsel %vm6640, %v7332, %v7331
    %v7334 = vperm.slane %v6578, %v6642
    %v7335 = vsel %vm6644, %v7334, %v7333
    %v7336 = vperm.slane %v6579, %v6646
    %v7337 = vsel %vm6648, %v7336, %v7335
    %v7338 = vperm.slane %v6580, %v6650
    %v7339 = vsel %vm6652, %v7338, %v7337
    %v7340 = vperm.slane %v6581, %v6654
    %v7341 = vsel %vm6656, %v7340, %v7339
    %v7342 = vperm.slane %v6582, %v6658
    %v7343 = vsel %vm6660, %v7342, %v7341
    %v7344 = vperm.slane %v6583, %v6600
    %v7345 = vperm.slane %v6584, %v6602
    %v7346 = vsel %vm6604, %v7345, %v7344
    %v7347 = vperm.slane %v6585, %v6606
    %v7348 = vsel %vm6608, %v7347, %v7346
    %v7349 = vperm.slane %v6586, %v6610
    %v7350 = vsel %vm6612, %v7349, %v7348
    %v7351 = vperm.slane %v6587, %v6614
    %v7352 = vsel %vm6616, %v7351, %v7350
    %v7353 = vperm.slane %v6588, %v6618
    %v7354 = vsel %vm6620, %v7353, %v7352
    %v7355 = vperm.slane %v6589, %v6622
    %v7356 = vsel %vm6624, %v7355, %v7354
    %v7357 = vperm.slane %v6590, %v6626
    %v7358 = vsel %vm6628, %v7357, %v7356
    %v7359 = vperm.slane %v6591, %v6630
    %v7360 = vsel %vm6632, %v7359, %v7358
    %v7361 = vperm.slane %v6592, %v6634
    %v7362 = vsel %vm6636, %v7361, %v7360
    %v7363 = vperm.slane %v6593, %v6638
    %v7364 = vsel %vm6640, %v7363, %v7362
    %v7365 = vperm.slane %v6594, %v6642
    %v7366 = vsel %vm6644, %v7365, %v7364
    %v7367 = vperm.slane %v6595, %v6646
    %v7368 = vsel %vm6648, %v7367, %v7366
    %v7369 = vperm.slane %v6596, %v6650
    %v7370 = vsel %vm6652, %v7369, %v7368
    %v7371 = vperm.slane %v6597, %v6654
    %v7372 = vsel %vm6656, %v7371, %v7370
    %v7373 = vperm.slane %v6598, %v6658
    %v7374 = vsel %vm6660, %v7373, %v7372
    %vm7375 = vcmask 1041409
    %v7376 = vsel %vm7375, %v7033, %v6661
    %v7377 = vsel %vm7375, %v7064, %v6692
    %v7378 = vsel %vm7375, %v7095, %v6723
    %v7379 = vsel %vm7375, %v7126, %v6754
    %v7380 = vsel %vm7375, %v7157, %v6785
    %v7381 = vsel %vm7375, %v7188, %v6816
    %v7382 = vsel %vm7375, %v7219, %v6847
    %v7383 = vsel %vm7375, %v7250, %v6878
    %v7384 = vsel %vm7375, %v7281, %v6909
    %v7385 = vsel %vm7375, %v7312, %v6940
    %v7386 = vsel %vm7375, %v7343, %v6971
    %v7387 = vsel %vm7375, %v7374, %v7002
    %v7388 = vpack.c.b16 %v7376, %v7376
    %v7389 = vpack.c.b16 %v7377, %v7377
    %v7390 = vpack.c.b16 %v7378, %v7378
    %v7391 = vpack.c.b16 %v7379, %v7379
    %v7392 = vpack.c.b16 %v7380, %v7380
    %v7393 = vpack.c.b16 %v7381, %v7381
    %v7394 = vpack.c.b16 %v7382, %v7382
    %v7395 = vpack.c.b16 %v7383, %v7383
    %v7396 = vpack.c.b16 %v7384, %v7384
    %v7397 = vpack.c.b16 %v7385, %v7385
    %v7398 = vpack.c.b16 %v7386, %v7386
    %v7399 = vpack.c.b16 %v7387, %v7387
    %v8180 = vunpack.c.l.b16 %v5237
    %v8181 = vunpack.c.h.b16 %v5237
    %v8182 = vunpack.c.l.b16 %v5238
    %v8183 = vunpack.c.h.b16 %v5238
    %v8184 = vunpack.c.l.b16 %v5239
    %v8185 = vunpack.c.h.b16 %v5239
    %v8186 = vunpack.c.l.b16 %v5240
    %v8187 = vunpack.c.h.b16 %v5240
    %v8188 = vunpack.c.l.b16 %v5241
    %v8189 = vunpack.c.h.b16 %v5241
    %v8190 = vunpack.c.l.b16 %v5242
    %v8191 = vunpack.c.h.b16 %v5242
    %v8192 = vunpack.c.l.b16 %v5243
    %v8193 = vunpack.c.h.b16 %v5243
    %v8194 = vunpack.c.l.b16 %v5244
    %v8195 = vunpack.c.h.b16 %v5244
    %v8196 = vunpack.c.l.b16 %v5245
    %v8197 = vunpack.c.h.b16 %v5245
    %v8198 = vunpack.c.l.b16 %v5246
    %v8199 = vunpack.c.h.b16 %v5246
    %v8200 = vunpack.c.l.b16 %v5247
    %v8201 = vunpack.c.h.b16 %v5247
    %v8202 = vunpack.c.l.b16 %v5248
    %v8203 = vunpack.c.h.b16 %v5248
    %v8204 = vunpack.c.l.b16 %v5249
    %v8205 = vunpack.c.h.b16 %v5249
    %v8206 = vunpack.c.l.b16 %v5250
    %v8207 = vunpack.c.h.b16 %v5250
    %v8208 = vunpack.c.l.b16 %v5251
    %v8209 = vunpack.c.h.b16 %v5251
    %v8210 = vunpack.c.l.b16 %v5252
    %v8211 = vunpack.c.h.b16 %v5252
    %v8212 = vunpack.c.l.b16 %v5253
    %v8213 = vunpack.c.h.b16 %v5253
    %v8214 = vunpack.c.l.b16 %v5254
    %v8215 = vunpack.c.h.b16 %v5254
    %v8216 = vunpack.c.l.b16 %v5255
    %v8217 = vunpack.c.h.b16 %v5255
    %v8218 = vunpack.c.l.b16 %v5256
    %v8219 = vunpack.c.h.b16 %v5256
    %v8220 = vunpack.c.l.b16 %v5257
    %v8221 = vunpack.c.h.b16 %v5257
    %v8222 = vunpack.c.l.b16 %v5258
    %v8223 = vunpack.c.h.b16 %v5258
    %v8224 = vunpack.c.l.b16 %v5259
    %v8225 = vunpack.c.h.b16 %v5259
    %v8226 = vunpack.c.l.b16 %v5260
    %v8227 = vunpack.c.h.b16 %v5260
    %v8228 = vunpack.c.l.b16 %v5261
    %v8229 = vunpack.c.h.b16 %v5261
    %v8230 = vunpack.c.l.b16 %v5262
    %v8231 = vunpack.c.h.b16 %v5262
    %v8232 = vunpack.c.l.b16 %v5263
    %v8233 = vunpack.c.h.b16 %v5263
    %v8234 = vunpack.c.l.b16 %v5264
    %v8235 = vunpack.c.h.b16 %v5264
    %v8236 = vunpack.c.l.b16 %v5265
    %v8237 = vunpack.c.h.b16 %v5265
    %v8238 = vunpack.c.l.b16 %v5266
    %v8239 = vunpack.c.h.b16 %v5266
    %v8240 = vunpack.c.l.b16 %v5267
    %v8241 = vunpack.c.h.b16 %v5267
    %v8242 = vunpack.c.l.b16 %v5268
    %v8243 = vunpack.c.h.b16 %v5268
    %v8244 = vunpack.c.l.b16 %v5269
    %v8245 = vunpack.c.h.b16 %v5269
    %v8246 = vunpack.c.l.b16 %v5270
    %v8247 = vunpack.c.h.b16 %v5270
    %v8248 = vunpack.c.l.b16 %v5271
    %v8249 = vunpack.c.h.b16 %v5271
    %v8250 = vunpack.c.l.b16 %v5272
    %v8251 = vunpack.c.h.b16 %v5272
    %v8252 = vunpack.c.l.b16 %v5273
    %v8253 = vunpack.c.h.b16 %v5273
    %v8254 = vunpack.c.l.b16 %v5274
    %v8255 = vunpack.c.h.b16 %v5274
    %v8256 = vunpack.c.l.b16 %v5275
    %v8257 = vunpack.c.h.b16 %v5275
    %v8258 = vunpack.c.l.b16 %v5276
    %v8259 = vunpack.c.h.b16 %v5276
    %v8260 = vunpack.c.l.b16 %v5277
    %v8261 = vunpack.c.h.b16 %v5277
    %v8262 = vunpack.c.l.b16 %v5278
    %v8263 = vunpack.c.h.b16 %v5278
    %v8264 = vunpack.c.l.b16 %v5279
    %v8265 = vunpack.c.h.b16 %v5279
    %v8266 = vunpack.c.l.b16 %v5280
    %v8267 = vunpack.c.h.b16 %v5280
    %v8268 = vunpack.c.l.b16 %v5281
    %v8269 = vunpack.c.h.b16 %v5281
    %v8270 = vunpack.c.l.b16 %v5282
    %v8271 = vunpack.c.h.b16 %v5282
    %v8272 = vunpack.c.l.b16 %v5283
    %v8273 = vunpack.c.h.b16 %v5283
    %v8274 = vunpack.c.l.b16 %v5284
    %v8275 = vunpack.c.h.b16 %v5284
    %v8276 = vunpack.c.l.b16 %v5285
    %v8277 = vunpack.c.h.b16 %v5285
    %v8278 = vunpack.c.l.b16 %v5286
    %v8279 = vunpack.c.h.b16 %v5286
    %v8280 = vunpack.c.l.b16 %v5287
    %v8281 = vunpack.c.h.b16 %v5287
    %v8282 = vunpack.c.l.b16 %v5288
    %v8283 = vunpack.c.h.b16 %v5288
    %v8284 = vunpack.c.l.b16 %v5289
    %v8285 = vunpack.c.h.b16 %v5289
    %v8286 = vunpack.c.l.b16 %v5290
    %v8287 = vunpack.c.h.b16 %v5290
    %v8288 = vunpack.c.l.b16 %v5291
    %v8289 = vunpack.c.h.b16 %v5291
    %v8290 = vunpack.c.l.b16 %v5292
    %v8291 = vunpack.c.h.b16 %v5292
    %v8292 = vunpack.c.l.b16 %v5293
    %v8293 = vunpack.c.h.b16 %v5293
    %v8294 = vunpack.c.l.b16 %v5294
    %v8295 = vunpack.c.h.b16 %v5294
    %v8296 = vunpack.c.l.b16 %v5295
    %v8297 = vunpack.c.h.b16 %v5295
    %v8298 = vunpack.c.l.b16 %v5296
    %v8299 = vunpack.c.h.b16 %v5296
    %v8300 = vunpack.c.l.b16 %v5297
    %v8301 = vunpack.c.h.b16 %v5297
    %v8302 = vunpack.c.l.b16 %v5298
    %v8303 = vunpack.c.h.b16 %v5298
    %v8304 = vunpack.c.l.b16 %v5299
    %v8305 = vunpack.c.h.b16 %v5299
    %v8306 = vunpack.c.l.b16 %v5300
    %v8307 = vunpack.c.h.b16 %v5300
    %v8308 = vunpack.c.l.b16 %v5301
    %v8309 = vunpack.c.h.b16 %v5301
    %v8310 = vunpack.c.l.b16 %v5302
    %v8311 = vunpack.c.h.b16 %v5302
    %v8312 = vunpack.c.l.b16 %v5303
    %v8313 = vunpack.c.h.b16 %v5303
    %v8314 = vunpack.c.l.b16 %v5304
    %v8315 = vunpack.c.h.b16 %v5304
    %v8316 = vunpack.c.l.b16 %v5305
    %v8317 = vunpack.c.h.b16 %v5305
    %v8318 = vunpack.c.l.b16 %v5306
    %v8319 = vunpack.c.h.b16 %v5306
    %v8320 = vunpack.c.l.b16 %v5307
    %v8321 = vunpack.c.h.b16 %v5307
    %v8322 = vunpack.c.l.b16 %v5308
    %v8323 = vunpack.c.h.b16 %v5308
    %v8324 = vunpack.c.l.b16 %v5309
    %v8325 = vunpack.c.h.b16 %v5309
    %v8326 = vunpack.c.l.b16 %v5310
    %v8327 = vunpack.c.h.b16 %v5310
    %v8328 = vunpack.c.l.b16 %v5311
    %v8329 = vunpack.c.h.b16 %v5311
    %v8330 = vunpack.c.l.b16 %v5312
    %v8331 = vunpack.c.h.b16 %v5312
    %v8332 = vunpack.c.l.b16 %v5313
    %v8333 = vunpack.c.h.b16 %v5313
    %v8334 = vunpack.c.l.b16 %v5314
    %v8335 = vunpack.c.h.b16 %v5314
    %v8336 = vunpack.c.l.b16 %v5315
    %v8337 = vunpack.c.h.b16 %v5315
    %v8338 = vunpack.c.l.b16 %v5316
    %v8339 = vunpack.c.h.b16 %v5316
    %v8340 = vunpack.c.l.b16 %v5317
    %v8341 = vunpack.c.h.b16 %v5317
    %v8342 = vunpack.c.l.b16 %v5318
    %v8343 = vunpack.c.h.b16 %v5318
    %v8344 = vunpack.c.l.b16 %v5319
    %v8345 = vunpack.c.h.b16 %v5319
    %v8346 = vunpack.c.l.b16 %v5320
    %v8347 = vunpack.c.h.b16 %v5320
    %v8348 = vunpack.c.l.b16 %v5321
    %v8349 = vunpack.c.h.b16 %v5321
    %v8350 = vunpack.c.l.b16 %v5322
    %v8351 = vunpack.c.h.b16 %v5322
    %v8352 = vunpack.c.l.b16 %v5323
    %v8353 = vunpack.c.h.b16 %v5323
    %v8354 = vunpack.c.l.b16 %v5324
    %v8355 = vunpack.c.h.b16 %v5324
    %v8356 = vunpack.c.l.b16 %v5325
    %v8357 = vunpack.c.h.b16 %v5325
    %v8358 = vunpack.c.l.b16 %v5326
    %v8359 = vunpack.c.h.b16 %v5326
    %v8360 = vunpack.c.l.b16 %v5327
    %v8361 = vunpack.c.h.b16 %v5327
    %v8362 = vunpack.c.l.b16 %v5328
    %v8363 = vunpack.c.h.b16 %v5328
    %v8364 = vunpack.c.l.b16 %v5329
    %v8365 = vunpack.c.h.b16 %v5329
    %v8366 = vunpack.c.l.b16 %v5330
    %v8367 = vunpack.c.h.b16 %v5330
    %v8368 = vunpack.c.l.b16 %v5331
    %v8369 = vunpack.c.h.b16 %v5331
    %v8370 = vunpack.c.l.b16 %v5332
    %v8371 = vunpack.c.h.b16 %v5332
    %v8372 = vunpack.c.l.b16 %v5333
    %v8373 = vunpack.c.h.b16 %v5333
    %v8374 = vunpack.c.l.b16 %v5334
    %v8375 = vunpack.c.h.b16 %v5334
    %v8376 = vunpack.c.l.b16 %v5335
    %v8377 = vunpack.c.h.b16 %v5335
    %v8378 = vunpack.c.l.b16 %v5336
    %v8379 = vunpack.c.h.b16 %v5336
    %v8380 = vunpack.c.l.b16 %v5337
    %v8381 = vunpack.c.h.b16 %v5337
    %v8382 = vunpack.c.l.b16 %v5338
    %v8383 = vunpack.c.h.b16 %v5338
    %v8384 = vunpack.c.l.b16 %v5339
    %v8385 = vunpack.c.h.b16 %v5339
    %v8386 = vunpack.c.l.b16 %v5340
    %v8387 = vunpack.c.h.b16 %v5340
    %v8388 = vunpack.c.l.b16 %v5341
    %v8389 = vunpack.c.h.b16 %v5341
    %v8390 = vunpack.c.l.b16 %v5342
    %v8391 = vunpack.c.h.b16 %v5342
    %v8392 = vunpack.c.l.b16 %v5343
    %v8393 = vunpack.c.h.b16 %v5343
    %v8394 = vunpack.c.l.b16 %v5344
    %v8395 = vunpack.c.h.b16 %v5344
    %v8396 = vunpack.c.l.b16 %v5345
    %v8397 = vunpack.c.h.b16 %v5345
    %v8398 = vunpack.c.l.b16 %v5346
    %v8399 = vunpack.c.h.b16 %v5346
    %v8400 = vunpack.c.l.b16 %v5347
    %v8401 = vunpack.c.h.b16 %v5347
    %v8402 = vunpack.c.l.b16 %v5348
    %v8403 = vunpack.c.h.b16 %v5348
    %v8404 = vunpack.c.l.b16 %v5349
    %v8405 = vunpack.c.h.b16 %v5349
    %v8406 = vunpack.c.l.b16 %v5350
    %v8407 = vunpack.c.h.b16 %v5350
    %v8408 = vunpack.c.l.b16 %v5351
    %v8409 = vunpack.c.h.b16 %v5351
    %v8410 = vunpack.c.l.b16 %v5352
    %v8411 = vunpack.c.h.b16 %v5352
    %v8412 = vunpack.c.l.b16 %v5353
    %v8413 = vunpack.c.h.b16 %v5353
    %v8414 = vunpack.c.l.b16 %v5354
    %v8415 = vunpack.c.h.b16 %v5354
    %v8416 = vunpack.c.l.b16 %v5355
    %v8417 = vunpack.c.h.b16 %v5355
    %v8418 = vunpack.c.l.b16 %v5356
    %v8419 = vunpack.c.h.b16 %v5356
    %v8420 = vunpack.c.l.b16 %v5357
    %v8421 = vunpack.c.h.b16 %v5357
    %v8422 = vunpack.c.l.b16 %v5358
    %v8423 = vunpack.c.h.b16 %v5358
    %v8424 = vunpack.c.l.b16 %v5359
    %v8425 = vunpack.c.h.b16 %v5359
    %v8426 = vunpack.c.l.b16 %v5360
    %v8427 = vunpack.c.h.b16 %v5360
    %v8428 = vunpack.c.l.b16 %v5361
    %v8429 = vunpack.c.h.b16 %v5361
    %v8430 = vunpack.c.l.b16 %v5362
    %v8431 = vunpack.c.h.b16 %v5362
    %v8432 = vunpack.c.l.b16 %v5363
    %v8433 = vunpack.c.h.b16 %v5363
    %v8434 = vunpack.c.l.b16 %v5364
    %v8435 = vunpack.c.h.b16 %v5364
    %v8436 = vunpack.c.l.b16 %v5365
    %v8437 = vunpack.c.h.b16 %v5365
    %v8438 = vunpack.c.l.b16 %v5366
    %v8439 = vunpack.c.h.b16 %v5366
    %v8440 = vunpack.c.l.b16 %v5367
    %v8441 = vunpack.c.h.b16 %v5367
    %v8442 = vunpack.c.l.b16 %v5368
    %v8443 = vunpack.c.h.b16 %v5368
    %v8444 = vunpack.c.l.b16 %v5369
    %v8445 = vunpack.c.h.b16 %v5369
    %v8446 = vunpack.c.l.b16 %v5370
    %v8447 = vunpack.c.h.b16 %v5370
    %v8448 = vunpack.c.l.b16 %v5371
    %v8449 = vunpack.c.h.b16 %v5371
    %v8450 = vunpack.c.l.b16 %v5372
    %v8451 = vunpack.c.h.b16 %v5372
    %v8452 = vunpack.c.l.b16 %v5373
    %v8453 = vunpack.c.h.b16 %v5373
    %v8454 = vunpack.c.l.b16 %v5374
    %v8455 = vunpack.c.h.b16 %v5374
    %v8456 = vunpack.c.l.b16 %v5375
    %v8457 = vunpack.c.h.b16 %v5375
    %v8458 = vunpack.c.l.b16 %v5376
    %v8459 = vunpack.c.h.b16 %v5376
    %v8460 = vunpack.c.l.b16 %v5377
    %v8461 = vunpack.c.h.b16 %v5377
    %v8462 = vunpack.c.l.b16 %v5378
    %v8463 = vunpack.c.h.b16 %v5378
    %v8464 = vunpack.c.l.b16 %v5379
    %v8465 = vunpack.c.h.b16 %v5379
    %v8466 = vunpack.c.l.b16 %v5380
    %v8467 = vunpack.c.h.b16 %v5380
    %v8468 = vunpack.c.l.b16 %v5381
    %v8469 = vunpack.c.h.b16 %v5381
    %v8470 = vunpack.c.l.b16 %v5382
    %v8471 = vunpack.c.h.b16 %v5382
    %v8472 = vunpack.c.l.b16 %v5383
    %v8473 = vunpack.c.h.b16 %v5383
    %v8474 = vunpack.c.l.b16 %v5384
    %v8475 = vunpack.c.h.b16 %v5384
    %v8476 = vunpack.c.l.b16 %v5385
    %v8477 = vunpack.c.h.b16 %v5385
    %v8478 = vunpack.c.l.b16 %v5386
    %v8479 = vunpack.c.h.b16 %v5386
    %v8480 = vunpack.c.l.b16 %v5387
    %v8481 = vunpack.c.h.b16 %v5387
    %v8482 = vunpack.c.l.b16 %v5388
    %v8483 = vunpack.c.h.b16 %v5388
    %v8484 = vunpack.c.l.b16 %v5389
    %v8485 = vunpack.c.h.b16 %v5389
    %v8486 = vunpack.c.l.b16 %v5390
    %v8487 = vunpack.c.h.b16 %v5390
    %v8488 = vunpack.c.l.b16 %v5391
    %v8489 = vunpack.c.h.b16 %v5391
    %v8490 = vunpack.c.l.b16 %v5392
    %v8491 = vunpack.c.h.b16 %v5392
    %v8492 = vunpack.c.l.b16 %v5393
    %v8493 = vunpack.c.h.b16 %v5393
    %v8494 = vunpack.c.l.b16 %v5394
    %v8495 = vunpack.c.h.b16 %v5394
    %v8496 = vunpack.c.l.b16 %v5395
    %v8497 = vunpack.c.h.b16 %v5395
    %v8498 = vunpack.c.l.b16 %v5396
    %v8499 = vunpack.c.h.b16 %v5396
    %v8500 = vunpack.c.l.b16 %v5397
    %v8501 = vunpack.c.h.b16 %v5397
    %v8502 = vunpack.c.l.b16 %v5398
    %v8503 = vunpack.c.h.b16 %v5398
    %v8504 = vunpack.c.l.b16 %v5399
    %v8505 = vunpack.c.h.b16 %v5399
    %v8506 = vunpack.c.l.b16 %v5400
    %v8507 = vunpack.c.h.b16 %v5400
    %v8508 = vunpack.c.l.b16 %v5401
    %v8509 = vunpack.c.h.b16 %v5401
    %v8510 = vunpack.c.l.b16 %v5402
    %v8511 = vunpack.c.h.b16 %v5402
    %v8512 = vunpack.c.l.b16 %v5403
    %v8513 = vunpack.c.h.b16 %v5403
    %v8514 = vunpack.c.l.b16 %v5404
    %v8515 = vunpack.c.h.b16 %v5404
    %v8516 = vunpack.c.l.b16 %v5405
    %v8517 = vunpack.c.h.b16 %v5405
    %v8518 = vunpack.c.l.b16 %v5406
    %v8519 = vunpack.c.h.b16 %v5406
    %v8520 = vunpack.c.l.b16 %v5407
    %v8521 = vunpack.c.h.b16 %v5407
    %v8522 = vunpack.c.l.b16 %v5408
    %v8523 = vunpack.c.h.b16 %v5408
    %v8524 = vunpack.c.l.b16 %v5409
    %v8525 = vunpack.c.h.b16 %v5409
    %v8526 = vunpack.c.l.b16 %v5410
    %v8527 = vunpack.c.h.b16 %v5410
    %v8528 = vunpack.c.l.b16 %v5411
    %v8529 = vunpack.c.h.b16 %v5411
    %v8530 = vunpack.c.l.b16 %v5412
    %v8531 = vunpack.c.h.b16 %v5412
    %v8532 = vunpack.c.l.b16 %v5413
    %v8533 = vunpack.c.h.b16 %v5413
    %v8534 = vunpack.c.l.b16 %v5414
    %v8535 = vunpack.c.h.b16 %v5414
    %v8536 = vunpack.c.l.b16 %v5415
    %v8537 = vunpack.c.h.b16 %v5415
    %v8538 = vunpack.c.l.b16 %v5416
    %v8539 = vunpack.c.h.b16 %v5416
    %v8540 = vunpack.c.l.b16 %v5417
    %v8541 = vunpack.c.h.b16 %v5417
    %v8542 = vunpack.c.l.b16 %v5418
    %v8543 = vunpack.c.h.b16 %v5418
    %v8544 = vunpack.c.l.b16 %v5419
    %v8545 = vunpack.c.h.b16 %v5419
    %v8546 = vunpack.c.l.b16 %v5420
    %v8547 = vunpack.c.h.b16 %v5420
    %v8548 = vunpack.c.l.b16 %v5421
    %v8549 = vunpack.c.h.b16 %v5421
    %v8550 = vunpack.c.l.b16 %v5422
    %v8551 = vunpack.c.h.b16 %v5422
    %v8552 = vunpack.c.l.b16 %v5423
    %v8553 = vunpack.c.h.b16 %v5423
    %v8554 = vunpack.c.l.b16 %v5424
    %v8555 = vunpack.c.h.b16 %v5424
    %v8556 = vunpack.c.l.b16 %v5425
    %v8557 = vunpack.c.h.b16 %v5425
    %v8558 = vunpack.c.l.b16 %v5426
    %v8559 = vunpack.c.h.b16 %v5426
    %v8560 = vunpack.c.l.b16 %v5427
    %v8561 = vunpack.c.h.b16 %v5427
    %v8562 = vunpack.c.l.b16 %v5428
    %v8563 = vunpack.c.h.b16 %v5428
    %v8564 = vunpack.c.l.b16 %v5429
    %v8565 = vunpack.c.h.b16 %v5429
    %v8566 = vunpack.c.l.b16 %v5430
    %v8567 = vunpack.c.h.b16 %v5430
    %v8568 = vunpack.c.l.b16 %v5431
    %v8569 = vunpack.c.h.b16 %v5431
    %v8570 = vunpack.c.l.b16 %v5432
    %v8571 = vunpack.c.h.b16 %v5432
    %v8572 = vunpack.c.l.b16 %v5433
    %v8573 = vunpack.c.h.b16 %v5433
    %v8574 = vunpack.c.l.b16 %v5434
    %v8575 = vunpack.c.h.b16 %v5434
    %v8576 = vunpack.c.l.b16 %v5435
    %v8577 = vunpack.c.h.b16 %v5435
    %v8578 = vunpack.c.l.b16 %v5436
    %v8579 = vunpack.c.h.b16 %v5436
    %v8580 = vunpack.c.l.b16 %v5437
    %v8581 = vunpack.c.h.b16 %v5437
    %v8582 = vunpack.c.l.b16 %v5438
    %v8583 = vunpack.c.h.b16 %v5438
    %v8584 = vunpack.c.l.b16 %v5439
    %v8585 = vunpack.c.h.b16 %v5439
    %v8586 = vunpack.c.l.b16 %v5440
    %v8587 = vunpack.c.h.b16 %v5440
    %v8588 = vunpack.c.l.b16 %v5441
    %v8589 = vunpack.c.h.b16 %v5441
    %v8590 = vunpack.c.l.b16 %v5442
    %v8591 = vunpack.c.h.b16 %v5442
    %v8592 = vunpack.c.l.b16 %v5443
    %v8593 = vunpack.c.h.b16 %v5443
    %v8594 = vunpack.c.l.b16 %v5444
    %v8595 = vunpack.c.h.b16 %v5444
    %v8596 = vunpack.c.l.b16 %v5445
    %v8597 = vunpack.c.h.b16 %v5445
    %v8598 = vunpack.c.l.b16 %v5446
    %v8599 = vunpack.c.h.b16 %v5446
    %v8600 = vunpack.c.l.b16 %v5447
    %v8601 = vunpack.c.h.b16 %v5447
    %v8602 = vunpack.c.l.b16 %v5448
    %v8603 = vunpack.c.h.b16 %v5448
    %v8604 = vunpack.c.l.b16 %v5449
    %v8605 = vunpack.c.h.b16 %v5449
    %v8606 = vunpack.c.l.b16 %v5450
    %v8607 = vunpack.c.h.b16 %v5450
    %v8608 = vunpack.c.l.b16 %v5451
    %v8609 = vunpack.c.h.b16 %v5451
    %v8610 = vunpack.c.l.b16 %v5452
    %v8611 = vunpack.c.h.b16 %v5452
    %v8612 = vunpack.c.l.b16 %v5453
    %v8613 = vunpack.c.h.b16 %v5453
    %v8614 = vunpack.c.l.b16 %v5454
    %v8615 = vunpack.c.h.b16 %v5454
    %v8616 = vunpack.c.l.b16 %v5455
    %v8617 = vunpack.c.h.b16 %v5455
    %v8618 = vunpack.c.l.b16 %v5456
    %v8619 = vunpack.c.h.b16 %v5456
    %v8620 = vunpack.c.l.b16 %v5457
    %v8621 = vunpack.c.h.b16 %v5457
    %v8622 = vunpack.c.l.b16 %v5458
    %v8623 = vunpack.c.h.b16 %v5458
    %v8624 = vunpack.c.l.b16 %v5459
    %v8625 = vunpack.c.h.b16 %v5459
    %v8626 = vunpack.c.l.b16 %v5460
    %v8627 = vunpack.c.h.b16 %v5460
    %v8628 = vunpack.c.l.b16 %v5461
    %v8629 = vunpack.c.h.b16 %v5461
    %v8630 = vunpack.c.l.b16 %v5462
    %v8631 = vunpack.c.h.b16 %v5462
    %v8632 = vunpack.c.l.b16 %v5463
    %v8633 = vunpack.c.h.b16 %v5463
    %v8634 = vunpack.c.l.b16 %v5464
    %v8635 = vunpack.c.h.b16 %v5464
    %v8636 = vunpack.c.l.b16 %v5465
    %v8637 = vunpack.c.h.b16 %v5465
    %v8638 = vunpack.c.l.b16 %v5466
    %v8639 = vunpack.c.h.b16 %v5466
    %v8640 = vunpack.c.l.b16 %v5467
    %v8641 = vunpack.c.h.b16 %v5467
    %v8642 = vunpack.c.l.b16 %v5468
    %v8643 = vunpack.c.h.b16 %v5468
    %v8644 = vunpack.c.l.b16 %v5469
    %v8645 = vunpack.c.h.b16 %v5469
    %v8646 = vunpack.c.l.b16 %v5470
    %v8647 = vunpack.c.h.b16 %v5470
    %v8648 = vunpack.c.l.b16 %v5471
    %v8649 = vunpack.c.h.b16 %v5471
    %v8650 = vunpack.c.l.b16 %v5472
    %v8651 = vunpack.c.h.b16 %v5472
    %v8652 = vunpack.c.l.b16 %v5473
    %v8653 = vunpack.c.h.b16 %v5473
    %v8654 = vunpack.c.l.b16 %v5474
    %v8655 = vunpack.c.h.b16 %v5474
    %v8656 = vunpack.c.l.b16 %v5475
    %v8657 = vunpack.c.h.b16 %v5475
    %v8658 = vunpack.c.l.b16 %v5476
    %v8659 = vunpack.c.h.b16 %v5476
    %v8660 = vunpack.c.l.b16 %v5477
    %v8661 = vunpack.c.h.b16 %v5477
    %v8662 = vunpack.c.l.b16 %v5478
    %v8663 = vunpack.c.h.b16 %v5478
    %v8664 = vunpack.c.l.b16 %v5479
    %v8665 = vunpack.c.h.b16 %v5479
    %v8666 = vunpack.c.l.b16 %v5480
    %v8667 = vunpack.c.h.b16 %v5480
    %v8668 = vunpack.c.l.b16 %v5481
    %v8669 = vunpack.c.h.b16 %v5481
    %v8670 = vunpack.c.l.b16 %v5482
    %v8671 = vunpack.c.h.b16 %v5482
    %v8672 = vunpack.c.l.b16 %v5483
    %v8673 = vunpack.c.h.b16 %v5483
    %v8674 = vunpack.c.l.b16 %v5484
    %v8675 = vunpack.c.h.b16 %v5484
    %v8676 = vunpack.c.l.b16 %v5485
    %v8677 = vunpack.c.h.b16 %v5485
    %v8678 = vunpack.c.l.b16 %v5486
    %v8679 = vunpack.c.h.b16 %v5486
    %v8680 = vunpack.c.l.b16 %v5487
    %v8681 = vunpack.c.h.b16 %v5487
    %v8682 = vunpack.c.l.b16 %v5488
    %v8683 = vunpack.c.h.b16 %v5488
    %v8684 = vunpack.c.l.b16 %v5489
    %v8685 = vunpack.c.h.b16 %v5489
    %v8686 = vunpack.c.l.b16 %v5490
    %v8687 = vunpack.c.h.b16 %v5490
    %v8688 = vunpack.c.l.b16 %v5491
    %v8689 = vunpack.c.h.b16 %v5491
    %v8690 = vunpack.c.l.b16 %v5492
    %v8691 = vunpack.c.h.b16 %v5492
    %v8692 = vunpack.c.l.b16 %v5493
    %v8693 = vunpack.c.h.b16 %v5493
    %v8694 = vunpack.c.l.b16 %v5494
    %v8695 = vunpack.c.h.b16 %v5494
    %v8696 = vunpack.c.l.b16 %v5495
    %v8697 = vunpack.c.h.b16 %v5495
    %v8698 = vunpack.c.l.b16 %v5496
    %v8699 = vunpack.c.h.b16 %v5496
    %v8700 = vunpack.c.l.b16 %v5497
    %v8701 = vunpack.c.h.b16 %v5497
    %v8702 = vunpack.c.l.b16 %v5498
    %v8703 = vunpack.c.h.b16 %v5498
    %v8704 = vunpack.c.l.b16 %v5499
    %v8705 = vunpack.c.h.b16 %v5499
    %v8706 = vunpack.c.l.b16 %v5500
    %v8707 = vunpack.c.h.b16 %v5500
    %v8708 = vunpack.c.l.b16 %v5501
    %v8709 = vunpack.c.h.b16 %v5501
    %v8710 = vunpack.c.l.b16 %v5502
    %v8711 = vunpack.c.h.b16 %v5502
    %v8712 = vunpack.c.l.b16 %v5503
    %v8713 = vunpack.c.h.b16 %v5503
    %v8714 = vunpack.c.l.b16 %v5504
    %v8715 = vunpack.c.h.b16 %v5504
    %v8716 = vunpack.c.l.b16 %v5505
    %v8717 = vunpack.c.h.b16 %v5505
    %v8718 = vunpack.c.l.b16 %v5506
    %v8719 = vunpack.c.h.b16 %v5506
    %v8720 = vunpack.c.l.b16 %v5507
    %v8721 = vunpack.c.h.b16 %v5507
    %v8722 = vunpack.c.l.b16 %v5508
    %v8723 = vunpack.c.h.b16 %v5508
    %v8724 = vunpack.c.l.b16 %v5509
    %v8725 = vunpack.c.h.b16 %v5509
    %v8726 = vunpack.c.l.b16 %v5510
    %v8727 = vunpack.c.h.b16 %v5510
    %v8728 = vunpack.c.l.b16 %v5511
    %v8729 = vunpack.c.h.b16 %v5511
    %v8730 = vunpack.c.l.b16 %v5512
    %v8731 = vunpack.c.h.b16 %v5512
    %v8732 = vunpack.c.l.b16 %v5513
    %v8733 = vunpack.c.h.b16 %v5513
    %v8734 = vunpack.c.l.b16 %v5514
    %v8735 = vunpack.c.h.b16 %v5514
    %v8736 = vunpack.c.l.b16 %v5515
    %v8737 = vunpack.c.h.b16 %v5515
    %v8738 = vunpack.c.l.b16 %v5516
    %v8739 = vunpack.c.h.b16 %v5516
    %v8740 = vunpack.c.l.b16 %v5517
    %v8741 = vunpack.c.h.b16 %v5517
    %v8742 = vunpack.c.l.b16 %v5518
    %v8743 = vunpack.c.h.b16 %v5518
    %v8744 = vunpack.c.l.b16 %v5519
    %v8745 = vunpack.c.h.b16 %v5519
    %v8746 = vunpack.c.l.b16 %v5520
    %v8747 = vunpack.c.h.b16 %v5520
    %v8748 = vunpack.c.l.b16 %v5521
    %v8749 = vunpack.c.h.b16 %v5521
    %v8750 = vunpack.c.l.b16 %v5522
    %v8751 = vunpack.c.h.b16 %v5522
    %v8752 = vunpack.c.l.b16 %v5523
    %v8753 = vunpack.c.h.b16 %v5523
    %v8754 = vunpack.c.l.b16 %v5524
    %v8755 = vunpack.c.h.b16 %v5524
    %v8756 = vunpack.c.l.b16 %v5525
    %v8757 = vunpack.c.h.b16 %v5525
    %v8758 = vunpack.c.l.b16 %v5526
    %v8759 = vunpack.c.h.b16 %v5526
    %v8760 = vunpack.c.l.b16 %v5527
    %v8761 = vunpack.c.h.b16 %v5527
    %v8762 = vunpack.c.l.b16 %v5528
    %v8763 = vunpack.c.h.b16 %v5528
    %v8764 = vunpack.c.l.b16 %v5529
    %v8765 = vunpack.c.h.b16 %v5529
    %v8766 = vunpack.c.l.b16 %v5530
    %v8767 = vunpack.c.h.b16 %v5530
    %v8768 = vunpack.c.l.b16 %v5531
    %v8769 = vunpack.c.h.b16 %v5531
    %v8770 = vunpack.c.l.b16 %v5532
    %v8771 = vunpack.c.h.b16 %v5532
    %v8772 = vunpack.c.l.b16 %v5533
    %v8773 = vunpack.c.h.b16 %v5533
    %v8774 = vunpack.c.l.b16 %v5534
    %v8775 = vunpack.c.h.b16 %v5534
    %v8776 = vunpack.c.l.b16 %v5535
    %v8777 = vunpack.c.h.b16 %v5535
    %v8778 = vunpack.c.l.b16 %v5536
    %v8779 = vunpack.c.h.b16 %v5536
    %v8780 = vunpack.c.l.b16 %v5537
    %v8781 = vunpack.c.h.b16 %v5537
    %v8782 = vunpack.c.l.b16 %v5538
    %v8783 = vunpack.c.h.b16 %v5538
    %v8784 = vunpack.c.l.b16 %v5539
    %v8785 = vunpack.c.h.b16 %v5539
    %v8786 = vunpack.c.l.b16 %v5540
    %v8787 = vunpack.c.h.b16 %v5540
    %v8788 = vunpack.c.l.b16 %v5541
    %v8789 = vunpack.c.h.b16 %v5541
    %v8790 = vunpack.c.l.b16 %v5542
    %v8791 = vunpack.c.h.b16 %v5542
    %v8792 = vunpack.c.l.b16 %v5543
    %v8793 = vunpack.c.h.b16 %v5543
    %v8794 = vunpack.c.l.b16 %v5544
    %v8795 = vunpack.c.h.b16 %v5544
    %v8796 = vunpack.c.l.b16 %v5545
    %v8797 = vunpack.c.h.b16 %v5545
    %v8798 = vunpack.c.l.b16 %v5546
    %v8799 = vunpack.c.h.b16 %v5546
    %v8800 = vunpack.c.l.b16 %v5547
    %v8801 = vunpack.c.h.b16 %v5547
    %v8802 = vunpack.c.l.b16 %v5548
    %v8803 = vunpack.c.h.b16 %v5548
    %v8804 = vunpack.c.l.b16 %v5549
    %v8805 = vunpack.c.h.b16 %v5549
    %v8806 = vunpack.c.l.b16 %v5550
    %v8807 = vunpack.c.h.b16 %v5550
    %v8808 = vunpack.c.l.b16 %v5551
    %v8809 = vunpack.c.h.b16 %v5551
    %v8810 = vunpack.c.l.b16 %v5552
    %v8811 = vunpack.c.h.b16 %v5552
    %v8812 = vunpack.c.l.b16 %v5553
    %v8813 = vunpack.c.h.b16 %v5553
    %v8814 = vunpack.c.l.b16 %v5554
    %v8815 = vunpack.c.h.b16 %v5554
    %v8816 = vunpack.c.l.b16 %v5555
    %v8817 = vunpack.c.h.b16 %v5555
    %v8818 = vunpack.c.l.b16 %v5556
    %v8819 = vunpack.c.h.b16 %v5556
    %v8820 = vunpack.c.l.b16 %v5557
    %v8821 = vunpack.c.h.b16 %v5557
    %v8822 = vunpack.c.l.b16 %v5558
    %v8823 = vunpack.c.h.b16 %v5558
    %v8824 = vunpack.c.l.b16 %v5559
    %v8825 = vunpack.c.h.b16 %v5559
    %v8826 = vunpack.c.l.b16 %v5560
    %v8827 = vunpack.c.h.b16 %v5560
    %v8828 = vunpack.c.l.b16 %v5561
    %v8829 = vunpack.c.h.b16 %v5561
    %v8830 = vunpack.c.l.b16 %v5562
    %v8831 = vunpack.c.h.b16 %v5562
    %v8832 = vunpack.c.l.b16 %v5563
    %v8833 = vunpack.c.h.b16 %v5563
    %v8834 = vunpack.c.l.b16 %v5564
    %v8835 = vunpack.c.h.b16 %v5564
    %v8836 = vunpack.c.l.b16 %v5565
    %v8837 = vunpack.c.h.b16 %v5565
    %v8838 = vunpack.c.l.b16 %v5566
    %v8839 = vunpack.c.h.b16 %v5566
    %v8840 = vunpack.c.l.b16 %v5567
    %v8841 = vunpack.c.h.b16 %v5567
    %v8842 = vunpack.c.l.b16 %v5568
    %v8843 = vunpack.c.h.b16 %v5568
    %v8844 = vunpack.c.l.b16 %v5569
    %v8845 = vunpack.c.h.b16 %v5569
    %v8846 = vunpack.c.l.b16 %v5570
    %v8847 = vunpack.c.h.b16 %v5570
    %v8848 = vunpack.c.l.b16 %v5571
    %v8849 = vunpack.c.h.b16 %v5571
    %v8850 = vunpack.c.l.b16 %v5572
    %v8851 = vunpack.c.h.b16 %v5572
    %v8852 = vunpack.c.l.b16 %v5573
    %v8853 = vunpack.c.h.b16 %v5573
    %v8854 = vunpack.c.l.b16 %v5574
    %v8855 = vunpack.c.h.b16 %v5574
    %v8856 = vunpack.c.l.b16 %v5575
    %v8857 = vunpack.c.h.b16 %v5575
    %v8858 = vunpack.c.l.b16 %v5576
    %v8859 = vunpack.c.h.b16 %v5576
    %v8860 = vunpack.c.l.b16 %v5577
    %v8861 = vunpack.c.h.b16 %v5577
    %v8862 = vunpack.c.l.b16 %v5578
    %v8863 = vunpack.c.h.b16 %v5578
    %v8864 = vunpack.c.l.b16 %v5579
    %v8865 = vunpack.c.h.b16 %v5579
    %v8866 = vunpack.c.l.b16 %v5580
    %v8867 = vunpack.c.h.b16 %v5580
    %v8868 = vunpack.c.l.b16 %v5581
    %v8869 = vunpack.c.h.b16 %v5581
    %v8870 = vunpack.c.l.b16 %v5582
    %v8871 = vunpack.c.h.b16 %v5582
    %v8872 = vunpack.c.l.b16 %v5583
    %v8873 = vunpack.c.h.b16 %v5583
    %v8874 = vunpack.c.l.b16 %v5584
    %v8875 = vunpack.c.h.b16 %v5584
    %v8876 = vunpack.c.l.b16 %v5585
    %v8877 = vunpack.c.h.b16 %v5585
    %v8878 = vunpack.c.l.b16 %v5586
    %v8879 = vunpack.c.h.b16 %v5586
    %v8880 = vunpack.c.l.b16 %v5587
    %v8881 = vunpack.c.h.b16 %v5587
    %v8882 = vunpack.c.l.b16 %v5588
    %v8883 = vunpack.c.h.b16 %v5588
    %v8884 = vunpack.c.l.b16 %v5589
    %v8885 = vunpack.c.h.b16 %v5589
    %v8886 = vunpack.c.l.b16 %v5590
    %v8887 = vunpack.c.h.b16 %v5590
    %v8888 = vunpack.c.l.b16 %v5591
    %v8889 = vunpack.c.h.b16 %v5591
    %v8890 = vunpack.c.l.b16 %v5592
    %v8891 = vunpack.c.h.b16 %v5592
    %v8892 = vunpack.c.l.b16 %v5593
    %v8893 = vunpack.c.h.b16 %v5593
    %v8894 = vunpack.c.l.b16 %v5594
    %v8895 = vunpack.c.h.b16 %v5594
    %v8896 = vunpack.c.l.b16 %v5595
    %v8897 = vunpack.c.h.b16 %v5595
    %v8898 = vunpack.c.l.b16 %v5596
    %v8899 = vunpack.c.h.b16 %v5596
    %v8900 = vunpack.c.l.b16 %v5597
    %v8901 = vunpack.c.h.b16 %v5597
    %v8902 = vunpack.c.l.b16 %v5598
    %v8903 = vunpack.c.h.b16 %v5598
    %v8904 = vunpack.c.l.b16 %v5599
    %v8905 = vunpack.c.h.b16 %v5599
    %v8906 = vunpack.c.l.b16 %v5600
    %v8907 = vunpack.c.h.b16 %v5600
    %v8908 = vunpack.c.l.b16 %v5601
    %v8909 = vunpack.c.h.b16 %v5601
    %v8910 = vunpack.c.l.b16 %v5602
    %v8911 = vunpack.c.h.b16 %v5602
    %v8912 = vunpack.c.l.b16 %v5603
    %v8913 = vunpack.c.h.b16 %v5603
    %v8914 = vunpack.c.l.b16 %v5604
    %v8915 = vunpack.c.h.b16 %v5604
    %v8916 = vunpack.c.l.b16 %v5605
    %v8917 = vunpack.c.h.b16 %v5605
    %v8918 = vunpack.c.l.b16 %v5606
    %v8919 = vunpack.c.h.b16 %v5606
    %v8920 = vunpack.c.l.b16 %v5607
    %v8921 = vunpack.c.h.b16 %v5607
    %v8922 = vunpack.c.l.b16 %v5608
    %v8923 = vunpack.c.h.b16 %v5608
    %v8924 = vunpack.c.l.b16 %v5609
    %v8925 = vunpack.c.h.b16 %v5609
    %v8926 = vunpack.c.l.b16 %v5610
    %v8927 = vunpack.c.h.b16 %v5610
    %v8928 = vunpack.c.l.b16 %v5611
    %v8929 = vunpack.c.h.b16 %v5611
    %v8930 = vunpack.c.l.b16 %v5612
    %v8931 = vunpack.c.h.b16 %v5612
    %v8932 = vunpack.c.l.b16 %v5613
    %v8933 = vunpack.c.h.b16 %v5613
    %v8934 = vunpack.c.l.b16 %v5614
    %v8935 = vunpack.c.h.b16 %v5614
    %v8936 = vunpack.c.l.b16 %v5615
    %v8937 = vunpack.c.h.b16 %v5615
    %v8938 = vunpack.c.l.b16 %v5616
    %v8939 = vunpack.c.h.b16 %v5616
    %v8940 = vunpack.c.l.b16 %v5617
    %v8941 = vunpack.c.h.b16 %v5617
    %v8942 = vunpack.c.l.b16 %v5618
    %v8943 = vunpack.c.h.b16 %v5618
    %v8944 = vunpack.c.l.b16 %v5619
    %v8945 = vunpack.c.h.b16 %v5619
    %v8946 = vunpack.c.l.b16 %v5620
    %v8947 = vunpack.c.h.b16 %v5620
    %v8948 = vunpack.c.l.b16 %v5621
    %v8949 = vunpack.c.h.b16 %v5621
    %v8950 = vunpack.c.l.b16 %v5622
    %v8951 = vunpack.c.h.b16 %v5622
    %v8952 = vunpack.c.l.b16 %v5623
    %v8953 = vunpack.c.h.b16 %v5623
    %v8954 = vunpack.c.l.b16 %v5624
    %v8955 = vunpack.c.h.b16 %v5624
    %v8956 = vunpack.c.l.b16 %v5625
    %v8957 = vunpack.c.h.b16 %v5625
    %v8958 = vunpack.c.l.b16 %v5626
    %v8959 = vunpack.c.h.b16 %v5626
    %v8960 = vunpack.c.l.b16 %v5627
    %v8961 = vunpack.c.h.b16 %v5627
    %v8962 = vunpack.c.l.b16 %v5628
    %v8963 = vunpack.c.h.b16 %v5628
    %v8964 = vunpack.c.l.b16 %v5629
    %v8965 = vunpack.c.h.b16 %v5629
    %v8966 = vunpack.c.l.b16 %v5630
    %v8967 = vunpack.c.h.b16 %v5630
    %v8968 = vunpack.c.l.b16 %v5631
    %v8969 = vunpack.c.h.b16 %v5631
    %v8970 = vunpack.c.l.b16 %v5632
    %v8971 = vunpack.c.h.b16 %v5632
    %v8972 = vunpack.c.l.b16 %v5633
    %v8973 = vunpack.c.h.b16 %v5633
    %v8974 = vunpack.c.l.b16 %v5634
    %v8975 = vunpack.c.h.b16 %v5634
    %v8976 = vunpack.c.l.b16 %v5635
    %v8977 = vunpack.c.h.b16 %v5635
    %v8978 = vunpack.c.l.b16 %v5636
    %v8979 = vunpack.c.h.b16 %v5636
    %v8980 = vunpack.c.l.b16 %v5637
    %v8981 = vunpack.c.h.b16 %v5637
    %v8982 = vunpack.c.l.b16 %v5638
    %v8983 = vunpack.c.h.b16 %v5638
    %v8984 = vunpack.c.l.b16 %v5639
    %v8985 = vunpack.c.h.b16 %v5639
    %v8986 = vunpack.c.l.b16 %v5640
    %v8987 = vunpack.c.h.b16 %v5640
    %v8988 = vunpack.c.l.b16 %v5641
    %v8989 = vunpack.c.h.b16 %v5641
    %v8990 = vunpack.c.l.b16 %v5642
    %v8991 = vunpack.c.h.b16 %v5642
    %v8992 = vunpack.c.l.b16 %v5643
    %v8993 = vunpack.c.h.b16 %v5643
    %v8994 = vunpack.c.l.b16 %v5644
    %v8995 = vunpack.c.h.b16 %v5644
    %v8996 = vunpack.c.l.b16 %v5645
    %v8997 = vunpack.c.h.b16 %v5645
    %v8998 = vunpack.c.l.b16 %v5646
    %v8999 = vunpack.c.h.b16 %v5646
    %v9000 = vunpack.c.l.b16 %v5647
    %v9001 = vunpack.c.h.b16 %v5647
    %v9002 = vunpack.c.l.b16 %v5648
    %v9003 = vunpack.c.h.b16 %v5648
    %v9004 = vunpack.c.l.b16 %v5649
    %v9005 = vunpack.c.h.b16 %v5649
    %v9006 = vunpack.c.l.b16 %v5650
    %v9007 = vunpack.c.h.b16 %v5650
    %v9008 = vunpack.c.l.b16 %v5651
    %v9009 = vunpack.c.h.b16 %v5651
    %v9010 = vunpack.c.l.b16 %v5652
    %v9011 = vunpack.c.h.b16 %v5652
    %v9012 = vunpack.c.l.b16 %v5653
    %v9013 = vunpack.c.h.b16 %v5653
    %v9014 = vunpack.c.l.b16 %v5654
    %v9015 = vunpack.c.h.b16 %v5654
    %v9016 = vunpack.c.l.b16 %v5655
    %v9017 = vunpack.c.h.b16 %v5655
    %v9018 = vunpack.c.l.b16 %v5656
    %v9019 = vunpack.c.h.b16 %v5656
    %v9020 = vunpack.c.l.b16 %v5657
    %v9021 = vunpack.c.h.b16 %v5657
    %v9022 = vunpack.c.l.b16 %v5658
    %v9023 = vunpack.c.h.b16 %v5658
    %v9024 = vunpack.c.l.b16 %v5659
    %v9025 = vunpack.c.h.b16 %v5659
    %v9026 = vunpack.c.l.b16 %v5660
    %v9027 = vunpack.c.h.b16 %v5660
    %v9028 = vunpack.c.l.b16 %v5661
    %v9029 = vunpack.c.h.b16 %v5661
    %v9030 = vunpack.c.l.b16 %v5662
    %v9031 = vunpack.c.h.b16 %v5662
    %v9032 = vunpack.c.l.b16 %v5663
    %v9033 = vunpack.c.h.b16 %v5663
    %v9034 = vunpack.c.l.b16 %v5664
    %v9035 = vunpack.c.h.b16 %v5664
    %v9036 = vunpack.c.l.b16 %v5665
    %v9037 = vunpack.c.h.b16 %v5665
    %v9038 = vunpack.c.l.b16 %v5666
    %v9039 = vunpack.c.h.b16 %v5666
    %v9040 = vunpack.c.l.b16 %v5667
    %v9041 = vunpack.c.h.b16 %v5667
    %v9042 = vunpack.c.l.b16 %v5668
    %v9043 = vunpack.c.h.b16 %v5668
    %v9044 = vunpack.c.l.b16 %v5669
    %v9045 = vunpack.c.h.b16 %v5669
    %v9046 = vunpack.c.l.b16 %v5670
    %v9047 = vunpack.c.h.b16 %v5670
    %v9048 = vunpack.c.l.b16 %v5671
    %v9049 = vunpack.c.h.b16 %v5671
    %v9050 = vunpack.c.l.b16 %v5672
    %v9051 = vunpack.c.h.b16 %v5672
    %v9052 = vunpack.c.l.b16 %v5673
    %v9053 = vunpack.c.h.b16 %v5673
    %v9054 = vunpack.c.l.b16 %v5674
    %v9055 = vunpack.c.h.b16 %v5674
    %v9056 = vunpack.c.l.b16 %v5675
    %v9057 = vunpack.c.h.b16 %v5675
    %v9058 = vunpack.c.l.b16 %v5676
    %v9059 = vunpack.c.h.b16 %v5676
    %v9060 = vunpack.c.l.b16 %v5677
    %v9061 = vunpack.c.h.b16 %v5677
    %v9062 = vunpack.c.l.b16 %v5678
    %v9063 = vunpack.c.h.b16 %v5678
    %v9064 = vunpack.c.l.b16 %v5679
    %v9065 = vunpack.c.h.b16 %v5679
    %v9066 = vunpack.c.l.b16 %v5680
    %v9067 = vunpack.c.h.b16 %v5680
    %v9068 = vunpack.c.l.b16 %v5681
    %v9069 = vunpack.c.h.b16 %v5681
    %v9070 = vunpack.c.l.b16 %v5682
    %v9071 = vunpack.c.h.b16 %v5682
    %v9072 = vunpack.c.l.b16 %v5683
    %v9073 = vunpack.c.h.b16 %v5683
    %v9074 = vunpack.c.l.b16 %v5684
    %v9075 = vunpack.c.h.b16 %v5684
    %v9076 = vunpack.c.l.b16 %v5685
    %v9077 = vunpack.c.h.b16 %v5685
    %v9078 = vunpack.c.l.b16 %v5686
    %v9079 = vunpack.c.h.b16 %v5686
    %v9080 = vunpack.c.l.b16 %v5687
    %v9081 = vunpack.c.h.b16 %v5687
    %v9082 = vunpack.c.l.b16 %v5688
    %v9083 = vunpack.c.h.b16 %v5688
    %v9084 = vunpack.c.l.b16 %v5689
    %v9085 = vunpack.c.h.b16 %v5689
    %v9086 = vunpack.c.l.b16 %v5690
    %v9087 = vunpack.c.h.b16 %v5690
    %v9088 = vunpack.c.l.b16 %v5691
    %v9089 = vunpack.c.h.b16 %v5691
    %v9090 = vunpack.c.l.b16 %v5692
    %v9091 = vunpack.c.h.b16 %v5692
    %v9092 = vunpack.c.l.b16 %v5693
    %v9093 = vunpack.c.h.b16 %v5693
    %v9094 = vunpack.c.l.b16 %v5694
    %v9095 = vunpack.c.h.b16 %v5694
    %v9096 = vunpack.c.l.b16 %v5695
    %v9097 = vunpack.c.h.b16 %v5695
    %v9098 = vunpack.c.l.b16 %v5696
    %v9099 = vunpack.c.h.b16 %v5696
    %v9100 = vunpack.c.l.b16 %v5697
    %v9101 = vunpack.c.h.b16 %v5697
    %v9102 = vunpack.c.l.b16 %v5698
    %v9103 = vunpack.c.h.b16 %v5698
    %v9104 = vunpack.c.l.b16 %v5699
    %v9105 = vunpack.c.h.b16 %v5699
    %v9106 = vunpack.c.l.b16 %v5700
    %v9107 = vunpack.c.h.b16 %v5700
    %v9108 = vunpack.c.l.b16 %v5701
    %v9109 = vunpack.c.h.b16 %v5701
    %v9110 = vunpack.c.l.b16 %v5702
    %v9111 = vunpack.c.h.b16 %v5702
    %v9112 = vunpack.c.l.b16 %v5703
    %v9113 = vunpack.c.h.b16 %v5703
    %v9114 = vunpack.c.l.b16 %v5704
    %v9115 = vunpack.c.h.b16 %v5704
    %v9116 = vunpack.c.l.b16 %v5705
    %v9117 = vunpack.c.h.b16 %v5705
    %v9118 = vunpack.c.l.b16 %v5706
    %v9119 = vunpack.c.h.b16 %v5706
    %v9120 = vunpack.c.l.b16 %v5707
    %v9121 = vunpack.c.h.b16 %v5707
    %v9122 = vunpack.c.l.b16 %v5708
    %v9123 = vunpack.c.h.b16 %v5708
    %v9124 = vunpack.c.l.b16 %v5709
    %v9125 = vunpack.c.h.b16 %v5709
    %v9126 = vunpack.c.l.b16 %v5710
    %v9127 = vunpack.c.h.b16 %v5710
    %v9128 = vunpack.c.l.b16 %v5711
    %v9129 = vunpack.c.h.b16 %v5711
    %v9130 = vunpack.c.l.b16 %v5712
    %v9131 = vunpack.c.h.b16 %v5712
    %v9132 = vunpack.c.l.b16 %v5713
    %v9133 = vunpack.c.h.b16 %v5713
    %v9134 = vunpack.c.l.b16 %v5714
    %v9135 = vunpack.c.h.b16 %v5714
    %v9136 = vunpack.c.l.b16 %v5715
    %v9137 = vunpack.c.h.b16 %v5715
    %v9138 = vunpack.c.l.b16 %v5716
    %v9139 = vunpack.c.h.b16 %v5716
    %v9140 = vunpack.c.l.b16 %v5717
    %v9141 = vunpack.c.h.b16 %v5717
    %v9142 = vunpack.c.l.b16 %v5718
    %v9143 = vunpack.c.h.b16 %v5718
    %v9144 = vunpack.c.l.b16 %v5719
    %v9145 = vunpack.c.h.b16 %v5719
    %v9146 = vunpack.c.l.b16 %v5720
    %v9147 = vunpack.c.h.b16 %v5720
    %v9148 = vunpack.c.l.b16 %v5721
    %v9149 = vunpack.c.h.b16 %v5721
    %v9150 = vunpack.c.l.b16 %v5722
    %v9151 = vunpack.c.h.b16 %v5722
    %v9152 = vunpack.c.l.b16 %v5723
    %v9153 = vunpack.c.h.b16 %v5723
    %v9154 = vunpack.c.l.b16 %v5724
    %v9155 = vunpack.c.h.b16 %v5724
    %v9156 = vunpack.c.l.b16 %v5725
    %v9157 = vunpack.c.h.b16 %v5725
    %v9158 = vunpack.c.l.b16 %v5726
    %v9159 = vunpack.c.h.b16 %v5726
    %v9160 = vunpack.c.l.b16 %v5727
    %v9161 = vunpack.c.h.b16 %v5727
    %v9162 = vunpack.c.l.b16 %v5728
    %v9163 = vunpack.c.h.b16 %v5728
    %v9164 = vunpack.c.l.b16 %v5729
    %v9165 = vunpack.c.h.b16 %v5729
    %v9166 = vunpack.c.l.b16 %v5730
    %v9167 = vunpack.c.h.b16 %v5730
    %v9168 = vunpack.c.l.b16 %v5731
    %v9169 = vunpack.c.h.b16 %v5731
    %v9170 = vunpack.c.l.b16 %v5732
    %v9171 = vunpack.c.h.b16 %v5732
    %v9172 = vunpack.c.l.b16 %v5733
    %v9173 = vunpack.c.h.b16 %v5733
    %v9174 = vunpack.c.l.b16 %v5734
    %v9175 = vunpack.c.h.b16 %v5734
    %v9176 = vunpack.c.l.b16 %v5735
    %v9177 = vunpack.c.h.b16 %v5735
    %v9178 = vunpack.c.l.b16 %v5736
    %v9179 = vunpack.c.h.b16 %v5736
    %v9180 = vunpack.c.l.b16 %v5737
    %v9181 = vunpack.c.h.b16 %v5737
    %v9182 = vunpack.c.l.b16 %v5738
    %v9183 = vunpack.c.h.b16 %v5738
    %v9184 = vunpack.c.l.b16 %v5739
    %v9185 = vunpack.c.h.b16 %v5739
    %v9186 = vunpack.c.l.b16 %v5740
    %v9187 = vunpack.c.h.b16 %v5740
    %v9188 = vunpack.c.l.b16 %v5741
    %v9189 = vunpack.c.h.b16 %v5741
    %v9190 = vunpack.c.l.b16 %v5742
    %v9191 = vunpack.c.h.b16 %v5742
    %v9192 = vunpack.c.l.b16 %v5743
    %v9193 = vunpack.c.h.b16 %v5743
    %v9194 = vunpack.c.l.b16 %v5744
    %v9195 = vunpack.c.h.b16 %v5744
    %v9196 = vunpack.c.l.b16 %v5745
    %v9197 = vunpack.c.h.b16 %v5745
    %v9198 = vunpack.c.l.b16 %v5746
    %v9199 = vunpack.c.h.b16 %v5746
    %v9200 = vunpack.c.l.b16 %v5747
    %v9201 = vunpack.c.h.b16 %v5747
    %v9202 = vunpack.c.l.b16 %v5748
    %v9203 = vunpack.c.h.b16 %v5748
    %v9204 = vunpack.c.l.b16 %v5749
    %v9205 = vunpack.c.h.b16 %v5749
    %v9206 = vunpack.c.l.b16 %v5750
    %v9207 = vunpack.c.h.b16 %v5750
    %v9208 = vunpack.c.l.b16 %v5751
    %v9209 = vunpack.c.h.b16 %v5751
    %v9210 = vunpack.c.l.b16 %v5752
    %v9211 = vunpack.c.h.b16 %v5752
    %v9212 = vunpack.c.l.b16 %v5753
    %v9213 = vunpack.c.h.b16 %v5753
    %v9214 = vunpack.c.l.b16 %v5754
    %v9215 = vunpack.c.h.b16 %v5754
    %v9216 = vunpack.c.l.b16 %v5755
    %v9217 = vunpack.c.h.b16 %v5755
    %v9218 = vunpack.c.l.b16 %v5756
    %v9219 = vunpack.c.h.b16 %v5756
    %v9220 = vunpack.c.l.b16 %v5757
    %v9221 = vunpack.c.h.b16 %v5757
    %v9222 = vunpack.c.l.b16 %v5758
    %v9223 = vunpack.c.h.b16 %v5758
    %v9224 = vunpack.c.l.b16 %v5759
    %v9225 = vunpack.c.h.b16 %v5759
    %v9226 = vunpack.c.l.b16 %v5760
    %v9227 = vunpack.c.h.b16 %v5760
    %v9228 = vunpack.c.l.b16 %v5761
    %v9229 = vunpack.c.h.b16 %v5761
    %v9230 = vunpack.c.l.b16 %v5762
    %v9231 = vunpack.c.h.b16 %v5762
    %v9232 = vunpack.c.l.b16 %v5763
    %v9233 = vunpack.c.h.b16 %v5763
    %v9234 = vunpack.c.l.b16 %v5764
    %v9235 = vunpack.c.h.b16 %v5764
    %v9236 = vunpack.c.l.b16 %v5765
    %v9237 = vunpack.c.h.b16 %v5765
    %v9238 = vunpack.c.l.b16 %v5766
    %v9239 = vunpack.c.h.b16 %v5766
    %v9240 = vunpack.c.l.b16 %v5767
    %v9241 = vunpack.c.h.b16 %v5767
    %v9242 = vunpack.c.l.b16 %v5768
    %v9243 = vunpack.c.h.b16 %v5768
    %v9244 = vunpack.c.l.b16 %v5769
    %v9245 = vunpack.c.h.b16 %v5769
    %v9246 = vunpack.c.l.b16 %v5770
    %v9247 = vunpack.c.h.b16 %v5770
    %v9248 = vunpack.c.l.b16 %v5771
    %v9249 = vunpack.c.h.b16 %v5771
    %v9250 = vunpack.c.l.b16 %v5772
    %v9251 = vunpack.c.h.b16 %v5772
    %v9252 = vunpack.c.l.b16 %v5773
    %v9253 = vunpack.c.h.b16 %v5773
    %v9254 = vunpack.c.l.b16 %v5774
    %v9255 = vunpack.c.h.b16 %v5774
    %v9256 = vunpack.c.l.b16 %v5775
    %v9257 = vunpack.c.h.b16 %v5775
    %v9258 = vunpack.c.l.b16 %v5776
    %v9259 = vunpack.c.h.b16 %v5776
    %v9260 = vunpack.c.l.b16 %v5777
    %v9261 = vunpack.c.h.b16 %v5777
    %v9262 = vunpack.c.l.b16 %v5778
    %v9263 = vunpack.c.h.b16 %v5778
    %v9264 = vunpack.c.l.b16 %v5779
    %v9265 = vunpack.c.h.b16 %v5779
    %v9266 = vunpack.c.l.b16 %v5780
    %v9267 = vunpack.c.h.b16 %v5780
    %v9268 = vunpack.c.l.b16 %v5781
    %v9269 = vunpack.c.h.b16 %v5781
    %v9270 = vunpack.c.l.b16 %v5782
    %v9271 = vunpack.c.h.b16 %v5782
    %v9272 = vunpack.c.l.b16 %v5783
    %v9273 = vunpack.c.h.b16 %v5783
    %v9274 = vunpack.c.l.b16 %v5784
    %v9275 = vunpack.c.h.b16 %v5784
    %v9276 = vunpack.c.l.b16 %v5785
    %v9277 = vunpack.c.h.b16 %v5785
    %v9278 = vunpack.c.l.b16 %v5786
    %v9279 = vunpack.c.h.b16 %v5786
    %v9280 = vunpack.c.l.b16 %v5787
    %v9281 = vunpack.c.h.b16 %v5787
    %v9282 = vunpack.c.l.b16 %v5788
    %v9283 = vunpack.c.h.b16 %v5788
    %v9284 = vunpack.c.l.b16 %v5789
    %v9285 = vunpack.c.h.b16 %v5789
    %v9286 = vunpack.c.l.b16 %v5790
    %v9287 = vunpack.c.h.b16 %v5790
    %v9288 = vunpack.c.l.b16 %v5791
    %v9289 = vunpack.c.h.b16 %v5791
    %v9290 = vunpack.c.l.b16 %v5792
    %v9291 = vunpack.c.h.b16 %v5792
    %v9292 = vunpack.c.l.b16 %v5793
    %v9293 = vunpack.c.h.b16 %v5793
    %v9294 = vunpack.c.l.b16 %v5794
    %v9295 = vunpack.c.h.b16 %v5794
    %v9296 = vunpack.c.l.b16 %v5795
    %v9297 = vunpack.c.h.b16 %v5795
    %v9298 = vunpack.c.l.b16 %v5796
    %v9299 = vunpack.c.h.b16 %v5796
    %v9300 = vunpack.c.l.b16 %v5797
    %v9301 = vunpack.c.h.b16 %v5797
    %v9302 = vunpack.c.l.b16 %v5798
    %v9303 = vunpack.c.h.b16 %v5798
    %v9304 = vunpack.c.l.b16 %v5799
    %v9305 = vunpack.c.h.b16 %v5799
    %v9306 = vunpack.c.l.b16 %v5800
    %v9307 = vunpack.c.h.b16 %v5800
    %v9308 = vunpack.c.l.b16 %v5801
    %v9309 = vunpack.c.h.b16 %v5801
    %v9310 = vunpack.c.l.b16 %v5802
    %v9311 = vunpack.c.h.b16 %v5802
    %v9312 = vunpack.c.l.b16 %v5803
    %v9313 = vunpack.c.h.b16 %v5803
    %v9314 = vunpack.c.l.b16 %v5804
    %v9315 = vunpack.c.h.b16 %v5804
    %v9316 = vunpack.c.l.b16 %v5805
    %v9317 = vunpack.c.h.b16 %v5805
    %v9318 = vunpack.c.l.b16 %v5806
    %v9319 = vunpack.c.h.b16 %v5806
    %v9320 = vunpack.c.l.b16 %v5807
    %v9321 = vunpack.c.h.b16 %v5807
    %v9322 = vunpack.c.l.b16 %v5808
    %v9323 = vunpack.c.h.b16 %v5808
    %v9324 = vunpack.c.l.b16 %v5809
    %v9325 = vunpack.c.h.b16 %v5809
    %v9326 = vunpack.c.l.b16 %v5810
    %v9327 = vunpack.c.h.b16 %v5810
    %v9328 = vunpack.c.l.b16 %v5811
    %v9329 = vunpack.c.h.b16 %v5811
    %v9330 = vunpack.c.l.b16 %v5812
    %v9331 = vunpack.c.h.b16 %v5812
    %v9332 = vunpack.c.l.b16 %v5813
    %v9333 = vunpack.c.h.b16 %v5813
    %v9334 = vunpack.c.l.b16 %v5814
    %v9335 = vunpack.c.h.b16 %v5814
    %v9336 = vunpack.c.l.b16 %v5815
    %v9337 = vunpack.c.h.b16 %v5815
    %v9338 = vunpack.c.l.b16 %v5816
    %v9339 = vunpack.c.h.b16 %v5816
    %v9340 = vunpack.c.l.b16 %v5817
    %v9341 = vunpack.c.h.b16 %v5817
    %v9342 = vunpack.c.l.b16 %v5818
    %v9343 = vunpack.c.h.b16 %v5818
    %v9344 = vunpack.c.l.b16 %v5819
    %v9345 = vunpack.c.h.b16 %v5819
    %v9346 = vunpack.c.l.b16 %v5820
    %v9347 = vunpack.c.h.b16 %v5820
    %v9348 = vunpack.c.l.b16 %v5821
    %v9349 = vunpack.c.h.b16 %v5821
    %v9350 = vunpack.c.l.b16 %v5822
    %v9351 = vunpack.c.h.b16 %v5822
    %v9352 = vunpack.c.l.b16 %v5823
    %v9353 = vunpack.c.h.b16 %v5823
    %v9354 = vunpack.c.l.b16 %v5824
    %v9355 = vunpack.c.h.b16 %v5824
    %v9356 = vunpack.c.l.b16 %v5825
    %v9357 = vunpack.c.h.b16 %v5825
    %v9358 = vunpack.c.l.b16 %v5826
    %v9359 = vunpack.c.h.b16 %v5826
    %v9360 = vunpack.c.l.b16 %v5827
    %v9361 = vunpack.c.h.b16 %v5827
    %v9362 = vunpack.c.l.b16 %v5828
    %v9363 = vunpack.c.h.b16 %v5828
    %v9364 = vunpack.c.l.b16 %v5829
    %v9365 = vunpack.c.h.b16 %v5829
    %v9366 = vunpack.c.l.b16 %v5830
    %v9367 = vunpack.c.h.b16 %v5830
    %v9368 = vunpack.c.l.b16 %v5831
    %v9369 = vunpack.c.h.b16 %v5831
    %v9370 = vunpack.c.l.b16 %v5832
    %v9371 = vunpack.c.h.b16 %v5832
    %v9372 = vunpack.c.l.b16 %v5833
    %v9373 = vunpack.c.h.b16 %v5833
    %v9374 = vunpack.c.l.b16 %v5834
    %v9375 = vunpack.c.h.b16 %v5834
    %v9376 = vunpack.c.l.b16 %v5835
    %v9377 = vunpack.c.h.b16 %v5835
    %v9378 = vunpack.c.l.b16 %v5836
    %v9379 = vunpack.c.h.b16 %v5836
    %v9380 = vunpack.c.l.b16 %v5837
    %v9381 = vunpack.c.h.b16 %v5837
    %v9382 = vunpack.c.l.b16 %v5838
    %v9383 = vunpack.c.h.b16 %v5838
    %v9384 = vunpack.c.l.b16 %v5839
    %v9385 = vunpack.c.h.b16 %v5839
    %v9386 = vunpack.c.l.b16 %v5840
    %v9387 = vunpack.c.h.b16 %v5840
    %v9388 = vunpack.c.l.b16 %v5841
    %v9389 = vunpack.c.h.b16 %v5841
    %v9390 = vunpack.c.l.b16 %v5842
    %v9391 = vunpack.c.h.b16 %v5842
    %v9392 = vunpack.c.l.b16 %v5843
    %v9393 = vunpack.c.h.b16 %v5843
    %v9394 = vunpack.c.l.b16 %v5844
    %v9395 = vunpack.c.h.b16 %v5844
    %v9396 = vunpack.c.l.b16 %v5845
    %v9397 = vunpack.c.h.b16 %v5845
    %v9398 = vunpack.c.l.b16 %v5846
    %v9399 = vunpack.c.h.b16 %v5846
    %v9400 = vunpack.c.l.b16 %v5847
    %v9401 = vunpack.c.h.b16 %v5847
    %v9402 = vunpack.c.l.b16 %v5848
    %v9403 = vunpack.c.h.b16 %v5848
    %v9404 = vunpack.c.l.b16 %v5849
    %v9405 = vunpack.c.h.b16 %v5849
    %v9406 = vunpack.c.l.b16 %v5850
    %v9407 = vunpack.c.h.b16 %v5850
    %v9408 = vunpack.c.l.b16 %v5851
    %v9409 = vunpack.c.h.b16 %v5851
    %v9410 = vunpack.c.l.b16 %v5852
    %v9411 = vunpack.c.h.b16 %v5852
    %v9412 = vunpack.c.l.b16 %v5853
    %v9413 = vunpack.c.h.b16 %v5853
    %v9414 = vunpack.c.l.b16 %v5854
    %v9415 = vunpack.c.h.b16 %v5854
    %v9416 = vunpack.c.l.b16 %v5855
    %v9417 = vunpack.c.h.b16 %v5855
    %v9418 = vunpack.c.l.b16 %v5856
    %v9419 = vunpack.c.h.b16 %v5856
    %v9420 = vunpack.c.l.b16 %v5857
    %v9421 = vunpack.c.h.b16 %v5857
    %v9422 = vunpack.c.l.b16 %v5858
    %v9423 = vunpack.c.h.b16 %v5858
    %v9424 = vunpack.c.l.b16 %v5859
    %v9425 = vunpack.c.h.b16 %v5859
    %v9426 = vunpack.c.l.b16 %v5860
    %v9427 = vunpack.c.h.b16 %v5860
    %v9428 = vunpack.c.l.b16 %v5861
    %v9429 = vunpack.c.h.b16 %v5861
    %v9430 = vunpack.c.l.b16 %v5862
    %v9431 = vunpack.c.h.b16 %v5862
    %v9432 = vunpack.c.l.b16 %v5863
    %v9433 = vunpack.c.h.b16 %v5863
    %v9434 = vunpack.c.l.b16 %v5864
    %v9435 = vunpack.c.h.b16 %v5864
    %v9436 = vunpack.c.l.b16 %v5865
    %v9437 = vunpack.c.h.b16 %v5865
    %v9438 = vunpack.c.l.b16 %v5866
    %v9439 = vunpack.c.h.b16 %v5866
    %v9440 = vunpack.c.l.b16 %v5867
    %v9441 = vunpack.c.h.b16 %v5867
    %v9442 = vunpack.c.l.b16 %v5868
    %v9443 = vunpack.c.h.b16 %v5868
    %v9444 = vunpack.c.l.b16 %v5869
    %v9445 = vunpack.c.h.b16 %v5869
    %v9446 = vunpack.c.l.b16 %v5870
    %v9447 = vunpack.c.h.b16 %v5870
    %v9448 = vunpack.c.l.b16 %v5871
    %v9449 = vunpack.c.h.b16 %v5871
    %v9450 = vunpack.c.l.b16 %v5872
    %v9451 = vunpack.c.h.b16 %v5872
    %v9452 = vunpack.c.l.b16 %v5873
    %v9453 = vunpack.c.h.b16 %v5873
    %v9454 = vunpack.c.l.b16 %v5874
    %v9455 = vunpack.c.h.b16 %v5874
    %v9456 = vunpack.c.l.b16 %v5875
    %v9457 = vunpack.c.h.b16 %v5875
    %v9458 = vunpack.c.l.b16 %v5876
    %v9459 = vunpack.c.h.b16 %v5876
    %v9460 = vunpack.c.l.b16 %v5877
    %v9461 = vunpack.c.h.b16 %v5877
    %v9462 = vunpack.c.l.b16 %v5878
    %v9463 = vunpack.c.h.b16 %v5878
    %v9464 = vunpack.c.l.b16 %v5879
    %v9465 = vunpack.c.h.b16 %v5879
    %v9466 = vunpack.c.l.b16 %v5880
    %v9467 = vunpack.c.h.b16 %v5880
    %v9468 = vunpack.c.l.b16 %v5881
    %v9469 = vunpack.c.h.b16 %v5881
    %v9470 = vunpack.c.l.b16 %v5882
    %v9471 = vunpack.c.h.b16 %v5882
    %v9472 = vunpack.c.l.b16 %v5883
    %v9473 = vunpack.c.h.b16 %v5883
    %v9474 = vunpack.c.l.b16 %v5884
    %v9475 = vunpack.c.h.b16 %v5884
    %v9476 = vunpack.c.l.b16 %v5885
    %v9477 = vunpack.c.h.b16 %v5885
    %v9478 = vunpack.c.l.b16 %v5886
    %v9479 = vunpack.c.h.b16 %v5886
    %v9480 = vunpack.c.l.b16 %v5887
    %v9481 = vunpack.c.h.b16 %v5887
    %v9482 = vunpack.c.l.b16 %v5888
    %v9483 = vunpack.c.h.b16 %v5888
    %v9484 = vunpack.c.l.b16 %v5889
    %v9485 = vunpack.c.h.b16 %v5889
    %v9486 = vunpack.c.l.b16 %v5890
    %v9487 = vunpack.c.h.b16 %v5890
    %v9488 = vunpack.c.l.b16 %v5891
    %v9489 = vunpack.c.h.b16 %v5891
    %v9490 = vunpack.c.l.b16 %v5892
    %v9491 = vunpack.c.h.b16 %v5892
    %v9492 = vunpack.c.l.b16 %v5893
    %v9493 = vunpack.c.h.b16 %v5893
    %v9494 = vunpack.c.l.b16 %v5894
    %v9495 = vunpack.c.h.b16 %v5894
    %v9496 = vunpack.c.l.b16 %v5895
    %v9497 = vunpack.c.h.b16 %v5895
    %v9498 = vunpack.c.l.b16 %v5896
    %v9499 = vunpack.c.h.b16 %v5896
    %v9500 = vunpack.c.l.b16 %v5897
    %v9501 = vunpack.c.h.b16 %v5897
    %v9502 = vunpack.c.l.b16 %v5898
    %v9503 = vunpack.c.h.b16 %v5898
    %v9504 = vunpack.c.l.b16 %v5899
    %v9505 = vunpack.c.h.b16 %v5899
    %v9506 = vunpack.c.l.b16 %v5900
    %v9507 = vunpack.c.h.b16 %v5900
    %v9508 = vunpack.c.l.b16 %v5901
    %v9509 = vunpack.c.h.b16 %v5901
    %v9510 = vunpack.c.l.b16 %v5902
    %v9511 = vunpack.c.h.b16 %v5902
    %v9512 = vunpack.c.l.b16 %v5903
    %v9513 = vunpack.c.h.b16 %v5903
    %v9514 = vunpack.c.l.b16 %v5904
    %v9515 = vunpack.c.h.b16 %v5904
    %v9516 = vunpack.c.l.b16 %v5905
    %v9517 = vunpack.c.h.b16 %v5905
    %v9518 = vunpack.c.l.b16 %v5906
    %v9519 = vunpack.c.h.b16 %v5906
    %v9520 = vunpack.c.l.b16 %v5907
    %v9521 = vunpack.c.h.b16 %v5907
    %v9522 = vunpack.c.l.b16 %v5908
    %v9523 = vunpack.c.h.b16 %v5908
    %v9524 = vunpack.c.l.b16 %v5909
    %v9525 = vunpack.c.h.b16 %v5909
    %v9526 = vunpack.c.l.b16 %v5910
    %v9527 = vunpack.c.h.b16 %v5910
    %v9528 = vunpack.c.l.b16 %v5911
    %v9529 = vunpack.c.h.b16 %v5911
    %v9530 = vunpack.c.l.b16 %v5912
    %v9531 = vunpack.c.h.b16 %v5912
    %v9532 = vunpack.c.l.b16 %v5913
    %v9533 = vunpack.c.h.b16 %v5913
    %v9534 = vunpack.c.l.b16 %v5914
    %v9535 = vunpack.c.h.b16 %v5914
    %v9536 = vunpack.c.l.b16 %v5915
    %v9537 = vunpack.c.h.b16 %v5915
    %v9538 = vunpack.c.l.b16 %v5916
    %v9539 = vunpack.c.h.b16 %v5916
    %v9540 = vunpack.c.l.b16 %v5917
    %v9541 = vunpack.c.h.b16 %v5917
    %v9542 = vunpack.c.l.b16 %v5918
    %v9543 = vunpack.c.h.b16 %v5918
    %v9544 = vunpack.c.l.b16 %v5919
    %v9545 = vunpack.c.h.b16 %v5919
    %v9546 = vunpack.c.l.b16 %v5920
    %v9547 = vunpack.c.h.b16 %v5920
    %v9548 = vunpack.c.l.b16 %v5921
    %v9549 = vunpack.c.h.b16 %v5921
    %v9550 = vunpack.c.l.b16 %v5922
    %v9551 = vunpack.c.h.b16 %v5922
    %v9552 = vunpack.c.l.b16 %v5923
    %v9553 = vunpack.c.h.b16 %v5923
    %v9554 = vunpack.c.l.b16 %v5924
    %v9555 = vunpack.c.h.b16 %v5924
    %v9556 = vunpack.c.l.b16 %v5925
    %v9557 = vunpack.c.h.b16 %v5925
    %v9558 = vunpack.c.l.b16 %v5926
    %v9559 = vunpack.c.h.b16 %v5926
    %v9560 = vunpack.c.l.b16 %v5927
    %v9561 = vunpack.c.h.b16 %v5927
    %v9562 = vunpack.c.l.b16 %v5928
    %v9563 = vunpack.c.h.b16 %v5928
    %v9564 = vunpack.c.l.b16 %v5929
    %v9565 = vunpack.c.h.b16 %v5929
    %v9566 = vunpack.c.l.b16 %v5930
    %v9567 = vunpack.c.h.b16 %v5930
    %v9568 = vunpack.c.l.b16 %v5931
    %v9569 = vunpack.c.h.b16 %v5931
    %v9570 = vunpack.c.l.b16 %v5932
    %v9571 = vunpack.c.h.b16 %v5932
    %v9572 = vunpack.c.l.b16 %v5933
    %v9573 = vunpack.c.h.b16 %v5933
    %v9574 = vunpack.c.l.b16 %v5934
    %v9575 = vunpack.c.h.b16 %v5934
    %v9576 = vunpack.c.l.b16 %v5935
    %v9577 = vunpack.c.h.b16 %v5935
    %v9578 = vunpack.c.l.b16 %v5936
    %v9579 = vunpack.c.h.b16 %v5936
    %v9580 = vunpack.c.l.b16 %v5937
    %v9581 = vunpack.c.h.b16 %v5937
    %v9582 = vunpack.c.l.b16 %v5938
    %v9583 = vunpack.c.h.b16 %v5938
    %v9584 = vunpack.c.l.b16 %v5939
    %v9585 = vunpack.c.h.b16 %v5939
    %v9586 = vunpack.c.l.b16 %v5940
    %v9587 = vunpack.c.h.b16 %v5940
    %v9588 = vunpack.c.l.b16 %v5941
    %v9589 = vunpack.c.h.b16 %v5941
    %v9590 = vunpack.c.l.b16 %v5942
    %v9591 = vunpack.c.h.b16 %v5942
    %v9592 = vunpack.c.l.b16 %v5943
    %v9593 = vunpack.c.h.b16 %v5943
    %v9594 = vunpack.c.l.b16 %v5944
    %v9595 = vunpack.c.h.b16 %v5944
    %v9596 = vunpack.c.l.b16 %v5945
    %v9597 = vunpack.c.h.b16 %v5945
    %v9598 = vunpack.c.l.b16 %v5946
    %v9599 = vunpack.c.h.b16 %v5946
    %v9600 = vunpack.c.l.b16 %v5947
    %v9601 = vunpack.c.h.b16 %v5947
    %v9602 = vunpack.c.l.b16 %v5948
    %v9603 = vunpack.c.h.b16 %v5948
    %v9604 = vunpack.c.l.b16 %v5949
    %v9605 = vunpack.c.h.b16 %v5949
    %v9606 = vunpack.c.l.b16 %v5950
    %v9607 = vunpack.c.h.b16 %v5950
    %v9608 = vunpack.c.l.b16 %v5951
    %v9609 = vunpack.c.h.b16 %v5951
    %v9610 = vunpack.c.l.b16 %v5952
    %v9611 = vunpack.c.h.b16 %v5952
    %v9612 = vunpack.c.l.b16 %v5953
    %v9613 = vunpack.c.h.b16 %v5953
    %v9614 = vunpack.c.l.b16 %v5954
    %v9615 = vunpack.c.h.b16 %v5954
    %v9616 = vunpack.c.l.b16 %v5955
    %v9617 = vunpack.c.h.b16 %v5955
    %v9618 = vunpack.c.l.b16 %v5956
    %v9619 = vunpack.c.h.b16 %v5956
    %v9620 = vunpack.c.l.b16 %v5957
    %v9621 = vunpack.c.h.b16 %v5957
    %v9622 = vunpack.c.l.b16 %v5958
    %v9623 = vunpack.c.h.b16 %v5958
    %v9624 = vunpack.c.l.b16 %v5959
    %v9625 = vunpack.c.h.b16 %v5959
    %v9626 = vunpack.c.l.b16 %v5960
    %v9627 = vunpack.c.h.b16 %v5960
    %v9628 = vunpack.c.l.b16 %v5961
    %v9629 = vunpack.c.h.b16 %v5961
    %v9630 = vunpack.c.l.b16 %v5962
    %v9631 = vunpack.c.h.b16 %v5962
    %v9632 = vunpack.c.l.b16 %v5963
    %v9633 = vunpack.c.h.b16 %v5963
    %v9634 = vunpack.c.l.b16 %v5964
    %v9635 = vunpack.c.h.b16 %v5964
    %v9636 = vunpack.c.l.b16 %v5965
    %v9637 = vunpack.c.h.b16 %v5965
    %v9638 = vunpack.c.l.b16 %v5966
    %v9639 = vunpack.c.h.b16 %v5966
    %v9640 = vunpack.c.l.b16 %v5967
    %v9641 = vunpack.c.h.b16 %v5967
    %v9642 = vunpack.c.l.b16 %v5968
    %v9643 = vunpack.c.h.b16 %v5968
    %v9644 = vunpack.c.l.b16 %v5969
    %v9645 = vunpack.c.h.b16 %v5969
    %v9646 = vunpack.c.l.b16 %v5970
    %v9647 = vunpack.c.h.b16 %v5970
    %v9648 = vunpack.c.l.b16 %v5971
    %v9649 = vunpack.c.h.b16 %v5971
    %v9650 = vunpack.c.l.b16 %v5972
    %v9651 = vunpack.c.h.b16 %v5972
    %v9652 = vunpack.c.l.b16 %v5973
    %v9653 = vunpack.c.h.b16 %v5973
    %v9654 = vunpack.c.l.b16 %v5974
    %v9655 = vunpack.c.h.b16 %v5974
    %v9656 = vunpack.c.l.b16 %v5975
    %v9657 = vunpack.c.h.b16 %v5975
    %v9658 = vunpack.c.l.b16 %v5976
    %v9659 = vunpack.c.h.b16 %v5976
    %v9660 = vunpack.c.l.b16 %v5977
    %v9661 = vunpack.c.h.b16 %v5977
    %v9662 = vunpack.c.l.b16 %v5978
    %v9663 = vunpack.c.h.b16 %v5978
    %v9664 = vunpack.c.l.b16 %v5979
    %v9665 = vunpack.c.h.b16 %v5979
    %v9666 = vunpack.c.l.b16 %v5980
    %v9667 = vunpack.c.h.b16 %v5980
    %v9668 = vunpack.c.l.b16 %v5981
    %v9669 = vunpack.c.h.b16 %v5981
    %v9670 = vunpack.c.l.b16 %v5982
    %v9671 = vunpack.c.h.b16 %v5982
    %v9672 = vunpack.c.l.b16 %v5983
    %v9673 = vunpack.c.h.b16 %v5983
    %v9674 = vunpack.c.l.b16 %v5984
    %v9675 = vunpack.c.h.b16 %v5984
    %v9676 = vunpack.c.l.b16 %v5985
    %v9677 = vunpack.c.h.b16 %v5985
    %v9678 = vunpack.c.l.b16 %v5986
    %v9679 = vunpack.c.h.b16 %v5986
    %v9680 = vunpack.c.l.b16 %v5987
    %v9681 = vunpack.c.h.b16 %v5987
    %v9682 = vunpack.c.l.b16 %v5988
    %v9683 = vunpack.c.h.b16 %v5988
    %v9684 = vunpack.c.l.b16 %v5989
    %v9685 = vunpack.c.h.b16 %v5989
    %v9686 = vunpack.c.l.b16 %v5990
    %v9687 = vunpack.c.h.b16 %v5990
    %v9688 = vunpack.c.l.b16 %v5991
    %v9689 = vunpack.c.h.b16 %v5991
    %v9690 = vunpack.c.l.b16 %v5992
    %v9691 = vunpack.c.h.b16 %v5992
    %v9692 = vunpack.c.l.b16 %v5993
    %v9693 = vunpack.c.h.b16 %v5993
    %v9694 = vunpack.c.l.b16 %v5994
    %v9695 = vunpack.c.h.b16 %v5994
    %v9696 = vunpack.c.l.b16 %v5995
    %v9697 = vunpack.c.h.b16 %v5995
    %v9698 = vunpack.c.l.b16 %v5996
    %v9699 = vunpack.c.h.b16 %v5996
    %v9700 = vunpack.c.l.b16 %v5997
    %v9701 = vunpack.c.h.b16 %v5997
    %v9702 = vunpack.c.l.b16 %v5998
    %v9703 = vunpack.c.h.b16 %v5998
    %v9704 = vunpack.c.l.b16 %v5999
    %v9705 = vunpack.c.h.b16 %v5999
    %v9706 = vunpack.c.l.b16 %v6000
    %v9707 = vunpack.c.h.b16 %v6000
    %v9708 = vunpack.c.l.b16 %v6001
    %v9709 = vunpack.c.h.b16 %v6001
    %v9710 = vunpack.c.l.b16 %v6002
    %v9711 = vunpack.c.h.b16 %v6002
    %v9712 = vunpack.c.l.b16 %v6003
    %v9713 = vunpack.c.h.b16 %v6003
    %v9714 = vunpack.c.l.b16 %v6004
    %v9715 = vunpack.c.h.b16 %v6004
    %v9716 = vpack.c.b16 %v8188, %v8180
    %v9717 = vpack.c.b16 %v8189, %v8181
    %v9718 = vpack.c.b16 %v8190, %v8182
    %v9719 = vpack.c.b16 %v8191, %v8183
    %v9720 = vpack.c.b16 %v8192, %v8184
    %v9721 = vpack.c.b16 %v8193, %v8185
    %v9722 = vpack.c.b16 %v8194, %v8186
    %v9723 = vpack.c.b16 %v8195, %v8187
    %v9724 = vpack.c.b16 %v8204, %v8196
    %v9725 = vpack.c.b16 %v8205, %v8197
    %v9726 = vpack.c.b16 %v8206, %v8198
    %v9727 = vpack.c.b16 %v8207, %v8199
    %v9728 = vpack.c.b16 %v8208, %v8200
    %v9729 = vpack.c.b16 %v8209, %v8201
    %v9730 = vpack.c.b16 %v8210, %v8202
    %v9731 = vpack.c.b16 %v8211, %v8203
    %v9732 = vpack.c.b16 %v8220, %v8212
    %v9733 = vpack.c.b16 %v8221, %v8213
    %v9734 = vpack.c.b16 %v8222, %v8214
    %v9735 = vpack.c.b16 %v8223, %v8215
    %v9736 = vpack.c.b16 %v8224, %v8216
    %v9737 = vpack.c.b16 %v8225, %v8217
    %v9738 = vpack.c.b16 %v8226, %v8218
    %v9739 = vpack.c.b16 %v8227, %v8219
    %v9740 = vpack.c.b16 %v8236, %v8228
    %v9741 = vpack.c.b16 %v8237, %v8229
    %v9742 = vpack.c.b16 %v8238, %v8230
    %v9743 = vpack.c.b16 %v8239, %v8231
    %v9744 = vpack.c.b16 %v8240, %v8232
    %v9745 = vpack.c.b16 %v8241, %v8233
    %v9746 = vpack.c.b16 %v8242, %v8234
    %v9747 = vpack.c.b16 %v8243, %v8235
    %v9748 = vpack.c.b16 %v8252, %v8244
    %v9749 = vpack.c.b16 %v8253, %v8245
    %v9750 = vpack.c.b16 %v8254, %v8246
    %v9751 = vpack.c.b16 %v8255, %v8247
    %v9752 = vpack.c.b16 %v8256, %v8248
    %v9753 = vpack.c.b16 %v8257, %v8249
    %v9754 = vpack.c.b16 %v8258, %v8250
    %v9755 = vpack.c.b16 %v8259, %v8251
    %v9756 = vpack.c.b16 %v8268, %v8260
    %v9757 = vpack.c.b16 %v8269, %v8261
    %v9758 = vpack.c.b16 %v8270, %v8262
    %v9759 = vpack.c.b16 %v8271, %v8263
    %v9760 = vpack.c.b16 %v8272, %v8264
    %v9761 = vpack.c.b16 %v8273, %v8265
    %v9762 = vpack.c.b16 %v8274, %v8266
    %v9763 = vpack.c.b16 %v8275, %v8267
    %v9764 = vpack.c.b16 %v8284, %v8276
    %v9765 = vpack.c.b16 %v8285, %v8277
    %v9766 = vpack.c.b16 %v8286, %v8278
    %v9767 = vpack.c.b16 %v8287, %v8279
    %v9768 = vpack.c.b16 %v8288, %v8280
    %v9769 = vpack.c.b16 %v8289, %v8281
    %v9770 = vpack.c.b16 %v8290, %v8282
    %v9771 = vpack.c.b16 %v8291, %v8283
    %v9772 = vpack.c.b16 %v8300, %v8292
    %v9773 = vpack.c.b16 %v8301, %v8293
    %v9774 = vpack.c.b16 %v8302, %v8294
    %v9775 = vpack.c.b16 %v8303, %v8295
    %v9776 = vpack.c.b16 %v8304, %v8296
    %v9777 = vpack.c.b16 %v8305, %v8297
    %v9778 = vpack.c.b16 %v8306, %v8298
    %v9779 = vpack.c.b16 %v8307, %v8299
    %v9780 = vpack.c.b16 %v8316, %v8308
    %v9781 = vpack.c.b16 %v8317, %v8309
    %v9782 = vpack.c.b16 %v8318, %v8310
    %v9783 = vpack.c.b16 %v8319, %v8311
    %v9784 = vpack.c.b16 %v8320, %v8312
    %v9785 = vpack.c.b16 %v8321, %v8313
    %v9786 = vpack.c.b16 %v8322, %v8314
    %v9787 = vpack.c.b16 %v8323, %v8315
    %v9788 = vpack.c.b16 %v8332, %v8324
    %v9789 = vpack.c.b16 %v8333, %v8325
    %v9790 = vpack.c.b16 %v8334, %v8326
    %v9791 = vpack.c.b16 %v8335, %v8327
    %v9792 = vpack.c.b16 %v8336, %v8328
    %v9793 = vpack.c.b16 %v8337, %v8329
    %v9794 = vpack.c.b16 %v8338, %v8330
    %v9795 = vpack.c.b16 %v8339, %v8331
    %v9796 = vpack.c.b16 %v8348, %v8340
    %v9797 = vpack.c.b16 %v8349, %v8341
    %v9798 = vpack.c.b16 %v8350, %v8342
    %v9799 = vpack.c.b16 %v8351, %v8343
    %v9800 = vpack.c.b16 %v8352, %v8344
    %v9801 = vpack.c.b16 %v8353, %v8345
    %v9802 = vpack.c.b16 %v8354, %v8346
    %v9803 = vpack.c.b16 %v8355, %v8347
    %v9804 = vpack.c.b16 %v8364, %v8356
    %v9805 = vpack.c.b16 %v8365, %v8357
    %v9806 = vpack.c.b16 %v8366, %v8358
    %v9807 = vpack.c.b16 %v8367, %v8359
    %v9808 = vpack.c.b16 %v8368, %v8360
    %v9809 = vpack.c.b16 %v8369, %v8361
    %v9810 = vpack.c.b16 %v8370, %v8362
    %v9811 = vpack.c.b16 %v8371, %v8363
    %v9812 = vpack.c.b16 %v8380, %v8372
    %v9813 = vpack.c.b16 %v8381, %v8373
    %v9814 = vpack.c.b16 %v8382, %v8374
    %v9815 = vpack.c.b16 %v8383, %v8375
    %v9816 = vpack.c.b16 %v8384, %v8376
    %v9817 = vpack.c.b16 %v8385, %v8377
    %v9818 = vpack.c.b16 %v8386, %v8378
    %v9819 = vpack.c.b16 %v8387, %v8379
    %v9820 = vpack.c.b16 %v8396, %v8388
    %v9821 = vpack.c.b16 %v8397, %v8389
    %v9822 = vpack.c.b16 %v8398, %v8390
    %v9823 = vpack.c.b16 %v8399, %v8391
    %v9824 = vpack.c.b16 %v8400, %v8392
    %v9825 = vpack.c.b16 %v8401, %v8393
    %v9826 = vpack.c.b16 %v8402, %v8394
    %v9827 = vpack.c.b16 %v8403, %v8395
    %v9828 = vpack.c.b16 %v8412, %v8404
    %v9829 = vpack.c.b16 %v8413, %v8405
    %v9830 = vpack.c.b16 %v8414, %v8406
    %v9831 = vpack.c.b16 %v8415, %v8407
    %v9832 = vpack.c.b16 %v8416, %v8408
    %v9833 = vpack.c.b16 %v8417, %v8409
    %v9834 = vpack.c.b16 %v8418, %v8410
    %v9835 = vpack.c.b16 %v8419, %v8411
    %v9836 = vpack.c.b16 %v8428, %v8420
    %v9837 = vpack.c.b16 %v8429, %v8421
    %v9838 = vpack.c.b16 %v8430, %v8422
    %v9839 = vpack.c.b16 %v8431, %v8423
    %v9840 = vpack.c.b16 %v8432, %v8424
    %v9841 = vpack.c.b16 %v8433, %v8425
    %v9842 = vpack.c.b16 %v8434, %v8426
    %v9843 = vpack.c.b16 %v8435, %v8427
    %v9844 = vpack.c.b16 %v8444, %v8436
    %v9845 = vpack.c.b16 %v8445, %v8437
    %v9846 = vpack.c.b16 %v8446, %v8438
    %v9847 = vpack.c.b16 %v8447, %v8439
    %v9848 = vpack.c.b16 %v8448, %v8440
    %v9849 = vpack.c.b16 %v8449, %v8441
    %v9850 = vpack.c.b16 %v8450, %v8442
    %v9851 = vpack.c.b16 %v8451, %v8443
    %v9852 = vpack.c.b16 %v8460, %v8452
    %v9853 = vpack.c.b16 %v8461, %v8453
    %v9854 = vpack.c.b16 %v8462, %v8454
    %v9855 = vpack.c.b16 %v8463, %v8455
    %v9856 = vpack.c.b16 %v8464, %v8456
    %v9857 = vpack.c.b16 %v8465, %v8457
    %v9858 = vpack.c.b16 %v8466, %v8458
    %v9859 = vpack.c.b16 %v8467, %v8459
    %v9860 = vpack.c.b16 %v8476, %v8468
    %v9861 = vpack.c.b16 %v8477, %v8469
    %v9862 = vpack.c.b16 %v8478, %v8470
    %v9863 = vpack.c.b16 %v8479, %v8471
    %v9864 = vpack.c.b16 %v8480, %v8472
    %v9865 = vpack.c.b16 %v8481, %v8473
    %v9866 = vpack.c.b16 %v8482, %v8474
    %v9867 = vpack.c.b16 %v8483, %v8475
    %v9868 = vpack.c.b16 %v8492, %v8484
    %v9869 = vpack.c.b16 %v8493, %v8485
    %v9870 = vpack.c.b16 %v8494, %v8486
    %v9871 = vpack.c.b16 %v8495, %v8487
    %v9872 = vpack.c.b16 %v8496, %v8488
    %v9873 = vpack.c.b16 %v8497, %v8489
    %v9874 = vpack.c.b16 %v8498, %v8490
    %v9875 = vpack.c.b16 %v8499, %v8491
    %v9876 = vpack.c.b16 %v8508, %v8500
    %v9877 = vpack.c.b16 %v8509, %v8501
    %v9878 = vpack.c.b16 %v8510, %v8502
    %v9879 = vpack.c.b16 %v8511, %v8503
    %v9880 = vpack.c.b16 %v8512, %v8504
    %v9881 = vpack.c.b16 %v8513, %v8505
    %v9882 = vpack.c.b16 %v8514, %v8506
    %v9883 = vpack.c.b16 %v8515, %v8507
    %v9884 = vpack.c.b16 %v8524, %v8516
    %v9885 = vpack.c.b16 %v8525, %v8517
    %v9886 = vpack.c.b16 %v8526, %v8518
    %v9887 = vpack.c.b16 %v8527, %v8519
    %v9888 = vpack.c.b16 %v8528, %v8520
    %v9889 = vpack.c.b16 %v8529, %v8521
    %v9890 = vpack.c.b16 %v8530, %v8522
    %v9891 = vpack.c.b16 %v8531, %v8523
    %v9892 = vpack.c.b16 %v8540, %v8532
    %v9893 = vpack.c.b16 %v8541, %v8533
    %v9894 = vpack.c.b16 %v8542, %v8534
    %v9895 = vpack.c.b16 %v8543, %v8535
    %v9896 = vpack.c.b16 %v8544, %v8536
    %v9897 = vpack.c.b16 %v8545, %v8537
    %v9898 = vpack.c.b16 %v8546, %v8538
    %v9899 = vpack.c.b16 %v8547, %v8539
    %v9900 = vpack.c.b16 %v8556, %v8548
    %v9901 = vpack.c.b16 %v8557, %v8549
    %v9902 = vpack.c.b16 %v8558, %v8550
    %v9903 = vpack.c.b16 %v8559, %v8551
    %v9904 = vpack.c.b16 %v8560, %v8552
    %v9905 = vpack.c.b16 %v8561, %v8553
    %v9906 = vpack.c.b16 %v8562, %v8554
    %v9907 = vpack.c.b16 %v8563, %v8555
    %v9908 = vpack.c.b16 %v8572, %v8564
    %v9909 = vpack.c.b16 %v8573, %v8565
    %v9910 = vpack.c.b16 %v8574, %v8566
    %v9911 = vpack.c.b16 %v8575, %v8567
    %v9912 = vpack.c.b16 %v8576, %v8568
    %v9913 = vpack.c.b16 %v8577, %v8569
    %v9914 = vpack.c.b16 %v8578, %v8570
    %v9915 = vpack.c.b16 %v8579, %v8571
    %v9916 = vpack.c.b16 %v8588, %v8580
    %v9917 = vpack.c.b16 %v8589, %v8581
    %v9918 = vpack.c.b16 %v8590, %v8582
    %v9919 = vpack.c.b16 %v8591, %v8583
    %v9920 = vpack.c.b16 %v8592, %v8584
    %v9921 = vpack.c.b16 %v8593, %v8585
    %v9922 = vpack.c.b16 %v8594, %v8586
    %v9923 = vpack.c.b16 %v8595, %v8587
    %v9924 = vpack.c.b16 %v8604, %v8596
    %v9925 = vpack.c.b16 %v8605, %v8597
    %v9926 = vpack.c.b16 %v8606, %v8598
    %v9927 = vpack.c.b16 %v8607, %v8599
    %v9928 = vpack.c.b16 %v8608, %v8600
    %v9929 = vpack.c.b16 %v8609, %v8601
    %v9930 = vpack.c.b16 %v8610, %v8602
    %v9931 = vpack.c.b16 %v8611, %v8603
    %v9932 = vpack.c.b16 %v8620, %v8612
    %v9933 = vpack.c.b16 %v8621, %v8613
    %v9934 = vpack.c.b16 %v8622, %v8614
    %v9935 = vpack.c.b16 %v8623, %v8615
    %v9936 = vpack.c.b16 %v8624, %v8616
    %v9937 = vpack.c.b16 %v8625, %v8617
    %v9938 = vpack.c.b16 %v8626, %v8618
    %v9939 = vpack.c.b16 %v8627, %v8619
    %v9940 = vpack.c.b16 %v8636, %v8628
    %v9941 = vpack.c.b16 %v8637, %v8629
    %v9942 = vpack.c.b16 %v8638, %v8630
    %v9943 = vpack.c.b16 %v8639, %v8631
    %v9944 = vpack.c.b16 %v8640, %v8632
    %v9945 = vpack.c.b16 %v8641, %v8633
    %v9946 = vpack.c.b16 %v8642, %v8634
    %v9947 = vpack.c.b16 %v8643, %v8635
    %v9948 = vpack.c.b16 %v8652, %v8644
    %v9949 = vpack.c.b16 %v8653, %v8645
    %v9950 = vpack.c.b16 %v8654, %v8646
    %v9951 = vpack.c.b16 %v8655, %v8647
    %v9952 = vpack.c.b16 %v8656, %v8648
    %v9953 = vpack.c.b16 %v8657, %v8649
    %v9954 = vpack.c.b16 %v8658, %v8650
    %v9955 = vpack.c.b16 %v8659, %v8651
    %v9956 = vpack.c.b16 %v8668, %v8660
    %v9957 = vpack.c.b16 %v8669, %v8661
    %v9958 = vpack.c.b16 %v8670, %v8662
    %v9959 = vpack.c.b16 %v8671, %v8663
    %v9960 = vpack.c.b16 %v8672, %v8664
    %v9961 = vpack.c.b16 %v8673, %v8665
    %v9962 = vpack.c.b16 %v8674, %v8666
    %v9963 = vpack.c.b16 %v8675, %v8667
    %v9964 = vpack.c.b16 %v8684, %v8676
    %v9965 = vpack.c.b16 %v8685, %v8677
    %v9966 = vpack.c.b16 %v8686, %v8678
    %v9967 = vpack.c.b16 %v8687, %v8679
    %v9968 = vpack.c.b16 %v8688, %v8680
    %v9969 = vpack.c.b16 %v8689, %v8681
    %v9970 = vpack.c.b16 %v8690, %v8682
    %v9971 = vpack.c.b16 %v8691, %v8683
    %v9972 = vpack.c.b16 %v8700, %v8692
    %v9973 = vpack.c.b16 %v8701, %v8693
    %v9974 = vpack.c.b16 %v8702, %v8694
    %v9975 = vpack.c.b16 %v8703, %v8695
    %v9976 = vpack.c.b16 %v8704, %v8696
    %v9977 = vpack.c.b16 %v8705, %v8697
    %v9978 = vpack.c.b16 %v8706, %v8698
    %v9979 = vpack.c.b16 %v8707, %v8699
    %v9980 = vpack.c.b16 %v8716, %v8708
    %v9981 = vpack.c.b16 %v8717, %v8709
    %v9982 = vpack.c.b16 %v8718, %v8710
    %v9983 = vpack.c.b16 %v8719, %v8711
    %v9984 = vpack.c.b16 %v8720, %v8712
    %v9985 = vpack.c.b16 %v8721, %v8713
    %v9986 = vpack.c.b16 %v8722, %v8714
    %v9987 = vpack.c.b16 %v8723, %v8715
    %v9988 = vpack.c.b16 %v8732, %v8724
    %v9989 = vpack.c.b16 %v8733, %v8725
    %v9990 = vpack.c.b16 %v8734, %v8726
    %v9991 = vpack.c.b16 %v8735, %v8727
    %v9992 = vpack.c.b16 %v8736, %v8728
    %v9993 = vpack.c.b16 %v8737, %v8729
    %v9994 = vpack.c.b16 %v8738, %v8730
    %v9995 = vpack.c.b16 %v8739, %v8731
    %v9996 = vpack.c.b16 %v8748, %v8740
    %v9997 = vpack.c.b16 %v8749, %v8741
    %v9998 = vpack.c.b16 %v8750, %v8742
    %v9999 = vpack.c.b16 %v8751, %v8743
    %v10000 = vpack.c.b16 %v8752, %v8744
    %v10001 = vpack.c.b16 %v8753, %v8745
    %v10002 = vpack.c.b16 %v8754, %v8746
    %v10003 = vpack.c.b16 %v8755, %v8747
    %v10004 = vpack.c.b16 %v8764, %v8756
    %v10005 = vpack.c.b16 %v8765, %v8757
    %v10006 = vpack.c.b16 %v8766, %v8758
    %v10007 = vpack.c.b16 %v8767, %v8759
    %v10008 = vpack.c.b16 %v8768, %v8760
    %v10009 = vpack.c.b16 %v8769, %v8761
    %v10010 = vpack.c.b16 %v8770, %v8762
    %v10011 = vpack.c.b16 %v8771, %v8763
    %v10012 = vpack.c.b16 %v8780, %v8772
    %v10013 = vpack.c.b16 %v8781, %v8773
    %v10014 = vpack.c.b16 %v8782, %v8774
    %v10015 = vpack.c.b16 %v8783, %v8775
    %v10016 = vpack.c.b16 %v8784, %v8776
    %v10017 = vpack.c.b16 %v8785, %v8777
    %v10018 = vpack.c.b16 %v8786, %v8778
    %v10019 = vpack.c.b16 %v8787, %v8779
    %v10020 = vpack.c.b16 %v8796, %v8788
    %v10021 = vpack.c.b16 %v8797, %v8789
    %v10022 = vpack.c.b16 %v8798, %v8790
    %v10023 = vpack.c.b16 %v8799, %v8791
    %v10024 = vpack.c.b16 %v8800, %v8792
    %v10025 = vpack.c.b16 %v8801, %v8793
    %v10026 = vpack.c.b16 %v8802, %v8794
    %v10027 = vpack.c.b16 %v8803, %v8795
    %v10028 = vpack.c.b16 %v8812, %v8804
    %v10029 = vpack.c.b16 %v8813, %v8805
    %v10030 = vpack.c.b16 %v8814, %v8806
    %v10031 = vpack.c.b16 %v8815, %v8807
    %v10032 = vpack.c.b16 %v8816, %v8808
    %v10033 = vpack.c.b16 %v8817, %v8809
    %v10034 = vpack.c.b16 %v8818, %v8810
    %v10035 = vpack.c.b16 %v8819, %v8811
    %v10036 = vpack.c.b16 %v8828, %v8820
    %v10037 = vpack.c.b16 %v8829, %v8821
    %v10038 = vpack.c.b16 %v8830, %v8822
    %v10039 = vpack.c.b16 %v8831, %v8823
    %v10040 = vpack.c.b16 %v8832, %v8824
    %v10041 = vpack.c.b16 %v8833, %v8825
    %v10042 = vpack.c.b16 %v8834, %v8826
    %v10043 = vpack.c.b16 %v8835, %v8827
    %v10044 = vpack.c.b16 %v8844, %v8836
    %v10045 = vpack.c.b16 %v8845, %v8837
    %v10046 = vpack.c.b16 %v8846, %v8838
    %v10047 = vpack.c.b16 %v8847, %v8839
    %v10048 = vpack.c.b16 %v8848, %v8840
    %v10049 = vpack.c.b16 %v8849, %v8841
    %v10050 = vpack.c.b16 %v8850, %v8842
    %v10051 = vpack.c.b16 %v8851, %v8843
    %v10052 = vpack.c.b16 %v8860, %v8852
    %v10053 = vpack.c.b16 %v8861, %v8853
    %v10054 = vpack.c.b16 %v8862, %v8854
    %v10055 = vpack.c.b16 %v8863, %v8855
    %v10056 = vpack.c.b16 %v8864, %v8856
    %v10057 = vpack.c.b16 %v8865, %v8857
    %v10058 = vpack.c.b16 %v8866, %v8858
    %v10059 = vpack.c.b16 %v8867, %v8859
    %v10060 = vpack.c.b16 %v8876, %v8868
    %v10061 = vpack.c.b16 %v8877, %v8869
    %v10062 = vpack.c.b16 %v8878, %v8870
    %v10063 = vpack.c.b16 %v8879, %v8871
    %v10064 = vpack.c.b16 %v8880, %v8872
    %v10065 = vpack.c.b16 %v8881, %v8873
    %v10066 = vpack.c.b16 %v8882, %v8874
    %v10067 = vpack.c.b16 %v8883, %v8875
    %v10068 = vpack.c.b16 %v8892, %v8884
    %v10069 = vpack.c.b16 %v8893, %v8885
    %v10070 = vpack.c.b16 %v8894, %v8886
    %v10071 = vpack.c.b16 %v8895, %v8887
    %v10072 = vpack.c.b16 %v8896, %v8888
    %v10073 = vpack.c.b16 %v8897, %v8889
    %v10074 = vpack.c.b16 %v8898, %v8890
    %v10075 = vpack.c.b16 %v8899, %v8891
    %v10076 = vpack.c.b16 %v8908, %v8900
    %v10077 = vpack.c.b16 %v8909, %v8901
    %v10078 = vpack.c.b16 %v8910, %v8902
    %v10079 = vpack.c.b16 %v8911, %v8903
    %v10080 = vpack.c.b16 %v8912, %v8904
    %v10081 = vpack.c.b16 %v8913, %v8905
    %v10082 = vpack.c.b16 %v8914, %v8906
    %v10083 = vpack.c.b16 %v8915, %v8907
    %v10084 = vpack.c.b16 %v8924, %v8916
    %v10085 = vpack.c.b16 %v8925, %v8917
    %v10086 = vpack.c.b16 %v8926, %v8918
    %v10087 = vpack.c.b16 %v8927, %v8919
    %v10088 = vpack.c.b16 %v8928, %v8920
    %v10089 = vpack.c.b16 %v8929, %v8921
    %v10090 = vpack.c.b16 %v8930, %v8922
    %v10091 = vpack.c.b16 %v8931, %v8923
    %v10092 = vpack.c.b16 %v8940, %v8932
    %v10093 = vpack.c.b16 %v8941, %v8933
    %v10094 = vpack.c.b16 %v8942, %v8934
    %v10095 = vpack.c.b16 %v8943, %v8935
    %v10096 = vpack.c.b16 %v8944, %v8936
    %v10097 = vpack.c.b16 %v8945, %v8937
    %v10098 = vpack.c.b16 %v8946, %v8938
    %v10099 = vpack.c.b16 %v8947, %v8939
    %v10100 = vpack.c.b16 %v8956, %v8948
    %v10101 = vpack.c.b16 %v8957, %v8949
    %v10102 = vpack.c.b16 %v8958, %v8950
    %v10103 = vpack.c.b16 %v8959, %v8951
    %v10104 = vpack.c.b16 %v8960, %v8952
    %v10105 = vpack.c.b16 %v8961, %v8953
    %v10106 = vpack.c.b16 %v8962, %v8954
    %v10107 = vpack.c.b16 %v8963, %v8955
    %v10108 = vpack.c.b16 %v8972, %v8964
    %v10109 = vpack.c.b16 %v8973, %v8965
    %v10110 = vpack.c.b16 %v8974, %v8966
    %v10111 = vpack.c.b16 %v8975, %v8967
    %v10112 = vpack.c.b16 %v8976, %v8968
    %v10113 = vpack.c.b16 %v8977, %v8969
    %v10114 = vpack.c.b16 %v8978, %v8970
    %v10115 = vpack.c.b16 %v8979, %v8971
    %v10116 = vpack.c.b16 %v8988, %v8980
    %v10117 = vpack.c.b16 %v8989, %v8981
    %v10118 = vpack.c.b16 %v8990, %v8982
    %v10119 = vpack.c.b16 %v8991, %v8983
    %v10120 = vpack.c.b16 %v8992, %v8984
    %v10121 = vpack.c.b16 %v8993, %v8985
    %v10122 = vpack.c.b16 %v8994, %v8986
    %v10123 = vpack.c.b16 %v8995, %v8987
    %v10124 = vpack.c.b16 %v9004, %v8996
    %v10125 = vpack.c.b16 %v9005, %v8997
    %v10126 = vpack.c.b16 %v9006, %v8998
    %v10127 = vpack.c.b16 %v9007, %v8999
    %v10128 = vpack.c.b16 %v9008, %v9000
    %v10129 = vpack.c.b16 %v9009, %v9001
    %v10130 = vpack.c.b16 %v9010, %v9002
    %v10131 = vpack.c.b16 %v9011, %v9003
    %v10132 = vpack.c.b16 %v9020, %v9012
    %v10133 = vpack.c.b16 %v9021, %v9013
    %v10134 = vpack.c.b16 %v9022, %v9014
    %v10135 = vpack.c.b16 %v9023, %v9015
    %v10136 = vpack.c.b16 %v9024, %v9016
    %v10137 = vpack.c.b16 %v9025, %v9017
    %v10138 = vpack.c.b16 %v9026, %v9018
    %v10139 = vpack.c.b16 %v9027, %v9019
    %v10140 = vpack.c.b16 %v9036, %v9028
    %v10141 = vpack.c.b16 %v9037, %v9029
    %v10142 = vpack.c.b16 %v9038, %v9030
    %v10143 = vpack.c.b16 %v9039, %v9031
    %v10144 = vpack.c.b16 %v9040, %v9032
    %v10145 = vpack.c.b16 %v9041, %v9033
    %v10146 = vpack.c.b16 %v9042, %v9034
    %v10147 = vpack.c.b16 %v9043, %v9035
    %v10148 = vpack.c.b16 %v9052, %v9044
    %v10149 = vpack.c.b16 %v9053, %v9045
    %v10150 = vpack.c.b16 %v9054, %v9046
    %v10151 = vpack.c.b16 %v9055, %v9047
    %v10152 = vpack.c.b16 %v9056, %v9048
    %v10153 = vpack.c.b16 %v9057, %v9049
    %v10154 = vpack.c.b16 %v9058, %v9050
    %v10155 = vpack.c.b16 %v9059, %v9051
    %v10156 = vpack.c.b16 %v9068, %v9060
    %v10157 = vpack.c.b16 %v9069, %v9061
    %v10158 = vpack.c.b16 %v9070, %v9062
    %v10159 = vpack.c.b16 %v9071, %v9063
    %v10160 = vpack.c.b16 %v9072, %v9064
    %v10161 = vpack.c.b16 %v9073, %v9065
    %v10162 = vpack.c.b16 %v9074, %v9066
    %v10163 = vpack.c.b16 %v9075, %v9067
    %v10164 = vpack.c.b16 %v9084, %v9076
    %v10165 = vpack.c.b16 %v9085, %v9077
    %v10166 = vpack.c.b16 %v9086, %v9078
    %v10167 = vpack.c.b16 %v9087, %v9079
    %v10168 = vpack.c.b16 %v9088, %v9080
    %v10169 = vpack.c.b16 %v9089, %v9081
    %v10170 = vpack.c.b16 %v9090, %v9082
    %v10171 = vpack.c.b16 %v9091, %v9083
    %v10172 = vpack.c.b16 %v9100, %v9092
    %v10173 = vpack.c.b16 %v9101, %v9093
    %v10174 = vpack.c.b16 %v9102, %v9094
    %v10175 = vpack.c.b16 %v9103, %v9095
    %v10176 = vpack.c.b16 %v9104, %v9096
    %v10177 = vpack.c.b16 %v9105, %v9097
    %v10178 = vpack.c.b16 %v9106, %v9098
    %v10179 = vpack.c.b16 %v9107, %v9099
    %v10180 = vpack.c.b16 %v9116, %v9108
    %v10181 = vpack.c.b16 %v9117, %v9109
    %v10182 = vpack.c.b16 %v9118, %v9110
    %v10183 = vpack.c.b16 %v9119, %v9111
    %v10184 = vpack.c.b16 %v9120, %v9112
    %v10185 = vpack.c.b16 %v9121, %v9113
    %v10186 = vpack.c.b16 %v9122, %v9114
    %v10187 = vpack.c.b16 %v9123, %v9115
    %v10188 = vpack.c.b16 %v9132, %v9124
    %v10189 = vpack.c.b16 %v9133, %v9125
    %v10190 = vpack.c.b16 %v9134, %v9126
    %v10191 = vpack.c.b16 %v9135, %v9127
    %v10192 = vpack.c.b16 %v9136, %v9128
    %v10193 = vpack.c.b16 %v9137, %v9129
    %v10194 = vpack.c.b16 %v9138, %v9130
    %v10195 = vpack.c.b16 %v9139, %v9131
    %v10196 = vpack.c.b16 %v9148, %v9140
    %v10197 = vpack.c.b16 %v9149, %v9141
    %v10198 = vpack.c.b16 %v9150, %v9142
    %v10199 = vpack.c.b16 %v9151, %v9143
    %v10200 = vpack.c.b16 %v9152, %v9144
    %v10201 = vpack.c.b16 %v9153, %v9145
    %v10202 = vpack.c.b16 %v9154, %v9146
    %v10203 = vpack.c.b16 %v9155, %v9147
    %v10204 = vpack.c.b16 %v9164, %v9156
    %v10205 = vpack.c.b16 %v9165, %v9157
    %v10206 = vpack.c.b16 %v9166, %v9158
    %v10207 = vpack.c.b16 %v9167, %v9159
    %v10208 = vpack.c.b16 %v9168, %v9160
    %v10209 = vpack.c.b16 %v9169, %v9161
    %v10210 = vpack.c.b16 %v9170, %v9162
    %v10211 = vpack.c.b16 %v9171, %v9163
    %v10212 = vpack.c.b16 %v9180, %v9172
    %v10213 = vpack.c.b16 %v9181, %v9173
    %v10214 = vpack.c.b16 %v9182, %v9174
    %v10215 = vpack.c.b16 %v9183, %v9175
    %v10216 = vpack.c.b16 %v9184, %v9176
    %v10217 = vpack.c.b16 %v9185, %v9177
    %v10218 = vpack.c.b16 %v9186, %v9178
    %v10219 = vpack.c.b16 %v9187, %v9179
    %v10220 = vpack.c.b16 %v9196, %v9188
    %v10221 = vpack.c.b16 %v9197, %v9189
    %v10222 = vpack.c.b16 %v9198, %v9190
    %v10223 = vpack.c.b16 %v9199, %v9191
    %v10224 = vpack.c.b16 %v9200, %v9192
    %v10225 = vpack.c.b16 %v9201, %v9193
    %v10226 = vpack.c.b16 %v9202, %v9194
    %v10227 = vpack.c.b16 %v9203, %v9195
    %v10228 = vpack.c.b16 %v9212, %v9204
    %v10229 = vpack.c.b16 %v9213, %v9205
    %v10230 = vpack.c.b16 %v9214, %v9206
    %v10231 = vpack.c.b16 %v9215, %v9207
    %v10232 = vpack.c.b16 %v9216, %v9208
    %v10233 = vpack.c.b16 %v9217, %v9209
    %v10234 = vpack.c.b16 %v9218, %v9210
    %v10235 = vpack.c.b16 %v9219, %v9211
    %v10236 = vpack.c.b16 %v9228, %v9220
    %v10237 = vpack.c.b16 %v9229, %v9221
    %v10238 = vpack.c.b16 %v9230, %v9222
    %v10239 = vpack.c.b16 %v9231, %v9223
    %v10240 = vpack.c.b16 %v9232, %v9224
    %v10241 = vpack.c.b16 %v9233, %v9225
    %v10242 = vpack.c.b16 %v9234, %v9226
    %v10243 = vpack.c.b16 %v9235, %v9227
    %v10244 = vpack.c.b16 %v9244, %v9236
    %v10245 = vpack.c.b16 %v9245, %v9237
    %v10246 = vpack.c.b16 %v9246, %v9238
    %v10247 = vpack.c.b16 %v9247, %v9239
    %v10248 = vpack.c.b16 %v9248, %v9240
    %v10249 = vpack.c.b16 %v9249, %v9241
    %v10250 = vpack.c.b16 %v9250, %v9242
    %v10251 = vpack.c.b16 %v9251, %v9243
    %v10252 = vpack.c.b16 %v9260, %v9252
    %v10253 = vpack.c.b16 %v9261, %v9253
    %v10254 = vpack.c.b16 %v9262, %v9254
    %v10255 = vpack.c.b16 %v9263, %v9255
    %v10256 = vpack.c.b16 %v9264, %v9256
    %v10257 = vpack.c.b16 %v9265, %v9257
    %v10258 = vpack.c.b16 %v9266, %v9258
    %v10259 = vpack.c.b16 %v9267, %v9259
    %v10260 = vpack.c.b16 %v9276, %v9268
    %v10261 = vpack.c.b16 %v9277, %v9269
    %v10262 = vpack.c.b16 %v9278, %v9270
    %v10263 = vpack.c.b16 %v9279, %v9271
    %v10264 = vpack.c.b16 %v9280, %v9272
    %v10265 = vpack.c.b16 %v9281, %v9273
    %v10266 = vpack.c.b16 %v9282, %v9274
    %v10267 = vpack.c.b16 %v9283, %v9275
    %v10268 = vpack.c.b16 %v9292, %v9284
    %v10269 = vpack.c.b16 %v9293, %v9285
    %v10270 = vpack.c.b16 %v9294, %v9286
    %v10271 = vpack.c.b16 %v9295, %v9287
    %v10272 = vpack.c.b16 %v9296, %v9288
    %v10273 = vpack.c.b16 %v9297, %v9289
    %v10274 = vpack.c.b16 %v9298, %v9290
    %v10275 = vpack.c.b16 %v9299, %v9291
    %v10276 = vpack.c.b16 %v9308, %v9300
    %v10277 = vpack.c.b16 %v9309, %v9301
    %v10278 = vpack.c.b16 %v9310, %v9302
    %v10279 = vpack.c.b16 %v9311, %v9303
    %v10280 = vpack.c.b16 %v9312, %v9304
    %v10281 = vpack.c.b16 %v9313, %v9305
    %v10282 = vpack.c.b16 %v9314, %v9306
    %v10283 = vpack.c.b16 %v9315, %v9307
    %v10284 = vpack.c.b16 %v9324, %v9316
    %v10285 = vpack.c.b16 %v9325, %v9317
    %v10286 = vpack.c.b16 %v9326, %v9318
    %v10287 = vpack.c.b16 %v9327, %v9319
    %v10288 = vpack.c.b16 %v9328, %v9320
    %v10289 = vpack.c.b16 %v9329, %v9321
    %v10290 = vpack.c.b16 %v9330, %v9322
    %v10291 = vpack.c.b16 %v9331, %v9323
    %v10292 = vpack.c.b16 %v9340, %v9332
    %v10293 = vpack.c.b16 %v9341, %v9333
    %v10294 = vpack.c.b16 %v9342, %v9334
    %v10295 = vpack.c.b16 %v9343, %v9335
    %v10296 = vpack.c.b16 %v9344, %v9336
    %v10297 = vpack.c.b16 %v9345, %v9337
    %v10298 = vpack.c.b16 %v9346, %v9338
    %v10299 = vpack.c.b16 %v9347, %v9339
    %v10300 = vpack.c.b16 %v9356, %v9348
    %v10301 = vpack.c.b16 %v9357, %v9349
    %v10302 = vpack.c.b16 %v9358, %v9350
    %v10303 = vpack.c.b16 %v9359, %v9351
    %v10304 = vpack.c.b16 %v9360, %v9352
    %v10305 = vpack.c.b16 %v9361, %v9353
    %v10306 = vpack.c.b16 %v9362, %v9354
    %v10307 = vpack.c.b16 %v9363, %v9355
    %v10308 = vpack.c.b16 %v9372, %v9364
    %v10309 = vpack.c.b16 %v9373, %v9365
    %v10310 = vpack.c.b16 %v9374, %v9366
    %v10311 = vpack.c.b16 %v9375, %v9367
    %v10312 = vpack.c.b16 %v9376, %v9368
    %v10313 = vpack.c.b16 %v9377, %v9369
    %v10314 = vpack.c.b16 %v9378, %v9370
    %v10315 = vpack.c.b16 %v9379, %v9371
    %v10316 = vpack.c.b16 %v9388, %v9380
    %v10317 = vpack.c.b16 %v9389, %v9381
    %v10318 = vpack.c.b16 %v9390, %v9382
    %v10319 = vpack.c.b16 %v9391, %v9383
    %v10320 = vpack.c.b16 %v9392, %v9384
    %v10321 = vpack.c.b16 %v9393, %v9385
    %v10322 = vpack.c.b16 %v9394, %v9386
    %v10323 = vpack.c.b16 %v9395, %v9387
    %v10324 = vpack.c.b16 %v9404, %v9396
    %v10325 = vpack.c.b16 %v9405, %v9397
    %v10326 = vpack.c.b16 %v9406, %v9398
    %v10327 = vpack.c.b16 %v9407, %v9399
    %v10328 = vpack.c.b16 %v9408, %v9400
    %v10329 = vpack.c.b16 %v9409, %v9401
    %v10330 = vpack.c.b16 %v9410, %v9402
    %v10331 = vpack.c.b16 %v9411, %v9403
    %v10332 = vpack.c.b16 %v9420, %v9412
    %v10333 = vpack.c.b16 %v9421, %v9413
    %v10334 = vpack.c.b16 %v9422, %v9414
    %v10335 = vpack.c.b16 %v9423, %v9415
    %v10336 = vpack.c.b16 %v9424, %v9416
    %v10337 = vpack.c.b16 %v9425, %v9417
    %v10338 = vpack.c.b16 %v9426, %v9418
    %v10339 = vpack.c.b16 %v9427, %v9419
    %v10340 = vpack.c.b16 %v9436, %v9428
    %v10341 = vpack.c.b16 %v9437, %v9429
    %v10342 = vpack.c.b16 %v9438, %v9430
    %v10343 = vpack.c.b16 %v9439, %v9431
    %v10344 = vpack.c.b16 %v9440, %v9432
    %v10345 = vpack.c.b16 %v9441, %v9433
    %v10346 = vpack.c.b16 %v9442, %v9434
    %v10347 = vpack.c.b16 %v9443, %v9435
    %v10348 = vpack.c.b16 %v9452, %v9444
    %v10349 = vpack.c.b16 %v9453, %v9445
    %v10350 = vpack.c.b16 %v9454, %v9446
    %v10351 = vpack.c.b16 %v9455, %v9447
    %v10352 = vpack.c.b16 %v9456, %v9448
    %v10353 = vpack.c.b16 %v9457, %v9449
    %v10354 = vpack.c.b16 %v9458, %v9450
    %v10355 = vpack.c.b16 %v9459, %v9451
    %v10356 = vpack.c.b16 %v9468, %v9460
    %v10357 = vpack.c.b16 %v9469, %v9461
    %v10358 = vpack.c.b16 %v9470, %v9462
    %v10359 = vpack.c.b16 %v9471, %v9463
    %v10360 = vpack.c.b16 %v9472, %v9464
    %v10361 = vpack.c.b16 %v9473, %v9465
    %v10362 = vpack.c.b16 %v9474, %v9466
    %v10363 = vpack.c.b16 %v9475, %v9467
    %v10364 = vpack.c.b16 %v9484, %v9476
    %v10365 = vpack.c.b16 %v9485, %v9477
    %v10366 = vpack.c.b16 %v9486, %v9478
    %v10367 = vpack.c.b16 %v9487, %v9479
    %v10368 = vpack.c.b16 %v9488, %v9480
    %v10369 = vpack.c.b16 %v9489, %v9481
    %v10370 = vpack.c.b16 %v9490, %v9482
    %v10371 = vpack.c.b16 %v9491, %v9483
    %v10372 = vpack.c.b16 %v9500, %v9492
    %v10373 = vpack.c.b16 %v9501, %v9493
    %v10374 = vpack.c.b16 %v9502, %v9494
    %v10375 = vpack.c.b16 %v9503, %v9495
    %v10376 = vpack.c.b16 %v9504, %v9496
    %v10377 = vpack.c.b16 %v9505, %v9497
    %v10378 = vpack.c.b16 %v9506, %v9498
    %v10379 = vpack.c.b16 %v9507, %v9499
    %v10380 = vpack.c.b16 %v9516, %v9508
    %v10381 = vpack.c.b16 %v9517, %v9509
    %v10382 = vpack.c.b16 %v9518, %v9510
    %v10383 = vpack.c.b16 %v9519, %v9511
    %v10384 = vpack.c.b16 %v9520, %v9512
    %v10385 = vpack.c.b16 %v9521, %v9513
    %v10386 = vpack.c.b16 %v9522, %v9514
    %v10387 = vpack.c.b16 %v9523, %v9515
    %v10388 = vpack.c.b16 %v9532, %v9524
    %v10389 = vpack.c.b16 %v9533, %v9525
    %v10390 = vpack.c.b16 %v9534, %v9526
    %v10391 = vpack.c.b16 %v9535, %v9527
    %v10392 = vpack.c.b16 %v9536, %v9528
    %v10393 = vpack.c.b16 %v9537, %v9529
    %v10394 = vpack.c.b16 %v9538, %v9530
    %v10395 = vpack.c.b16 %v9539, %v9531
    %v10396 = vpack.c.b16 %v9548, %v9540
    %v10397 = vpack.c.b16 %v9549, %v9541
    %v10398 = vpack.c.b16 %v9550, %v9542
    %v10399 = vpack.c.b16 %v9551, %v9543
    %v10400 = vpack.c.b16 %v9552, %v9544
    %v10401 = vpack.c.b16 %v9553, %v9545
    %v10402 = vpack.c.b16 %v9554, %v9546
    %v10403 = vpack.c.b16 %v9555, %v9547
    %v10404 = vpack.c.b16 %v9564, %v9556
    %v10405 = vpack.c.b16 %v9565, %v9557
    %v10406 = vpack.c.b16 %v9566, %v9558
    %v10407 = vpack.c.b16 %v9567, %v9559
    %v10408 = vpack.c.b16 %v9568, %v9560
    %v10409 = vpack.c.b16 %v9569, %v9561
    %v10410 = vpack.c.b16 %v9570, %v9562
    %v10411 = vpack.c.b16 %v9571, %v9563
    %v10412 = vpack.c.b16 %v9580, %v9572
    %v10413 = vpack.c.b16 %v9581, %v9573
    %v10414 = vpack.c.b16 %v9582, %v9574
    %v10415 = vpack.c.b16 %v9583, %v9575
    %v10416 = vpack.c.b16 %v9584, %v9576
    %v10417 = vpack.c.b16 %v9585, %v9577
    %v10418 = vpack.c.b16 %v9586, %v9578
    %v10419 = vpack.c.b16 %v9587, %v9579
    %v10420 = vpack.c.b16 %v9596, %v9588
    %v10421 = vpack.c.b16 %v9597, %v9589
    %v10422 = vpack.c.b16 %v9598, %v9590
    %v10423 = vpack.c.b16 %v9599, %v9591
    %v10424 = vpack.c.b16 %v9600, %v9592
    %v10425 = vpack.c.b16 %v9601, %v9593
    %v10426 = vpack.c.b16 %v9602, %v9594
    %v10427 = vpack.c.b16 %v9603, %v9595
    %v10428 = vpack.c.b16 %v9612, %v9604
    %v10429 = vpack.c.b16 %v9613, %v9605
    %v10430 = vpack.c.b16 %v9614, %v9606
    %v10431 = vpack.c.b16 %v9615, %v9607
    %v10432 = vpack.c.b16 %v9616, %v9608
    %v10433 = vpack.c.b16 %v9617, %v9609
    %v10434 = vpack.c.b16 %v9618, %v9610
    %v10435 = vpack.c.b16 %v9619, %v9611
    %v10436 = vpack.c.b16 %v9628, %v9620
    %v10437 = vpack.c.b16 %v9629, %v9621
    %v10438 = vpack.c.b16 %v9630, %v9622
    %v10439 = vpack.c.b16 %v9631, %v9623
    %v10440 = vpack.c.b16 %v9632, %v9624
    %v10441 = vpack.c.b16 %v9633, %v9625
    %v10442 = vpack.c.b16 %v9634, %v9626
    %v10443 = vpack.c.b16 %v9635, %v9627
    %v10444 = vpack.c.b16 %v9644, %v9636
    %v10445 = vpack.c.b16 %v9645, %v9637
    %v10446 = vpack.c.b16 %v9646, %v9638
    %v10447 = vpack.c.b16 %v9647, %v9639
    %v10448 = vpack.c.b16 %v9648, %v9640
    %v10449 = vpack.c.b16 %v9649, %v9641
    %v10450 = vpack.c.b16 %v9650, %v9642
    %v10451 = vpack.c.b16 %v9651, %v9643
    %v10452 = vpack.c.b16 %v9660, %v9652
    %v10453 = vpack.c.b16 %v9661, %v9653
    %v10454 = vpack.c.b16 %v9662, %v9654
    %v10455 = vpack.c.b16 %v9663, %v9655
    %v10456 = vpack.c.b16 %v9664, %v9656
    %v10457 = vpack.c.b16 %v9665, %v9657
    %v10458 = vpack.c.b16 %v9666, %v9658
    %v10459 = vpack.c.b16 %v9667, %v9659
    %v10460 = vpack.c.b16 %v9676, %v9668
    %v10461 = vpack.c.b16 %v9677, %v9669
    %v10462 = vpack.c.b16 %v9678, %v9670
    %v10463 = vpack.c.b16 %v9679, %v9671
    %v10464 = vpack.c.b16 %v9680, %v9672
    %v10465 = vpack.c.b16 %v9681, %v9673
    %v10466 = vpack.c.b16 %v9682, %v9674
    %v10467 = vpack.c.b16 %v9683, %v9675
    %v10468 = vpack.c.b16 %v9692, %v9684
    %v10469 = vpack.c.b16 %v9693, %v9685
    %v10470 = vpack.c.b16 %v9694, %v9686
    %v10471 = vpack.c.b16 %v9695, %v9687
    %v10472 = vpack.c.b16 %v9696, %v9688
    %v10473 = vpack.c.b16 %v9697, %v9689
    %v10474 = vpack.c.b16 %v9698, %v9690
    %v10475 = vpack.c.b16 %v9699, %v9691
    %v10476 = vpack.c.b16 %v9708, %v9700
    %v10477 = vpack.c.b16 %v9709, %v9701
    %v10478 = vpack.c.b16 %v9710, %v9702
    %v10479 = vpack.c.b16 %v9711, %v9703
    %v10480 = vpack.c.b16 %v9712, %v9704
    %v10481 = vpack.c.b16 %v9713, %v9705
    %v10482 = vpack.c.b16 %v9714, %v9706
    %v10483 = vpack.c.b16 %v9715, %v9707
    %11252 = vmatpush.bf16.msra.mxu0 %v9772
    %11253 = vmatpush.bf16.msra.mxu0 %v9764
    %11254 = vmatpush.bf16.msra.mxu0 %v9756
    %11255 = vmatpush.bf16.msra.mxu0 %v9748
    %11256 = vmatpush.bf16.msra.mxu0 %v9740
    %11257 = vmatpush.bf16.msra.mxu0 %v9732
    %11258 = vmatpush.bf16.msra.mxu0 %v9724
    %11259 = vmatpush.bf16.msra.mxu0 %v9716
    %11260 = vmatmul.bf16.gmra.mxu0 %v7388
    %v11261 = vpop.f32.mrf.mxu0
    %v11262 = vadd.f32 %v6007, %v11261
    %v11263 = vpop.f32.mrf.mxu0
    %11264 = vdwg.mxu0
    %11265 = vmatpush.bf16.msra.mxu0 %v9836
    %11266 = vmatpush.bf16.msra.mxu0 %v9828
    %11267 = vmatpush.bf16.msra.mxu0 %v9820
    %11268 = vmatpush.bf16.msra.mxu0 %v9812
    %11269 = vmatpush.bf16.msra.mxu0 %v9804
    %11270 = vmatpush.bf16.msra.mxu0 %v9796
    %11271 = vmatpush.bf16.msra.mxu0 %v9788
    %11272 = vmatpush.bf16.msra.mxu0 %v9780
    %11273 = vmatmul.bf16.gmra.mxu0 %v7389
    %v11274 = vpop.f32.mrf.mxu0
    %v11275 = vadd.f32 %v11262, %v11274
    %v11276 = vpop.f32.mrf.mxu0
    %11277 = vdwg.mxu0
    %11278 = vmatpush.bf16.msra.mxu0 %v9900
    %11279 = vmatpush.bf16.msra.mxu0 %v9892
    %11280 = vmatpush.bf16.msra.mxu0 %v9884
    %11281 = vmatpush.bf16.msra.mxu0 %v9876
    %11282 = vmatpush.bf16.msra.mxu0 %v9868
    %11283 = vmatpush.bf16.msra.mxu0 %v9860
    %11284 = vmatpush.bf16.msra.mxu0 %v9852
    %11285 = vmatpush.bf16.msra.mxu0 %v9844
    %11286 = vmatmul.bf16.gmra.mxu0 %v7390
    %v11287 = vpop.f32.mrf.mxu0
    %v11288 = vadd.f32 %v11275, %v11287
    %v11289 = vpop.f32.mrf.mxu0
    %11290 = vdwg.mxu0
    %11291 = vmatpush.bf16.msra.mxu0 %v9964
    %11292 = vmatpush.bf16.msra.mxu0 %v9956
    %11293 = vmatpush.bf16.msra.mxu0 %v9948
    %11294 = vmatpush.bf16.msra.mxu0 %v9940
    %11295 = vmatpush.bf16.msra.mxu0 %v9932
    %11296 = vmatpush.bf16.msra.mxu0 %v9924
    %11297 = vmatpush.bf16.msra.mxu0 %v9916
    %11298 = vmatpush.bf16.msra.mxu0 %v9908
    %11299 = vmatmul.bf16.gmra.mxu0 %v7391
    %v11300 = vpop.f32.mrf.mxu0
    %v11301 = vadd.f32 %v11288, %v11300
    %v11302 = vpop.f32.mrf.mxu0
    %11303 = vdwg.mxu0
    %11304 = vmatpush.bf16.msra.mxu0 %v10028
    %11305 = vmatpush.bf16.msra.mxu0 %v10020
    %11306 = vmatpush.bf16.msra.mxu0 %v10012
    %11307 = vmatpush.bf16.msra.mxu0 %v10004
    %11308 = vmatpush.bf16.msra.mxu0 %v9996
    %11309 = vmatpush.bf16.msra.mxu0 %v9988
    %11310 = vmatpush.bf16.msra.mxu0 %v9980
    %11311 = vmatpush.bf16.msra.mxu0 %v9972
    %11312 = vmatmul.bf16.gmra.mxu0 %v7392
    %v11313 = vpop.f32.mrf.mxu0
    %v11314 = vadd.f32 %v11301, %v11313
    %v11315 = vpop.f32.mrf.mxu0
    %11316 = vdwg.mxu0
    %11317 = vmatpush.bf16.msra.mxu0 %v10092
    %11318 = vmatpush.bf16.msra.mxu0 %v10084
    %11319 = vmatpush.bf16.msra.mxu0 %v10076
    %11320 = vmatpush.bf16.msra.mxu0 %v10068
    %11321 = vmatpush.bf16.msra.mxu0 %v10060
    %11322 = vmatpush.bf16.msra.mxu0 %v10052
    %11323 = vmatpush.bf16.msra.mxu0 %v10044
    %11324 = vmatpush.bf16.msra.mxu0 %v10036
    %11325 = vmatmul.bf16.gmra.mxu0 %v7393
    %v11326 = vpop.f32.mrf.mxu0
    %v11327 = vadd.f32 %v11314, %v11326
    %v11328 = vpop.f32.mrf.mxu0
    %11329 = vdwg.mxu0
    %11330 = vmatpush.bf16.msra.mxu0 %v10156
    %11331 = vmatpush.bf16.msra.mxu0 %v10148
    %11332 = vmatpush.bf16.msra.mxu0 %v10140
    %11333 = vmatpush.bf16.msra.mxu0 %v10132
    %11334 = vmatpush.bf16.msra.mxu0 %v10124
    %11335 = vmatpush.bf16.msra.mxu0 %v10116
    %11336 = vmatpush.bf16.msra.mxu0 %v10108
    %11337 = vmatpush.bf16.msra.mxu0 %v10100
    %11338 = vmatmul.bf16.gmra.mxu0 %v7394
    %v11339 = vpop.f32.mrf.mxu0
    %v11340 = vadd.f32 %v11327, %v11339
    %v11341 = vpop.f32.mrf.mxu0
    %11342 = vdwg.mxu0
    %11343 = vmatpush.bf16.msra.mxu0 %v10220
    %11344 = vmatpush.bf16.msra.mxu0 %v10212
    %11345 = vmatpush.bf16.msra.mxu0 %v10204
    %11346 = vmatpush.bf16.msra.mxu0 %v10196
    %11347 = vmatpush.bf16.msra.mxu0 %v10188
    %11348 = vmatpush.bf16.msra.mxu0 %v10180
    %11349 = vmatpush.bf16.msra.mxu0 %v10172
    %11350 = vmatpush.bf16.msra.mxu0 %v10164
    %11351 = vmatmul.bf16.gmra.mxu0 %v7395
    %v11352 = vpop.f32.mrf.mxu0
    %v11353 = vadd.f32 %v11340, %v11352
    %v11354 = vpop.f32.mrf.mxu0
    %11355 = vdwg.mxu0
    %11356 = vmatpush.bf16.msra.mxu0 %v10284
    %11357 = vmatpush.bf16.msra.mxu0 %v10276
    %11358 = vmatpush.bf16.msra.mxu0 %v10268
    %11359 = vmatpush.bf16.msra.mxu0 %v10260
    %11360 = vmatpush.bf16.msra.mxu0 %v10252
    %11361 = vmatpush.bf16.msra.mxu0 %v10244
    %11362 = vmatpush.bf16.msra.mxu0 %v10236
    %11363 = vmatpush.bf16.msra.mxu0 %v10228
    %11364 = vmatmul.bf16.gmra.mxu0 %v7396
    %v11365 = vpop.f32.mrf.mxu0
    %v11366 = vadd.f32 %v11353, %v11365
    %v11367 = vpop.f32.mrf.mxu0
    %11368 = vdwg.mxu0
    %11369 = vmatpush.bf16.msra.mxu0 %v10348
    %11370 = vmatpush.bf16.msra.mxu0 %v10340
    %11371 = vmatpush.bf16.msra.mxu0 %v10332
    %11372 = vmatpush.bf16.msra.mxu0 %v10324
    %11373 = vmatpush.bf16.msra.mxu0 %v10316
    %11374 = vmatpush.bf16.msra.mxu0 %v10308
    %11375 = vmatpush.bf16.msra.mxu0 %v10300
    %11376 = vmatpush.bf16.msra.mxu0 %v10292
    %11377 = vmatmul.bf16.gmra.mxu0 %v7397
    %v11378 = vpop.f32.mrf.mxu0
    %v11379 = vadd.f32 %v11366, %v11378
    %v11380 = vpop.f32.mrf.mxu0
    %11381 = vdwg.mxu0
    %11382 = vmatpush.bf16.msra.mxu0 %v10412
    %11383 = vmatpush.bf16.msra.mxu0 %v10404
    %11384 = vmatpush.bf16.msra.mxu0 %v10396
    %11385 = vmatpush.bf16.msra.mxu0 %v10388
    %11386 = vmatpush.bf16.msra.mxu0 %v10380
    %11387 = vmatpush.bf16.msra.mxu0 %v10372
    %11388 = vmatpush.bf16.msra.mxu0 %v10364
    %11389 = vmatpush.bf16.msra.mxu0 %v10356
    %11390 = vmatmul.bf16.gmra.mxu0 %v7398
    %v11391 = vpop.f32.mrf.mxu0
    %v11392 = vadd.f32 %v11379, %v11391
    %v11393 = vpop.f32.mrf.mxu0
    %11394 = vdwg.mxu0
    %11395 = vmatpush.bf16.msra.mxu0 %v10476
    %11396 = vmatpush.bf16.msra.mxu0 %v10468
    %11397 = vmatpush.bf16.msra.mxu0 %v10460
    %11398 = vmatpush.bf16.msra.mxu0 %v10452
    %11399 = vmatpush.bf16.msra.mxu0 %v10444
    %11400 = vmatpush.bf16.msra.mxu0 %v10436
    %11401 = vmatpush.bf16.msra.mxu0 %v10428
    %11402 = vmatpush.bf16.msra.mxu0 %v10420
    %11403 = vmatmul.bf16.gmra.mxu0 %v7399
    %v11404 = vpop.f32.mrf.mxu0
    %v11405 = vadd.f32 %v11392, %v11404
    %v11406 = vpop.f32.mrf.mxu0
    %11407 = vdwg.mxu0
    %11408 = vmatpush.bf16.msra.mxu0 %v9773
    %11409 = vmatpush.bf16.msra.mxu0 %v9765
    %11410 = vmatpush.bf16.msra.mxu0 %v9757
    %11411 = vmatpush.bf16.msra.mxu0 %v9749
    %11412 = vmatpush.bf16.msra.mxu0 %v9741
    %11413 = vmatpush.bf16.msra.mxu0 %v9733
    %11414 = vmatpush.bf16.msra.mxu0 %v9725
    %11415 = vmatpush.bf16.msra.mxu0 %v9717
    %11416 = vmatmul.bf16.gmra.mxu0 %v7388
    %v11417 = vpop.f32.mrf.mxu0
    %v11418 = vadd.f32 %v6008, %v11417
    %v11419 = vpop.f32.mrf.mxu0
    %11420 = vdwg.mxu0
    %11421 = vmatpush.bf16.msra.mxu0 %v9837
    %11422 = vmatpush.bf16.msra.mxu0 %v9829
    %11423 = vmatpush.bf16.msra.mxu0 %v9821
    %11424 = vmatpush.bf16.msra.mxu0 %v9813
    %11425 = vmatpush.bf16.msra.mxu0 %v9805
    %11426 = vmatpush.bf16.msra.mxu0 %v9797
    %11427 = vmatpush.bf16.msra.mxu0 %v9789
    %11428 = vmatpush.bf16.msra.mxu0 %v9781
    %11429 = vmatmul.bf16.gmra.mxu0 %v7389
    %v11430 = vpop.f32.mrf.mxu0
    %v11431 = vadd.f32 %v11418, %v11430
    %v11432 = vpop.f32.mrf.mxu0
    %11433 = vdwg.mxu0
    %11434 = vmatpush.bf16.msra.mxu0 %v9901
    %11435 = vmatpush.bf16.msra.mxu0 %v9893
    %11436 = vmatpush.bf16.msra.mxu0 %v9885
    %11437 = vmatpush.bf16.msra.mxu0 %v9877
    %11438 = vmatpush.bf16.msra.mxu0 %v9869
    %11439 = vmatpush.bf16.msra.mxu0 %v9861
    %11440 = vmatpush.bf16.msra.mxu0 %v9853
    %11441 = vmatpush.bf16.msra.mxu0 %v9845
    %11442 = vmatmul.bf16.gmra.mxu0 %v7390
    %v11443 = vpop.f32.mrf.mxu0
    %v11444 = vadd.f32 %v11431, %v11443
    %v11445 = vpop.f32.mrf.mxu0
    %11446 = vdwg.mxu0
    %11447 = vmatpush.bf16.msra.mxu0 %v9965
    %11448 = vmatpush.bf16.msra.mxu0 %v9957
    %11449 = vmatpush.bf16.msra.mxu0 %v9949
    %11450 = vmatpush.bf16.msra.mxu0 %v9941
    %11451 = vmatpush.bf16.msra.mxu0 %v9933
    %11452 = vmatpush.bf16.msra.mxu0 %v9925
    %11453 = vmatpush.bf16.msra.mxu0 %v9917
    %11454 = vmatpush.bf16.msra.mxu0 %v9909
    %11455 = vmatmul.bf16.gmra.mxu0 %v7391
    %v11456 = vpop.f32.mrf.mxu0
    %v11457 = vadd.f32 %v11444, %v11456
    %v11458 = vpop.f32.mrf.mxu0
    %11459 = vdwg.mxu0
    %11460 = vmatpush.bf16.msra.mxu0 %v10029
    %11461 = vmatpush.bf16.msra.mxu0 %v10021
    %11462 = vmatpush.bf16.msra.mxu0 %v10013
    %11463 = vmatpush.bf16.msra.mxu0 %v10005
    %11464 = vmatpush.bf16.msra.mxu0 %v9997
    %11465 = vmatpush.bf16.msra.mxu0 %v9989
    %11466 = vmatpush.bf16.msra.mxu0 %v9981
    %11467 = vmatpush.bf16.msra.mxu0 %v9973
    %11468 = vmatmul.bf16.gmra.mxu0 %v7392
    %v11469 = vpop.f32.mrf.mxu0
    %v11470 = vadd.f32 %v11457, %v11469
    %v11471 = vpop.f32.mrf.mxu0
    %11472 = vdwg.mxu0
    %11473 = vmatpush.bf16.msra.mxu0 %v10093
    %11474 = vmatpush.bf16.msra.mxu0 %v10085
    %11475 = vmatpush.bf16.msra.mxu0 %v10077
    %11476 = vmatpush.bf16.msra.mxu0 %v10069
    %11477 = vmatpush.bf16.msra.mxu0 %v10061
    %11478 = vmatpush.bf16.msra.mxu0 %v10053
    %11479 = vmatpush.bf16.msra.mxu0 %v10045
    %11480 = vmatpush.bf16.msra.mxu0 %v10037
    %11481 = vmatmul.bf16.gmra.mxu0 %v7393
    %v11482 = vpop.f32.mrf.mxu0
    %v11483 = vadd.f32 %v11470, %v11482
    %v11484 = vpop.f32.mrf.mxu0
    %11485 = vdwg.mxu0
    %11486 = vmatpush.bf16.msra.mxu0 %v10157
    %11487 = vmatpush.bf16.msra.mxu0 %v10149
    %11488 = vmatpush.bf16.msra.mxu0 %v10141
    %11489 = vmatpush.bf16.msra.mxu0 %v10133
    %11490 = vmatpush.bf16.msra.mxu0 %v10125
    %11491 = vmatpush.bf16.msra.mxu0 %v10117
    %11492 = vmatpush.bf16.msra.mxu0 %v10109
    %11493 = vmatpush.bf16.msra.mxu0 %v10101
    %11494 = vmatmul.bf16.gmra.mxu0 %v7394
    %v11495 = vpop.f32.mrf.mxu0
    %v11496 = vadd.f32 %v11483, %v11495
    %v11497 = vpop.f32.mrf.mxu0
    %11498 = vdwg.mxu0
    %11499 = vmatpush.bf16.msra.mxu0 %v10221
    %11500 = vmatpush.bf16.msra.mxu0 %v10213
    %11501 = vmatpush.bf16.msra.mxu0 %v10205
    %11502 = vmatpush.bf16.msra.mxu0 %v10197
    %11503 = vmatpush.bf16.msra.mxu0 %v10189
    %11504 = vmatpush.bf16.msra.mxu0 %v10181
    %11505 = vmatpush.bf16.msra.mxu0 %v10173
    %11506 = vmatpush.bf16.msra.mxu0 %v10165
    %11507 = vmatmul.bf16.gmra.mxu0 %v7395
    %v11508 = vpop.f32.mrf.mxu0
    %v11509 = vadd.f32 %v11496, %v11508
    %v11510 = vpop.f32.mrf.mxu0
    %11511 = vdwg.mxu0
    %11512 = vmatpush.bf16.msra.mxu0 %v10285
    %11513 = vmatpush.bf16.msra.mxu0 %v10277
    %11514 = vmatpush.bf16.msra.mxu0 %v10269
    %11515 = vmatpush.bf16.msra.mxu0 %v10261
    %11516 = vmatpush.bf16.msra.mxu0 %v10253
    %11517 = vmatpush.bf16.msra.mxu0 %v10245
    %11518 = vmatpush.bf16.msra.mxu0 %v10237
    %11519 = vmatpush.bf16.msra.mxu0 %v10229
    %11520 = vmatmul.bf16.gmra.mxu0 %v7396
    %v11521 = vpop.f32.mrf.mxu0
    %v11522 = vadd.f32 %v11509, %v11521
    %v11523 = vpop.f32.mrf.mxu0
    %11524 = vdwg.mxu0
    %11525 = vmatpush.bf16.msra.mxu0 %v10349
    %11526 = vmatpush.bf16.msra.mxu0 %v10341
    %11527 = vmatpush.bf16.msra.mxu0 %v10333
    %11528 = vmatpush.bf16.msra.mxu0 %v10325
    %11529 = vmatpush.bf16.msra.mxu0 %v10317
    %11530 = vmatpush.bf16.msra.mxu0 %v10309
    %11531 = vmatpush.bf16.msra.mxu0 %v10301
    %11532 = vmatpush.bf16.msra.mxu0 %v10293
    %11533 = vmatmul.bf16.gmra.mxu0 %v7397
    %v11534 = vpop.f32.mrf.mxu0
    %v11535 = vadd.f32 %v11522, %v11534
    %v11536 = vpop.f32.mrf.mxu0
    %11537 = vdwg.mxu0
    %11538 = vmatpush.bf16.msra.mxu0 %v10413
    %11539 = vmatpush.bf16.msra.mxu0 %v10405
    %11540 = vmatpush.bf16.msra.mxu0 %v10397
    %11541 = vmatpush.bf16.msra.mxu0 %v10389
    %11542 = vmatpush.bf16.msra.mxu0 %v10381
    %11543 = vmatpush.bf16.msra.mxu0 %v10373
    %11544 = vmatpush.bf16.msra.mxu0 %v10365
    %11545 = vmatpush.bf16.msra.mxu0 %v10357
    %11546 = vmatmul.bf16.gmra.mxu0 %v7398
    %v11547 = vpop.f32.mrf.mxu0
    %v11548 = vadd.f32 %v11535, %v11547
    %v11549 = vpop.f32.mrf.mxu0
    %11550 = vdwg.mxu0
    %11551 = vmatpush.bf16.msra.mxu0 %v10477
    %11552 = vmatpush.bf16.msra.mxu0 %v10469
    %11553 = vmatpush.bf16.msra.mxu0 %v10461
    %11554 = vmatpush.bf16.msra.mxu0 %v10453
    %11555 = vmatpush.bf16.msra.mxu0 %v10445
    %11556 = vmatpush.bf16.msra.mxu0 %v10437
    %11557 = vmatpush.bf16.msra.mxu0 %v10429
    %11558 = vmatpush.bf16.msra.mxu0 %v10421
    %11559 = vmatmul.bf16.gmra.mxu0 %v7399
    %v11560 = vpop.f32.mrf.mxu0
    %v11561 = vadd.f32 %v11548, %v11560
    %v11562 = vpop.f32.mrf.mxu0
    %11563 = vdwg.mxu0
    %11564 = vmatpush.bf16.msra.mxu0 %v9774
    %11565 = vmatpush.bf16.msra.mxu0 %v9766
    %11566 = vmatpush.bf16.msra.mxu0 %v9758
    %11567 = vmatpush.bf16.msra.mxu0 %v9750
    %11568 = vmatpush.bf16.msra.mxu0 %v9742
    %11569 = vmatpush.bf16.msra.mxu0 %v9734
    %11570 = vmatpush.bf16.msra.mxu0 %v9726
    %11571 = vmatpush.bf16.msra.mxu0 %v9718
    %11572 = vmatmul.bf16.gmra.mxu0 %v7388
    %v11573 = vpop.f32.mrf.mxu0
    %v11574 = vadd.f32 %v6009, %v11573
    %v11575 = vpop.f32.mrf.mxu0
    %11576 = vdwg.mxu0
    %11577 = vmatpush.bf16.msra.mxu0 %v9838
    %11578 = vmatpush.bf16.msra.mxu0 %v9830
    %11579 = vmatpush.bf16.msra.mxu0 %v9822
    %11580 = vmatpush.bf16.msra.mxu0 %v9814
    %11581 = vmatpush.bf16.msra.mxu0 %v9806
    %11582 = vmatpush.bf16.msra.mxu0 %v9798
    %11583 = vmatpush.bf16.msra.mxu0 %v9790
    %11584 = vmatpush.bf16.msra.mxu0 %v9782
    %11585 = vmatmul.bf16.gmra.mxu0 %v7389
    %v11586 = vpop.f32.mrf.mxu0
    %v11587 = vadd.f32 %v11574, %v11586
    %v11588 = vpop.f32.mrf.mxu0
    %11589 = vdwg.mxu0
    %11590 = vmatpush.bf16.msra.mxu0 %v9902
    %11591 = vmatpush.bf16.msra.mxu0 %v9894
    %11592 = vmatpush.bf16.msra.mxu0 %v9886
    %11593 = vmatpush.bf16.msra.mxu0 %v9878
    %11594 = vmatpush.bf16.msra.mxu0 %v9870
    %11595 = vmatpush.bf16.msra.mxu0 %v9862
    %11596 = vmatpush.bf16.msra.mxu0 %v9854
    %11597 = vmatpush.bf16.msra.mxu0 %v9846
    %11598 = vmatmul.bf16.gmra.mxu0 %v7390
    %v11599 = vpop.f32.mrf.mxu0
    %v11600 = vadd.f32 %v11587, %v11599
    %v11601 = vpop.f32.mrf.mxu0
    %11602 = vdwg.mxu0
    %11603 = vmatpush.bf16.msra.mxu0 %v9966
    %11604 = vmatpush.bf16.msra.mxu0 %v9958
    %11605 = vmatpush.bf16.msra.mxu0 %v9950
    %11606 = vmatpush.bf16.msra.mxu0 %v9942
    %11607 = vmatpush.bf16.msra.mxu0 %v9934
    %11608 = vmatpush.bf16.msra.mxu0 %v9926
    %11609 = vmatpush.bf16.msra.mxu0 %v9918
    %11610 = vmatpush.bf16.msra.mxu0 %v9910
    %11611 = vmatmul.bf16.gmra.mxu0 %v7391
    %v11612 = vpop.f32.mrf.mxu0
    %v11613 = vadd.f32 %v11600, %v11612
    %v11614 = vpop.f32.mrf.mxu0
    %11615 = vdwg.mxu0
    %11616 = vmatpush.bf16.msra.mxu0 %v10030
    %11617 = vmatpush.bf16.msra.mxu0 %v10022
    %11618 = vmatpush.bf16.msra.mxu0 %v10014
    %11619 = vmatpush.bf16.msra.mxu0 %v10006
    %11620 = vmatpush.bf16.msra.mxu0 %v9998
    %11621 = vmatpush.bf16.msra.mxu0 %v9990
    %11622 = vmatpush.bf16.msra.mxu0 %v9982
    %11623 = vmatpush.bf16.msra.mxu0 %v9974
    %11624 = vmatmul.bf16.gmra.mxu0 %v7392
    %v11625 = vpop.f32.mrf.mxu0
    %v11626 = vadd.f32 %v11613, %v11625
    %v11627 = vpop.f32.mrf.mxu0
    %11628 = vdwg.mxu0
    %11629 = vmatpush.bf16.msra.mxu0 %v10094
    %11630 = vmatpush.bf16.msra.mxu0 %v10086
    %11631 = vmatpush.bf16.msra.mxu0 %v10078
    %11632 = vmatpush.bf16.msra.mxu0 %v10070
    %11633 = vmatpush.bf16.msra.mxu0 %v10062
    %11634 = vmatpush.bf16.msra.mxu0 %v10054
    %11635 = vmatpush.bf16.msra.mxu0 %v10046
    %11636 = vmatpush.bf16.msra.mxu0 %v10038
    %11637 = vmatmul.bf16.gmra.mxu0 %v7393
    %v11638 = vpop.f32.mrf.mxu0
    %v11639 = vadd.f32 %v11626, %v11638
    %v11640 = vpop.f32.mrf.mxu0
    %11641 = vdwg.mxu0
    %11642 = vmatpush.bf16.msra.mxu0 %v10158
    %11643 = vmatpush.bf16.msra.mxu0 %v10150
    %11644 = vmatpush.bf16.msra.mxu0 %v10142
    %11645 = vmatpush.bf16.msra.mxu0 %v10134
    %11646 = vmatpush.bf16.msra.mxu0 %v10126
    %11647 = vmatpush.bf16.msra.mxu0 %v10118
    %11648 = vmatpush.bf16.msra.mxu0 %v10110
    %11649 = vmatpush.bf16.msra.mxu0 %v10102
    %11650 = vmatmul.bf16.gmra.mxu0 %v7394
    %v11651 = vpop.f32.mrf.mxu0
    %v11652 = vadd.f32 %v11639, %v11651
    %v11653 = vpop.f32.mrf.mxu0
    %11654 = vdwg.mxu0
    %11655 = vmatpush.bf16.msra.mxu0 %v10222
    %11656 = vmatpush.bf16.msra.mxu0 %v10214
    %11657 = vmatpush.bf16.msra.mxu0 %v10206
    %11658 = vmatpush.bf16.msra.mxu0 %v10198
    %11659 = vmatpush.bf16.msra.mxu0 %v10190
    %11660 = vmatpush.bf16.msra.mxu0 %v10182
    %11661 = vmatpush.bf16.msra.mxu0 %v10174
    %11662 = vmatpush.bf16.msra.mxu0 %v10166
    %11663 = vmatmul.bf16.gmra.mxu0 %v7395
    %v11664 = vpop.f32.mrf.mxu0
    %v11665 = vadd.f32 %v11652, %v11664
    %v11666 = vpop.f32.mrf.mxu0
    %11667 = vdwg.mxu0
    %11668 = vmatpush.bf16.msra.mxu0 %v10286
    %11669 = vmatpush.bf16.msra.mxu0 %v10278
    %11670 = vmatpush.bf16.msra.mxu0 %v10270
    %11671 = vmatpush.bf16.msra.mxu0 %v10262
    %11672 = vmatpush.bf16.msra.mxu0 %v10254
    %11673 = vmatpush.bf16.msra.mxu0 %v10246
    %11674 = vmatpush.bf16.msra.mxu0 %v10238
    %11675 = vmatpush.bf16.msra.mxu0 %v10230
    %11676 = vmatmul.bf16.gmra.mxu0 %v7396
    %v11677 = vpop.f32.mrf.mxu0
    %v11678 = vadd.f32 %v11665, %v11677
    %v11679 = vpop.f32.mrf.mxu0
    %11680 = vdwg.mxu0
    %11681 = vmatpush.bf16.msra.mxu0 %v10350
    %11682 = vmatpush.bf16.msra.mxu0 %v10342
    %11683 = vmatpush.bf16.msra.mxu0 %v10334
    %11684 = vmatpush.bf16.msra.mxu0 %v10326
    %11685 = vmatpush.bf16.msra.mxu0 %v10318
    %11686 = vmatpush.bf16.msra.mxu0 %v10310
    %11687 = vmatpush.bf16.msra.mxu0 %v10302
    %11688 = vmatpush.bf16.msra.mxu0 %v10294
    %11689 = vmatmul.bf16.gmra.mxu0 %v7397
    %v11690 = vpop.f32.mrf.mxu0
    %v11691 = vadd.f32 %v11678, %v11690
    %v11692 = vpop.f32.mrf.mxu0
    %11693 = vdwg.mxu0
    %11694 = vmatpush.bf16.msra.mxu0 %v10414
    %11695 = vmatpush.bf16.msra.mxu0 %v10406
    %11696 = vmatpush.bf16.msra.mxu0 %v10398
    %11697 = vmatpush.bf16.msra.mxu0 %v10390
    %11698 = vmatpush.bf16.msra.mxu0 %v10382
    %11699 = vmatpush.bf16.msra.mxu0 %v10374
    %11700 = vmatpush.bf16.msra.mxu0 %v10366
    %11701 = vmatpush.bf16.msra.mxu0 %v10358
    %11702 = vmatmul.bf16.gmra.mxu0 %v7398
    %v11703 = vpop.f32.mrf.mxu0
    %v11704 = vadd.f32 %v11691, %v11703
    %v11705 = vpop.f32.mrf.mxu0
    %11706 = vdwg.mxu0
    %11707 = vmatpush.bf16.msra.mxu0 %v10478
    %11708 = vmatpush.bf16.msra.mxu0 %v10470
    %11709 = vmatpush.bf16.msra.mxu0 %v10462
    %11710 = vmatpush.bf16.msra.mxu0 %v10454
    %11711 = vmatpush.bf16.msra.mxu0 %v10446
    %11712 = vmatpush.bf16.msra.mxu0 %v10438
    %11713 = vmatpush.bf16.msra.mxu0 %v10430
    %11714 = vmatpush.bf16.msra.mxu0 %v10422
    %11715 = vmatmul.bf16.gmra.mxu0 %v7399
    %v11716 = vpop.f32.mrf.mxu0
    %v11717 = vadd.f32 %v11704, %v11716
    %v11718 = vpop.f32.mrf.mxu0
    %11719 = vdwg.mxu0
    %11720 = vmatpush.bf16.msra.mxu0 %v9775
    %11721 = vmatpush.bf16.msra.mxu0 %v9767
    %11722 = vmatpush.bf16.msra.mxu0 %v9759
    %11723 = vmatpush.bf16.msra.mxu0 %v9751
    %11724 = vmatpush.bf16.msra.mxu0 %v9743
    %11725 = vmatpush.bf16.msra.mxu0 %v9735
    %11726 = vmatpush.bf16.msra.mxu0 %v9727
    %11727 = vmatpush.bf16.msra.mxu0 %v9719
    %11728 = vmatmul.bf16.gmra.mxu0 %v7388
    %v11729 = vpop.f32.mrf.mxu0
    %v11730 = vadd.f32 %v6010, %v11729
    %v11731 = vpop.f32.mrf.mxu0
    %11732 = vdwg.mxu0
    %11733 = vmatpush.bf16.msra.mxu0 %v9839
    %11734 = vmatpush.bf16.msra.mxu0 %v9831
    %11735 = vmatpush.bf16.msra.mxu0 %v9823
    %11736 = vmatpush.bf16.msra.mxu0 %v9815
    %11737 = vmatpush.bf16.msra.mxu0 %v9807
    %11738 = vmatpush.bf16.msra.mxu0 %v9799
    %11739 = vmatpush.bf16.msra.mxu0 %v9791
    %11740 = vmatpush.bf16.msra.mxu0 %v9783
    %11741 = vmatmul.bf16.gmra.mxu0 %v7389
    %v11742 = vpop.f32.mrf.mxu0
    %v11743 = vadd.f32 %v11730, %v11742
    %v11744 = vpop.f32.mrf.mxu0
    %11745 = vdwg.mxu0
    %11746 = vmatpush.bf16.msra.mxu0 %v9903
    %11747 = vmatpush.bf16.msra.mxu0 %v9895
    %11748 = vmatpush.bf16.msra.mxu0 %v9887
    %11749 = vmatpush.bf16.msra.mxu0 %v9879
    %11750 = vmatpush.bf16.msra.mxu0 %v9871
    %11751 = vmatpush.bf16.msra.mxu0 %v9863
    %11752 = vmatpush.bf16.msra.mxu0 %v9855
    %11753 = vmatpush.bf16.msra.mxu0 %v9847
    %11754 = vmatmul.bf16.gmra.mxu0 %v7390
    %v11755 = vpop.f32.mrf.mxu0
    %v11756 = vadd.f32 %v11743, %v11755
    %v11757 = vpop.f32.mrf.mxu0
    %11758 = vdwg.mxu0
    %11759 = vmatpush.bf16.msra.mxu0 %v9967
    %11760 = vmatpush.bf16.msra.mxu0 %v9959
    %11761 = vmatpush.bf16.msra.mxu0 %v9951
    %11762 = vmatpush.bf16.msra.mxu0 %v9943
    %11763 = vmatpush.bf16.msra.mxu0 %v9935
    %11764 = vmatpush.bf16.msra.mxu0 %v9927
    %11765 = vmatpush.bf16.msra.mxu0 %v9919
    %11766 = vmatpush.bf16.msra.mxu0 %v9911
    %11767 = vmatmul.bf16.gmra.mxu0 %v7391
    %v11768 = vpop.f32.mrf.mxu0
    %v11769 = vadd.f32 %v11756, %v11768
    %v11770 = vpop.f32.mrf.mxu0
    %11771 = vdwg.mxu0
    %11772 = vmatpush.bf16.msra.mxu0 %v10031
    %11773 = vmatpush.bf16.msra.mxu0 %v10023
    %11774 = vmatpush.bf16.msra.mxu0 %v10015
    %11775 = vmatpush.bf16.msra.mxu0 %v10007
    %11776 = vmatpush.bf16.msra.mxu0 %v9999
    %11777 = vmatpush.bf16.msra.mxu0 %v9991
    %11778 = vmatpush.bf16.msra.mxu0 %v9983
    %11779 = vmatpush.bf16.msra.mxu0 %v9975
    %11780 = vmatmul.bf16.gmra.mxu0 %v7392
    %v11781 = vpop.f32.mrf.mxu0
    %v11782 = vadd.f32 %v11769, %v11781
    %v11783 = vpop.f32.mrf.mxu0
    %11784 = vdwg.mxu0
    %11785 = vmatpush.bf16.msra.mxu0 %v10095
    %11786 = vmatpush.bf16.msra.mxu0 %v10087
    %11787 = vmatpush.bf16.msra.mxu0 %v10079
    %11788 = vmatpush.bf16.msra.mxu0 %v10071
    %11789 = vmatpush.bf16.msra.mxu0 %v10063
    %11790 = vmatpush.bf16.msra.mxu0 %v10055
    %11791 = vmatpush.bf16.msra.mxu0 %v10047
    %11792 = vmatpush.bf16.msra.mxu0 %v10039
    %11793 = vmatmul.bf16.gmra.mxu0 %v7393
    %v11794 = vpop.f32.mrf.mxu0
    %v11795 = vadd.f32 %v11782, %v11794
    %v11796 = vpop.f32.mrf.mxu0
    %11797 = vdwg.mxu0
    %11798 = vmatpush.bf16.msra.mxu0 %v10159
    %11799 = vmatpush.bf16.msra.mxu0 %v10151
    %11800 = vmatpush.bf16.msra.mxu0 %v10143
    %11801 = vmatpush.bf16.msra.mxu0 %v10135
    %11802 = vmatpush.bf16.msra.mxu0 %v10127
    %11803 = vmatpush.bf16.msra.mxu0 %v10119
    %11804 = vmatpush.bf16.msra.mxu0 %v10111
    %11805 = vmatpush.bf16.msra.mxu0 %v10103
    %11806 = vmatmul.bf16.gmra.mxu0 %v7394
    %v11807 = vpop.f32.mrf.mxu0
    %v11808 = vadd.f32 %v11795, %v11807
    %v11809 = vpop.f32.mrf.mxu0
    %11810 = vdwg.mxu0
    %11811 = vmatpush.bf16.msra.mxu0 %v10223
    %11812 = vmatpush.bf16.msra.mxu0 %v10215
    %11813 = vmatpush.bf16.msra.mxu0 %v10207
    %11814 = vmatpush.bf16.msra.mxu0 %v10199
    %11815 = vmatpush.bf16.msra.mxu0 %v10191
    %11816 = vmatpush.bf16.msra.mxu0 %v10183
    %11817 = vmatpush.bf16.msra.mxu0 %v10175
    %11818 = vmatpush.bf16.msra.mxu0 %v10167
    %11819 = vmatmul.bf16.gmra.mxu0 %v7395
    %v11820 = vpop.f32.mrf.mxu0
    %v11821 = vadd.f32 %v11808, %v11820
    %v11822 = vpop.f32.mrf.mxu0
    %11823 = vdwg.mxu0
    %11824 = vmatpush.bf16.msra.mxu0 %v10287
    %11825 = vmatpush.bf16.msra.mxu0 %v10279
    %11826 = vmatpush.bf16.msra.mxu0 %v10271
    %11827 = vmatpush.bf16.msra.mxu0 %v10263
    %11828 = vmatpush.bf16.msra.mxu0 %v10255
    %11829 = vmatpush.bf16.msra.mxu0 %v10247
    %11830 = vmatpush.bf16.msra.mxu0 %v10239
    %11831 = vmatpush.bf16.msra.mxu0 %v10231
    %11832 = vmatmul.bf16.gmra.mxu0 %v7396
    %v11833 = vpop.f32.mrf.mxu0
    %v11834 = vadd.f32 %v11821, %v11833
    %v11835 = vpop.f32.mrf.mxu0
    %11836 = vdwg.mxu0
    %11837 = vmatpush.bf16.msra.mxu0 %v10351
    %11838 = vmatpush.bf16.msra.mxu0 %v10343
    %11839 = vmatpush.bf16.msra.mxu0 %v10335
    %11840 = vmatpush.bf16.msra.mxu0 %v10327
    %11841 = vmatpush.bf16.msra.mxu0 %v10319
    %11842 = vmatpush.bf16.msra.mxu0 %v10311
    %11843 = vmatpush.bf16.msra.mxu0 %v10303
    %11844 = vmatpush.bf16.msra.mxu0 %v10295
    %11845 = vmatmul.bf16.gmra.mxu0 %v7397
    %v11846 = vpop.f32.mrf.mxu0
    %v11847 = vadd.f32 %v11834, %v11846
    %v11848 = vpop.f32.mrf.mxu0
    %11849 = vdwg.mxu0
    %11850 = vmatpush.bf16.msra.mxu0 %v10415
    %11851 = vmatpush.bf16.msra.mxu0 %v10407
    %11852 = vmatpush.bf16.msra.mxu0 %v10399
    %11853 = vmatpush.bf16.msra.mxu0 %v10391
    %11854 = vmatpush.bf16.msra.mxu0 %v10383
    %11855 = vmatpush.bf16.msra.mxu0 %v10375
    %11856 = vmatpush.bf16.msra.mxu0 %v10367
    %11857 = vmatpush.bf16.msra.mxu0 %v10359
    %11858 = vmatmul.bf16.gmra.mxu0 %v7398
    %v11859 = vpop.f32.mrf.mxu0
    %v11860 = vadd.f32 %v11847, %v11859
    %v11861 = vpop.f32.mrf.mxu0
    %11862 = vdwg.mxu0
    %11863 = vmatpush.bf16.msra.mxu0 %v10479
    %11864 = vmatpush.bf16.msra.mxu0 %v10471
    %11865 = vmatpush.bf16.msra.mxu0 %v10463
    %11866 = vmatpush.bf16.msra.mxu0 %v10455
    %11867 = vmatpush.bf16.msra.mxu0 %v10447
    %11868 = vmatpush.bf16.msra.mxu0 %v10439
    %11869 = vmatpush.bf16.msra.mxu0 %v10431
    %11870 = vmatpush.bf16.msra.mxu0 %v10423
    %11871 = vmatmul.bf16.gmra.mxu0 %v7399
    %v11872 = vpop.f32.mrf.mxu0
    %v11873 = vadd.f32 %v11860, %v11872
    %v11874 = vpop.f32.mrf.mxu0
    %11875 = vdwg.mxu0
    %11876 = vmatpush.bf16.msra.mxu0 %v9776
    %11877 = vmatpush.bf16.msra.mxu0 %v9768
    %11878 = vmatpush.bf16.msra.mxu0 %v9760
    %11879 = vmatpush.bf16.msra.mxu0 %v9752
    %11880 = vmatpush.bf16.msra.mxu0 %v9744
    %11881 = vmatpush.bf16.msra.mxu0 %v9736
    %11882 = vmatpush.bf16.msra.mxu0 %v9728
    %11883 = vmatpush.bf16.msra.mxu0 %v9720
    %11884 = vmatmul.bf16.gmra.mxu0 %v7388
    %v11885 = vpop.f32.mrf.mxu0
    %v11886 = vadd.f32 %v6011, %v11885
    %v11887 = vpop.f32.mrf.mxu0
    %11888 = vdwg.mxu0
    %11889 = vmatpush.bf16.msra.mxu0 %v9840
    %11890 = vmatpush.bf16.msra.mxu0 %v9832
    %11891 = vmatpush.bf16.msra.mxu0 %v9824
    %11892 = vmatpush.bf16.msra.mxu0 %v9816
    %11893 = vmatpush.bf16.msra.mxu0 %v9808
    %11894 = vmatpush.bf16.msra.mxu0 %v9800
    %11895 = vmatpush.bf16.msra.mxu0 %v9792
    %11896 = vmatpush.bf16.msra.mxu0 %v9784
    %11897 = vmatmul.bf16.gmra.mxu0 %v7389
    %v11898 = vpop.f32.mrf.mxu0
    %v11899 = vadd.f32 %v11886, %v11898
    %v11900 = vpop.f32.mrf.mxu0
    %11901 = vdwg.mxu0
    %11902 = vmatpush.bf16.msra.mxu0 %v9904
    %11903 = vmatpush.bf16.msra.mxu0 %v9896
    %11904 = vmatpush.bf16.msra.mxu0 %v9888
    %11905 = vmatpush.bf16.msra.mxu0 %v9880
    %11906 = vmatpush.bf16.msra.mxu0 %v9872
    %11907 = vmatpush.bf16.msra.mxu0 %v9864
    %11908 = vmatpush.bf16.msra.mxu0 %v9856
    %11909 = vmatpush.bf16.msra.mxu0 %v9848
    %11910 = vmatmul.bf16.gmra.mxu0 %v7390
    %v11911 = vpop.f32.mrf.mxu0
    %v11912 = vadd.f32 %v11899, %v11911
    %v11913 = vpop.f32.mrf.mxu0
    %11914 = vdwg.mxu0
    %11915 = vmatpush.bf16.msra.mxu0 %v9968
    %11916 = vmatpush.bf16.msra.mxu0 %v9960
    %11917 = vmatpush.bf16.msra.mxu0 %v9952
    %11918 = vmatpush.bf16.msra.mxu0 %v9944
    %11919 = vmatpush.bf16.msra.mxu0 %v9936
    %11920 = vmatpush.bf16.msra.mxu0 %v9928
    %11921 = vmatpush.bf16.msra.mxu0 %v9920
    %11922 = vmatpush.bf16.msra.mxu0 %v9912
    %11923 = vmatmul.bf16.gmra.mxu0 %v7391
    %v11924 = vpop.f32.mrf.mxu0
    %v11925 = vadd.f32 %v11912, %v11924
    %v11926 = vpop.f32.mrf.mxu0
    %11927 = vdwg.mxu0
    %11928 = vmatpush.bf16.msra.mxu0 %v10032
    %11929 = vmatpush.bf16.msra.mxu0 %v10024
    %11930 = vmatpush.bf16.msra.mxu0 %v10016
    %11931 = vmatpush.bf16.msra.mxu0 %v10008
    %11932 = vmatpush.bf16.msra.mxu0 %v10000
    %11933 = vmatpush.bf16.msra.mxu0 %v9992
    %11934 = vmatpush.bf16.msra.mxu0 %v9984
    %11935 = vmatpush.bf16.msra.mxu0 %v9976
    %11936 = vmatmul.bf16.gmra.mxu0 %v7392
    %v11937 = vpop.f32.mrf.mxu0
    %v11938 = vadd.f32 %v11925, %v11937
    %v11939 = vpop.f32.mrf.mxu0
    %11940 = vdwg.mxu0
    %11941 = vmatpush.bf16.msra.mxu0 %v10096
    %11942 = vmatpush.bf16.msra.mxu0 %v10088
    %11943 = vmatpush.bf16.msra.mxu0 %v10080
    %11944 = vmatpush.bf16.msra.mxu0 %v10072
    %11945 = vmatpush.bf16.msra.mxu0 %v10064
    %11946 = vmatpush.bf16.msra.mxu0 %v10056
    %11947 = vmatpush.bf16.msra.mxu0 %v10048
    %11948 = vmatpush.bf16.msra.mxu0 %v10040
    %11949 = vmatmul.bf16.gmra.mxu0 %v7393
    %v11950 = vpop.f32.mrf.mxu0
    %v11951 = vadd.f32 %v11938, %v11950
    %v11952 = vpop.f32.mrf.mxu0
    %11953 = vdwg.mxu0
    %11954 = vmatpush.bf16.msra.mxu0 %v10160
    %11955 = vmatpush.bf16.msra.mxu0 %v10152
    %11956 = vmatpush.bf16.msra.mxu0 %v10144
    %11957 = vmatpush.bf16.msra.mxu0 %v10136
    %11958 = vmatpush.bf16.msra.mxu0 %v10128
    %11959 = vmatpush.bf16.msra.mxu0 %v10120
    %11960 = vmatpush.bf16.msra.mxu0 %v10112
    %11961 = vmatpush.bf16.msra.mxu0 %v10104
    %11962 = vmatmul.bf16.gmra.mxu0 %v7394
    %v11963 = vpop.f32.mrf.mxu0
    %v11964 = vadd.f32 %v11951, %v11963
    %v11965 = vpop.f32.mrf.mxu0
    %11966 = vdwg.mxu0
    %11967 = vmatpush.bf16.msra.mxu0 %v10224
    %11968 = vmatpush.bf16.msra.mxu0 %v10216
    %11969 = vmatpush.bf16.msra.mxu0 %v10208
    %11970 = vmatpush.bf16.msra.mxu0 %v10200
    %11971 = vmatpush.bf16.msra.mxu0 %v10192
    %11972 = vmatpush.bf16.msra.mxu0 %v10184
    %11973 = vmatpush.bf16.msra.mxu0 %v10176
    %11974 = vmatpush.bf16.msra.mxu0 %v10168
    %11975 = vmatmul.bf16.gmra.mxu0 %v7395
    %v11976 = vpop.f32.mrf.mxu0
    %v11977 = vadd.f32 %v11964, %v11976
    %v11978 = vpop.f32.mrf.mxu0
    %11979 = vdwg.mxu0
    %11980 = vmatpush.bf16.msra.mxu0 %v10288
    %11981 = vmatpush.bf16.msra.mxu0 %v10280
    %11982 = vmatpush.bf16.msra.mxu0 %v10272
    %11983 = vmatpush.bf16.msra.mxu0 %v10264
    %11984 = vmatpush.bf16.msra.mxu0 %v10256
    %11985 = vmatpush.bf16.msra.mxu0 %v10248
    %11986 = vmatpush.bf16.msra.mxu0 %v10240
    %11987 = vmatpush.bf16.msra.mxu0 %v10232
    %11988 = vmatmul.bf16.gmra.mxu0 %v7396
    %v11989 = vpop.f32.mrf.mxu0
    %v11990 = vadd.f32 %v11977, %v11989
    %v11991 = vpop.f32.mrf.mxu0
    %11992 = vdwg.mxu0
    %11993 = vmatpush.bf16.msra.mxu0 %v10352
    %11994 = vmatpush.bf16.msra.mxu0 %v10344
    %11995 = vmatpush.bf16.msra.mxu0 %v10336
    %11996 = vmatpush.bf16.msra.mxu0 %v10328
    %11997 = vmatpush.bf16.msra.mxu0 %v10320
    %11998 = vmatpush.bf16.msra.mxu0 %v10312
    %11999 = vmatpush.bf16.msra.mxu0 %v10304
    %12000 = vmatpush.bf16.msra.mxu0 %v10296
    %12001 = vmatmul.bf16.gmra.mxu0 %v7397
    %v12002 = vpop.f32.mrf.mxu0
    %v12003 = vadd.f32 %v11990, %v12002
    %v12004 = vpop.f32.mrf.mxu0
    %12005 = vdwg.mxu0
    %12006 = vmatpush.bf16.msra.mxu0 %v10416
    %12007 = vmatpush.bf16.msra.mxu0 %v10408
    %12008 = vmatpush.bf16.msra.mxu0 %v10400
    %12009 = vmatpush.bf16.msra.mxu0 %v10392
    %12010 = vmatpush.bf16.msra.mxu0 %v10384
    %12011 = vmatpush.bf16.msra.mxu0 %v10376
    %12012 = vmatpush.bf16.msra.mxu0 %v10368
    %12013 = vmatpush.bf16.msra.mxu0 %v10360
    %12014 = vmatmul.bf16.gmra.mxu0 %v7398
    %v12015 = vpop.f32.mrf.mxu0
    %v12016 = vadd.f32 %v12003, %v12015
    %v12017 = vpop.f32.mrf.mxu0
    %12018 = vdwg.mxu0
    %12019 = vmatpush.bf16.msra.mxu0 %v10480
    %12020 = vmatpush.bf16.msra.mxu0 %v10472
    %12021 = vmatpush.bf16.msra.mxu0 %v10464
    %12022 = vmatpush.bf16.msra.mxu0 %v10456
    %12023 = vmatpush.bf16.msra.mxu0 %v10448
    %12024 = vmatpush.bf16.msra.mxu0 %v10440
    %12025 = vmatpush.bf16.msra.mxu0 %v10432
    %12026 = vmatpush.bf16.msra.mxu0 %v10424
    %12027 = vmatmul.bf16.gmra.mxu0 %v7399
    %v12028 = vpop.f32.mrf.mxu0
    %v12029 = vadd.f32 %v12016, %v12028
    %v12030 = vpop.f32.mrf.mxu0
    %12031 = vdwg.mxu0
    %12032 = vmatpush.bf16.msra.mxu0 %v9777
    %12033 = vmatpush.bf16.msra.mxu0 %v9769
    %12034 = vmatpush.bf16.msra.mxu0 %v9761
    %12035 = vmatpush.bf16.msra.mxu0 %v9753
    %12036 = vmatpush.bf16.msra.mxu0 %v9745
    %12037 = vmatpush.bf16.msra.mxu0 %v9737
    %12038 = vmatpush.bf16.msra.mxu0 %v9729
    %12039 = vmatpush.bf16.msra.mxu0 %v9721
    %12040 = vmatmul.bf16.gmra.mxu0 %v7388
    %v12041 = vpop.f32.mrf.mxu0
    %v12042 = vadd.f32 %v6012, %v12041
    %v12043 = vpop.f32.mrf.mxu0
    %12044 = vdwg.mxu0
    %12045 = vmatpush.bf16.msra.mxu0 %v9841
    %12046 = vmatpush.bf16.msra.mxu0 %v9833
    %12047 = vmatpush.bf16.msra.mxu0 %v9825
    %12048 = vmatpush.bf16.msra.mxu0 %v9817
    %12049 = vmatpush.bf16.msra.mxu0 %v9809
    %12050 = vmatpush.bf16.msra.mxu0 %v9801
    %12051 = vmatpush.bf16.msra.mxu0 %v9793
    %12052 = vmatpush.bf16.msra.mxu0 %v9785
    %12053 = vmatmul.bf16.gmra.mxu0 %v7389
    %v12054 = vpop.f32.mrf.mxu0
    %v12055 = vadd.f32 %v12042, %v12054
    %v12056 = vpop.f32.mrf.mxu0
    %12057 = vdwg.mxu0
    %12058 = vmatpush.bf16.msra.mxu0 %v9905
    %12059 = vmatpush.bf16.msra.mxu0 %v9897
    %12060 = vmatpush.bf16.msra.mxu0 %v9889
    %12061 = vmatpush.bf16.msra.mxu0 %v9881
    %12062 = vmatpush.bf16.msra.mxu0 %v9873
    %12063 = vmatpush.bf16.msra.mxu0 %v9865
    %12064 = vmatpush.bf16.msra.mxu0 %v9857
    %12065 = vmatpush.bf16.msra.mxu0 %v9849
    %12066 = vmatmul.bf16.gmra.mxu0 %v7390
    %v12067 = vpop.f32.mrf.mxu0
    %v12068 = vadd.f32 %v12055, %v12067
    %v12069 = vpop.f32.mrf.mxu0
    %12070 = vdwg.mxu0
    %12071 = vmatpush.bf16.msra.mxu0 %v9969
    %12072 = vmatpush.bf16.msra.mxu0 %v9961
    %12073 = vmatpush.bf16.msra.mxu0 %v9953
    %12074 = vmatpush.bf16.msra.mxu0 %v9945
    %12075 = vmatpush.bf16.msra.mxu0 %v9937
    %12076 = vmatpush.bf16.msra.mxu0 %v9929
    %12077 = vmatpush.bf16.msra.mxu0 %v9921
    %12078 = vmatpush.bf16.msra.mxu0 %v9913
    %12079 = vmatmul.bf16.gmra.mxu0 %v7391
    %v12080 = vpop.f32.mrf.mxu0
    %v12081 = vadd.f32 %v12068, %v12080
    %v12082 = vpop.f32.mrf.mxu0
    %12083 = vdwg.mxu0
    %12084 = vmatpush.bf16.msra.mxu0 %v10033
    %12085 = vmatpush.bf16.msra.mxu0 %v10025
    %12086 = vmatpush.bf16.msra.mxu0 %v10017
    %12087 = vmatpush.bf16.msra.mxu0 %v10009
    %12088 = vmatpush.bf16.msra.mxu0 %v10001
    %12089 = vmatpush.bf16.msra.mxu0 %v9993
    %12090 = vmatpush.bf16.msra.mxu0 %v9985
    %12091 = vmatpush.bf16.msra.mxu0 %v9977
    %12092 = vmatmul.bf16.gmra.mxu0 %v7392
    %v12093 = vpop.f32.mrf.mxu0
    %v12094 = vadd.f32 %v12081, %v12093
    %v12095 = vpop.f32.mrf.mxu0
    %12096 = vdwg.mxu0
    %12097 = vmatpush.bf16.msra.mxu0 %v10097
    %12098 = vmatpush.bf16.msra.mxu0 %v10089
    %12099 = vmatpush.bf16.msra.mxu0 %v10081
    %12100 = vmatpush.bf16.msra.mxu0 %v10073
    %12101 = vmatpush.bf16.msra.mxu0 %v10065
    %12102 = vmatpush.bf16.msra.mxu0 %v10057
    %12103 = vmatpush.bf16.msra.mxu0 %v10049
    %12104 = vmatpush.bf16.msra.mxu0 %v10041
    %12105 = vmatmul.bf16.gmra.mxu0 %v7393
    %v12106 = vpop.f32.mrf.mxu0
    %v12107 = vadd.f32 %v12094, %v12106
    %v12108 = vpop.f32.mrf.mxu0
    %12109 = vdwg.mxu0
    %12110 = vmatpush.bf16.msra.mxu0 %v10161
    %12111 = vmatpush.bf16.msra.mxu0 %v10153
    %12112 = vmatpush.bf16.msra.mxu0 %v10145
    %12113 = vmatpush.bf16.msra.mxu0 %v10137
    %12114 = vmatpush.bf16.msra.mxu0 %v10129
    %12115 = vmatpush.bf16.msra.mxu0 %v10121
    %12116 = vmatpush.bf16.msra.mxu0 %v10113
    %12117 = vmatpush.bf16.msra.mxu0 %v10105
    %12118 = vmatmul.bf16.gmra.mxu0 %v7394
    %v12119 = vpop.f32.mrf.mxu0
    %v12120 = vadd.f32 %v12107, %v12119
    %v12121 = vpop.f32.mrf.mxu0
    %12122 = vdwg.mxu0
    %12123 = vmatpush.bf16.msra.mxu0 %v10225
    %12124 = vmatpush.bf16.msra.mxu0 %v10217
    %12125 = vmatpush.bf16.msra.mxu0 %v10209
    %12126 = vmatpush.bf16.msra.mxu0 %v10201
    %12127 = vmatpush.bf16.msra.mxu0 %v10193
    %12128 = vmatpush.bf16.msra.mxu0 %v10185
    %12129 = vmatpush.bf16.msra.mxu0 %v10177
    %12130 = vmatpush.bf16.msra.mxu0 %v10169
    %12131 = vmatmul.bf16.gmra.mxu0 %v7395
    %v12132 = vpop.f32.mrf.mxu0
    %v12133 = vadd.f32 %v12120, %v12132
    %v12134 = vpop.f32.mrf.mxu0
    %12135 = vdwg.mxu0
    %12136 = vmatpush.bf16.msra.mxu0 %v10289
    %12137 = vmatpush.bf16.msra.mxu0 %v10281
    %12138 = vmatpush.bf16.msra.mxu0 %v10273
    %12139 = vmatpush.bf16.msra.mxu0 %v10265
    %12140 = vmatpush.bf16.msra.mxu0 %v10257
    %12141 = vmatpush.bf16.msra.mxu0 %v10249
    %12142 = vmatpush.bf16.msra.mxu0 %v10241
    %12143 = vmatpush.bf16.msra.mxu0 %v10233
    %12144 = vmatmul.bf16.gmra.mxu0 %v7396
    %v12145 = vpop.f32.mrf.mxu0
    %v12146 = vadd.f32 %v12133, %v12145
    %v12147 = vpop.f32.mrf.mxu0
    %12148 = vdwg.mxu0
    %12149 = vmatpush.bf16.msra.mxu0 %v10353
    %12150 = vmatpush.bf16.msra.mxu0 %v10345
    %12151 = vmatpush.bf16.msra.mxu0 %v10337
    %12152 = vmatpush.bf16.msra.mxu0 %v10329
    %12153 = vmatpush.bf16.msra.mxu0 %v10321
    %12154 = vmatpush.bf16.msra.mxu0 %v10313
    %12155 = vmatpush.bf16.msra.mxu0 %v10305
    %12156 = vmatpush.bf16.msra.mxu0 %v10297
    %12157 = vmatmul.bf16.gmra.mxu0 %v7397
    %v12158 = vpop.f32.mrf.mxu0
    %v12159 = vadd.f32 %v12146, %v12158
    %v12160 = vpop.f32.mrf.mxu0
    %12161 = vdwg.mxu0
    %12162 = vmatpush.bf16.msra.mxu0 %v10417
    %12163 = vmatpush.bf16.msra.mxu0 %v10409
    %12164 = vmatpush.bf16.msra.mxu0 %v10401
    %12165 = vmatpush.bf16.msra.mxu0 %v10393
    %12166 = vmatpush.bf16.msra.mxu0 %v10385
    %12167 = vmatpush.bf16.msra.mxu0 %v10377
    %12168 = vmatpush.bf16.msra.mxu0 %v10369
    %12169 = vmatpush.bf16.msra.mxu0 %v10361
    %12170 = vmatmul.bf16.gmra.mxu0 %v7398
    %v12171 = vpop.f32.mrf.mxu0
    %v12172 = vadd.f32 %v12159, %v12171
    %v12173 = vpop.f32.mrf.mxu0
    %12174 = vdwg.mxu0
    %12175 = vmatpush.bf16.msra.mxu0 %v10481
    %12176 = vmatpush.bf16.msra.mxu0 %v10473
    %12177 = vmatpush.bf16.msra.mxu0 %v10465
    %12178 = vmatpush.bf16.msra.mxu0 %v10457
    %12179 = vmatpush.bf16.msra.mxu0 %v10449
    %12180 = vmatpush.bf16.msra.mxu0 %v10441
    %12181 = vmatpush.bf16.msra.mxu0 %v10433
    %12182 = vmatpush.bf16.msra.mxu0 %v10425
    %12183 = vmatmul.bf16.gmra.mxu0 %v7399
    %v12184 = vpop.f32.mrf.mxu0
    %v12185 = vadd.f32 %v12172, %v12184
    %v12186 = vpop.f32.mrf.mxu0
    %12187 = vdwg.mxu0
    %12188 = vmatpush.bf16.msra.mxu0 %v9778
    %12189 = vmatpush.bf16.msra.mxu0 %v9770
    %12190 = vmatpush.bf16.msra.mxu0 %v9762
    %12191 = vmatpush.bf16.msra.mxu0 %v9754
    %12192 = vmatpush.bf16.msra.mxu0 %v9746
    %12193 = vmatpush.bf16.msra.mxu0 %v9738
    %12194 = vmatpush.bf16.msra.mxu0 %v9730
    %12195 = vmatpush.bf16.msra.mxu0 %v9722
    %12196 = vmatmul.bf16.gmra.mxu0 %v7388
    %v12197 = vpop.f32.mrf.mxu0
    %v12198 = vadd.f32 %v6013, %v12197
    %v12199 = vpop.f32.mrf.mxu0
    %12200 = vdwg.mxu0
    %12201 = vmatpush.bf16.msra.mxu0 %v9842
    %12202 = vmatpush.bf16.msra.mxu0 %v9834
    %12203 = vmatpush.bf16.msra.mxu0 %v9826
    %12204 = vmatpush.bf16.msra.mxu0 %v9818
    %12205 = vmatpush.bf16.msra.mxu0 %v9810
    %12206 = vmatpush.bf16.msra.mxu0 %v9802
    %12207 = vmatpush.bf16.msra.mxu0 %v9794
    %12208 = vmatpush.bf16.msra.mxu0 %v9786
    %12209 = vmatmul.bf16.gmra.mxu0 %v7389
    %v12210 = vpop.f32.mrf.mxu0
    %v12211 = vadd.f32 %v12198, %v12210
    %v12212 = vpop.f32.mrf.mxu0
    %12213 = vdwg.mxu0
    %12214 = vmatpush.bf16.msra.mxu0 %v9906
    %12215 = vmatpush.bf16.msra.mxu0 %v9898
    %12216 = vmatpush.bf16.msra.mxu0 %v9890
    %12217 = vmatpush.bf16.msra.mxu0 %v9882
    %12218 = vmatpush.bf16.msra.mxu0 %v9874
    %12219 = vmatpush.bf16.msra.mxu0 %v9866
    %12220 = vmatpush.bf16.msra.mxu0 %v9858
    %12221 = vmatpush.bf16.msra.mxu0 %v9850
    %12222 = vmatmul.bf16.gmra.mxu0 %v7390
    %v12223 = vpop.f32.mrf.mxu0
    %v12224 = vadd.f32 %v12211, %v12223
    %v12225 = vpop.f32.mrf.mxu0
    %12226 = vdwg.mxu0
    %12227 = vmatpush.bf16.msra.mxu0 %v9970
    %12228 = vmatpush.bf16.msra.mxu0 %v9962
    %12229 = vmatpush.bf16.msra.mxu0 %v9954
    %12230 = vmatpush.bf16.msra.mxu0 %v9946
    %12231 = vmatpush.bf16.msra.mxu0 %v9938
    %12232 = vmatpush.bf16.msra.mxu0 %v9930
    %12233 = vmatpush.bf16.msra.mxu0 %v9922
    %12234 = vmatpush.bf16.msra.mxu0 %v9914
    %12235 = vmatmul.bf16.gmra.mxu0 %v7391
    %v12236 = vpop.f32.mrf.mxu0
    %v12237 = vadd.f32 %v12224, %v12236
    %v12238 = vpop.f32.mrf.mxu0
    %12239 = vdwg.mxu0
    %12240 = vmatpush.bf16.msra.mxu0 %v10034
    %12241 = vmatpush.bf16.msra.mxu0 %v10026
    %12242 = vmatpush.bf16.msra.mxu0 %v10018
    %12243 = vmatpush.bf16.msra.mxu0 %v10010
    %12244 = vmatpush.bf16.msra.mxu0 %v10002
    %12245 = vmatpush.bf16.msra.mxu0 %v9994
    %12246 = vmatpush.bf16.msra.mxu0 %v9986
    %12247 = vmatpush.bf16.msra.mxu0 %v9978
    %12248 = vmatmul.bf16.gmra.mxu0 %v7392
    %v12249 = vpop.f32.mrf.mxu0
    %v12250 = vadd.f32 %v12237, %v12249
    %v12251 = vpop.f32.mrf.mxu0
    %12252 = vdwg.mxu0
    %12253 = vmatpush.bf16.msra.mxu0 %v10098
    %12254 = vmatpush.bf16.msra.mxu0 %v10090
    %12255 = vmatpush.bf16.msra.mxu0 %v10082
    %12256 = vmatpush.bf16.msra.mxu0 %v10074
    %12257 = vmatpush.bf16.msra.mxu0 %v10066
    %12258 = vmatpush.bf16.msra.mxu0 %v10058
    %12259 = vmatpush.bf16.msra.mxu0 %v10050
    %12260 = vmatpush.bf16.msra.mxu0 %v10042
    %12261 = vmatmul.bf16.gmra.mxu0 %v7393
    %v12262 = vpop.f32.mrf.mxu0
    %v12263 = vadd.f32 %v12250, %v12262
    %v12264 = vpop.f32.mrf.mxu0
    %12265 = vdwg.mxu0
    %12266 = vmatpush.bf16.msra.mxu0 %v10162
    %12267 = vmatpush.bf16.msra.mxu0 %v10154
    %12268 = vmatpush.bf16.msra.mxu0 %v10146
    %12269 = vmatpush.bf16.msra.mxu0 %v10138
    %12270 = vmatpush.bf16.msra.mxu0 %v10130
    %12271 = vmatpush.bf16.msra.mxu0 %v10122
    %12272 = vmatpush.bf16.msra.mxu0 %v10114
    %12273 = vmatpush.bf16.msra.mxu0 %v10106
    %12274 = vmatmul.bf16.gmra.mxu0 %v7394
    %v12275 = vpop.f32.mrf.mxu0
    %v12276 = vadd.f32 %v12263, %v12275
    %v12277 = vpop.f32.mrf.mxu0
    %12278 = vdwg.mxu0
    %12279 = vmatpush.bf16.msra.mxu0 %v10226
    %12280 = vmatpush.bf16.msra.mxu0 %v10218
    %12281 = vmatpush.bf16.msra.mxu0 %v10210
    %12282 = vmatpush.bf16.msra.mxu0 %v10202
    %12283 = vmatpush.bf16.msra.mxu0 %v10194
    %12284 = vmatpush.bf16.msra.mxu0 %v10186
    %12285 = vmatpush.bf16.msra.mxu0 %v10178
    %12286 = vmatpush.bf16.msra.mxu0 %v10170
    %12287 = vmatmul.bf16.gmra.mxu0 %v7395
    %v12288 = vpop.f32.mrf.mxu0
    %v12289 = vadd.f32 %v12276, %v12288
    %v12290 = vpop.f32.mrf.mxu0
    %12291 = vdwg.mxu0
    %12292 = vmatpush.bf16.msra.mxu0 %v10290
    %12293 = vmatpush.bf16.msra.mxu0 %v10282
    %12294 = vmatpush.bf16.msra.mxu0 %v10274
    %12295 = vmatpush.bf16.msra.mxu0 %v10266
    %12296 = vmatpush.bf16.msra.mxu0 %v10258
    %12297 = vmatpush.bf16.msra.mxu0 %v10250
    %12298 = vmatpush.bf16.msra.mxu0 %v10242
    %12299 = vmatpush.bf16.msra.mxu0 %v10234
    %12300 = vmatmul.bf16.gmra.mxu0 %v7396
    %v12301 = vpop.f32.mrf.mxu0
    %v12302 = vadd.f32 %v12289, %v12301
    %v12303 = vpop.f32.mrf.mxu0
    %12304 = vdwg.mxu0
    %12305 = vmatpush.bf16.msra.mxu0 %v10354
    %12306 = vmatpush.bf16.msra.mxu0 %v10346
    %12307 = vmatpush.bf16.msra.mxu0 %v10338
    %12308 = vmatpush.bf16.msra.mxu0 %v10330
    %12309 = vmatpush.bf16.msra.mxu0 %v10322
    %12310 = vmatpush.bf16.msra.mxu0 %v10314
    %12311 = vmatpush.bf16.msra.mxu0 %v10306
    %12312 = vmatpush.bf16.msra.mxu0 %v10298
    %12313 = vmatmul.bf16.gmra.mxu0 %v7397
    %v12314 = vpop.f32.mrf.mxu0
    %v12315 = vadd.f32 %v12302, %v12314
    %v12316 = vpop.f32.mrf.mxu0
    %12317 = vdwg.mxu0
    %12318 = vmatpush.bf16.msra.mxu0 %v10418
    %12319 = vmatpush.bf16.msra.mxu0 %v10410
    %12320 = vmatpush.bf16.msra.mxu0 %v10402
    %12321 = vmatpush.bf16.msra.mxu0 %v10394
    %12322 = vmatpush.bf16.msra.mxu0 %v10386
    %12323 = vmatpush.bf16.msra.mxu0 %v10378
    %12324 = vmatpush.bf16.msra.mxu0 %v10370
    %12325 = vmatpush.bf16.msra.mxu0 %v10362
    %12326 = vmatmul.bf16.gmra.mxu0 %v7398
    %v12327 = vpop.f32.mrf.mxu0
    %v12328 = vadd.f32 %v12315, %v12327
    %v12329 = vpop.f32.mrf.mxu0
    %12330 = vdwg.mxu0
    %12331 = vmatpush.bf16.msra.mxu0 %v10482
    %12332 = vmatpush.bf16.msra.mxu0 %v10474
    %12333 = vmatpush.bf16.msra.mxu0 %v10466
    %12334 = vmatpush.bf16.msra.mxu0 %v10458
    %12335 = vmatpush.bf16.msra.mxu0 %v10450
    %12336 = vmatpush.bf16.msra.mxu0 %v10442
    %12337 = vmatpush.bf16.msra.mxu0 %v10434
    %12338 = vmatpush.bf16.msra.mxu0 %v10426
    %12339 = vmatmul.bf16.gmra.mxu0 %v7399
    %v12340 = vpop.f32.mrf.mxu0
    %v12341 = vadd.f32 %v12328, %v12340
    %v12342 = vpop.f32.mrf.mxu0
    %12343 = vdwg.mxu0
    %12344 = vmatpush.bf16.msra.mxu0 %v9779
    %12345 = vmatpush.bf16.msra.mxu0 %v9771
    %12346 = vmatpush.bf16.msra.mxu0 %v9763
    %12347 = vmatpush.bf16.msra.mxu0 %v9755
    %12348 = vmatpush.bf16.msra.mxu0 %v9747
    %12349 = vmatpush.bf16.msra.mxu0 %v9739
    %12350 = vmatpush.bf16.msra.mxu0 %v9731
    %12351 = vmatpush.bf16.msra.mxu0 %v9723
    %12352 = vmatmul.bf16.gmra.mxu0 %v7388
    %v12353 = vpop.f32.mrf.mxu0
    %v12354 = vadd.f32 %v6014, %v12353
    %v12355 = vpop.f32.mrf.mxu0
    %12356 = vdwg.mxu0
    %12357 = vmatpush.bf16.msra.mxu0 %v9843
    %12358 = vmatpush.bf16.msra.mxu0 %v9835
    %12359 = vmatpush.bf16.msra.mxu0 %v9827
    %12360 = vmatpush.bf16.msra.mxu0 %v9819
    %12361 = vmatpush.bf16.msra.mxu0 %v9811
    %12362 = vmatpush.bf16.msra.mxu0 %v9803
    %12363 = vmatpush.bf16.msra.mxu0 %v9795
    %12364 = vmatpush.bf16.msra.mxu0 %v9787
    %12365 = vmatmul.bf16.gmra.mxu0 %v7389
    %v12366 = vpop.f32.mrf.mxu0
    %v12367 = vadd.f32 %v12354, %v12366
    %v12368 = vpop.f32.mrf.mxu0
    %12369 = vdwg.mxu0
    %12370 = vmatpush.bf16.msra.mxu0 %v9907
    %12371 = vmatpush.bf16.msra.mxu0 %v9899
    %12372 = vmatpush.bf16.msra.mxu0 %v9891
    %12373 = vmatpush.bf16.msra.mxu0 %v9883
    %12374 = vmatpush.bf16.msra.mxu0 %v9875
    %12375 = vmatpush.bf16.msra.mxu0 %v9867
    %12376 = vmatpush.bf16.msra.mxu0 %v9859
    %12377 = vmatpush.bf16.msra.mxu0 %v9851
    %12378 = vmatmul.bf16.gmra.mxu0 %v7390
    %v12379 = vpop.f32.mrf.mxu0
    %v12380 = vadd.f32 %v12367, %v12379
    %v12381 = vpop.f32.mrf.mxu0
    %12382 = vdwg.mxu0
    %12383 = vmatpush.bf16.msra.mxu0 %v9971
    %12384 = vmatpush.bf16.msra.mxu0 %v9963
    %12385 = vmatpush.bf16.msra.mxu0 %v9955
    %12386 = vmatpush.bf16.msra.mxu0 %v9947
    %12387 = vmatpush.bf16.msra.mxu0 %v9939
    %12388 = vmatpush.bf16.msra.mxu0 %v9931
    %12389 = vmatpush.bf16.msra.mxu0 %v9923
    %12390 = vmatpush.bf16.msra.mxu0 %v9915
    %12391 = vmatmul.bf16.gmra.mxu0 %v7391
    %v12392 = vpop.f32.mrf.mxu0
    %v12393 = vadd.f32 %v12380, %v12392
    %v12394 = vpop.f32.mrf.mxu0
    %12395 = vdwg.mxu0
    %12396 = vmatpush.bf16.msra.mxu0 %v10035
    %12397 = vmatpush.bf16.msra.mxu0 %v10027
    %12398 = vmatpush.bf16.msra.mxu0 %v10019
    %12399 = vmatpush.bf16.msra.mxu0 %v10011
    %12400 = vmatpush.bf16.msra.mxu0 %v10003
    %12401 = vmatpush.bf16.msra.mxu0 %v9995
    %12402 = vmatpush.bf16.msra.mxu0 %v9987
    %12403 = vmatpush.bf16.msra.mxu0 %v9979
    %12404 = vmatmul.bf16.gmra.mxu0 %v7392
    %v12405 = vpop.f32.mrf.mxu0
    %v12406 = vadd.f32 %v12393, %v12405
    %v12407 = vpop.f32.mrf.mxu0
    %12408 = vdwg.mxu0
    %12409 = vmatpush.bf16.msra.mxu0 %v10099
    %12410 = vmatpush.bf16.msra.mxu0 %v10091
    %12411 = vmatpush.bf16.msra.mxu0 %v10083
    %12412 = vmatpush.bf16.msra.mxu0 %v10075
    %12413 = vmatpush.bf16.msra.mxu0 %v10067
    %12414 = vmatpush.bf16.msra.mxu0 %v10059
    %12415 = vmatpush.bf16.msra.mxu0 %v10051
    %12416 = vmatpush.bf16.msra.mxu0 %v10043
    %12417 = vmatmul.bf16.gmra.mxu0 %v7393
    %v12418 = vpop.f32.mrf.mxu0
    %v12419 = vadd.f32 %v12406, %v12418
    %v12420 = vpop.f32.mrf.mxu0
    %12421 = vdwg.mxu0
    %12422 = vmatpush.bf16.msra.mxu0 %v10163
    %12423 = vmatpush.bf16.msra.mxu0 %v10155
    %12424 = vmatpush.bf16.msra.mxu0 %v10147
    %12425 = vmatpush.bf16.msra.mxu0 %v10139
    %12426 = vmatpush.bf16.msra.mxu0 %v10131
    %12427 = vmatpush.bf16.msra.mxu0 %v10123
    %12428 = vmatpush.bf16.msra.mxu0 %v10115
    %12429 = vmatpush.bf16.msra.mxu0 %v10107
    %12430 = vmatmul.bf16.gmra.mxu0 %v7394
    %v12431 = vpop.f32.mrf.mxu0
    %v12432 = vadd.f32 %v12419, %v12431
    %v12433 = vpop.f32.mrf.mxu0
    %12434 = vdwg.mxu0
    %12435 = vmatpush.bf16.msra.mxu0 %v10227
    %12436 = vmatpush.bf16.msra.mxu0 %v10219
    %12437 = vmatpush.bf16.msra.mxu0 %v10211
    %12438 = vmatpush.bf16.msra.mxu0 %v10203
    %12439 = vmatpush.bf16.msra.mxu0 %v10195
    %12440 = vmatpush.bf16.msra.mxu0 %v10187
    %12441 = vmatpush.bf16.msra.mxu0 %v10179
    %12442 = vmatpush.bf16.msra.mxu0 %v10171
    %12443 = vmatmul.bf16.gmra.mxu0 %v7395
    %v12444 = vpop.f32.mrf.mxu0
    %v12445 = vadd.f32 %v12432, %v12444
    %v12446 = vpop.f32.mrf.mxu0
    %12447 = vdwg.mxu0
    %12448 = vmatpush.bf16.msra.mxu0 %v10291
    %12449 = vmatpush.bf16.msra.mxu0 %v10283
    %12450 = vmatpush.bf16.msra.mxu0 %v10275
    %12451 = vmatpush.bf16.msra.mxu0 %v10267
    %12452 = vmatpush.bf16.msra.mxu0 %v10259
    %12453 = vmatpush.bf16.msra.mxu0 %v10251
    %12454 = vmatpush.bf16.msra.mxu0 %v10243
    %12455 = vmatpush.bf16.msra.mxu0 %v10235
    %12456 = vmatmul.bf16.gmra.mxu0 %v7396
    %v12457 = vpop.f32.mrf.mxu0
    %v12458 = vadd.f32 %v12445, %v12457
    %v12459 = vpop.f32.mrf.mxu0
    %12460 = vdwg.mxu0
    %12461 = vmatpush.bf16.msra.mxu0 %v10355
    %12462 = vmatpush.bf16.msra.mxu0 %v10347
    %12463 = vmatpush.bf16.msra.mxu0 %v10339
    %12464 = vmatpush.bf16.msra.mxu0 %v10331
    %12465 = vmatpush.bf16.msra.mxu0 %v10323
    %12466 = vmatpush.bf16.msra.mxu0 %v10315
    %12467 = vmatpush.bf16.msra.mxu0 %v10307
    %12468 = vmatpush.bf16.msra.mxu0 %v10299
    %12469 = vmatmul.bf16.gmra.mxu0 %v7397
    %v12470 = vpop.f32.mrf.mxu0
    %v12471 = vadd.f32 %v12458, %v12470
    %v12472 = vpop.f32.mrf.mxu0
    %12473 = vdwg.mxu0
    %12474 = vmatpush.bf16.msra.mxu0 %v10419
    %12475 = vmatpush.bf16.msra.mxu0 %v10411
    %12476 = vmatpush.bf16.msra.mxu0 %v10403
    %12477 = vmatpush.bf16.msra.mxu0 %v10395
    %12478 = vmatpush.bf16.msra.mxu0 %v10387
    %12479 = vmatpush.bf16.msra.mxu0 %v10379
    %12480 = vmatpush.bf16.msra.mxu0 %v10371
    %12481 = vmatpush.bf16.msra.mxu0 %v10363
    %12482 = vmatmul.bf16.gmra.mxu0 %v7398
    %v12483 = vpop.f32.mrf.mxu0
    %v12484 = vadd.f32 %v12471, %v12483
    %v12485 = vpop.f32.mrf.mxu0
    %12486 = vdwg.mxu0
    %12487 = vmatpush.bf16.msra.mxu0 %v10483
    %12488 = vmatpush.bf16.msra.mxu0 %v10475
    %12489 = vmatpush.bf16.msra.mxu0 %v10467
    %12490 = vmatpush.bf16.msra.mxu0 %v10459
    %12491 = vmatpush.bf16.msra.mxu0 %v10451
    %12492 = vmatpush.bf16.msra.mxu0 %v10443
    %12493 = vmatpush.bf16.msra.mxu0 %v10435
    %12494 = vmatpush.bf16.msra.mxu0 %v10427
    %12495 = vmatmul.bf16.gmra.mxu0 %v7399
    %v12496 = vpop.f32.mrf.mxu0
    %v12497 = vadd.f32 %v12484, %v12496
    %v12498 = vpop.f32.mrf.mxu0
    %12499 = vdwg.mxu0
    %v12508 = vrot.slane %v11561, 6
    %v12509 = vrot.slane %v11717, 4
    %v12510 = vrot.slane %v11873, 2
    %v12511 = vrot.slane %v12185, 6
    %v12512 = vrot.slane %v12341, 4
    %v12513 = vrot.slane %v12497, 2
    %vm12514 = vcmask 1041408
    %v12515 = vsel %vm12514, %v11405, %v12508
    %vm12516 = vcmask 1045508
    %v12517 = vsel %vm12516, %v12509, %v12510
    %vm12518 = vcmask 1043456
    %v12519 = vsel %vm12518, %v12515, %v12517
    %v12520 = vsel %vm12514, %v12029, %v12511
    %v12521 = vsel %vm12516, %v12512, %v12513
    %v12522 = vsel %vm12518, %v12520, %v12521
    %12525 = vst [vmem:[#allocation7] sm:$0xff] %v12519
    %12526 = vst [vmem:[#allocation7 + $0x8] sm:$0xff] %v12522
    // Predicated region
    $region22: #{custom_model_forward.1} parent=1 // pred_check
      _
    $region23: #{custom_model_forward.1} parent=1 // pred_check_branch
      %12528 = sbr.rel (0) target = $region25
    $region24: #{custom_model_forward.1} parent=1 // pred_region
      %12530 = vsyncadd [#allocation4], 0
      %s12532 = sshll.u32 [#allocation7], 4
      %s12533 = int_to_ptr.vmem [resolvable:$true] %s12532
      %s12534 = sshll.u32 %s3, 4
      %s12535 = int_to_ptr.hbm [resolvable:$true] %s12534
      %12537 = dma.vmem_to_hbm [thread:$0]  %s12533, 256, %s12535, [#allocation4]
    $region25: #{custom_model_forward.1} parent=1 // pred_fallthru
      _
    // Predicated region
    $region26: #{custom_model_forward.1} parent=1 // pred_check
      _
    $region27: #{custom_model_forward.1} parent=1 // pred_check_branch
      %12539 = sbr.rel (0) target = $region29
    $region28: #{custom_model_forward.1} parent=1 // pred_region
      %12541 = dma.done [#allocation4], 256
    $region29: #{custom_model_forward.1} parent=1 // pred_fallthru
      _
    %12542 = vsyncpa [#allocation3], 1
    %12543 = vsyncpa [#allocation6], 1
    %12544 = vsyncpa [#allocation4], 1

</llo_original>
